<compile_context>
chip_gen: v5e
topology: v5e:2x2
jax: 0.10.0
libtpu: 0.0.40
codegen_flags: <defaults>
</compile_context>

<pallas_src>
import functools

import jax
import jax.numpy as jnp
from jax.experimental import pallas as pl
from jax.experimental.pallas import tpu as pltpu


# --------------------------------------------------------------------------- #
# Kernel
# --------------------------------------------------------------------------- #
def _up_lstm_kernel(xin_ref, st_ref, w1_ref, b1_ref, w2_ref, b2_ref,
                    out_ref, pb2, *, H, W, nf):
    HW = H * W
    f32 = jnp.float32

    def conv_gates(tap, w_ref, b_ref, c_prev):
        """3x3 SAME ConvLSTM gate update as nine accumulating MXU matmuls."""
        acc = None
        for idx in range(9):                              # static unroll
            kh, kw = idx // 3, idx % 3
            lhs = tap(kh, kw)                             # (H, W, K) shifted window
            t = jnp.dot(lhs.reshape(HW, lhs.shape[-1]), w_ref[idx],
                        preferred_element_type=f32)
            acc = t if acc is None else acc + t
        acc = (acc + b_ref[...]).reshape(H, W, 4 * nf)    # lane-dense (4*nf = 128)
        i = jax.nn.sigmoid(acc[..., 0 * nf:1 * nf])
        f = jax.nn.sigmoid(acc[..., 1 * nf:2 * nf])
        o = jax.nn.sigmoid(acc[..., 2 * nf:3 * nf])
        g = jnp.tanh(acc[..., 3 * nf:4 * nf])
        c_next = f * c_prev + i * g
        h_next = o * jnp.tanh(c_next)
        return h_next, c_next

    # packed per-batch state: [c1 | h2 | c2]
    c1 = st_ref[:, :, 0 * nf:1 * nf]
    h2 = st_ref[:, :, 1 * nf:2 * nf]
    c2 = st_ref[:, :, 2 * nf:3 * nf]

    # ---- cell 1: x = [x2 | up(x1) | h1], pre-padded & channel-packed by the
    #              wrapper, so the taps read the input block directly ----------
    h1n, c1n = conv_gates(lambda kh, kw: xin_ref[kh:kh + H, kw:kw + W, :],
                          w1_ref, b1_ref, c1)

    # ---- cell 2: x = [h1_next | h2] written into a small zero-haloed scratch -
    # Only the 1-pixel halo frame is zeroed (every program: megacore-safe);
    # the interior is one full-lane store of the lane-concatenated value.
    zrow = jnp.zeros((1, W + 2, 2 * nf), f32)
    zcol = jnp.zeros((H, 1, 2 * nf), f32)
    pb2[0:1, :, :] = zrow
    pb2[H + 1:H + 2, :, :] = zrow
    pb2[1:H + 1, 0:1, :] = zcol
    pb2[1:H + 1, W + 1:W + 2, :] = zcol
    pb2[1:H + 1, 1:W + 1, :] = jnp.concatenate([h1n, h2], axis=-1)

    h2n, c2n = conv_gates(lambda kh, kw: pb2[kh:kh + H, kw:kw + W, :],
                          w2_ref, b2_ref, c2)

    # single lane-dense (H, W, 4*nf) store; NCHW unpacking is wrapper plumbing
    out_ref[...] = jnp.concatenate([h1n, c1n, h2n, c2n], axis=-1)


# --------------------------------------------------------------------------- #
# Wrapper
# --------------------------------------------------------------------------- #
def _interp_matrix(out_size, in_size):
    """Dense (out, in) 1-D bilinear interpolation matrix, align_corners=True."""
    if in_size == 1:
        return jnp.ones((out_size, 1), jnp.float32)
    pos = jnp.arange(out_size, dtype=jnp.float32) * (in_size - 1) / (out_size - 1)
    lo = jnp.minimum(jnp.floor(pos).astype(jnp.int32), in_size - 2)
    frac = pos - lo.astype(jnp.float32)
    rows = jnp.arange(out_size)
    m = jnp.zeros((out_size, in_size), jnp.float32)
    m = m.at[rows, lo].add(1.0 - frac)
    m = m.at[rows, lo + 1].add(frac)
    return m


def up_lstm_forward(params, x1, x2, h1, h2, c1, c2):
    """Mirrors up_lstm.forward.  x1:(B,C1,h,w)  x2,h*,c*:(B,C,H,W) NCHW.

    Returns (h1, c1, h2, c2), each (B, nf, H, W).
    """
    nf = params["nf"]
    B, C1, hs, ws = x1.shape
    _, C2, H, W = x2.shape
    H1, W1 = 2 * hs, 2 * ws
    diffY, diffX = H - H1, W - W1
    assert diffY >= 0 and diffX >= 0
    top, left = diffY // 2, diffX // 2
    f32 = jnp.float32

    # --- wrapper-side plumbing (cheap, fused by XLA) --------------------------
    # bilinear 2x upsample (align_corners=True) as two tiny interpolation
    # matmuls, then F.pad, channel packing [x2 | up(x1) | h1] and the SAME-conv
    # zero halo, so the kernel never writes padding or concatenates inputs.
    uh = _interp_matrix(H1, hs)
    uw = _interp_matrix(W1, ws)
    x1u = jnp.einsum("Hh,Ww,bhwc->bHWc", uh, uw,
                     jnp.transpose(x1, (0, 2, 3, 1)).astype(f32),
                     precision=jax.lax.Precision.HIGHEST)        # (B,H1,W1,C1)
    x1u = jnp.pad(x1u, ((0, 0), (top, diffY - top), (left, diffX - left), (0, 0)))

    to_nhwc = lambda t: jnp.transpose(t, (0, 2, 3, 1)).astype(f32)
    x2k, h1k, c1k, h2k, c2k = (to_nhwc(t) for t in (x2, h1, c1, h2, c2))

    xin = jnp.concatenate([x2k, x1u, h1k], axis=-1)              # (B,H,W,cc1)
    xin = jnp.pad(xin, ((0, 0), (1, 1), (1, 1), (0, 0)))         # + conv halo
    st = jnp.concatenate([c1k, h2k, c2k], axis=-1)               # (B,H,W,3*nf)

    cc1 = C2 + C1 + nf                      # conv1 K (x2|x1|h1): no zero rows
    cc2 = 2 * nf                            # conv2 K (h1n|h2):   no zero rows
    w1m = params["w1"].reshape(9, cc1, 4 * nf).astype(f32)       # per-tap (K,4nf)
    w2m = params["w2"].reshape(9, cc2, 4 * nf).astype(f32)
    b1m = params["b1"].reshape(1, 4 * nf).astype(f32)
    b2m = params["b2"].reshape(1, 4 * nf).astype(f32)

    kern = functools.partial(_up_lstm_kernel, H=H, W=W, nf=nf)

    shared = lambda a: pl.BlockSpec(a.shape, lambda b: (0,) * a.ndim)

    out = pl.pallas_call(
        kern,
        out_shape=jax.ShapeDtypeStruct((B, H, W, 4 * nf), f32),
        grid_spec=pltpu.PrefetchScalarGridSpec(
            num_scalar_prefetch=0,
            grid=(B,),
            in_specs=[
                pl.BlockSpec((None, H + 2, W + 2, cc1), lambda b: (b, 0, 0, 0)),
                pl.BlockSpec((None, H, W, 3 * nf), lambda b: (b, 0, 0, 0)),
                shared(w1m), shared(b1m),
                shared(w2m), shared(b2m),
            ],
            out_specs=pl.BlockSpec((None, H, W, 4 * nf), lambda b: (b, 0, 0, 0)),
            scratch_shapes=[
                pltpu.VMEM((H + 2, W + 2, 2 * nf), f32),   # cell-2 padded buffer
            ],
        ),
        compiler_params=pltpu.CompilerParams(
            dimension_semantics=("parallel",)),            # batch across v7x cores
    )(xin, st, w1m, b1m, w2m, b2m)

    def unpack(j):
        return jnp.transpose(out[..., j * nf:(j + 1) * nf], (0, 3, 1, 2))  # NCHW

    return unpack(0), unpack(1), unpack(2), unpack(3)


# --------------------------------------------------------------------------- #
# Pure-JAX reference (mirrors the PyTorch forward) and parameter construction
# --------------------------------------------------------------------------- #
def _ref_forward(params, x1, x2, h1, h2, c1, c2):
    nf = params["nf"]
    B, C1, hs, ws = x1.shape
    _, C2, H, W = x2.shape
    uh = _interp_matrix(2 * hs, hs)
    uw = _interp_matrix(2 * ws, ws)
    x1u = jnp.einsum("Hh,Ww,bchw->bcHW", uh, uw, x1.astype(jnp.float32),
                     precision=jax.lax.Precision.HIGHEST)
    dY, dX = H - 2 * hs, W - 2 * ws
    x1u = jnp.pad(x1u, ((0, 0), (0, 0),
                        (dY // 2, dY - dY // 2), (dX // 2, dX - dX // 2)))
    x = jnp.concatenate([x2.astype(jnp.float32), x1u], axis=1)      # NCHW

    to_nhwc = lambda t: jnp.transpose(t, (0, 2, 3, 1)).astype(jnp.float32)

    def cell(x_nhwc, h, c, w_hwio, b):
        comb = jnp.concatenate([x_nhwc, h], axis=-1)
        conv = jax.lax.conv_general_dilated(
            comb, w_hwio, (1, 1), "SAME",
            dimension_numbers=("NHWC", "HWIO", "NHWC"),
            precision=jax.lax.Precision.HIGHEST) + b.reshape(1, 1, 1, -1)
        i = jax.nn.sigmoid(conv[..., :nf])
        f = jax.nn.sigmoid(conv[..., nf:2 * nf])
        o = jax.nn.sigmoid(conv[..., 2 * nf:3 * nf])
        g = jnp.tanh(conv[..., 3 * nf:])
        cn = f * c + i * g
        return o * jnp.tanh(cn), cn

    h1n, c1n = cell(to_nhwc(x), to_nhwc(h1), to_nhwc(c1),
                    params["w1"], params["b1"])
    h2n, c2n = cell(h1n, to_nhwc(h2), to_nhwc(c2),
                    params["w2"], params["b2"])
    back = lambda t: jnp.transpose(t, (0, 3, 1, 2))
    return back(h1n), back(c1n), back(h2n), back(c2n)


def make_params(key, in_ch, out_ch):
    """ConvLSTM weights stored HWIO (torch OIHW weight == transpose(2,3,1,0))."""
    nf = out_ch
    k = jax.random.split(key, 4)
    w1 = 0.1 * jax.random.normal(k[0], (3, 3, in_ch + nf, 4 * nf), jnp.float32)
    b1 = 0.1 * jax.random.normal(k[1], (4 * nf,), jnp.float32)
    w2 = 0.1 * jax.random.normal(k[2], (3, 3, 2 * nf, 4 * nf), jnp.float32)
    b2 = 0.1 * jax.random.normal(k[3], (4 * nf,), jnp.float32)
    return {"nf": nf, "w1": w1, "b1": b1, "w2": w2, "b2": b2}


if __name__ == "__main__":
    B = 2
    IN_CH, OUT_CH = 64, 32          # conv1: in_ch -> out_ch ; 4*out_ch = 128
    HS, WS = 8, 8                   # x1 spatial (pre-upsample)
    H, W = 2 * HS, 2 * WS           # x2 spatial (W % 8 == 0 keeps reshapes free)
    C1 = C2 = IN_CH // 2

    key = jax.random.PRNGKey(0)
    k1, k2, kh1, kc1, kh2, kc2, kp = jax.random.split(key, 7)
    x1 = jax.random.normal(k1, (B, C1, HS, WS), jnp.float32)
    x2 = jax.random.normal(k2, (B, C2, H, W), jnp.float32)
    h1 = jax.random.normal(kh1, (B, OUT_CH, H, W), jnp.float32)
    c1 = jax.random.normal(kc1, (B, OUT_CH, H, W), jnp.float32)
    h2 = jax.random.normal(kh2, (B, OUT_CH, H, W), jnp.float32)
    c2 = jax.random.normal(kc2, (B, OUT_CH, H, W), jnp.float32)
    params = make_params(kp, IN_CH, OUT_CH)

    outs = jax.block_until_ready(up_lstm_forward(params, x1, x2, h1, h2, c1, c2))
    refs = jax.block_until_ready(_ref_forward(params, x1, x2, h1, h2, c1, c2))

    for name, o, r in zip(("h1", "c1", "h2", "c2"), outs, refs):
        assert o.shape == r.shape == (B, OUT_CH, H, W), (name, o.shape)
        err = float(jnp.max(jnp.abs(o - r)))
        assert jnp.allclose(o, r, atol=5e-3, rtol=5e-3), (name, err)

    print("KERNEL_OK")
</pallas_src>

<mosaic_0001>
module attributes {stable_mosaic.version = 11 : i64} {
  func.func @_up_lstm_kernel(%arg0: i32, %arg1: memref<1x18x18x96xf32, #tpu.memory_space<vmem>>, %arg2: memref<1x16x16x96xf32, #tpu.memory_space<vmem>>, %arg3: memref<9x96x128xf32, #tpu.memory_space<vmem>>, %arg4: memref<1x128xf32, #tpu.memory_space<vmem>>, %arg5: memref<9x64x128xf32, #tpu.memory_space<vmem>>, %arg6: memref<1x128xf32, #tpu.memory_space<vmem>>, %arg7: memref<1x16x16x128xf32, #tpu.memory_space<vmem>>, %arg8: memref<18x18x64xf32, #tpu.memory_space<vmem>>) attributes {dimension_semantics = [#tpu.dimension_semantics<parallel>], iteration_bounds = array<i64: 2>, scalar_prefetch = 0 : i64, scratch_operands = 1 : i64, tpu.core_type = #tpu.core_type<tc>, window_params = [{transform_indices = @transform_0, window_bounds = array<i64: 1, 18, 18, 96>}, {transform_indices = @transform_1, window_bounds = array<i64: 1, 16, 16, 96>}, {pipeline_mode = #tpu.pipeline_mode<synchronous>, transform_indices = @transform_2, window_bounds = array<i64: 9, 96, 128>}, {pipeline_mode = #tpu.pipeline_mode<synchronous>, transform_indices = @transform_3, window_bounds = array<i64: 1, 128>}, {pipeline_mode = #tpu.pipeline_mode<synchronous>, transform_indices = @transform_4, window_bounds = array<i64: 9, 64, 128>}, {pipeline_mode = #tpu.pipeline_mode<synchronous>, transform_indices = @transform_5, window_bounds = array<i64: 1, 128>}, {transform_indices = @transform_6, window_bounds = array<i64: 1, 16, 16, 128>}]} {
    %c0 = arith.constant 0 : index
    %c0_0 = arith.constant 0 : index
    %c0_1 = arith.constant 0 : index
    %c0_2 = arith.constant 0 : index
    %0 = vector.load %arg2[%c0, %c0_0, %c0_1, %c0_2] : memref<1x16x16x96xf32, #tpu.memory_space<vmem>>, vector<1x16x16x32xf32>
    %1 = vector.shape_cast %0 : vector<1x16x16x32xf32> to vector<16x16x32xf32>
    %c0_3 = arith.constant 0 : index
    %c0_4 = arith.constant 0 : index
    %c0_5 = arith.constant 0 : index
    %c32 = arith.constant 32 : index
    %2 = vector.load %arg2[%c0_3, %c0_4, %c0_5, %c32] : memref<1x16x16x96xf32, #tpu.memory_space<vmem>>, vector<1x16x16x32xf32>
    %3 = vector.shape_cast %2 : vector<1x16x16x32xf32> to vector<16x16x32xf32>
    %c0_6 = arith.constant 0 : index
    %c0_7 = arith.constant 0 : index
    %c0_8 = arith.constant 0 : index
    %c64 = arith.constant 64 : index
    %4 = vector.load %arg2[%c0_6, %c0_7, %c0_8, %c64] : memref<1x16x16x96xf32, #tpu.memory_space<vmem>>, vector<1x16x16x32xf32>
    %5 = vector.shape_cast %4 : vector<1x16x16x32xf32> to vector<16x16x32xf32>
    %c0_9 = arith.constant 0 : index
    %c0_10 = arith.constant 0 : index
    %c0_11 = arith.constant 0 : index
    %c0_12 = arith.constant 0 : index
    %6 = vector.load %arg1[%c0_9, %c0_10, %c0_11, %c0_12] : memref<1x18x18x96xf32, #tpu.memory_space<vmem>>, vector<1x16x16x96xf32>
    %7 = vector.shape_cast %6 : vector<1x16x16x96xf32> to vector<16x16x96xf32>
    %8 = vector.shape_cast %7 : vector<16x16x96xf32> to vector<256x96xf32>
    %c0_13 = arith.constant 0 : index
    %c0_14 = arith.constant 0 : index
    %c0_15 = arith.constant 0 : index
    %9 = vector.load %arg3[%c0_13, %c0_14, %c0_15] : memref<9x96x128xf32, #tpu.memory_space<vmem>>, vector<1x96x128xf32>
    %10 = vector.shape_cast %9 : vector<1x96x128xf32> to vector<96x128xf32>
    %cst = arith.constant dense<0.000000e+00> : vector<256x128xf32>
    %11 = tpu.matmul %8, %10, %cst {dimension_numbers = #tpu.dot_dimension_numbers<[1], [0], [0], [1], [0, 0, 1, 1], [], []>} : vector<256x96xf32>, vector<96x128xf32>, vector<256x128xf32> -> vector<256x128xf32>
    %c0_16 = arith.constant 0 : index
    %c0_17 = arith.constant 0 : index
    %c1 = arith.constant 1 : index
    %c0_18 = arith.constant 0 : index
    %12 = vector.load %arg1[%c0_16, %c0_17, %c1, %c0_18] : memref<1x18x18x96xf32, #tpu.memory_space<vmem>>, vector<1x16x16x96xf32>
    %13 = vector.shape_cast %12 : vector<1x16x16x96xf32> to vector<16x16x96xf32>
    %14 = vector.shape_cast %13 : vector<16x16x96xf32> to vector<256x96xf32>
    %c1_19 = arith.constant 1 : index
    %c0_20 = arith.constant 0 : index
    %c0_21 = arith.constant 0 : index
    %15 = vector.load %arg3[%c1_19, %c0_20, %c0_21] : memref<9x96x128xf32, #tpu.memory_space<vmem>>, vector<1x96x128xf32>
    %16 = vector.shape_cast %15 : vector<1x96x128xf32> to vector<96x128xf32>
    %cst_22 = arith.constant dense<0.000000e+00> : vector<256x128xf32>
    %17 = tpu.matmul %14, %16, %cst_22 {dimension_numbers = #tpu.dot_dimension_numbers<[1], [0], [0], [1], [0, 0, 1, 1], [], []>} : vector<256x96xf32>, vector<96x128xf32>, vector<256x128xf32> -> vector<256x128xf32>
    %18 = arith.addf %11, %17 : vector<256x128xf32>
    %c0_23 = arith.constant 0 : index
    %c0_24 = arith.constant 0 : index
    %c2 = arith.constant 2 : index
    %c0_25 = arith.constant 0 : index
    %19 = vector.load %arg1[%c0_23, %c0_24, %c2, %c0_25] : memref<1x18x18x96xf32, #tpu.memory_space<vmem>>, vector<1x16x16x96xf32>
    %20 = vector.shape_cast %19 : vector<1x16x16x96xf32> to vector<16x16x96xf32>
    %21 = vector.shape_cast %20 : vector<16x16x96xf32> to vector<256x96xf32>
    %c2_26 = arith.constant 2 : index
    %c0_27 = arith.constant 0 : index
    %c0_28 = arith.constant 0 : index
    %22 = vector.load %arg3[%c2_26, %c0_27, %c0_28] : memref<9x96x128xf32, #tpu.memory_space<vmem>>, vector<1x96x128xf32>
    %23 = vector.shape_cast %22 : vector<1x96x128xf32> to vector<96x128xf32>
    %cst_29 = arith.constant dense<0.000000e+00> : vector<256x128xf32>
    %24 = tpu.matmul %21, %23, %cst_29 {dimension_numbers = #tpu.dot_dimension_numbers<[1], [0], [0], [1], [0, 0, 1, 1], [], []>} : vector<256x96xf32>, vector<96x128xf32>, vector<256x128xf32> -> vector<256x128xf32>
    %25 = arith.addf %18, %24 : vector<256x128xf32>
    %c0_30 = arith.constant 0 : index
    %c1_31 = arith.constant 1 : index
    %c0_32 = arith.constant 0 : index
    %c0_33 = arith.constant 0 : index
    %26 = vector.load %arg1[%c0_30, %c1_31, %c0_32, %c0_33] : memref<1x18x18x96xf32, #tpu.memory_space<vmem>>, vector<1x16x16x96xf32>
    %27 = vector.shape_cast %26 : vector<1x16x16x96xf32> to vector<16x16x96xf32>
    %28 = vector.shape_cast %27 : vector<16x16x96xf32> to vector<256x96xf32>
    %c3 = arith.constant 3 : index
    %c0_34 = arith.constant 0 : index
    %c0_35 = arith.constant 0 : index
    %29 = vector.load %arg3[%c3, %c0_34, %c0_35] : memref<9x96x128xf32, #tpu.memory_space<vmem>>, vector<1x96x128xf32>
    %30 = vector.shape_cast %29 : vector<1x96x128xf32> to vector<96x128xf32>
    %cst_36 = arith.constant dense<0.000000e+00> : vector<256x128xf32>
    %31 = tpu.matmul %28, %30, %cst_36 {dimension_numbers = #tpu.dot_dimension_numbers<[1], [0], [0], [1], [0, 0, 1, 1], [], []>} : vector<256x96xf32>, vector<96x128xf32>, vector<256x128xf32> -> vector<256x128xf32>
    %32 = arith.addf %25, %31 : vector<256x128xf32>
    %c0_37 = arith.constant 0 : index
    %c1_38 = arith.constant 1 : index
    %c1_39 = arith.constant 1 : index
    %c0_40 = arith.constant 0 : index
    %33 = vector.load %arg1[%c0_37, %c1_38, %c1_39, %c0_40] : memref<1x18x18x96xf32, #tpu.memory_space<vmem>>, vector<1x16x16x96xf32>
    %34 = vector.shape_cast %33 : vector<1x16x16x96xf32> to vector<16x16x96xf32>
    %35 = vector.shape_cast %34 : vector<16x16x96xf32> to vector<256x96xf32>
    %c4 = arith.constant 4 : index
    %c0_41 = arith.constant 0 : index
    %c0_42 = arith.constant 0 : index
    %36 = vector.load %arg3[%c4, %c0_41, %c0_42] : memref<9x96x128xf32, #tpu.memory_space<vmem>>, vector<1x96x128xf32>
    %37 = vector.shape_cast %36 : vector<1x96x128xf32> to vector<96x128xf32>
    %cst_43 = arith.constant dense<0.000000e+00> : vector<256x128xf32>
    %38 = tpu.matmul %35, %37, %cst_43 {dimension_numbers = #tpu.dot_dimension_numbers<[1], [0], [0], [1], [0, 0, 1, 1], [], []>} : vector<256x96xf32>, vector<96x128xf32>, vector<256x128xf32> -> vector<256x128xf32>
    %39 = arith.addf %32, %38 : vector<256x128xf32>
    %c0_44 = arith.constant 0 : index
    %c1_45 = arith.constant 1 : index
    %c2_46 = arith.constant 2 : index
    %c0_47 = arith.constant 0 : index
    %40 = vector.load %arg1[%c0_44, %c1_45, %c2_46, %c0_47] : memref<1x18x18x96xf32, #tpu.memory_space<vmem>>, vector<1x16x16x96xf32>
    %41 = vector.shape_cast %40 : vector<1x16x16x96xf32> to vector<16x16x96xf32>
    %42 = vector.shape_cast %41 : vector<16x16x96xf32> to vector<256x96xf32>
    %c5 = arith.constant 5 : index
    %c0_48 = arith.constant 0 : index
    %c0_49 = arith.constant 0 : index
    %43 = vector.load %arg3[%c5, %c0_48, %c0_49] : memref<9x96x128xf32, #tpu.memory_space<vmem>>, vector<1x96x128xf32>
    %44 = vector.shape_cast %43 : vector<1x96x128xf32> to vector<96x128xf32>
    %cst_50 = arith.constant dense<0.000000e+00> : vector<256x128xf32>
    %45 = tpu.matmul %42, %44, %cst_50 {dimension_numbers = #tpu.dot_dimension_numbers<[1], [0], [0], [1], [0, 0, 1, 1], [], []>} : vector<256x96xf32>, vector<96x128xf32>, vector<256x128xf32> -> vector<256x128xf32>
    %46 = arith.addf %39, %45 : vector<256x128xf32>
    %c0_51 = arith.constant 0 : index
    %c2_52 = arith.constant 2 : index
    %c0_53 = arith.constant 0 : index
    %c0_54 = arith.constant 0 : index
    %47 = vector.load %arg1[%c0_51, %c2_52, %c0_53, %c0_54] : memref<1x18x18x96xf32, #tpu.memory_space<vmem>>, vector<1x16x16x96xf32>
    %48 = vector.shape_cast %47 : vector<1x16x16x96xf32> to vector<16x16x96xf32>
    %49 = vector.shape_cast %48 : vector<16x16x96xf32> to vector<256x96xf32>
    %c6 = arith.constant 6 : index
    %c0_55 = arith.constant 0 : index
    %c0_56 = arith.constant 0 : index
    %50 = vector.load %arg3[%c6, %c0_55, %c0_56] : memref<9x96x128xf32, #tpu.memory_space<vmem>>, vector<1x96x128xf32>
    %51 = vector.shape_cast %50 : vector<1x96x128xf32> to vector<96x128xf32>
    %cst_57 = arith.constant dense<0.000000e+00> : vector<256x128xf32>
    %52 = tpu.matmul %49, %51, %cst_57 {dimension_numbers = #tpu.dot_dimension_numbers<[1], [0], [0], [1], [0, 0, 1, 1], [], []>} : vector<256x96xf32>, vector<96x128xf32>, vector<256x128xf32> -> vector<256x128xf32>
    %53 = arith.addf %46, %52 : vector<256x128xf32>
    %c0_58 = arith.constant 0 : index
    %c2_59 = arith.constant 2 : index
    %c1_60 = arith.constant 1 : index
    %c0_61 = arith.constant 0 : index
    %54 = vector.load %arg1[%c0_58, %c2_59, %c1_60, %c0_61] : memref<1x18x18x96xf32, #tpu.memory_space<vmem>>, vector<1x16x16x96xf32>
    %55 = vector.shape_cast %54 : vector<1x16x16x96xf32> to vector<16x16x96xf32>
    %56 = vector.shape_cast %55 : vector<16x16x96xf32> to vector<256x96xf32>
    %c7 = arith.constant 7 : index
    %c0_62 = arith.constant 0 : index
    %c0_63 = arith.constant 0 : index
    %57 = vector.load %arg3[%c7, %c0_62, %c0_63] : memref<9x96x128xf32, #tpu.memory_space<vmem>>, vector<1x96x128xf32>
    %58 = vector.shape_cast %57 : vector<1x96x128xf32> to vector<96x128xf32>
    %cst_64 = arith.constant dense<0.000000e+00> : vector<256x128xf32>
    %59 = tpu.matmul %56, %58, %cst_64 {dimension_numbers = #tpu.dot_dimension_numbers<[1], [0], [0], [1], [0, 0, 1, 1], [], []>} : vector<256x96xf32>, vector<96x128xf32>, vector<256x128xf32> -> vector<256x128xf32>
    %60 = arith.addf %53, %59 : vector<256x128xf32>
    %c0_65 = arith.constant 0 : index
    %c2_66 = arith.constant 2 : index
    %c2_67 = arith.constant 2 : index
    %c0_68 = arith.constant 0 : index
    %61 = vector.load %arg1[%c0_65, %c2_66, %c2_67, %c0_68] : memref<1x18x18x96xf32, #tpu.memory_space<vmem>>, vector<1x16x16x96xf32>
    %62 = vector.shape_cast %61 : vector<1x16x16x96xf32> to vector<16x16x96xf32>
    %63 = vector.shape_cast %62 : vector<16x16x96xf32> to vector<256x96xf32>
    %c8 = arith.constant 8 : index
    %c0_69 = arith.constant 0 : index
    %c0_70 = arith.constant 0 : index
    %64 = vector.load %arg3[%c8, %c0_69, %c0_70] : memref<9x96x128xf32, #tpu.memory_space<vmem>>, vector<1x96x128xf32>
    %65 = vector.shape_cast %64 : vector<1x96x128xf32> to vector<96x128xf32>
    %cst_71 = arith.constant dense<0.000000e+00> : vector<256x128xf32>
    %66 = tpu.matmul %63, %65, %cst_71 {dimension_numbers = #tpu.dot_dimension_numbers<[1], [0], [0], [1], [0, 0, 1, 1], [], []>} : vector<256x96xf32>, vector<96x128xf32>, vector<256x128xf32> -> vector<256x128xf32>
    %67 = arith.addf %60, %66 : vector<256x128xf32>
    %c0_72 = arith.constant 0 : index
    %c0_73 = arith.constant 0 : index
    %68 = vector.load %arg4[%c0_72, %c0_73] : memref<1x128xf32, #tpu.memory_space<vmem>>, vector<1x128xf32>
    %69 = vector.broadcast %68 : vector<1x128xf32> to vector<256x128xf32>
    %70 = arith.addf %67, %69 : vector<256x128xf32>
    %71 = vector.shape_cast %70 : vector<256x128xf32> to vector<16x16x128xf32>
    %72 = vector.extract_strided_slice %71 {offsets = [0, 0, 0], sizes = [16, 16, 32], strides = [1, 1, 1]} : vector<16x16x128xf32> to vector<16x16x32xf32>
    %73 = arith.negf %72 : vector<16x16x32xf32>
    %74 = math.exp %73 : vector<16x16x32xf32>
    %cst_74 = arith.constant 1.000000e+00 : f32
    %75 = vector.broadcast %cst_74 : f32 to vector<16x16x32xf32>
    %76 = arith.addf %75, %74 : vector<16x16x32xf32>
    %77 = arith.divf %75, %76 : vector<16x16x32xf32>
    %78 = vector.extract_strided_slice %71 {offsets = [0, 0, 32], sizes = [16, 16, 32], strides = [1, 1, 1]} : vector<16x16x128xf32> to vector<16x16x32xf32>
    %79 = arith.negf %78 : vector<16x16x32xf32>
    %80 = math.exp %79 : vector<16x16x32xf32>
    %cst_75 = arith.constant 1.000000e+00 : f32
    %81 = vector.broadcast %cst_75 : f32 to vector<16x16x32xf32>
    %82 = arith.addf %81, %80 : vector<16x16x32xf32>
    %83 = arith.divf %81, %82 : vector<16x16x32xf32>
    %84 = vector.extract_strided_slice %71 {offsets = [0, 0, 64], sizes = [16, 16, 32], strides = [1, 1, 1]} : vector<16x16x128xf32> to vector<16x16x32xf32>
    %85 = arith.negf %84 : vector<16x16x32xf32>
    %86 = math.exp %85 : vector<16x16x32xf32>
    %cst_76 = arith.constant 1.000000e+00 : f32
    %87 = vector.broadcast %cst_76 : f32 to vector<16x16x32xf32>
    %88 = arith.addf %87, %86 : vector<16x16x32xf32>
    %89 = arith.divf %87, %88 : vector<16x16x32xf32>
    %90 = vector.extract_strided_slice %71 {offsets = [0, 0, 96], sizes = [16, 16, 32], strides = [1, 1, 1]} : vector<16x16x128xf32> to vector<16x16x32xf32>
    %91 = math.tanh %90 : vector<16x16x32xf32>
    %92 = arith.mulf %83, %1 : vector<16x16x32xf32>
    %93 = arith.mulf %77, %91 : vector<16x16x32xf32>
    %94 = arith.addf %92, %93 : vector<16x16x32xf32>
    %95 = math.tanh %94 : vector<16x16x32xf32>
    %96 = arith.mulf %89, %95 : vector<16x16x32xf32>
    %cst_77 = arith.constant 0.000000e+00 : f32
    %97 = vector.broadcast %cst_77 : f32 to vector<1x18x64xf32>
    %cst_78 = arith.constant 0.000000e+00 : f32
    %98 = vector.broadcast %cst_78 : f32 to vector<16x1x64xf32>
    %c0_79 = arith.constant 0 : index
    %c0_80 = arith.constant 0 : index
    %c0_81 = arith.constant 0 : index
    %99 = vector.load %arg8[%c0_79, %c0_80, %c0_81] : memref<18x18x64xf32, #tpu.memory_space<vmem>>, vector<1x18x64xf32>
    tpu.vector_store %arg8[%c0_79, %c0_80, %c0_81], %97 {strides = array<i32>} : memref<18x18x64xf32, #tpu.memory_space<vmem>>, vector<1x18x64xf32>,
    %c17 = arith.constant 17 : index
    %c0_82 = arith.constant 0 : index
    %c0_83 = arith.constant 0 : index
    %100 = vector.load %arg8[%c17, %c0_82, %c0_83] : memref<18x18x64xf32, #tpu.memory_space<vmem>>, vector<1x18x64xf32>
    tpu.vector_store %arg8[%c17, %c0_82, %c0_83], %97 {strides = array<i32>} : memref<18x18x64xf32, #tpu.memory_space<vmem>>, vector<1x18x64xf32>,
    %c1_84 = arith.constant 1 : index
    %c0_85 = arith.constant 0 : index
    %c0_86 = arith.constant 0 : index
    %101 = vector.load %arg8[%c1_84, %c0_85, %c0_86] : memref<18x18x64xf32, #tpu.memory_space<vmem>>, vector<16x1x64xf32>
    tpu.vector_store %arg8[%c1_84, %c0_85, %c0_86], %98 {strides = array<i32>} : memref<18x18x64xf32, #tpu.memory_space<vmem>>, vector<16x1x64xf32>,
    %c1_87 = arith.constant 1 : index
    %c17_88 = arith.constant 17 : index
    %c0_89 = arith.constant 0 : index
    %102 = vector.load %arg8[%c1_87, %c17_88, %c0_89] : memref<18x18x64xf32, #tpu.memory_space<vmem>>, vector<16x1x64xf32>
    tpu.vector_store %arg8[%c1_87, %c17_88, %c0_89], %98 {strides = array<i32>} : memref<18x18x64xf32, #tpu.memory_space<vmem>>, vector<16x1x64xf32>,
    %103 = tpu.concatenate %96, %3 in 2 : vector<16x16x32xf32>, vector<16x16x32xf32> -> vector<16x16x64xf32>
    %c1_90 = arith.constant 1 : index
    %c1_91 = arith.constant 1 : index
    %c0_92 = arith.constant 0 : index
    %104 = vector.load %arg8[%c1_90, %c1_91, %c0_92] : memref<18x18x64xf32, #tpu.memory_space<vmem>>, vector<16x16x64xf32>
    tpu.vector_store %arg8[%c1_90, %c1_91, %c0_92], %103 {strides = array<i32>} : memref<18x18x64xf32, #tpu.memory_space<vmem>>, vector<16x16x64xf32>,
    %c0_93 = arith.constant 0 : index
    %c0_94 = arith.constant 0 : index
    %c0_95 = arith.constant 0 : index
    %105 = vector.load %arg8[%c0_93, %c0_94, %c0_95] : memref<18x18x64xf32, #tpu.memory_space<vmem>>, vector<16x16x64xf32>
    %106 = vector.shape_cast %105 : vector<16x16x64xf32> to vector<256x64xf32>
    %c0_96 = arith.constant 0 : index
    %c0_97 = arith.constant 0 : index
    %c0_98 = arith.constant 0 : index
    %107 = vector.load %arg5[%c0_96, %c0_97, %c0_98] : memref<9x64x128xf32, #tpu.memory_space<vmem>>, vector<1x64x128xf32>
    %108 = vector.shape_cast %107 : vector<1x64x128xf32> to vector<64x128xf32>
    %cst_99 = arith.constant dense<0.000000e+00> : vector<256x128xf32>
    %109 = tpu.matmul %106, %108, %cst_99 {dimension_numbers = #tpu.dot_dimension_numbers<[1], [0], [0], [1], [0, 0, 1, 1], [], []>} : vector<256x64xf32>, vector<64x128xf32>, vector<256x128xf32> -> vector<256x128xf32>
    %c0_100 = arith.constant 0 : index
    %c1_101 = arith.constant 1 : index
    %c0_102 = arith.constant 0 : index
    %110 = vector.load %arg8[%c0_100, %c1_101, %c0_102] : memref<18x18x64xf32, #tpu.memory_space<vmem>>, vector<16x16x64xf32>
    %111 = vector.shape_cast %110 : vector<16x16x64xf32> to vector<256x64xf32>
    %c1_103 = arith.constant 1 : index
    %c0_104 = arith.constant 0 : index
    %c0_105 = arith.constant 0 : index
    %112 = vector.load %arg5[%c1_103, %c0_104, %c0_105] : memref<9x64x128xf32, #tpu.memory_space<vmem>>, vector<1x64x128xf32>
    %113 = vector.shape_cast %112 : vector<1x64x128xf32> to vector<64x128xf32>
    %cst_106 = arith.constant dense<0.000000e+00> : vector<256x128xf32>
    %114 = tpu.matmul %111, %113, %cst_106 {dimension_numbers = #tpu.dot_dimension_numbers<[1], [0], [0], [1], [0, 0, 1, 1], [], []>} : vector<256x64xf32>, vector<64x128xf32>, vector<256x128xf32> -> vector<256x128xf32>
    %115 = arith.addf %109, %114 : vector<256x128xf32>
    %c0_107 = arith.constant 0 : index
    %c2_108 = arith.constant 2 : index
    %c0_109 = arith.constant 0 : index
    %116 = vector.load %arg8[%c0_107, %c2_108, %c0_109] : memref<18x18x64xf32, #tpu.memory_space<vmem>>, vector<16x16x64xf32>
    %117 = vector.shape_cast %116 : vector<16x16x64xf32> to vector<256x64xf32>
    %c2_110 = arith.constant 2 : index
    %c0_111 = arith.constant 0 : index
    %c0_112 = arith.constant 0 : index
    %118 = vector.load %arg5[%c2_110, %c0_111, %c0_112] : memref<9x64x128xf32, #tpu.memory_space<vmem>>, vector<1x64x128xf32>
    %119 = vector.shape_cast %118 : vector<1x64x128xf32> to vector<64x128xf32>
    %cst_113 = arith.constant dense<0.000000e+00> : vector<256x128xf32>
    %120 = tpu.matmul %117, %119, %cst_113 {dimension_numbers = #tpu.dot_dimension_numbers<[1], [0], [0], [1], [0, 0, 1, 1], [], []>} : vector<256x64xf32>, vector<64x128xf32>, vector<256x128xf32> -> vector<256x128xf32>
    %121 = arith.addf %115, %120 : vector<256x128xf32>
    %c1_114 = arith.constant 1 : index
    %c0_115 = arith.constant 0 : index
    %c0_116 = arith.constant 0 : index
    %122 = vector.load %arg8[%c1_114, %c0_115, %c0_116] : memref<18x18x64xf32, #tpu.memory_space<vmem>>, vector<16x16x64xf32>
    %123 = vector.shape_cast %122 : vector<16x16x64xf32> to vector<256x64xf32>
    %c3_117 = arith.constant 3 : index
    %c0_118 = arith.constant 0 : index
    %c0_119 = arith.constant 0 : index
    %124 = vector.load %arg5[%c3_117, %c0_118, %c0_119] : memref<9x64x128xf32, #tpu.memory_space<vmem>>, vector<1x64x128xf32>
    %125 = vector.shape_cast %124 : vector<1x64x128xf32> to vector<64x128xf32>
    %cst_120 = arith.constant dense<0.000000e+00> : vector<256x128xf32>
    %126 = tpu.matmul %123, %125, %cst_120 {dimension_numbers = #tpu.dot_dimension_numbers<[1], [0], [0], [1], [0, 0, 1, 1], [], []>} : vector<256x64xf32>, vector<64x128xf32>, vector<256x128xf32> -> vector<256x128xf32>
    %127 = arith.addf %121, %126 : vector<256x128xf32>
    %c1_121 = arith.constant 1 : index
    %c1_122 = arith.constant 1 : index
    %c0_123 = arith.constant 0 : index
    %128 = vector.load %arg8[%c1_121, %c1_122, %c0_123] : memref<18x18x64xf32, #tpu.memory_space<vmem>>, vector<16x16x64xf32>
    %129 = vector.shape_cast %128 : vector<16x16x64xf32> to vector<256x64xf32>
    %c4_124 = arith.constant 4 : index
    %c0_125 = arith.constant 0 : index
    %c0_126 = arith.constant 0 : index
    %130 = vector.load %arg5[%c4_124, %c0_125, %c0_126] : memref<9x64x128xf32, #tpu.memory_space<vmem>>, vector<1x64x128xf32>
    %131 = vector.shape_cast %130 : vector<1x64x128xf32> to vector<64x128xf32>
    %cst_127 = arith.constant dense<0.000000e+00> : vector<256x128xf32>
    %132 = tpu.matmul %129, %131, %cst_127 {dimension_numbers = #tpu.dot_dimension_numbers<[1], [0], [0], [1], [0, 0, 1, 1], [], []>} : vector<256x64xf32>, vector<64x128xf32>, vector<256x128xf32> -> vector<256x128xf32>
    %133 = arith.addf %127, %132 : vector<256x128xf32>
    %c1_128 = arith.constant 1 : index
    %c2_129 = arith.constant 2 : index
    %c0_130 = arith.constant 0 : index
    %134 = vector.load %arg8[%c1_128, %c2_129, %c0_130] : memref<18x18x64xf32, #tpu.memory_space<vmem>>, vector<16x16x64xf32>
    %135 = vector.shape_cast %134 : vector<16x16x64xf32> to vector<256x64xf32>
    %c5_131 = arith.constant 5 : index
    %c0_132 = arith.constant 0 : index
    %c0_133 = arith.constant 0 : index
    %136 = vector.load %arg5[%c5_131, %c0_132, %c0_133] : memref<9x64x128xf32, #tpu.memory_space<vmem>>, vector<1x64x128xf32>
    %137 = vector.shape_cast %136 : vector<1x64x128xf32> to vector<64x128xf32>
    %cst_134 = arith.constant dense<0.000000e+00> : vector<256x128xf32>
    %138 = tpu.matmul %135, %137, %cst_134 {dimension_numbers = #tpu.dot_dimension_numbers<[1], [0], [0], [1], [0, 0, 1, 1], [], []>} : vector<256x64xf32>, vector<64x128xf32>, vector<256x128xf32> -> vector<256x128xf32>
    %139 = arith.addf %133, %138 : vector<256x128xf32>
    %c2_135 = arith.constant 2 : index
    %c0_136 = arith.constant 0 : index
    %c0_137 = arith.constant 0 : index
    %140 = vector.load %arg8[%c2_135, %c0_136, %c0_137] : memref<18x18x64xf32, #tpu.memory_space<vmem>>, vector<16x16x64xf32>
    %141 = vector.shape_cast %140 : vector<16x16x64xf32> to vector<256x64xf32>
    %c6_138 = arith.constant 6 : index
    %c0_139 = arith.constant 0 : index
    %c0_140 = arith.constant 0 : index
    %142 = vector.load %arg5[%c6_138, %c0_139, %c0_140] : memref<9x64x128xf32, #tpu.memory_space<vmem>>, vector<1x64x128xf32>
    %143 = vector.shape_cast %142 : vector<1x64x128xf32> to vector<64x128xf32>
    %cst_141 = arith.constant dense<0.000000e+00> : vector<256x128xf32>
    %144 = tpu.matmul %141, %143, %cst_141 {dimension_numbers = #tpu.dot_dimension_numbers<[1], [0], [0], [1], [0, 0, 1, 1], [], []>} : vector<256x64xf32>, vector<64x128xf32>, vector<256x128xf32> -> vector<256x128xf32>
    %145 = arith.addf %139, %144 : vector<256x128xf32>
    %c2_142 = arith.constant 2 : index
    %c1_143 = arith.constant 1 : index
    %c0_144 = arith.constant 0 : index
    %146 = vector.load %arg8[%c2_142, %c1_143, %c0_144] : memref<18x18x64xf32, #tpu.memory_space<vmem>>, vector<16x16x64xf32>
    %147 = vector.shape_cast %146 : vector<16x16x64xf32> to vector<256x64xf32>
    %c7_145 = arith.constant 7 : index
    %c0_146 = arith.constant 0 : index
    %c0_147 = arith.constant 0 : index
    %148 = vector.load %arg5[%c7_145, %c0_146, %c0_147] : memref<9x64x128xf32, #tpu.memory_space<vmem>>, vector<1x64x128xf32>
    %149 = vector.shape_cast %148 : vector<1x64x128xf32> to vector<64x128xf32>
    %cst_148 = arith.constant dense<0.000000e+00> : vector<256x128xf32>
    %150 = tpu.matmul %147, %149, %cst_148 {dimension_numbers = #tpu.dot_dimension_numbers<[1], [0], [0], [1], [0, 0, 1, 1], [], []>} : vector<256x64xf32>, vector<64x128xf32>, vector<256x128xf32> -> vector<256x128xf32>
    %151 = arith.addf %145, %150 : vector<256x128xf32>
    %c2_149 = arith.constant 2 : index
    %c2_150 = arith.constant 2 : index
    %c0_151 = arith.constant 0 : index
    %152 = vector.load %arg8[%c2_149, %c2_150, %c0_151] : memref<18x18x64xf32, #tpu.memory_space<vmem>>, vector<16x16x64xf32>
    %153 = vector.shape_cast %152 : vector<16x16x64xf32> to vector<256x64xf32>
    %c8_152 = arith.constant 8 : index
    %c0_153 = arith.constant 0 : index
    %c0_154 = arith.constant 0 : index
    %154 = vector.load %arg5[%c8_152, %c0_153, %c0_154] : memref<9x64x128xf32, #tpu.memory_space<vmem>>, vector<1x64x128xf32>
    %155 = vector.shape_cast %154 : vector<1x64x128xf32> to vector<64x128xf32>
    %cst_155 = arith.constant dense<0.000000e+00> : vector<256x128xf32>
    %156 = tpu.matmul %153, %155, %cst_155 {dimension_numbers = #tpu.dot_dimension_numbers<[1], [0], [0], [1], [0, 0, 1, 1], [], []>} : vector<256x64xf32>, vector<64x128xf32>, vector<256x128xf32> -> vector<256x128xf32>
    %157 = arith.addf %151, %156 : vector<256x128xf32>
    %c0_156 = arith.constant 0 : index
    %c0_157 = arith.constant 0 : index
    %158 = vector.load %arg6[%c0_156, %c0_157] : memref<1x128xf32, #tpu.memory_space<vmem>>, vector<1x128xf32>
    %159 = vector.broadcast %158 : vector<1x128xf32> to vector<256x128xf32>
    %160 = arith.addf %157, %159 : vector<256x128xf32>
    %161 = vector.shape_cast %160 : vector<256x128xf32> to vector<16x16x128xf32>
    %162 = vector.extract_strided_slice %161 {offsets = [0, 0, 0], sizes = [16, 16, 32], strides = [1, 1, 1]} : vector<16x16x128xf32> to vector<16x16x32xf32>
    %163 = arith.negf %162 : vector<16x16x32xf32>
    %164 = math.exp %163 : vector<16x16x32xf32>
    %cst_158 = arith.constant 1.000000e+00 : f32
    %165 = vector.broadcast %cst_158 : f32 to vector<16x16x32xf32>
    %166 = arith.addf %165, %164 : vector<16x16x32xf32>
    %167 = arith.divf %165, %166 : vector<16x16x32xf32>
    %168 = vector.extract_strided_slice %161 {offsets = [0, 0, 32], sizes = [16, 16, 32], strides = [1, 1, 1]} : vector<16x16x128xf32> to vector<16x16x32xf32>
    %169 = arith.negf %168 : vector<16x16x32xf32>
    %170 = math.exp %169 : vector<16x16x32xf32>
    %cst_159 = arith.constant 1.000000e+00 : f32
    %171 = vector.broadcast %cst_159 : f32 to vector<16x16x32xf32>
    %172 = arith.addf %171, %170 : vector<16x16x32xf32>
    %173 = arith.divf %171, %172 : vector<16x16x32xf32>
    %174 = vector.extract_strided_slice %161 {offsets = [0, 0, 64], sizes = [16, 16, 32], strides = [1, 1, 1]} : vector<16x16x128xf32> to vector<16x16x32xf32>
    %175 = arith.negf %174 : vector<16x16x32xf32>
    %176 = math.exp %175 : vector<16x16x32xf32>
    %cst_160 = arith.constant 1.000000e+00 : f32
    %177 = vector.broadcast %cst_160 : f32 to vector<16x16x32xf32>
    %178 = arith.addf %177, %176 : vector<16x16x32xf32>
    %179 = arith.divf %177, %178 : vector<16x16x32xf32>
    %180 = vector.extract_strided_slice %161 {offsets = [0, 0, 96], sizes = [16, 16, 32], strides = [1, 1, 1]} : vector<16x16x128xf32> to vector<16x16x32xf32>
    %181 = math.tanh %180 : vector<16x16x32xf32>
    %182 = arith.mulf %173, %5 : vector<16x16x32xf32>
    %183 = arith.mulf %167, %181 : vector<16x16x32xf32>
    %184 = arith.addf %182, %183 : vector<16x16x32xf32>
    %185 = math.tanh %184 : vector<16x16x32xf32>
    %186 = arith.mulf %179, %185 : vector<16x16x32xf32>
    %187 = tpu.concatenate %96, %94, %186, %184 in 2 : vector<16x16x32xf32>, vector<16x16x32xf32>, vector<16x16x32xf32>, vector<16x16x32xf32> -> vector<16x16x128xf32>
    %c0_161 = arith.constant 0 : index
    %c0_162 = arith.constant 0 : index
    %c0_163 = arith.constant 0 : index
    %c0_164 = arith.constant 0 : index
    %188 = vector.load %arg7[%c0_161, %c0_162, %c0_163, %c0_164] : memref<1x16x16x128xf32, #tpu.memory_space<vmem>>, vector<1x16x16x128xf32>
    %189 = vector.shape_cast %188 : vector<1x16x16x128xf32> to vector<16x16x128xf32>
    %190 = vector.shape_cast %187 : vector<16x16x128xf32> to vector<1x16x16x128xf32>
    tpu.vector_store %arg7[%c0_161, %c0_162, %c0_163, %c0_164], %190 {strides = array<i32>} : memref<1x16x16x128xf32, #tpu.memory_space<vmem>>, vector<1x16x16x128xf32>,
    return
  }
  func.func @transform_0(%arg0: i32) -> (i32, i32, i32, i32) {
    %c0_i32 = arith.constant 0 : i32
    %c0_i32_0 = arith.constant 0 : i32
    %c0_i32_1 = arith.constant 0 : i32
    %c0_i32_2 = arith.constant 0 : i32
    return %arg0, %c0_i32, %c0_i32_0, %c0_i32_1 : i32, i32, i32, i32
  }
  func.func @transform_1(%arg0: i32) -> (i32, i32, i32, i32) {
    %c0_i32 = arith.constant 0 : i32
    %c0_i32_0 = arith.constant 0 : i32
    %c0_i32_1 = arith.constant 0 : i32
    %c0_i32_2 = arith.constant 0 : i32
    return %arg0, %c0_i32, %c0_i32_0, %c0_i32_1 : i32, i32, i32, i32
  }
  func.func @transform_2(%arg0: i32) -> (i32, i32, i32) {
    %c0_i32 = arith.constant 0 : i32
    %c0_i32_0 = arith.constant 0 : i32
    %c0_i32_1 = arith.constant 0 : i32
    %c0_i32_2 = arith.constant 0 : i32
    return %c0_i32, %c0_i32_0, %c0_i32_1 : i32, i32, i32
  }
  func.func @transform_3(%arg0: i32) -> (i32, i32) {
    %c0_i32 = arith.constant 0 : i32
    %c0_i32_0 = arith.constant 0 : i32
    %c0_i32_1 = arith.constant 0 : i32
    return %c0_i32, %c0_i32_0 : i32, i32
  }
  func.func @transform_4(%arg0: i32) -> (i32, i32, i32) {
    %c0_i32 = arith.constant 0 : i32
    %c0_i32_0 = arith.constant 0 : i32
    %c0_i32_1 = arith.constant 0 : i32
    %c0_i32_2 = arith.constant 0 : i32
    return %c0_i32, %c0_i32_0, %c0_i32_1 : i32, i32, i32
  }
  func.func @transform_5(%arg0: i32) -> (i32, i32) {
    %c0_i32 = arith.constant 0 : i32
    %c0_i32_0 = arith.constant 0 : i32
    %c0_i32_1 = arith.constant 0 : i32
    return %c0_i32, %c0_i32_0 : i32, i32
  }
  func.func @transform_6(%arg0: i32) -> (i32, i32, i32, i32) {
    %c0_i32 = arith.constant 0 : i32
    %c0_i32_0 = arith.constant 0 : i32
    %c0_i32_1 = arith.constant 0 : i32
    %c0_i32_2 = arith.constant 0 : i32
    return %arg0, %c0_i32, %c0_i32_0, %c0_i32_1 : i32, i32, i32, i32
  }
}

</mosaic_0001>

<llo_original>
// kernel: tpu_custom_call.1
$region0: #{tpu_custom_call.1}
  #allocation0 [shape = 'u32[]', space=smem, size = 0x4, offset = 0x4, fixed_abs, tag = 'smem constant byte address 0x4 - core index']
  #allocation1 [shape = 'u32[72,128]{1,0:T(1,128)}', space=vmem, size = 0x9000, scoped, tag = 'internal scratch']
  #allocation2 [shape = 'f32[18,18,64]{2,1,0:T(8,128)}', space=vmem, size = 0x36000, scoped, tag = 'scratch operand']
  %s0 = inlined_call_operand.vmem [shape: f32[2,18,18,96], index: 0, kind: input, shape index: {}]
  %s1 = inlined_call_operand.hbm [shape: f32[2,16,16,96], index: 1, kind: input, shape index: {}]
  %s2 = inlined_call_operand.vmem [shape: f32[9,96,128], index: 2, kind: input, shape index: {}]
  %s3 = inlined_call_operand.vmem [shape: f32[1,128], index: 3, kind: input, shape index: {}]
  %s4 = inlined_call_operand.vmem [shape: f32[9,64,128], index: 4, kind: input, shape index: {}]
  %s5 = inlined_call_operand.vmem [shape: f32[1,128], index: 5, kind: input, shape index: {}]
  %s6 = inlined_call_operand.hbm [shape: f32[2,16,16,128], index: 6, kind: output, shape index: {}]
  %s7 = sld [smem:[#allocation0]]
  $region61: #{tpu_custom_call.1} parent=0
    _
  %s9 = ssub.s32 1, %s7
  %s10 = scalar_select 0, %s9, %s7
  $region1: #{tpu_custom_call.1} parent=0
    #allocation3 [shape = 'u8[262144]{0}', space=vmem, size = 0x40000, scoped, tag = 'input window, operand 1']
    #allocation4 [shape = 's32[2]{0}', space=sflag, size = 0x8, scoped, tag = 'scoped memory for tpu_custom_call.1']
    #allocation5 [shape = 's32[2]{0}', space=sflag, size = 0x8, scoped, tag = 'scoped memory for tpu_custom_call.1']
    #allocation6 [shape = 'u8[262144]{0}', space=vmem, size = 0x40000, scoped, tag = 'output window, operand 0']
    %11 = vsyncpa [#allocation4], 0
    %s12 = scalar_lea.sflag [#allocation4], 1
    %13 = vsyncpa %s12, 0
    %14 = vsyncpa [#allocation5], 0
    %s15 = scalar_lea.sflag [#allocation5], 1
    %16 = vsyncpa %s15, 0
    loop: start=0, step=1, limit=4
    $region2: #{tpu_custom_call.1} parent=1 // loop_pre_header
      _
    $region3: #{tpu_custom_call.1} parent=1 // loop_header
      %s18 = sphi 0, %s22
      %p19 = scmp.ge.s32.totalorder %s18, 4
      %s28 = sphi 0, %s30
      %s31 = sphi 0, %s28
      %s32 = sphi 0, %s31
      %s48 = sphi 0, %s32
      %s54 = sphi 0, %s56
      %s57 = sphi 0, %s54
      %s58 = sphi 0, %s57
      %s74 = sphi 0, %s58
      %s78 = sphi 0, %s78
      %s80 = sphi 0, %s78
      %s81 = sphi 0, %s80
      %s95 = sphi 0, %s81
      %s99 = sphi 0, %s99
      %s101 = sphi 0, %s99
      %s102 = sphi 0, %s101
      %s116 = sphi 0, %s102
      %s120 = sphi 0, %s120
      %s122 = sphi 0, %s120
      %s123 = sphi 0, %s122
      %s137 = sphi 0, %s123
      %s141 = sphi 0, %s141
      %s143 = sphi 0, %s141
      %s144 = sphi 0, %s143
      %s158 = sphi 0, %s144
      %s164 = sphi 0, %s166
      %s167 = sphi 0, %s164
      %s168 = sphi 0, %s167
      %s184 = sphi 0, %s168
    $region4: #{tpu_custom_call.1} parent=1 // loop_header_branch
      %21 = sbr.rel (%p19) target = $region8
    $region5: #{tpu_custom_call.1} parent=1 // loop_body
      %s23 = ssub.s32 %s18, 1
      %s24 = ssub.s32 %s18, 2
      %s25 = sadd.s32 %s18, 1
      %s26 = ssub.s32 %s18, %s25
      %p27 = scmp.eq.s32.totalorder %s26, 0
      %s29 = sadd.s32 %s28, 1
      %s30 = scalar_select %p27, %s28, %s29
      %p33 = pneg %p27
      %p34 = scmp.eq.s32.totalorder %s18, 1
      %p35 = por %p33, %p34
      %p36 = scmp.ne.s32.totalorder %s28, %s31
      %p37 = scmp.eq.s32.totalorder %s18, 0
      %p38 = por %p36, %p37
      %p39 = scmp.ne.s32.totalorder %s28, %s31
      %p40 = scmp.eq.s32.totalorder %s23, 1
      %p41 = por %p39, %p40
      %p42 = scmp.ne.s32.totalorder %s31, %s32
      %p43 = scmp.eq.s32.totalorder %s23, 0
      %p44 = por %p42, %p43
      %p45 = scmp.ne.s32.totalorder %s31, %s32
      %p46 = scmp.eq.s32.totalorder %s24, 1
      %p47 = por %p45, %p46
      %p49 = scmp.ne.s32.totalorder %s32, %s48
      %p50 = scmp.eq.s32.totalorder %s24, 0
      %p51 = por %p49, %p50
      %s52 = ssub.s32 %s18, %s25
      %p53 = scmp.eq.s32.totalorder %s52, 0
      %s55 = sadd.s32 %s54, 1
      %s56 = scalar_select %p53, %s54, %s55
      %p59 = pneg %p53
      %p60 = scmp.eq.s32.totalorder %s18, 1
      %p61 = por %p59, %p60
      %p62 = scmp.ne.s32.totalorder %s54, %s57
      %p63 = scmp.eq.s32.totalorder %s18, 0
      %p64 = por %p62, %p63
      %p65 = scmp.ne.s32.totalorder %s54, %s57
      %p66 = scmp.eq.s32.totalorder %s23, 1
      %p67 = por %p65, %p66
      %p68 = scmp.ne.s32.totalorder %s57, %s58
      %p69 = scmp.eq.s32.totalorder %s23, 0
      %p70 = por %p68, %p69
      %p71 = scmp.ne.s32.totalorder %s57, %s58
      %p72 = scmp.eq.s32.totalorder %s24, 1
      %p73 = por %p71, %p72
      %p75 = scmp.ne.s32.totalorder %s58, %s74
      %p76 = scmp.eq.s32.totalorder %s24, 0
      %p77 = por %p75, %p76
      %s79 = sadd.s32 %s78, 1
      %p82 = scmp.eq.s32.totalorder %s18, 1
      %p83 = scmp.ne.s32.totalorder %s78, %s80
      %p84 = scmp.eq.s32.totalorder %s18, 0
      %p85 = por %p83, %p84
      %p86 = scmp.ne.s32.totalorder %s78, %s80
      %p87 = scmp.eq.s32.totalorder %s23, 1
      %p88 = por %p86, %p87
      %p89 = scmp.ne.s32.totalorder %s80, %s81
      %p90 = scmp.eq.s32.totalorder %s23, 0
      %p91 = por %p89, %p90
      %p92 = scmp.ne.s32.totalorder %s80, %s81
      %p93 = scmp.eq.s32.totalorder %s24, 1
      %p94 = por %p92, %p93
      %p96 = scmp.ne.s32.totalorder %s81, %s95
      %p97 = scmp.eq.s32.totalorder %s24, 0
      %p98 = por %p96, %p97
      %s100 = sadd.s32 %s99, 1
      %p103 = scmp.eq.s32.totalorder %s18, 1
      %p104 = scmp.ne.s32.totalorder %s99, %s101
      %p105 = scmp.eq.s32.totalorder %s18, 0
      %p106 = por %p104, %p105
      %p107 = scmp.ne.s32.totalorder %s99, %s101
      %p108 = scmp.eq.s32.totalorder %s23, 1
      %p109 = por %p107, %p108
      %p110 = scmp.ne.s32.totalorder %s101, %s102
      %p111 = scmp.eq.s32.totalorder %s23, 0
      %p112 = por %p110, %p111
      %p113 = scmp.ne.s32.totalorder %s101, %s102
      %p114 = scmp.eq.s32.totalorder %s24, 1
      %p115 = por %p113, %p114
      %p117 = scmp.ne.s32.totalorder %s102, %s116
      %p118 = scmp.eq.s32.totalorder %s24, 0
      %p119 = por %p117, %p118
      %s121 = sadd.s32 %s120, 1
      %p124 = scmp.eq.s32.totalorder %s18, 1
      %p125 = scmp.ne.s32.totalorder %s120, %s122
      %p126 = scmp.eq.s32.totalorder %s18, 0
      %p127 = por %p125, %p126
      %p128 = scmp.ne.s32.totalorder %s120, %s122
      %p129 = scmp.eq.s32.totalorder %s23, 1
      %p130 = por %p128, %p129
      %p131 = scmp.ne.s32.totalorder %s122, %s123
      %p132 = scmp.eq.s32.totalorder %s23, 0
      %p133 = por %p131, %p132
      %p134 = scmp.ne.s32.totalorder %s122, %s123
      %p135 = scmp.eq.s32.totalorder %s24, 1
      %p136 = por %p134, %p135
      %p138 = scmp.ne.s32.totalorder %s123, %s137
      %p139 = scmp.eq.s32.totalorder %s24, 0
      %p140 = por %p138, %p139
      %s142 = sadd.s32 %s141, 1
      %p145 = scmp.eq.s32.totalorder %s18, 1
      %p146 = scmp.ne.s32.totalorder %s141, %s143
      %p147 = scmp.eq.s32.totalorder %s18, 0
      %p148 = por %p146, %p147
      %p149 = scmp.ne.s32.totalorder %s141, %s143
      %p150 = scmp.eq.s32.totalorder %s23, 1
      %p151 = por %p149, %p150
      %p152 = scmp.ne.s32.totalorder %s143, %s144
      %p153 = scmp.eq.s32.totalorder %s23, 0
      %p154 = por %p152, %p153
      %p155 = scmp.ne.s32.totalorder %s143, %s144
      %p156 = scmp.eq.s32.totalorder %s24, 1
      %p157 = por %p155, %p156
      %p159 = scmp.ne.s32.totalorder %s144, %s158
      %p160 = scmp.eq.s32.totalorder %s24, 0
      %p161 = por %p159, %p160
      %s162 = ssub.s32 %s18, %s25
      %p163 = scmp.eq.s32.totalorder %s162, 0
      %s165 = sadd.s32 %s164, 1
      %s166 = scalar_select %p163, %s164, %s165
      %p169 = pneg %p163
      %p170 = scmp.eq.s32.totalorder %s18, 1
      %p171 = por %p169, %p170
      %p172 = scmp.ne.s32.totalorder %s164, %s167
      %p173 = scmp.eq.s32.totalorder %s18, 0
      %p174 = por %p172, %p173
      %p175 = scmp.ne.s32.totalorder %s164, %s167
      %p176 = scmp.eq.s32.totalorder %s23, 1
      %p177 = por %p175, %p176
      %p178 = scmp.ne.s32.totalorder %s167, %s168
      %p179 = scmp.eq.s32.totalorder %s23, 0
      %p180 = por %p178, %p179
      %p181 = scmp.ne.s32.totalorder %s167, %s168
      %p182 = scmp.eq.s32.totalorder %s24, 1
      %p183 = por %p181, %p182
      %p185 = scmp.ne.s32.totalorder %s168, %s184
      %p186 = scmp.eq.s32.totalorder %s24, 0
      %p187 = por %p185, %p186
      %p188 = scmp.le.s32.totalorder 1, %s18
      %p189 = scmp.lt.s32.totalorder %s18, 3
      %p190 = pnand %p188, %p189
      %p191 = pneg %p190
      // Predicated region
      $region9: #{tpu_custom_call.1} parent=5 // pred_check
        _
      $region10: #{tpu_custom_call.1} parent=5 // pred_check_branch
        %193 = sbr.rel (%p190) target = $region12
      $region11: #{tpu_custom_call.1} parent=5 // pred_region
        %s194 = ssub.s32 %s18, 1
        // Predicated region
        $region13: #{tpu_custom_call.1} parent=11 // pred_check
          %p195 = pneg %p91
        $region14: #{tpu_custom_call.1} parent=11 // pred_check_branch
          %197 = sbr.rel (%p195) target = $region16
        $region15: #{tpu_custom_call.1} parent=11 // pred_region
          _
        $region16: #{tpu_custom_call.1} parent=11 // pred_fallthru
          _
        // Predicated region
        $region17: #{tpu_custom_call.1} parent=11 // pred_check
          %p198 = pneg %p112
        $region18: #{tpu_custom_call.1} parent=11 // pred_check_branch
          %200 = sbr.rel (%p198) target = $region20
        $region19: #{tpu_custom_call.1} parent=11 // pred_region
          _
        $region20: #{tpu_custom_call.1} parent=11 // pred_fallthru
          _
        // Predicated region
        $region21: #{tpu_custom_call.1} parent=11 // pred_check
          %p201 = pneg %p133
        $region22: #{tpu_custom_call.1} parent=11 // pred_check_branch
          %203 = sbr.rel (%p201) target = $region24
        $region23: #{tpu_custom_call.1} parent=11 // pred_region
          _
        $region24: #{tpu_custom_call.1} parent=11 // pred_fallthru
          _
        // Predicated region
        $region25: #{tpu_custom_call.1} parent=11 // pred_check
          %p204 = pneg %p154
        $region26: #{tpu_custom_call.1} parent=11 // pred_check_branch
          %206 = sbr.rel (%p204) target = $region28
        $region27: #{tpu_custom_call.1} parent=11 // pred_region
          _
        $region28: #{tpu_custom_call.1} parent=11 // pred_fallthru
          _
      $region12: #{tpu_custom_call.1} parent=5 // pred_fallthru
        _
      %p207 = scmp.lt.s32.totalorder %s18, 2
      // Predicated region
      $region29: #{tpu_custom_call.1} parent=5 // pred_check
        %p208 = pneg %p207
      $region30: #{tpu_custom_call.1} parent=5 // pred_check_branch
        %210 = sbr.rel (%p208) target = $region32
      $region31: #{tpu_custom_call.1} parent=5 // pred_region
        // Predicated region
        $region33: #{tpu_custom_call.1} parent=31 // pred_check
          %p211 = pneg %p38
        $region34: #{tpu_custom_call.1} parent=31 // pred_check_branch
          %213 = sbr.rel (%p211) target = $region36
        $region35: #{tpu_custom_call.1} parent=31 // pred_region
          %p214 = scmp.lt.s32.totalorder %s18, 1
          %s215 = scalar_select %p214, %s18, 1
          %s216 = smul.addr %s215, 54
          %s217 = smul.addr %s216, 8
          %s218 = scalar_lea.vmem %s0, %s217
        $region36: #{tpu_custom_call.1} parent=31 // pred_fallthru
          _
        // Predicated region
        $region37: #{tpu_custom_call.1} parent=31 // pred_check
          %p219 = pneg %p64
        $region38: #{tpu_custom_call.1} parent=31 // pred_check_branch
          %221 = sbr.rel (%p219) target = $region40
        $region39: #{tpu_custom_call.1} parent=31 // pred_region
          %s222 = sand.u32 %s54, 1
          %s223 = scalar_lea.sflag [#allocation4], %s222
          %s224 = sand.u32 %s54, 1
          %s225 = smul.addr %s224, 256
          %s226 = scalar_lea.vmem [#allocation3], %s225
          %228 = vsyncadd %s223, 0
          %s229 = smul.addr %s18, 32
          %s230 = smul.addr %s229, 8
          %s231 = scalar_lea.hbm %s1, %s230
          %s232 = sshll.u32 %s231, 4
          %s233 = int_to_ptr.hbm [resolvable:$true] %s232
          %s234 = sshll.u32 %s226, 4
          %s235 = int_to_ptr.vmem [resolvable:$true] %s234
          %240 = dma.hbm_to_vmem [thread:$0]  %s233, 4096, %s235, %s223, 128, 128, 8
        $region40: #{tpu_custom_call.1} parent=31 // pred_fallthru
          _
      $region32: #{tpu_custom_call.1} parent=5 // pred_fallthru
        _
      %p241 = scmp.le.s32.totalorder 1, %s18
      %p242 = scmp.lt.s32.totalorder %s18, 3
      %p243 = pnand %p241, %p242
      %p244 = pneg %p243
      // Predicated region
      $region41: #{tpu_custom_call.1} parent=5 // pred_check
        _
      $region42: #{tpu_custom_call.1} parent=5 // pred_check_branch
        %246 = sbr.rel (%p243) target = $region44
      $region43: #{tpu_custom_call.1} parent=5 // pred_region
        %s247 = ssub.s32 %s18, 1
        %s248 = sand.u32 %s57, 1
        %s249 = scalar_lea.sflag [#allocation4], %s248
        %s250 = sand.u32 %s57, 1
        %s251 = smul.addr %s250, 256
        %s252 = scalar_lea.vmem [#allocation3], %s251
        // Predicated region
        $region45: #{tpu_custom_call.1} parent=43 // pred_check
          %p253 = pneg %p70
        $region46: #{tpu_custom_call.1} parent=43 // pred_check_branch
          %255 = sbr.rel (%p253) target = $region48
        $region47: #{tpu_custom_call.1} parent=43 // pred_region
          %257 = dma.done %s249, 4096
        $region48: #{tpu_custom_call.1} parent=43 // pred_fallthru
          _
        %p258 = scmp.lt.s32.totalorder %s23, 1
        %s259 = scalar_select %p258, %s23, 1
        %s260 = smul.addr %s259, 54
        %s261 = smul.addr %s260, 8
        %s262 = scalar_lea.vmem %s0, %s261
        %p263 = pneg %p44
        %p264 = pneg %p41
        %s265 = sand.u32 %s57, 1
        %s266 = scalar_lea.sflag [#allocation4], %s265
        %s267 = sand.u32 %s57, 1
        %s268 = smul.addr %s267, 256
        %s269 = scalar_lea.vmem [#allocation3], %s268
        %p270 = pneg %p70
        %p271 = pneg %p67
        %p272 = pneg %p91
        %p273 = pneg %p88
        %p274 = pneg %p112
        %p275 = pneg %p109
        %p276 = pneg %p133
        %p277 = pneg %p130
        %p278 = pneg %p154
        %p279 = pneg %p151
        %p280 = pneg %p180
        %p281 = pneg %p177
        %s282 = sand.u32 %s167, 1
        %s283 = scalar_lea.sflag [#allocation5], %s282
        %s284 = sand.u32 %s167, 1
        %s285 = smul.addr %s284, 256
        %s286 = scalar_lea.vmem [#allocation6], %s285
        %p287 = scmp.lt.s32.totalorder %s23, 1
        %s288 = scalar_select %p287, %s23, 1
        %s289 = smul.addr %s288, 54
        %s290 = smul.addr %s289, 8
        %s291 = scalar_lea.vmem %s0, %s290
        %v292 = vld [vmem:[%s252] sm:$0xff]
        %v293 = vld [vmem:[%s252 + $0x8] sm:$0xff]
        %v294 = vld [vmem:[%s252 + $0x10] sm:$0xff]
        %v295 = vld [vmem:[%s252 + $0x18] sm:$0xff]
        %v296 = vld [vmem:[%s252 + $0x20] sm:$0xff]
        %v297 = vld [vmem:[%s252 + $0x28] sm:$0xff]
        %v298 = vld [vmem:[%s252 + $0x30] sm:$0xff]
        %v299 = vld [vmem:[%s252 + $0x38] sm:$0xff]
        %v300 = vld [vmem:[%s252 + $0x40] sm:$0xff]
        %v301 = vld [vmem:[%s252 + $0x48] sm:$0xff]
        %v302 = vld [vmem:[%s252 + $0x50] sm:$0xff]
        %v303 = vld [vmem:[%s252 + $0x58] sm:$0xff]
        %v304 = vld [vmem:[%s252 + $0x60] sm:$0xff]
        %v305 = vld [vmem:[%s252 + $0x68] sm:$0xff]
        %v306 = vld [vmem:[%s252 + $0x70] sm:$0xff]
        %v307 = vld [vmem:[%s252 + $0x78] sm:$0xff]
        %v308 = vld [vmem:[%s252 + $0x80] sm:$0xff]
        %v309 = vld [vmem:[%s252 + $0x88] sm:$0xff]
        %v310 = vld [vmem:[%s252 + $0x90] sm:$0xff]
        %v311 = vld [vmem:[%s252 + $0x98] sm:$0xff]
        %v312 = vld [vmem:[%s252 + $0xa0] sm:$0xff]
        %v313 = vld [vmem:[%s252 + $0xa8] sm:$0xff]
        %v314 = vld [vmem:[%s252 + $0xb0] sm:$0xff]
        %v315 = vld [vmem:[%s252 + $0xb8] sm:$0xff]
        %v316 = vld [vmem:[%s252 + $0xc0] sm:$0xff]
        %v317 = vld [vmem:[%s252 + $0xc8] sm:$0xff]
        %v318 = vld [vmem:[%s252 + $0xd0] sm:$0xff]
        %v319 = vld [vmem:[%s252 + $0xd8] sm:$0xff]
        %v320 = vld [vmem:[%s252 + $0xe0] sm:$0xff]
        %v321 = vld [vmem:[%s252 + $0xe8] sm:$0xff]
        %v322 = vld [vmem:[%s252 + $0xf0] sm:$0xff]
        %v323 = vld [vmem:[%s252 + $0xf8] sm:$0xff]
        %v324 = vld [vmem:[%s291] sm:$0xff]
        %v325 = vld [vmem:[%s291 + $0x8] sm:$0xff]
        %v326 = vld [vmem:[%s291 + $0x18] sm:$0xff]
        %v327 = vld [vmem:[%s291 + $0x20] sm:$0xff]
        %v328 = vld [vmem:[%s291 + $0x30] sm:$0xff]
        %v329 = vld [vmem:[%s291 + $0x38] sm:$0xff]
        %v330 = vld [vmem:[%s291 + $0x48] sm:$0xff]
        %v331 = vld [vmem:[%s291 + $0x50] sm:$0xff]
        %v332 = vld [vmem:[%s291 + $0x60] sm:$0xff]
        %v333 = vld [vmem:[%s291 + $0x68] sm:$0xff]
        %v334 = vld [vmem:[%s291 + $0x78] sm:$0xff]
        %v335 = vld [vmem:[%s291 + $0x80] sm:$0xff]
        %v336 = vld [vmem:[%s291 + $0x90] sm:$0xff]
        %v337 = vld [vmem:[%s291 + $0x98] sm:$0xff]
        %v338 = vld [vmem:[%s291 + $0xa8] sm:$0xff]
        %v339 = vld [vmem:[%s291 + $0xb0] sm:$0xff]
        %v340 = vld [vmem:[%s291 + $0xc0] sm:$0xff]
        %v341 = vld [vmem:[%s291 + $0xc8] sm:$0xff]
        %v342 = vld [vmem:[%s291 + $0xd8] sm:$0xff]
        %v343 = vld [vmem:[%s291 + $0xe0] sm:$0xff]
        %v344 = vld [vmem:[%s291 + $0xf0] sm:$0xff]
        %v345 = vld [vmem:[%s291 + $0xf8] sm:$0xff]
        %v346 = vld [vmem:[%s291 + $0x108] sm:$0xff]
        %v347 = vld [vmem:[%s291 + $0x110] sm:$0xff]
        %v348 = vld [vmem:[%s291 + $0x120] sm:$0xff]
        %v349 = vld [vmem:[%s291 + $0x128] sm:$0xff]
        %v350 = vld [vmem:[%s291 + $0x138] sm:$0xff]
        %v351 = vld [vmem:[%s291 + $0x140] sm:$0xff]
        %v352 = vld [vmem:[%s291 + $0x150] sm:$0xff]
        %v353 = vld [vmem:[%s291 + $0x158] sm:$0xff]
        %v354 = vld [vmem:[%s291 + $0x168] sm:$0xff]
        %v355 = vld [vmem:[%s291 + $0x170] sm:$0xff]
        %v356 = vld [vmem:[%s2] sm:$0xff]
        %v357 = vld [vmem:[%s2 + $0x8] sm:$0xff]
        %v358 = vld [vmem:[%s2 + $0x10] sm:$0xff]
        %v359 = vld [vmem:[%s2 + $0x18] sm:$0xff]
        %v360 = vld [vmem:[%s2 + $0x20] sm:$0xff]
        %v361 = vld [vmem:[%s2 + $0x28] sm:$0xff]
        %v362 = vld [vmem:[%s2 + $0x30] sm:$0xff]
        %v363 = vld [vmem:[%s2 + $0x38] sm:$0xff]
        %v364 = vld [vmem:[%s2 + $0x40] sm:$0xff]
        %v365 = vld [vmem:[%s2 + $0x48] sm:$0xff]
        %v366 = vld [vmem:[%s2 + $0x50] sm:$0xff]
        %v367 = vld [vmem:[%s2 + $0x58] sm:$0xff]
        %v368 = vld [vmem:[%s291 + $0x1] sm:$0xff]
        %v369 = vld [vmem:[%s291 + $0x9] sm:$0xff]
        %v370 = vld [vmem:[%s291 + $0x19] sm:$0xff]
        %v371 = vld [vmem:[%s291 + $0x21] sm:$0xff]
        %v372 = vld [vmem:[%s291 + $0x31] sm:$0xff]
        %v373 = vld [vmem:[%s291 + $0x39] sm:$0xff]
        %v374 = vld [vmem:[%s291 + $0x49] sm:$0xff]
        %v375 = vld [vmem:[%s291 + $0x51] sm:$0xff]
        %v376 = vld [vmem:[%s291 + $0x61] sm:$0xff]
        %v377 = vld [vmem:[%s291 + $0x69] sm:$0xff]
        %v378 = vld [vmem:[%s291 + $0x79] sm:$0xff]
        %v379 = vld [vmem:[%s291 + $0x81] sm:$0xff]
        %v380 = vld [vmem:[%s291 + $0x91] sm:$0xff]
        %v381 = vld [vmem:[%s291 + $0x99] sm:$0xff]
        %v382 = vld [vmem:[%s291 + $0xa9] sm:$0xff]
        %v383 = vld [vmem:[%s291 + $0xb1] sm:$0xff]
        %v384 = vld [vmem:[%s291 + $0xc1] sm:$0xff]
        %v385 = vld [vmem:[%s291 + $0xc9] sm:$0xff]
        %v386 = vld [vmem:[%s291 + $0xd9] sm:$0xff]
        %v387 = vld [vmem:[%s291 + $0xe1] sm:$0xff]
        %v388 = vld [vmem:[%s291 + $0xf1] sm:$0xff]
        %v389 = vld [vmem:[%s291 + $0xf9] sm:$0xff]
        %v390 = vld [vmem:[%s291 + $0x109] sm:$0xff]
        %v391 = vld [vmem:[%s291 + $0x111] sm:$0xff]
        %v392 = vld [vmem:[%s291 + $0x121] sm:$0xff]
        %v393 = vld [vmem:[%s291 + $0x129] sm:$0xff]
        %v394 = vld [vmem:[%s291 + $0x139] sm:$0xff]
        %v395 = vld [vmem:[%s291 + $0x141] sm:$0xff]
        %v396 = vld [vmem:[%s291 + $0x151] sm:$0xff]
        %v397 = vld [vmem:[%s291 + $0x159] sm:$0xff]
        %v398 = vld [vmem:[%s291 + $0x169] sm:$0xff]
        %v399 = vld [vmem:[%s291 + $0x171] sm:$0xff]
        %s400 = scalar_lea.vmem %s2, 96
        %v401 = vld [vmem:[%s400] sm:$0xff]
        %v402 = vld [vmem:[%s400 + $0x8] sm:$0xff]
        %v403 = vld [vmem:[%s400 + $0x10] sm:$0xff]
        %v404 = vld [vmem:[%s400 + $0x18] sm:$0xff]
        %v405 = vld [vmem:[%s400 + $0x20] sm:$0xff]
        %v406 = vld [vmem:[%s400 + $0x28] sm:$0xff]
        %v407 = vld [vmem:[%s400 + $0x30] sm:$0xff]
        %v408 = vld [vmem:[%s400 + $0x38] sm:$0xff]
        %v409 = vld [vmem:[%s400 + $0x40] sm:$0xff]
        %v410 = vld [vmem:[%s400 + $0x48] sm:$0xff]
        %v411 = vld [vmem:[%s400 + $0x50] sm:$0xff]
        %v412 = vld [vmem:[%s400 + $0x58] sm:$0xff]
        %vm413 = vcmask 785408
        %v415 = vsel %vm413, %v368, 0
        %v418 = vsel %vm413, %v369, 0
        %v421 = vsel %vm413, %v370, 0
        %v424 = vsel %vm413, %v371, 0
        %v427 = vsel %vm413, %v372, 0
        %v430 = vsel %vm413, %v373, 0
        %v433 = vsel %vm413, %v374, 0
        %v436 = vsel %vm413, %v375, 0
        %v439 = vsel %vm413, %v376, 0
        %v442 = vsel %vm413, %v377, 0
        %v445 = vsel %vm413, %v378, 0
        %v448 = vsel %vm413, %v379, 0
        %v451 = vsel %vm413, %v380, 0
        %v454 = vsel %vm413, %v381, 0
        %v457 = vsel %vm413, %v382, 0
        %v460 = vsel %vm413, %v383, 0
        %v463 = vsel %vm413, %v384, 0
        %v466 = vsel %vm413, %v385, 0
        %v469 = vsel %vm413, %v386, 0
        %v472 = vsel %vm413, %v387, 0
        %v475 = vsel %vm413, %v388, 0
        %v478 = vsel %vm413, %v389, 0
        %v481 = vsel %vm413, %v390, 0
        %v484 = vsel %vm413, %v391, 0
        %v487 = vsel %vm413, %v392, 0
        %v490 = vsel %vm413, %v393, 0
        %v493 = vsel %vm413, %v394, 0
        %v496 = vsel %vm413, %v395, 0
        %v499 = vsel %vm413, %v396, 0
        %v502 = vsel %vm413, %v397, 0
        %v505 = vsel %vm413, %v398, 0
        %v508 = vsel %vm413, %v399, 0
        %510 = vmatpush.msra.mxu0 0.0
        %511 = vmatpush.msra.mxu0 0.0
        %512 = vmatpush.msra.mxu0 0.0
        %513 = vmatpush.msra.mxu0 0.0
        %514 = vmatpush.msra.mxu0 %v412
        %515 = vmatpush.msra.mxu0 %v411
        %516 = vmatpush.msra.mxu0 %v410
        %517 = vmatpush.msra.mxu0 %v409
        %518 = vmatpush.msra.mxu0 %v408
        %519 = vmatpush.msra.mxu0 %v407
        %520 = vmatpush.msra.mxu0 %v406
        %521 = vmatpush.msra.mxu0 %v405
        %522 = vmatpush.msra.mxu0 %v404
        %523 = vmatpush.msra.mxu0 %v403
        %524 = vmatpush.msra.mxu0 %v402
        %525 = vmatpush.msra.mxu0 %v401
        %526 = vmatmul.f32.gmra.mxu0 %v415
        %v527 = vpop.f32.mrf.mxu0
        %v528 = vadd.f32 0.0, %v527
        %529 = vmatmul.f32.gmra.mxu0 %v418
        %v530 = vpop.f32.mrf.mxu0
        %v531 = vadd.f32 0.0, %v530
        %532 = vmatmul.f32.gmra.mxu0 %v421
        %v533 = vpop.f32.mrf.mxu0
        %v534 = vadd.f32 0.0, %v533
        %535 = vmatmul.f32.gmra.mxu0 %v424
        %v536 = vpop.f32.mrf.mxu0
        %v537 = vadd.f32 0.0, %v536
        %538 = vmatmul.f32.gmra.mxu0 %v427
        %v539 = vpop.f32.mrf.mxu0
        %v540 = vadd.f32 0.0, %v539
        %541 = vmatmul.f32.gmra.mxu0 %v430
        %v542 = vpop.f32.mrf.mxu0
        %v543 = vadd.f32 0.0, %v542
        %544 = vmatmul.f32.gmra.mxu0 %v433
        %v545 = vpop.f32.mrf.mxu0
        %v546 = vadd.f32 0.0, %v545
        %547 = vmatmul.f32.gmra.mxu0 %v436
        %v548 = vpop.f32.mrf.mxu0
        %v549 = vadd.f32 0.0, %v548
        %550 = vmatmul.f32.gmra.mxu0 %v439
        %v551 = vpop.f32.mrf.mxu0
        %v552 = vadd.f32 0.0, %v551
        %553 = vmatmul.f32.gmra.mxu0 %v442
        %v554 = vpop.f32.mrf.mxu0
        %v555 = vadd.f32 0.0, %v554
        %556 = vmatmul.f32.gmra.mxu0 %v445
        %v557 = vpop.f32.mrf.mxu0
        %v558 = vadd.f32 0.0, %v557
        %559 = vmatmul.f32.gmra.mxu0 %v448
        %v560 = vpop.f32.mrf.mxu0
        %v561 = vadd.f32 0.0, %v560
        %562 = vmatmul.f32.gmra.mxu0 %v451
        %v563 = vpop.f32.mrf.mxu0
        %v564 = vadd.f32 0.0, %v563
        %565 = vmatmul.f32.gmra.mxu0 %v454
        %v566 = vpop.f32.mrf.mxu0
        %v567 = vadd.f32 0.0, %v566
        %568 = vmatmul.f32.gmra.mxu0 %v457
        %v569 = vpop.f32.mrf.mxu0
        %v570 = vadd.f32 0.0, %v569
        %571 = vmatmul.f32.gmra.mxu0 %v460
        %v572 = vpop.f32.mrf.mxu0
        %v573 = vadd.f32 0.0, %v572
        %574 = vmatmul.f32.gmra.mxu0 %v463
        %v575 = vpop.f32.mrf.mxu0
        %v576 = vadd.f32 0.0, %v575
        %577 = vmatmul.f32.gmra.mxu0 %v466
        %v578 = vpop.f32.mrf.mxu0
        %v579 = vadd.f32 0.0, %v578
        %580 = vmatmul.f32.gmra.mxu0 %v469
        %v581 = vpop.f32.mrf.mxu0
        %v582 = vadd.f32 0.0, %v581
        %583 = vmatmul.f32.gmra.mxu0 %v472
        %v584 = vpop.f32.mrf.mxu0
        %v585 = vadd.f32 0.0, %v584
        %586 = vmatmul.f32.gmra.mxu0 %v475
        %v587 = vpop.f32.mrf.mxu0
        %v588 = vadd.f32 0.0, %v587
        %589 = vmatmul.f32.gmra.mxu0 %v478
        %v590 = vpop.f32.mrf.mxu0
        %v591 = vadd.f32 0.0, %v590
        %592 = vmatmul.f32.gmra.mxu0 %v481
        %v593 = vpop.f32.mrf.mxu0
        %v594 = vadd.f32 0.0, %v593
        %595 = vmatmul.f32.gmra.mxu0 %v484
        %v596 = vpop.f32.mrf.mxu0
        %v597 = vadd.f32 0.0, %v596
        %598 = vmatmul.f32.gmra.mxu0 %v487
        %v599 = vpop.f32.mrf.mxu0
        %v600 = vadd.f32 0.0, %v599
        %601 = vmatmul.f32.gmra.mxu0 %v490
        %v602 = vpop.f32.mrf.mxu0
        %v603 = vadd.f32 0.0, %v602
        %604 = vmatmul.f32.gmra.mxu0 %v493
        %v605 = vpop.f32.mrf.mxu0
        %v606 = vadd.f32 0.0, %v605
        %607 = vmatmul.f32.gmra.mxu0 %v496
        %v608 = vpop.f32.mrf.mxu0
        %v609 = vadd.f32 0.0, %v608
        %610 = vmatmul.f32.gmra.mxu0 %v499
        %v611 = vpop.f32.mrf.mxu0
        %v612 = vadd.f32 0.0, %v611
        %613 = vmatmul.f32.gmra.mxu0 %v502
        %v614 = vpop.f32.mrf.mxu0
        %v615 = vadd.f32 0.0, %v614
        %616 = vmatmul.f32.gmra.mxu0 %v505
        %v617 = vpop.f32.mrf.mxu0
        %v618 = vadd.f32 0.0, %v617
        %619 = vmatmul.f32.gmra.mxu0 %v508
        %v620 = vpop.f32.mrf.mxu0
        %v621 = vadd.f32 0.0, %v620
        %622 = vdwg.mxu0
        %v624 = vsel %vm413, %v324, 0
        %v627 = vsel %vm413, %v325, 0
        %v630 = vsel %vm413, %v326, 0
        %v633 = vsel %vm413, %v327, 0
        %v636 = vsel %vm413, %v328, 0
        %v639 = vsel %vm413, %v329, 0
        %v642 = vsel %vm413, %v330, 0
        %v645 = vsel %vm413, %v331, 0
        %v648 = vsel %vm413, %v332, 0
        %v651 = vsel %vm413, %v333, 0
        %v654 = vsel %vm413, %v334, 0
        %v657 = vsel %vm413, %v335, 0
        %v660 = vsel %vm413, %v336, 0
        %v663 = vsel %vm413, %v337, 0
        %v666 = vsel %vm413, %v338, 0
        %v669 = vsel %vm413, %v339, 0
        %v672 = vsel %vm413, %v340, 0
        %v675 = vsel %vm413, %v341, 0
        %v678 = vsel %vm413, %v342, 0
        %v681 = vsel %vm413, %v343, 0
        %v684 = vsel %vm413, %v344, 0
        %v687 = vsel %vm413, %v345, 0
        %v690 = vsel %vm413, %v346, 0
        %v693 = vsel %vm413, %v347, 0
        %v696 = vsel %vm413, %v348, 0
        %v699 = vsel %vm413, %v349, 0
        %v702 = vsel %vm413, %v350, 0
        %v705 = vsel %vm413, %v351, 0
        %v708 = vsel %vm413, %v352, 0
        %v711 = vsel %vm413, %v353, 0
        %v714 = vsel %vm413, %v354, 0
        %v717 = vsel %vm413, %v355, 0
        %719 = vmatpush.msra.mxu0 0.0
        %720 = vmatpush.msra.mxu0 0.0
        %721 = vmatpush.msra.mxu0 0.0
        %722 = vmatpush.msra.mxu0 0.0
        %723 = vmatpush.msra.mxu0 %v367
        %724 = vmatpush.msra.mxu0 %v366
        %725 = vmatpush.msra.mxu0 %v365
        %726 = vmatpush.msra.mxu0 %v364
        %727 = vmatpush.msra.mxu0 %v363
        %728 = vmatpush.msra.mxu0 %v362
        %729 = vmatpush.msra.mxu0 %v361
        %730 = vmatpush.msra.mxu0 %v360
        %731 = vmatpush.msra.mxu0 %v359
        %732 = vmatpush.msra.mxu0 %v358
        %733 = vmatpush.msra.mxu0 %v357
        %734 = vmatpush.msra.mxu0 %v356
        %735 = vmatmul.f32.gmra.mxu0 %v624
        %v736 = vpop.f32.mrf.mxu0
        %v737 = vadd.f32 %v528, %v736
        %738 = vmatmul.f32.gmra.mxu0 %v627
        %v739 = vpop.f32.mrf.mxu0
        %v740 = vadd.f32 %v531, %v739
        %741 = vmatmul.f32.gmra.mxu0 %v630
        %v742 = vpop.f32.mrf.mxu0
        %v743 = vadd.f32 %v534, %v742
        %744 = vmatmul.f32.gmra.mxu0 %v633
        %v745 = vpop.f32.mrf.mxu0
        %v746 = vadd.f32 %v537, %v745
        %747 = vmatmul.f32.gmra.mxu0 %v636
        %v748 = vpop.f32.mrf.mxu0
        %v749 = vadd.f32 %v540, %v748
        %750 = vmatmul.f32.gmra.mxu0 %v639
        %v751 = vpop.f32.mrf.mxu0
        %v752 = vadd.f32 %v543, %v751
        %753 = vmatmul.f32.gmra.mxu0 %v642
        %v754 = vpop.f32.mrf.mxu0
        %v755 = vadd.f32 %v546, %v754
        %756 = vmatmul.f32.gmra.mxu0 %v645
        %v757 = vpop.f32.mrf.mxu0
        %v758 = vadd.f32 %v549, %v757
        %759 = vmatmul.f32.gmra.mxu0 %v648
        %v760 = vpop.f32.mrf.mxu0
        %v761 = vadd.f32 %v552, %v760
        %762 = vmatmul.f32.gmra.mxu0 %v651
        %v763 = vpop.f32.mrf.mxu0
        %v764 = vadd.f32 %v555, %v763
        %765 = vmatmul.f32.gmra.mxu0 %v654
        %v766 = vpop.f32.mrf.mxu0
        %v767 = vadd.f32 %v558, %v766
        %768 = vmatmul.f32.gmra.mxu0 %v657
        %v769 = vpop.f32.mrf.mxu0
        %v770 = vadd.f32 %v561, %v769
        %771 = vmatmul.f32.gmra.mxu0 %v660
        %v772 = vpop.f32.mrf.mxu0
        %v773 = vadd.f32 %v564, %v772
        %774 = vmatmul.f32.gmra.mxu0 %v663
        %v775 = vpop.f32.mrf.mxu0
        %v776 = vadd.f32 %v567, %v775
        %777 = vmatmul.f32.gmra.mxu0 %v666
        %v778 = vpop.f32.mrf.mxu0
        %v779 = vadd.f32 %v570, %v778
        %780 = vmatmul.f32.gmra.mxu0 %v669
        %v781 = vpop.f32.mrf.mxu0
        %v782 = vadd.f32 %v573, %v781
        %783 = vmatmul.f32.gmra.mxu0 %v672
        %v784 = vpop.f32.mrf.mxu0
        %v785 = vadd.f32 %v576, %v784
        %786 = vmatmul.f32.gmra.mxu0 %v675
        %v787 = vpop.f32.mrf.mxu0
        %v788 = vadd.f32 %v579, %v787
        %789 = vmatmul.f32.gmra.mxu0 %v678
        %v790 = vpop.f32.mrf.mxu0
        %v791 = vadd.f32 %v582, %v790
        %792 = vmatmul.f32.gmra.mxu0 %v681
        %v793 = vpop.f32.mrf.mxu0
        %v794 = vadd.f32 %v585, %v793
        %795 = vmatmul.f32.gmra.mxu0 %v684
        %v796 = vpop.f32.mrf.mxu0
        %v797 = vadd.f32 %v588, %v796
        %798 = vmatmul.f32.gmra.mxu0 %v687
        %v799 = vpop.f32.mrf.mxu0
        %v800 = vadd.f32 %v591, %v799
        %801 = vmatmul.f32.gmra.mxu0 %v690
        %v802 = vpop.f32.mrf.mxu0
        %v803 = vadd.f32 %v594, %v802
        %804 = vmatmul.f32.gmra.mxu0 %v693
        %v805 = vpop.f32.mrf.mxu0
        %v806 = vadd.f32 %v597, %v805
        %807 = vmatmul.f32.gmra.mxu0 %v696
        %v808 = vpop.f32.mrf.mxu0
        %v809 = vadd.f32 %v600, %v808
        %810 = vmatmul.f32.gmra.mxu0 %v699
        %v811 = vpop.f32.mrf.mxu0
        %v812 = vadd.f32 %v603, %v811
        %813 = vmatmul.f32.gmra.mxu0 %v702
        %v814 = vpop.f32.mrf.mxu0
        %v815 = vadd.f32 %v606, %v814
        %816 = vmatmul.f32.gmra.mxu0 %v705
        %v817 = vpop.f32.mrf.mxu0
        %v818 = vadd.f32 %v609, %v817
        %819 = vmatmul.f32.gmra.mxu0 %v708
        %v820 = vpop.f32.mrf.mxu0
        %v821 = vadd.f32 %v612, %v820
        %822 = vmatmul.f32.gmra.mxu0 %v711
        %v823 = vpop.f32.mrf.mxu0
        %v824 = vadd.f32 %v615, %v823
        %825 = vmatmul.f32.gmra.mxu0 %v714
        %v826 = vpop.f32.mrf.mxu0
        %v827 = vadd.f32 %v618, %v826
        %828 = vmatmul.f32.gmra.mxu0 %v717
        %v829 = vpop.f32.mrf.mxu0
        %v830 = vadd.f32 %v621, %v829
        %831 = vdwg.mxu0
        %v832 = vld [vmem:[%s291 + $0x2] sm:$0xff]
        %v833 = vld [vmem:[%s291 + $0xa] sm:$0xff]
        %v834 = vld [vmem:[%s291 + $0x1a] sm:$0xff]
        %v835 = vld [vmem:[%s291 + $0x22] sm:$0xff]
        %v836 = vld [vmem:[%s291 + $0x32] sm:$0xff]
        %v837 = vld [vmem:[%s291 + $0x3a] sm:$0xff]
        %v838 = vld [vmem:[%s291 + $0x4a] sm:$0xff]
        %v839 = vld [vmem:[%s291 + $0x52] sm:$0xff]
        %v840 = vld [vmem:[%s291 + $0x62] sm:$0xff]
        %v841 = vld [vmem:[%s291 + $0x6a] sm:$0xff]
        %v842 = vld [vmem:[%s291 + $0x7a] sm:$0xff]
        %v843 = vld [vmem:[%s291 + $0x82] sm:$0xff]
        %v844 = vld [vmem:[%s291 + $0x92] sm:$0xff]
        %v845 = vld [vmem:[%s291 + $0x9a] sm:$0xff]
        %v846 = vld [vmem:[%s291 + $0xaa] sm:$0xff]
        %v847 = vld [vmem:[%s291 + $0xb2] sm:$0xff]
        %v848 = vld [vmem:[%s291 + $0xc2] sm:$0xff]
        %v849 = vld [vmem:[%s291 + $0xca] sm:$0xff]
        %v850 = vld [vmem:[%s291 + $0xda] sm:$0xff]
        %v851 = vld [vmem:[%s291 + $0xe2] sm:$0xff]
        %v852 = vld [vmem:[%s291 + $0xf2] sm:$0xff]
        %v853 = vld [vmem:[%s291 + $0xfa] sm:$0xff]
        %v854 = vld [vmem:[%s291 + $0x10a] sm:$0xff]
        %v855 = vld [vmem:[%s291 + $0x112] sm:$0xff]
        %v856 = vld [vmem:[%s291 + $0x122] sm:$0xff]
        %v857 = vld [vmem:[%s291 + $0x12a] sm:$0xff]
        %v858 = vld [vmem:[%s291 + $0x13a] sm:$0xff]
        %v859 = vld [vmem:[%s291 + $0x142] sm:$0xff]
        %v860 = vld [vmem:[%s291 + $0x152] sm:$0xff]
        %v861 = vld [vmem:[%s291 + $0x15a] sm:$0xff]
        %v862 = vld [vmem:[%s291 + $0x16a] sm:$0xff]
        %v863 = vld [vmem:[%s291 + $0x172] sm:$0xff]
        %s864 = scalar_lea.vmem %s2, 192
        %v865 = vld [vmem:[%s864] sm:$0xff]
        %v866 = vld [vmem:[%s864 + $0x8] sm:$0xff]
        %v867 = vld [vmem:[%s864 + $0x10] sm:$0xff]
        %v868 = vld [vmem:[%s864 + $0x18] sm:$0xff]
        %v869 = vld [vmem:[%s864 + $0x20] sm:$0xff]
        %v870 = vld [vmem:[%s864 + $0x28] sm:$0xff]
        %v871 = vld [vmem:[%s864 + $0x30] sm:$0xff]
        %v872 = vld [vmem:[%s864 + $0x38] sm:$0xff]
        %v873 = vld [vmem:[%s864 + $0x40] sm:$0xff]
        %v874 = vld [vmem:[%s864 + $0x48] sm:$0xff]
        %v875 = vld [vmem:[%s864 + $0x50] sm:$0xff]
        %v876 = vld [vmem:[%s864 + $0x58] sm:$0xff]
        %v878 = vsel %vm413, %v832, 0
        %v881 = vsel %vm413, %v833, 0
        %v884 = vsel %vm413, %v834, 0
        %v887 = vsel %vm413, %v835, 0
        %v890 = vsel %vm413, %v836, 0
        %v893 = vsel %vm413, %v837, 0
        %v896 = vsel %vm413, %v838, 0
        %v899 = vsel %vm413, %v839, 0
        %v902 = vsel %vm413, %v840, 0
        %v905 = vsel %vm413, %v841, 0
        %v908 = vsel %vm413, %v842, 0
        %v911 = vsel %vm413, %v843, 0
        %v914 = vsel %vm413, %v844, 0
        %v917 = vsel %vm413, %v845, 0
        %v920 = vsel %vm413, %v846, 0
        %v923 = vsel %vm413, %v847, 0
        %v926 = vsel %vm413, %v848, 0
        %v929 = vsel %vm413, %v849, 0
        %v932 = vsel %vm413, %v850, 0
        %v935 = vsel %vm413, %v851, 0
        %v938 = vsel %vm413, %v852, 0
        %v941 = vsel %vm413, %v853, 0
        %v944 = vsel %vm413, %v854, 0
        %v947 = vsel %vm413, %v855, 0
        %v950 = vsel %vm413, %v856, 0
        %v953 = vsel %vm413, %v857, 0
        %v956 = vsel %vm413, %v858, 0
        %v959 = vsel %vm413, %v859, 0
        %v962 = vsel %vm413, %v860, 0
        %v965 = vsel %vm413, %v861, 0
        %v968 = vsel %vm413, %v862, 0
        %v971 = vsel %vm413, %v863, 0
        %973 = vmatpush.msra.mxu0 0.0
        %974 = vmatpush.msra.mxu0 0.0
        %975 = vmatpush.msra.mxu0 0.0
        %976 = vmatpush.msra.mxu0 0.0
        %977 = vmatpush.msra.mxu0 %v876
        %978 = vmatpush.msra.mxu0 %v875
        %979 = vmatpush.msra.mxu0 %v874
        %980 = vmatpush.msra.mxu0 %v873
        %981 = vmatpush.msra.mxu0 %v872
        %982 = vmatpush.msra.mxu0 %v871
        %983 = vmatpush.msra.mxu0 %v870
        %984 = vmatpush.msra.mxu0 %v869
        %985 = vmatpush.msra.mxu0 %v868
        %986 = vmatpush.msra.mxu0 %v867
        %987 = vmatpush.msra.mxu0 %v866
        %988 = vmatpush.msra.mxu0 %v865
        %989 = vmatmul.f32.gmra.mxu0 %v878
        %v990 = vpop.f32.mrf.mxu0
        %v991 = vadd.f32 0.0, %v990
        %992 = vmatmul.f32.gmra.mxu0 %v881
        %v993 = vpop.f32.mrf.mxu0
        %v994 = vadd.f32 0.0, %v993
        %995 = vmatmul.f32.gmra.mxu0 %v884
        %v996 = vpop.f32.mrf.mxu0
        %v997 = vadd.f32 0.0, %v996
        %998 = vmatmul.f32.gmra.mxu0 %v887
        %v999 = vpop.f32.mrf.mxu0
        %v1000 = vadd.f32 0.0, %v999
        %1001 = vmatmul.f32.gmra.mxu0 %v890
        %v1002 = vpop.f32.mrf.mxu0
        %v1003 = vadd.f32 0.0, %v1002
        %1004 = vmatmul.f32.gmra.mxu0 %v893
        %v1005 = vpop.f32.mrf.mxu0
        %v1006 = vadd.f32 0.0, %v1005
        %1007 = vmatmul.f32.gmra.mxu0 %v896
        %v1008 = vpop.f32.mrf.mxu0
        %v1009 = vadd.f32 0.0, %v1008
        %1010 = vmatmul.f32.gmra.mxu0 %v899
        %v1011 = vpop.f32.mrf.mxu0
        %v1012 = vadd.f32 0.0, %v1011
        %1013 = vmatmul.f32.gmra.mxu0 %v902
        %v1014 = vpop.f32.mrf.mxu0
        %v1015 = vadd.f32 0.0, %v1014
        %1016 = vmatmul.f32.gmra.mxu0 %v905
        %v1017 = vpop.f32.mrf.mxu0
        %v1018 = vadd.f32 0.0, %v1017
        %1019 = vmatmul.f32.gmra.mxu0 %v908
        %v1020 = vpop.f32.mrf.mxu0
        %v1021 = vadd.f32 0.0, %v1020
        %1022 = vmatmul.f32.gmra.mxu0 %v911
        %v1023 = vpop.f32.mrf.mxu0
        %v1024 = vadd.f32 0.0, %v1023
        %1025 = vmatmul.f32.gmra.mxu0 %v914
        %v1026 = vpop.f32.mrf.mxu0
        %v1027 = vadd.f32 0.0, %v1026
        %1028 = vmatmul.f32.gmra.mxu0 %v917
        %v1029 = vpop.f32.mrf.mxu0
        %v1030 = vadd.f32 0.0, %v1029
        %1031 = vmatmul.f32.gmra.mxu0 %v920
        %v1032 = vpop.f32.mrf.mxu0
        %v1033 = vadd.f32 0.0, %v1032
        %1034 = vmatmul.f32.gmra.mxu0 %v923
        %v1035 = vpop.f32.mrf.mxu0
        %v1036 = vadd.f32 0.0, %v1035
        %1037 = vmatmul.f32.gmra.mxu0 %v926
        %v1038 = vpop.f32.mrf.mxu0
        %v1039 = vadd.f32 0.0, %v1038
        %1040 = vmatmul.f32.gmra.mxu0 %v929
        %v1041 = vpop.f32.mrf.mxu0
        %v1042 = vadd.f32 0.0, %v1041
        %1043 = vmatmul.f32.gmra.mxu0 %v932
        %v1044 = vpop.f32.mrf.mxu0
        %v1045 = vadd.f32 0.0, %v1044
        %1046 = vmatmul.f32.gmra.mxu0 %v935
        %v1047 = vpop.f32.mrf.mxu0
        %v1048 = vadd.f32 0.0, %v1047
        %1049 = vmatmul.f32.gmra.mxu0 %v938
        %v1050 = vpop.f32.mrf.mxu0
        %v1051 = vadd.f32 0.0, %v1050
        %1052 = vmatmul.f32.gmra.mxu0 %v941
        %v1053 = vpop.f32.mrf.mxu0
        %v1054 = vadd.f32 0.0, %v1053
        %1055 = vmatmul.f32.gmra.mxu0 %v944
        %v1056 = vpop.f32.mrf.mxu0
        %v1057 = vadd.f32 0.0, %v1056
        %1058 = vmatmul.f32.gmra.mxu0 %v947
        %v1059 = vpop.f32.mrf.mxu0
        %v1060 = vadd.f32 0.0, %v1059
        %1061 = vmatmul.f32.gmra.mxu0 %v950
        %v1062 = vpop.f32.mrf.mxu0
        %v1063 = vadd.f32 0.0, %v1062
        %1064 = vmatmul.f32.gmra.mxu0 %v953
        %v1065 = vpop.f32.mrf.mxu0
        %v1066 = vadd.f32 0.0, %v1065
        %1067 = vmatmul.f32.gmra.mxu0 %v956
        %v1068 = vpop.f32.mrf.mxu0
        %v1069 = vadd.f32 0.0, %v1068
        %1070 = vmatmul.f32.gmra.mxu0 %v959
        %v1071 = vpop.f32.mrf.mxu0
        %v1072 = vadd.f32 0.0, %v1071
        %1073 = vmatmul.f32.gmra.mxu0 %v962
        %v1074 = vpop.f32.mrf.mxu0
        %v1075 = vadd.f32 0.0, %v1074
        %1076 = vmatmul.f32.gmra.mxu0 %v965
        %v1077 = vpop.f32.mrf.mxu0
        %v1078 = vadd.f32 0.0, %v1077
        %1079 = vmatmul.f32.gmra.mxu0 %v968
        %v1080 = vpop.f32.mrf.mxu0
        %v1081 = vadd.f32 0.0, %v1080
        %1082 = vmatmul.f32.gmra.mxu0 %v971
        %v1083 = vpop.f32.mrf.mxu0
        %v1084 = vadd.f32 0.0, %v1083
        %1085 = vdwg.mxu0
        %v1086 = vadd.f32 %v737, %v991
        %v1087 = vadd.f32 %v740, %v994
        %v1088 = vadd.f32 %v743, %v997
        %v1089 = vadd.f32 %v746, %v1000
        %v1090 = vadd.f32 %v749, %v1003
        %v1091 = vadd.f32 %v752, %v1006
        %v1092 = vadd.f32 %v755, %v1009
        %v1093 = vadd.f32 %v758, %v1012
        %v1094 = vadd.f32 %v761, %v1015
        %v1095 = vadd.f32 %v764, %v1018
        %v1096 = vadd.f32 %v767, %v1021
        %v1097 = vadd.f32 %v770, %v1024
        %v1098 = vadd.f32 %v773, %v1027
        %v1099 = vadd.f32 %v776, %v1030
        %v1100 = vadd.f32 %v779, %v1033
        %v1101 = vadd.f32 %v782, %v1036
        %v1102 = vadd.f32 %v785, %v1039
        %v1103 = vadd.f32 %v788, %v1042
        %v1104 = vadd.f32 %v791, %v1045
        %v1105 = vadd.f32 %v794, %v1048
        %v1106 = vadd.f32 %v797, %v1051
        %v1107 = vadd.f32 %v800, %v1054
        %v1108 = vadd.f32 %v803, %v1057
        %v1109 = vadd.f32 %v806, %v1060
        %v1110 = vadd.f32 %v809, %v1063
        %v1111 = vadd.f32 %v812, %v1066
        %v1112 = vadd.f32 %v815, %v1069
        %v1113 = vadd.f32 %v818, %v1072
        %v1114 = vadd.f32 %v821, %v1075
        %v1115 = vadd.f32 %v824, %v1078
        %v1116 = vadd.f32 %v827, %v1081
        %v1117 = vadd.f32 %v830, %v1084
        %s1118 = scalar_lea.vmem %s291, 24
        %v1119 = vld [vmem:[%s1118] sm:$0xff]
        %v1120 = vld [vmem:[%s1118 + $0x8] sm:$0xff]
        %v1121 = vld [vmem:[%s1118 + $0x18] sm:$0xff]
        %v1122 = vld [vmem:[%s1118 + $0x20] sm:$0xff]
        %v1123 = vld [vmem:[%s1118 + $0x30] sm:$0xff]
        %v1124 = vld [vmem:[%s1118 + $0x38] sm:$0xff]
        %v1125 = vld [vmem:[%s1118 + $0x48] sm:$0xff]
        %v1126 = vld [vmem:[%s1118 + $0x50] sm:$0xff]
        %v1127 = vld [vmem:[%s1118 + $0x60] sm:$0xff]
        %v1128 = vld [vmem:[%s1118 + $0x68] sm:$0xff]
        %v1129 = vld [vmem:[%s1118 + $0x78] sm:$0xff]
        %v1130 = vld [vmem:[%s1118 + $0x80] sm:$0xff]
        %v1131 = vld [vmem:[%s1118 + $0x90] sm:$0xff]
        %v1132 = vld [vmem:[%s1118 + $0x98] sm:$0xff]
        %v1133 = vld [vmem:[%s1118 + $0xa8] sm:$0xff]
        %v1134 = vld [vmem:[%s1118 + $0xb0] sm:$0xff]
        %v1135 = vld [vmem:[%s1118 + $0xc0] sm:$0xff]
        %v1136 = vld [vmem:[%s1118 + $0xc8] sm:$0xff]
        %v1137 = vld [vmem:[%s1118 + $0xd8] sm:$0xff]
        %v1138 = vld [vmem:[%s1118 + $0xe0] sm:$0xff]
        %v1139 = vld [vmem:[%s1118 + $0xf0] sm:$0xff]
        %v1140 = vld [vmem:[%s1118 + $0xf8] sm:$0xff]
        %v1141 = vld [vmem:[%s1118 + $0x108] sm:$0xff]
        %v1142 = vld [vmem:[%s1118 + $0x110] sm:$0xff]
        %v1143 = vld [vmem:[%s1118 + $0x120] sm:$0xff]
        %v1144 = vld [vmem:[%s1118 + $0x128] sm:$0xff]
        %v1145 = vld [vmem:[%s1118 + $0x138] sm:$0xff]
        %v1146 = vld [vmem:[%s1118 + $0x140] sm:$0xff]
        %v1147 = vld [vmem:[%s1118 + $0x150] sm:$0xff]
        %v1148 = vld [vmem:[%s1118 + $0x158] sm:$0xff]
        %v1149 = vld [vmem:[%s1118 + $0x168] sm:$0xff]
        %v1150 = vld [vmem:[%s1118 + $0x170] sm:$0xff]
        %s1151 = scalar_lea.vmem %s2, 288
        %v1152 = vld [vmem:[%s1151] sm:$0xff]
        %v1153 = vld [vmem:[%s1151 + $0x8] sm:$0xff]
        %v1154 = vld [vmem:[%s1151 + $0x10] sm:$0xff]
        %v1155 = vld [vmem:[%s1151 + $0x18] sm:$0xff]
        %v1156 = vld [vmem:[%s1151 + $0x20] sm:$0xff]
        %v1157 = vld [vmem:[%s1151 + $0x28] sm:$0xff]
        %v1158 = vld [vmem:[%s1151 + $0x30] sm:$0xff]
        %v1159 = vld [vmem:[%s1151 + $0x38] sm:$0xff]
        %v1160 = vld [vmem:[%s1151 + $0x40] sm:$0xff]
        %v1161 = vld [vmem:[%s1151 + $0x48] sm:$0xff]
        %v1162 = vld [vmem:[%s1151 + $0x50] sm:$0xff]
        %v1163 = vld [vmem:[%s1151 + $0x58] sm:$0xff]
        %v1165 = vsel %vm413, %v1119, 0
        %v1168 = vsel %vm413, %v1120, 0
        %v1171 = vsel %vm413, %v1121, 0
        %v1174 = vsel %vm413, %v1122, 0
        %v1177 = vsel %vm413, %v1123, 0
        %v1180 = vsel %vm413, %v1124, 0
        %v1183 = vsel %vm413, %v1125, 0
        %v1186 = vsel %vm413, %v1126, 0
        %v1189 = vsel %vm413, %v1127, 0
        %v1192 = vsel %vm413, %v1128, 0
        %v1195 = vsel %vm413, %v1129, 0
        %v1198 = vsel %vm413, %v1130, 0
        %v1201 = vsel %vm413, %v1131, 0
        %v1204 = vsel %vm413, %v1132, 0
        %v1207 = vsel %vm413, %v1133, 0
        %v1210 = vsel %vm413, %v1134, 0
        %v1213 = vsel %vm413, %v1135, 0
        %v1216 = vsel %vm413, %v1136, 0
        %v1219 = vsel %vm413, %v1137, 0
        %v1222 = vsel %vm413, %v1138, 0
        %v1225 = vsel %vm413, %v1139, 0
        %v1228 = vsel %vm413, %v1140, 0
        %v1231 = vsel %vm413, %v1141, 0
        %v1234 = vsel %vm413, %v1142, 0
        %v1237 = vsel %vm413, %v1143, 0
        %v1240 = vsel %vm413, %v1144, 0
        %v1243 = vsel %vm413, %v1145, 0
        %v1246 = vsel %vm413, %v1146, 0
        %v1249 = vsel %vm413, %v1147, 0
        %v1252 = vsel %vm413, %v1148, 0
        %v1255 = vsel %vm413, %v1149, 0
        %v1258 = vsel %vm413, %v1150, 0
        %1260 = vmatpush.msra.mxu0 0.0
        %1261 = vmatpush.msra.mxu0 0.0
        %1262 = vmatpush.msra.mxu0 0.0
        %1263 = vmatpush.msra.mxu0 0.0
        %1264 = vmatpush.msra.mxu0 %v1163
        %1265 = vmatpush.msra.mxu0 %v1162
        %1266 = vmatpush.msra.mxu0 %v1161
        %1267 = vmatpush.msra.mxu0 %v1160
        %1268 = vmatpush.msra.mxu0 %v1159
        %1269 = vmatpush.msra.mxu0 %v1158
        %1270 = vmatpush.msra.mxu0 %v1157
        %1271 = vmatpush.msra.mxu0 %v1156
        %1272 = vmatpush.msra.mxu0 %v1155
        %1273 = vmatpush.msra.mxu0 %v1154
        %1274 = vmatpush.msra.mxu0 %v1153
        %1275 = vmatpush.msra.mxu0 %v1152
        %1276 = vmatmul.f32.gmra.mxu0 %v1165
        %v1277 = vpop.f32.mrf.mxu0
        %v1278 = vadd.f32 0.0, %v1277
        %1279 = vmatmul.f32.gmra.mxu0 %v1168
        %v1280 = vpop.f32.mrf.mxu0
        %v1281 = vadd.f32 0.0, %v1280
        %1282 = vmatmul.f32.gmra.mxu0 %v1171
        %v1283 = vpop.f32.mrf.mxu0
        %v1284 = vadd.f32 0.0, %v1283
        %1285 = vmatmul.f32.gmra.mxu0 %v1174
        %v1286 = vpop.f32.mrf.mxu0
        %v1287 = vadd.f32 0.0, %v1286
        %1288 = vmatmul.f32.gmra.mxu0 %v1177
        %v1289 = vpop.f32.mrf.mxu0
        %v1290 = vadd.f32 0.0, %v1289
        %1291 = vmatmul.f32.gmra.mxu0 %v1180
        %v1292 = vpop.f32.mrf.mxu0
        %v1293 = vadd.f32 0.0, %v1292
        %1294 = vmatmul.f32.gmra.mxu0 %v1183
        %v1295 = vpop.f32.mrf.mxu0
        %v1296 = vadd.f32 0.0, %v1295
        %1297 = vmatmul.f32.gmra.mxu0 %v1186
        %v1298 = vpop.f32.mrf.mxu0
        %v1299 = vadd.f32 0.0, %v1298
        %1300 = vmatmul.f32.gmra.mxu0 %v1189
        %v1301 = vpop.f32.mrf.mxu0
        %v1302 = vadd.f32 0.0, %v1301
        %1303 = vmatmul.f32.gmra.mxu0 %v1192
        %v1304 = vpop.f32.mrf.mxu0
        %v1305 = vadd.f32 0.0, %v1304
        %1306 = vmatmul.f32.gmra.mxu0 %v1195
        %v1307 = vpop.f32.mrf.mxu0
        %v1308 = vadd.f32 0.0, %v1307
        %1309 = vmatmul.f32.gmra.mxu0 %v1198
        %v1310 = vpop.f32.mrf.mxu0
        %v1311 = vadd.f32 0.0, %v1310
        %1312 = vmatmul.f32.gmra.mxu0 %v1201
        %v1313 = vpop.f32.mrf.mxu0
        %v1314 = vadd.f32 0.0, %v1313
        %1315 = vmatmul.f32.gmra.mxu0 %v1204
        %v1316 = vpop.f32.mrf.mxu0
        %v1317 = vadd.f32 0.0, %v1316
        %1318 = vmatmul.f32.gmra.mxu0 %v1207
        %v1319 = vpop.f32.mrf.mxu0
        %v1320 = vadd.f32 0.0, %v1319
        %1321 = vmatmul.f32.gmra.mxu0 %v1210
        %v1322 = vpop.f32.mrf.mxu0
        %v1323 = vadd.f32 0.0, %v1322
        %1324 = vmatmul.f32.gmra.mxu0 %v1213
        %v1325 = vpop.f32.mrf.mxu0
        %v1326 = vadd.f32 0.0, %v1325
        %1327 = vmatmul.f32.gmra.mxu0 %v1216
        %v1328 = vpop.f32.mrf.mxu0
        %v1329 = vadd.f32 0.0, %v1328
        %1330 = vmatmul.f32.gmra.mxu0 %v1219
        %v1331 = vpop.f32.mrf.mxu0
        %v1332 = vadd.f32 0.0, %v1331
        %1333 = vmatmul.f32.gmra.mxu0 %v1222
        %v1334 = vpop.f32.mrf.mxu0
        %v1335 = vadd.f32 0.0, %v1334
        %1336 = vmatmul.f32.gmra.mxu0 %v1225
        %v1337 = vpop.f32.mrf.mxu0
        %v1338 = vadd.f32 0.0, %v1337
        %1339 = vmatmul.f32.gmra.mxu0 %v1228
        %v1340 = vpop.f32.mrf.mxu0
        %v1341 = vadd.f32 0.0, %v1340
        %1342 = vmatmul.f32.gmra.mxu0 %v1231
        %v1343 = vpop.f32.mrf.mxu0
        %v1344 = vadd.f32 0.0, %v1343
        %1345 = vmatmul.f32.gmra.mxu0 %v1234
        %v1346 = vpop.f32.mrf.mxu0
        %v1347 = vadd.f32 0.0, %v1346
        %1348 = vmatmul.f32.gmra.mxu0 %v1237
        %v1349 = vpop.f32.mrf.mxu0
        %v1350 = vadd.f32 0.0, %v1349
        %1351 = vmatmul.f32.gmra.mxu0 %v1240
        %v1352 = vpop.f32.mrf.mxu0
        %v1353 = vadd.f32 0.0, %v1352
        %1354 = vmatmul.f32.gmra.mxu0 %v1243
        %v1355 = vpop.f32.mrf.mxu0
        %v1356 = vadd.f32 0.0, %v1355
        %1357 = vmatmul.f32.gmra.mxu0 %v1246
        %v1358 = vpop.f32.mrf.mxu0
        %v1359 = vadd.f32 0.0, %v1358
        %1360 = vmatmul.f32.gmra.mxu0 %v1249
        %v1361 = vpop.f32.mrf.mxu0
        %v1362 = vadd.f32 0.0, %v1361
        %1363 = vmatmul.f32.gmra.mxu0 %v1252
        %v1364 = vpop.f32.mrf.mxu0
        %v1365 = vadd.f32 0.0, %v1364
        %1366 = vmatmul.f32.gmra.mxu0 %v1255
        %v1367 = vpop.f32.mrf.mxu0
        %v1368 = vadd.f32 0.0, %v1367
        %1369 = vmatmul.f32.gmra.mxu0 %v1258
        %v1370 = vpop.f32.mrf.mxu0
        %v1371 = vadd.f32 0.0, %v1370
        %1372 = vdwg.mxu0
        %v1373 = vadd.f32 %v1086, %v1278
        %v1374 = vadd.f32 %v1087, %v1281
        %v1375 = vadd.f32 %v1088, %v1284
        %v1376 = vadd.f32 %v1089, %v1287
        %v1377 = vadd.f32 %v1090, %v1290
        %v1378 = vadd.f32 %v1091, %v1293
        %v1379 = vadd.f32 %v1092, %v1296
        %v1380 = vadd.f32 %v1093, %v1299
        %v1381 = vadd.f32 %v1094, %v1302
        %v1382 = vadd.f32 %v1095, %v1305
        %v1383 = vadd.f32 %v1096, %v1308
        %v1384 = vadd.f32 %v1097, %v1311
        %v1385 = vadd.f32 %v1098, %v1314
        %v1386 = vadd.f32 %v1099, %v1317
        %v1387 = vadd.f32 %v1100, %v1320
        %v1388 = vadd.f32 %v1101, %v1323
        %v1389 = vadd.f32 %v1102, %v1326
        %v1390 = vadd.f32 %v1103, %v1329
        %v1391 = vadd.f32 %v1104, %v1332
        %v1392 = vadd.f32 %v1105, %v1335
        %v1393 = vadd.f32 %v1106, %v1338
        %v1394 = vadd.f32 %v1107, %v1341
        %v1395 = vadd.f32 %v1108, %v1344
        %v1396 = vadd.f32 %v1109, %v1347
        %v1397 = vadd.f32 %v1110, %v1350
        %v1398 = vadd.f32 %v1111, %v1353
        %v1399 = vadd.f32 %v1112, %v1356
        %v1400 = vadd.f32 %v1113, %v1359
        %v1401 = vadd.f32 %v1114, %v1362
        %v1402 = vadd.f32 %v1115, %v1365
        %v1403 = vadd.f32 %v1116, %v1368
        %v1404 = vadd.f32 %v1117, %v1371
        %v1405 = vld [vmem:[%s1118 + $0x1] sm:$0xff]
        %v1406 = vld [vmem:[%s1118 + $0x9] sm:$0xff]
        %v1407 = vld [vmem:[%s1118 + $0x19] sm:$0xff]
        %v1408 = vld [vmem:[%s1118 + $0x21] sm:$0xff]
        %v1409 = vld [vmem:[%s1118 + $0x31] sm:$0xff]
        %v1410 = vld [vmem:[%s1118 + $0x39] sm:$0xff]
        %v1411 = vld [vmem:[%s1118 + $0x49] sm:$0xff]
        %v1412 = vld [vmem:[%s1118 + $0x51] sm:$0xff]
        %v1413 = vld [vmem:[%s1118 + $0x61] sm:$0xff]
        %v1414 = vld [vmem:[%s1118 + $0x69] sm:$0xff]
        %v1415 = vld [vmem:[%s1118 + $0x79] sm:$0xff]
        %v1416 = vld [vmem:[%s1118 + $0x81] sm:$0xff]
        %v1417 = vld [vmem:[%s1118 + $0x91] sm:$0xff]
        %v1418 = vld [vmem:[%s1118 + $0x99] sm:$0xff]
        %v1419 = vld [vmem:[%s1118 + $0xa9] sm:$0xff]
        %v1420 = vld [vmem:[%s1118 + $0xb1] sm:$0xff]
        %v1421 = vld [vmem:[%s1118 + $0xc1] sm:$0xff]
        %v1422 = vld [vmem:[%s1118 + $0xc9] sm:$0xff]
        %v1423 = vld [vmem:[%s1118 + $0xd9] sm:$0xff]
        %v1424 = vld [vmem:[%s1118 + $0xe1] sm:$0xff]
        %v1425 = vld [vmem:[%s1118 + $0xf1] sm:$0xff]
        %v1426 = vld [vmem:[%s1118 + $0xf9] sm:$0xff]
        %v1427 = vld [vmem:[%s1118 + $0x109] sm:$0xff]
        %v1428 = vld [vmem:[%s1118 + $0x111] sm:$0xff]
        %v1429 = vld [vmem:[%s1118 + $0x121] sm:$0xff]
        %v1430 = vld [vmem:[%s1118 + $0x129] sm:$0xff]
        %v1431 = vld [vmem:[%s1118 + $0x139] sm:$0xff]
        %v1432 = vld [vmem:[%s1118 + $0x141] sm:$0xff]
        %v1433 = vld [vmem:[%s1118 + $0x151] sm:$0xff]
        %v1434 = vld [vmem:[%s1118 + $0x159] sm:$0xff]
        %v1435 = vld [vmem:[%s1118 + $0x169] sm:$0xff]
        %v1436 = vld [vmem:[%s1118 + $0x171] sm:$0xff]
        %s1437 = scalar_lea.vmem %s2, 384
        %v1438 = vld [vmem:[%s1437] sm:$0xff]
        %v1439 = vld [vmem:[%s1437 + $0x8] sm:$0xff]
        %v1440 = vld [vmem:[%s1437 + $0x10] sm:$0xff]
        %v1441 = vld [vmem:[%s1437 + $0x18] sm:$0xff]
        %v1442 = vld [vmem:[%s1437 + $0x20] sm:$0xff]
        %v1443 = vld [vmem:[%s1437 + $0x28] sm:$0xff]
        %v1444 = vld [vmem:[%s1437 + $0x30] sm:$0xff]
        %v1445 = vld [vmem:[%s1437 + $0x38] sm:$0xff]
        %v1446 = vld [vmem:[%s1437 + $0x40] sm:$0xff]
        %v1447 = vld [vmem:[%s1437 + $0x48] sm:$0xff]
        %v1448 = vld [vmem:[%s1437 + $0x50] sm:$0xff]
        %v1449 = vld [vmem:[%s1437 + $0x58] sm:$0xff]
        %v1451 = vsel %vm413, %v1405, 0
        %v1454 = vsel %vm413, %v1406, 0
        %v1457 = vsel %vm413, %v1407, 0
        %v1460 = vsel %vm413, %v1408, 0
        %v1463 = vsel %vm413, %v1409, 0
        %v1466 = vsel %vm413, %v1410, 0
        %v1469 = vsel %vm413, %v1411, 0
        %v1472 = vsel %vm413, %v1412, 0
        %v1475 = vsel %vm413, %v1413, 0
        %v1478 = vsel %vm413, %v1414, 0
        %v1481 = vsel %vm413, %v1415, 0
        %v1484 = vsel %vm413, %v1416, 0
        %v1487 = vsel %vm413, %v1417, 0
        %v1490 = vsel %vm413, %v1418, 0
        %v1493 = vsel %vm413, %v1419, 0
        %v1496 = vsel %vm413, %v1420, 0
        %v1499 = vsel %vm413, %v1421, 0
        %v1502 = vsel %vm413, %v1422, 0
        %v1505 = vsel %vm413, %v1423, 0
        %v1508 = vsel %vm413, %v1424, 0
        %v1511 = vsel %vm413, %v1425, 0
        %v1514 = vsel %vm413, %v1426, 0
        %v1517 = vsel %vm413, %v1427, 0
        %v1520 = vsel %vm413, %v1428, 0
        %v1523 = vsel %vm413, %v1429, 0
        %v1526 = vsel %vm413, %v1430, 0
        %v1529 = vsel %vm413, %v1431, 0
        %v1532 = vsel %vm413, %v1432, 0
        %v1535 = vsel %vm413, %v1433, 0
        %v1538 = vsel %vm413, %v1434, 0
        %v1541 = vsel %vm413, %v1435, 0
        %v1544 = vsel %vm413, %v1436, 0
        %1546 = vmatpush.msra.mxu0 0.0
        %1547 = vmatpush.msra.mxu0 0.0
        %1548 = vmatpush.msra.mxu0 0.0
        %1549 = vmatpush.msra.mxu0 0.0
        %1550 = vmatpush.msra.mxu0 %v1449
        %1551 = vmatpush.msra.mxu0 %v1448
        %1552 = vmatpush.msra.mxu0 %v1447
        %1553 = vmatpush.msra.mxu0 %v1446
        %1554 = vmatpush.msra.mxu0 %v1445
        %1555 = vmatpush.msra.mxu0 %v1444
        %1556 = vmatpush.msra.mxu0 %v1443
        %1557 = vmatpush.msra.mxu0 %v1442
        %1558 = vmatpush.msra.mxu0 %v1441
        %1559 = vmatpush.msra.mxu0 %v1440
        %1560 = vmatpush.msra.mxu0 %v1439
        %1561 = vmatpush.msra.mxu0 %v1438
        %1562 = vmatmul.f32.gmra.mxu0 %v1451
        %v1563 = vpop.f32.mrf.mxu0
        %v1564 = vadd.f32 0.0, %v1563
        %1565 = vmatmul.f32.gmra.mxu0 %v1454
        %v1566 = vpop.f32.mrf.mxu0
        %v1567 = vadd.f32 0.0, %v1566
        %1568 = vmatmul.f32.gmra.mxu0 %v1457
        %v1569 = vpop.f32.mrf.mxu0
        %v1570 = vadd.f32 0.0, %v1569
        %1571 = vmatmul.f32.gmra.mxu0 %v1460
        %v1572 = vpop.f32.mrf.mxu0
        %v1573 = vadd.f32 0.0, %v1572
        %1574 = vmatmul.f32.gmra.mxu0 %v1463
        %v1575 = vpop.f32.mrf.mxu0
        %v1576 = vadd.f32 0.0, %v1575
        %1577 = vmatmul.f32.gmra.mxu0 %v1466
        %v1578 = vpop.f32.mrf.mxu0
        %v1579 = vadd.f32 0.0, %v1578
        %1580 = vmatmul.f32.gmra.mxu0 %v1469
        %v1581 = vpop.f32.mrf.mxu0
        %v1582 = vadd.f32 0.0, %v1581
        %1583 = vmatmul.f32.gmra.mxu0 %v1472
        %v1584 = vpop.f32.mrf.mxu0
        %v1585 = vadd.f32 0.0, %v1584
        %1586 = vmatmul.f32.gmra.mxu0 %v1475
        %v1587 = vpop.f32.mrf.mxu0
        %v1588 = vadd.f32 0.0, %v1587
        %1589 = vmatmul.f32.gmra.mxu0 %v1478
        %v1590 = vpop.f32.mrf.mxu0
        %v1591 = vadd.f32 0.0, %v1590
        %1592 = vmatmul.f32.gmra.mxu0 %v1481
        %v1593 = vpop.f32.mrf.mxu0
        %v1594 = vadd.f32 0.0, %v1593
        %1595 = vmatmul.f32.gmra.mxu0 %v1484
        %v1596 = vpop.f32.mrf.mxu0
        %v1597 = vadd.f32 0.0, %v1596
        %1598 = vmatmul.f32.gmra.mxu0 %v1487
        %v1599 = vpop.f32.mrf.mxu0
        %v1600 = vadd.f32 0.0, %v1599
        %1601 = vmatmul.f32.gmra.mxu0 %v1490
        %v1602 = vpop.f32.mrf.mxu0
        %v1603 = vadd.f32 0.0, %v1602
        %1604 = vmatmul.f32.gmra.mxu0 %v1493
        %v1605 = vpop.f32.mrf.mxu0
        %v1606 = vadd.f32 0.0, %v1605
        %1607 = vmatmul.f32.gmra.mxu0 %v1496
        %v1608 = vpop.f32.mrf.mxu0
        %v1609 = vadd.f32 0.0, %v1608
        %1610 = vmatmul.f32.gmra.mxu0 %v1499
        %v1611 = vpop.f32.mrf.mxu0
        %v1612 = vadd.f32 0.0, %v1611
        %1613 = vmatmul.f32.gmra.mxu0 %v1502
        %v1614 = vpop.f32.mrf.mxu0
        %v1615 = vadd.f32 0.0, %v1614
        %1616 = vmatmul.f32.gmra.mxu0 %v1505
        %v1617 = vpop.f32.mrf.mxu0
        %v1618 = vadd.f32 0.0, %v1617
        %1619 = vmatmul.f32.gmra.mxu0 %v1508
        %v1620 = vpop.f32.mrf.mxu0
        %v1621 = vadd.f32 0.0, %v1620
        %1622 = vmatmul.f32.gmra.mxu0 %v1511
        %v1623 = vpop.f32.mrf.mxu0
        %v1624 = vadd.f32 0.0, %v1623
        %1625 = vmatmul.f32.gmra.mxu0 %v1514
        %v1626 = vpop.f32.mrf.mxu0
        %v1627 = vadd.f32 0.0, %v1626
        %1628 = vmatmul.f32.gmra.mxu0 %v1517
        %v1629 = vpop.f32.mrf.mxu0
        %v1630 = vadd.f32 0.0, %v1629
        %1631 = vmatmul.f32.gmra.mxu0 %v1520
        %v1632 = vpop.f32.mrf.mxu0
        %v1633 = vadd.f32 0.0, %v1632
        %1634 = vmatmul.f32.gmra.mxu0 %v1523
        %v1635 = vpop.f32.mrf.mxu0
        %v1636 = vadd.f32 0.0, %v1635
        %1637 = vmatmul.f32.gmra.mxu0 %v1526
        %v1638 = vpop.f32.mrf.mxu0
        %v1639 = vadd.f32 0.0, %v1638
        %1640 = vmatmul.f32.gmra.mxu0 %v1529
        %v1641 = vpop.f32.mrf.mxu0
        %v1642 = vadd.f32 0.0, %v1641
        %1643 = vmatmul.f32.gmra.mxu0 %v1532
        %v1644 = vpop.f32.mrf.mxu0
        %v1645 = vadd.f32 0.0, %v1644
        %1646 = vmatmul.f32.gmra.mxu0 %v1535
        %v1647 = vpop.f32.mrf.mxu0
        %v1648 = vadd.f32 0.0, %v1647
        %1649 = vmatmul.f32.gmra.mxu0 %v1538
        %v1650 = vpop.f32.mrf.mxu0
        %v1651 = vadd.f32 0.0, %v1650
        %1652 = vmatmul.f32.gmra.mxu0 %v1541
        %v1653 = vpop.f32.mrf.mxu0
        %v1654 = vadd.f32 0.0, %v1653
        %1655 = vmatmul.f32.gmra.mxu0 %v1544
        %v1656 = vpop.f32.mrf.mxu0
        %v1657 = vadd.f32 0.0, %v1656
        %1658 = vdwg.mxu0
        %v1659 = vadd.f32 %v1373, %v1564
        %v1660 = vadd.f32 %v1374, %v1567
        %v1661 = vadd.f32 %v1375, %v1570
        %v1662 = vadd.f32 %v1376, %v1573
        %v1663 = vadd.f32 %v1377, %v1576
        %v1664 = vadd.f32 %v1378, %v1579
        %v1665 = vadd.f32 %v1379, %v1582
        %v1666 = vadd.f32 %v1380, %v1585
        %v1667 = vadd.f32 %v1381, %v1588
        %v1668 = vadd.f32 %v1382, %v1591
        %v1669 = vadd.f32 %v1383, %v1594
        %v1670 = vadd.f32 %v1384, %v1597
        %v1671 = vadd.f32 %v1385, %v1600
        %v1672 = vadd.f32 %v1386, %v1603
        %v1673 = vadd.f32 %v1387, %v1606
        %v1674 = vadd.f32 %v1388, %v1609
        %v1675 = vadd.f32 %v1389, %v1612
        %v1676 = vadd.f32 %v1390, %v1615
        %v1677 = vadd.f32 %v1391, %v1618
        %v1678 = vadd.f32 %v1392, %v1621
        %v1679 = vadd.f32 %v1393, %v1624
        %v1680 = vadd.f32 %v1394, %v1627
        %v1681 = vadd.f32 %v1395, %v1630
        %v1682 = vadd.f32 %v1396, %v1633
        %v1683 = vadd.f32 %v1397, %v1636
        %v1684 = vadd.f32 %v1398, %v1639
        %v1685 = vadd.f32 %v1399, %v1642
        %v1686 = vadd.f32 %v1400, %v1645
        %v1687 = vadd.f32 %v1401, %v1648
        %v1688 = vadd.f32 %v1402, %v1651
        %v1689 = vadd.f32 %v1403, %v1654
        %v1690 = vadd.f32 %v1404, %v1657
        %v1691 = vld [vmem:[%s1118 + $0x2] sm:$0xff]
        %v1692 = vld [vmem:[%s1118 + $0xa] sm:$0xff]
        %v1693 = vld [vmem:[%s1118 + $0x1a] sm:$0xff]
        %v1694 = vld [vmem:[%s1118 + $0x22] sm:$0xff]
        %v1695 = vld [vmem:[%s1118 + $0x32] sm:$0xff]
        %v1696 = vld [vmem:[%s1118 + $0x3a] sm:$0xff]
        %v1697 = vld [vmem:[%s1118 + $0x4a] sm:$0xff]
        %v1698 = vld [vmem:[%s1118 + $0x52] sm:$0xff]
        %v1699 = vld [vmem:[%s1118 + $0x62] sm:$0xff]
        %v1700 = vld [vmem:[%s1118 + $0x6a] sm:$0xff]
        %v1701 = vld [vmem:[%s1118 + $0x7a] sm:$0xff]
        %v1702 = vld [vmem:[%s1118 + $0x82] sm:$0xff]
        %v1703 = vld [vmem:[%s1118 + $0x92] sm:$0xff]
        %v1704 = vld [vmem:[%s1118 + $0x9a] sm:$0xff]
        %v1705 = vld [vmem:[%s1118 + $0xaa] sm:$0xff]
        %v1706 = vld [vmem:[%s1118 + $0xb2] sm:$0xff]
        %v1707 = vld [vmem:[%s1118 + $0xc2] sm:$0xff]
        %v1708 = vld [vmem:[%s1118 + $0xca] sm:$0xff]
        %v1709 = vld [vmem:[%s1118 + $0xda] sm:$0xff]
        %v1710 = vld [vmem:[%s1118 + $0xe2] sm:$0xff]
        %v1711 = vld [vmem:[%s1118 + $0xf2] sm:$0xff]
        %v1712 = vld [vmem:[%s1118 + $0xfa] sm:$0xff]
        %v1713 = vld [vmem:[%s1118 + $0x10a] sm:$0xff]
        %v1714 = vld [vmem:[%s1118 + $0x112] sm:$0xff]
        %v1715 = vld [vmem:[%s1118 + $0x122] sm:$0xff]
        %v1716 = vld [vmem:[%s1118 + $0x12a] sm:$0xff]
        %v1717 = vld [vmem:[%s1118 + $0x13a] sm:$0xff]
        %v1718 = vld [vmem:[%s1118 + $0x142] sm:$0xff]
        %v1719 = vld [vmem:[%s1118 + $0x152] sm:$0xff]
        %v1720 = vld [vmem:[%s1118 + $0x15a] sm:$0xff]
        %v1721 = vld [vmem:[%s1118 + $0x16a] sm:$0xff]
        %v1722 = vld [vmem:[%s1118 + $0x172] sm:$0xff]
        %s1723 = scalar_lea.vmem %s2, 480
        %v1724 = vld [vmem:[%s1723] sm:$0xff]
        %v1725 = vld [vmem:[%s1723 + $0x8] sm:$0xff]
        %v1726 = vld [vmem:[%s1723 + $0x10] sm:$0xff]
        %v1727 = vld [vmem:[%s1723 + $0x18] sm:$0xff]
        %v1728 = vld [vmem:[%s1723 + $0x20] sm:$0xff]
        %v1729 = vld [vmem:[%s1723 + $0x28] sm:$0xff]
        %v1730 = vld [vmem:[%s1723 + $0x30] sm:$0xff]
        %v1731 = vld [vmem:[%s1723 + $0x38] sm:$0xff]
        %v1732 = vld [vmem:[%s1723 + $0x40] sm:$0xff]
        %v1733 = vld [vmem:[%s1723 + $0x48] sm:$0xff]
        %v1734 = vld [vmem:[%s1723 + $0x50] sm:$0xff]
        %v1735 = vld [vmem:[%s1723 + $0x58] sm:$0xff]
        %v1737 = vsel %vm413, %v1691, 0
        %v1740 = vsel %vm413, %v1692, 0
        %v1743 = vsel %vm413, %v1693, 0
        %v1746 = vsel %vm413, %v1694, 0
        %v1749 = vsel %vm413, %v1695, 0
        %v1752 = vsel %vm413, %v1696, 0
        %v1755 = vsel %vm413, %v1697, 0
        %v1758 = vsel %vm413, %v1698, 0
        %v1761 = vsel %vm413, %v1699, 0
        %v1764 = vsel %vm413, %v1700, 0
        %v1767 = vsel %vm413, %v1701, 0
        %v1770 = vsel %vm413, %v1702, 0
        %v1773 = vsel %vm413, %v1703, 0
        %v1776 = vsel %vm413, %v1704, 0
        %v1779 = vsel %vm413, %v1705, 0
        %v1782 = vsel %vm413, %v1706, 0
        %v1785 = vsel %vm413, %v1707, 0
        %v1788 = vsel %vm413, %v1708, 0
        %v1791 = vsel %vm413, %v1709, 0
        %v1794 = vsel %vm413, %v1710, 0
        %v1797 = vsel %vm413, %v1711, 0
        %v1800 = vsel %vm413, %v1712, 0
        %v1803 = vsel %vm413, %v1713, 0
        %v1806 = vsel %vm413, %v1714, 0
        %v1809 = vsel %vm413, %v1715, 0
        %v1812 = vsel %vm413, %v1716, 0
        %v1815 = vsel %vm413, %v1717, 0
        %v1818 = vsel %vm413, %v1718, 0
        %v1821 = vsel %vm413, %v1719, 0
        %v1824 = vsel %vm413, %v1720, 0
        %v1827 = vsel %vm413, %v1721, 0
        %v1830 = vsel %vm413, %v1722, 0
        %1832 = vmatpush.msra.mxu0 0.0
        %1833 = vmatpush.msra.mxu0 0.0
        %1834 = vmatpush.msra.mxu0 0.0
        %1835 = vmatpush.msra.mxu0 0.0
        %1836 = vmatpush.msra.mxu0 %v1735
        %1837 = vmatpush.msra.mxu0 %v1734
        %1838 = vmatpush.msra.mxu0 %v1733
        %1839 = vmatpush.msra.mxu0 %v1732
        %1840 = vmatpush.msra.mxu0 %v1731
        %1841 = vmatpush.msra.mxu0 %v1730
        %1842 = vmatpush.msra.mxu0 %v1729
        %1843 = vmatpush.msra.mxu0 %v1728
        %1844 = vmatpush.msra.mxu0 %v1727
        %1845 = vmatpush.msra.mxu0 %v1726
        %1846 = vmatpush.msra.mxu0 %v1725
        %1847 = vmatpush.msra.mxu0 %v1724
        %1848 = vmatmul.f32.gmra.mxu0 %v1737
        %v1849 = vpop.f32.mrf.mxu0
        %v1850 = vadd.f32 0.0, %v1849
        %1851 = vmatmul.f32.gmra.mxu0 %v1740
        %v1852 = vpop.f32.mrf.mxu0
        %v1853 = vadd.f32 0.0, %v1852
        %1854 = vmatmul.f32.gmra.mxu0 %v1743
        %v1855 = vpop.f32.mrf.mxu0
        %v1856 = vadd.f32 0.0, %v1855
        %1857 = vmatmul.f32.gmra.mxu0 %v1746
        %v1858 = vpop.f32.mrf.mxu0
        %v1859 = vadd.f32 0.0, %v1858
        %1860 = vmatmul.f32.gmra.mxu0 %v1749
        %v1861 = vpop.f32.mrf.mxu0
        %v1862 = vadd.f32 0.0, %v1861
        %1863 = vmatmul.f32.gmra.mxu0 %v1752
        %v1864 = vpop.f32.mrf.mxu0
        %v1865 = vadd.f32 0.0, %v1864
        %1866 = vmatmul.f32.gmra.mxu0 %v1755
        %v1867 = vpop.f32.mrf.mxu0
        %v1868 = vadd.f32 0.0, %v1867
        %1869 = vmatmul.f32.gmra.mxu0 %v1758
        %v1870 = vpop.f32.mrf.mxu0
        %v1871 = vadd.f32 0.0, %v1870
        %1872 = vmatmul.f32.gmra.mxu0 %v1761
        %v1873 = vpop.f32.mrf.mxu0
        %v1874 = vadd.f32 0.0, %v1873
        %1875 = vmatmul.f32.gmra.mxu0 %v1764
        %v1876 = vpop.f32.mrf.mxu0
        %v1877 = vadd.f32 0.0, %v1876
        %1878 = vmatmul.f32.gmra.mxu0 %v1767
        %v1879 = vpop.f32.mrf.mxu0
        %v1880 = vadd.f32 0.0, %v1879
        %1881 = vmatmul.f32.gmra.mxu0 %v1770
        %v1882 = vpop.f32.mrf.mxu0
        %v1883 = vadd.f32 0.0, %v1882
        %1884 = vmatmul.f32.gmra.mxu0 %v1773
        %v1885 = vpop.f32.mrf.mxu0
        %v1886 = vadd.f32 0.0, %v1885
        %1887 = vmatmul.f32.gmra.mxu0 %v1776
        %v1888 = vpop.f32.mrf.mxu0
        %v1889 = vadd.f32 0.0, %v1888
        %1890 = vmatmul.f32.gmra.mxu0 %v1779
        %v1891 = vpop.f32.mrf.mxu0
        %v1892 = vadd.f32 0.0, %v1891
        %1893 = vmatmul.f32.gmra.mxu0 %v1782
        %v1894 = vpop.f32.mrf.mxu0
        %v1895 = vadd.f32 0.0, %v1894
        %1896 = vmatmul.f32.gmra.mxu0 %v1785
        %v1897 = vpop.f32.mrf.mxu0
        %v1898 = vadd.f32 0.0, %v1897
        %1899 = vmatmul.f32.gmra.mxu0 %v1788
        %v1900 = vpop.f32.mrf.mxu0
        %v1901 = vadd.f32 0.0, %v1900
        %1902 = vmatmul.f32.gmra.mxu0 %v1791
        %v1903 = vpop.f32.mrf.mxu0
        %v1904 = vadd.f32 0.0, %v1903
        %1905 = vmatmul.f32.gmra.mxu0 %v1794
        %v1906 = vpop.f32.mrf.mxu0
        %v1907 = vadd.f32 0.0, %v1906
        %1908 = vmatmul.f32.gmra.mxu0 %v1797
        %v1909 = vpop.f32.mrf.mxu0
        %v1910 = vadd.f32 0.0, %v1909
        %1911 = vmatmul.f32.gmra.mxu0 %v1800
        %v1912 = vpop.f32.mrf.mxu0
        %v1913 = vadd.f32 0.0, %v1912
        %1914 = vmatmul.f32.gmra.mxu0 %v1803
        %v1915 = vpop.f32.mrf.mxu0
        %v1916 = vadd.f32 0.0, %v1915
        %1917 = vmatmul.f32.gmra.mxu0 %v1806
        %v1918 = vpop.f32.mrf.mxu0
        %v1919 = vadd.f32 0.0, %v1918
        %1920 = vmatmul.f32.gmra.mxu0 %v1809
        %v1921 = vpop.f32.mrf.mxu0
        %v1922 = vadd.f32 0.0, %v1921
        %1923 = vmatmul.f32.gmra.mxu0 %v1812
        %v1924 = vpop.f32.mrf.mxu0
        %v1925 = vadd.f32 0.0, %v1924
        %1926 = vmatmul.f32.gmra.mxu0 %v1815
        %v1927 = vpop.f32.mrf.mxu0
        %v1928 = vadd.f32 0.0, %v1927
        %1929 = vmatmul.f32.gmra.mxu0 %v1818
        %v1930 = vpop.f32.mrf.mxu0
        %v1931 = vadd.f32 0.0, %v1930
        %1932 = vmatmul.f32.gmra.mxu0 %v1821
        %v1933 = vpop.f32.mrf.mxu0
        %v1934 = vadd.f32 0.0, %v1933
        %1935 = vmatmul.f32.gmra.mxu0 %v1824
        %v1936 = vpop.f32.mrf.mxu0
        %v1937 = vadd.f32 0.0, %v1936
        %1938 = vmatmul.f32.gmra.mxu0 %v1827
        %v1939 = vpop.f32.mrf.mxu0
        %v1940 = vadd.f32 0.0, %v1939
        %1941 = vmatmul.f32.gmra.mxu0 %v1830
        %v1942 = vpop.f32.mrf.mxu0
        %v1943 = vadd.f32 0.0, %v1942
        %1944 = vdwg.mxu0
        %v1945 = vadd.f32 %v1659, %v1850
        %v1946 = vadd.f32 %v1660, %v1853
        %v1947 = vadd.f32 %v1661, %v1856
        %v1948 = vadd.f32 %v1662, %v1859
        %v1949 = vadd.f32 %v1663, %v1862
        %v1950 = vadd.f32 %v1664, %v1865
        %v1951 = vadd.f32 %v1665, %v1868
        %v1952 = vadd.f32 %v1666, %v1871
        %v1953 = vadd.f32 %v1667, %v1874
        %v1954 = vadd.f32 %v1668, %v1877
        %v1955 = vadd.f32 %v1669, %v1880
        %v1956 = vadd.f32 %v1670, %v1883
        %v1957 = vadd.f32 %v1671, %v1886
        %v1958 = vadd.f32 %v1672, %v1889
        %v1959 = vadd.f32 %v1673, %v1892
        %v1960 = vadd.f32 %v1674, %v1895
        %v1961 = vadd.f32 %v1675, %v1898
        %v1962 = vadd.f32 %v1676, %v1901
        %v1963 = vadd.f32 %v1677, %v1904
        %v1964 = vadd.f32 %v1678, %v1907
        %v1965 = vadd.f32 %v1679, %v1910
        %v1966 = vadd.f32 %v1680, %v1913
        %v1967 = vadd.f32 %v1681, %v1916
        %v1968 = vadd.f32 %v1682, %v1919
        %v1969 = vadd.f32 %v1683, %v1922
        %v1970 = vadd.f32 %v1684, %v1925
        %v1971 = vadd.f32 %v1685, %v1928
        %v1972 = vadd.f32 %v1686, %v1931
        %v1973 = vadd.f32 %v1687, %v1934
        %v1974 = vadd.f32 %v1688, %v1937
        %v1975 = vadd.f32 %v1689, %v1940
        %v1976 = vadd.f32 %v1690, %v1943
        %s1977 = scalar_lea.vmem %s291, 48
        %v1978 = vld [vmem:[%s1977] sm:$0xff]
        %v1979 = vld [vmem:[%s1977 + $0x8] sm:$0xff]
        %v1980 = vld [vmem:[%s1977 + $0x18] sm:$0xff]
        %v1981 = vld [vmem:[%s1977 + $0x20] sm:$0xff]
        %v1982 = vld [vmem:[%s1977 + $0x30] sm:$0xff]
        %v1983 = vld [vmem:[%s1977 + $0x38] sm:$0xff]
        %v1984 = vld [vmem:[%s1977 + $0x48] sm:$0xff]
        %v1985 = vld [vmem:[%s1977 + $0x50] sm:$0xff]
        %v1986 = vld [vmem:[%s1977 + $0x60] sm:$0xff]
        %v1987 = vld [vmem:[%s1977 + $0x68] sm:$0xff]
        %v1988 = vld [vmem:[%s1977 + $0x78] sm:$0xff]
        %v1989 = vld [vmem:[%s1977 + $0x80] sm:$0xff]
        %v1990 = vld [vmem:[%s1977 + $0x90] sm:$0xff]
        %v1991 = vld [vmem:[%s1977 + $0x98] sm:$0xff]
        %v1992 = vld [vmem:[%s1977 + $0xa8] sm:$0xff]
        %v1993 = vld [vmem:[%s1977 + $0xb0] sm:$0xff]
        %v1994 = vld [vmem:[%s1977 + $0xc0] sm:$0xff]
        %v1995 = vld [vmem:[%s1977 + $0xc8] sm:$0xff]
        %v1996 = vld [vmem:[%s1977 + $0xd8] sm:$0xff]
        %v1997 = vld [vmem:[%s1977 + $0xe0] sm:$0xff]
        %v1998 = vld [vmem:[%s1977 + $0xf0] sm:$0xff]
        %v1999 = vld [vmem:[%s1977 + $0xf8] sm:$0xff]
        %v2000 = vld [vmem:[%s1977 + $0x108] sm:$0xff]
        %v2001 = vld [vmem:[%s1977 + $0x110] sm:$0xff]
        %v2002 = vld [vmem:[%s1977 + $0x120] sm:$0xff]
        %v2003 = vld [vmem:[%s1977 + $0x128] sm:$0xff]
        %v2004 = vld [vmem:[%s1977 + $0x138] sm:$0xff]
        %v2005 = vld [vmem:[%s1977 + $0x140] sm:$0xff]
        %v2006 = vld [vmem:[%s1977 + $0x150] sm:$0xff]
        %v2007 = vld [vmem:[%s1977 + $0x158] sm:$0xff]
        %v2008 = vld [vmem:[%s1977 + $0x168] sm:$0xff]
        %v2009 = vld [vmem:[%s1977 + $0x170] sm:$0xff]
        %s2010 = scalar_lea.vmem %s2, 576
        %v2011 = vld [vmem:[%s2010] sm:$0xff]
        %v2012 = vld [vmem:[%s2010 + $0x8] sm:$0xff]
        %v2013 = vld [vmem:[%s2010 + $0x10] sm:$0xff]
        %v2014 = vld [vmem:[%s2010 + $0x18] sm:$0xff]
        %v2015 = vld [vmem:[%s2010 + $0x20] sm:$0xff]
        %v2016 = vld [vmem:[%s2010 + $0x28] sm:$0xff]
        %v2017 = vld [vmem:[%s2010 + $0x30] sm:$0xff]
        %v2018 = vld [vmem:[%s2010 + $0x38] sm:$0xff]
        %v2019 = vld [vmem:[%s2010 + $0x40] sm:$0xff]
        %v2020 = vld [vmem:[%s2010 + $0x48] sm:$0xff]
        %v2021 = vld [vmem:[%s2010 + $0x50] sm:$0xff]
        %v2022 = vld [vmem:[%s2010 + $0x58] sm:$0xff]
        %v2024 = vsel %vm413, %v1978, 0
        %v2027 = vsel %vm413, %v1979, 0
        %v2030 = vsel %vm413, %v1980, 0
        %v2033 = vsel %vm413, %v1981, 0
        %v2036 = vsel %vm413, %v1982, 0
        %v2039 = vsel %vm413, %v1983, 0
        %v2042 = vsel %vm413, %v1984, 0
        %v2045 = vsel %vm413, %v1985, 0
        %v2048 = vsel %vm413, %v1986, 0
        %v2051 = vsel %vm413, %v1987, 0
        %v2054 = vsel %vm413, %v1988, 0
        %v2057 = vsel %vm413, %v1989, 0
        %v2060 = vsel %vm413, %v1990, 0
        %v2063 = vsel %vm413, %v1991, 0
        %v2066 = vsel %vm413, %v1992, 0
        %v2069 = vsel %vm413, %v1993, 0
        %v2072 = vsel %vm413, %v1994, 0
        %v2075 = vsel %vm413, %v1995, 0
        %v2078 = vsel %vm413, %v1996, 0
        %v2081 = vsel %vm413, %v1997, 0
        %v2084 = vsel %vm413, %v1998, 0
        %v2087 = vsel %vm413, %v1999, 0
        %v2090 = vsel %vm413, %v2000, 0
        %v2093 = vsel %vm413, %v2001, 0
        %v2096 = vsel %vm413, %v2002, 0
        %v2099 = vsel %vm413, %v2003, 0
        %v2102 = vsel %vm413, %v2004, 0
        %v2105 = vsel %vm413, %v2005, 0
        %v2108 = vsel %vm413, %v2006, 0
        %v2111 = vsel %vm413, %v2007, 0
        %v2114 = vsel %vm413, %v2008, 0
        %v2117 = vsel %vm413, %v2009, 0
        %2119 = vmatpush.msra.mxu0 0.0
        %2120 = vmatpush.msra.mxu0 0.0
        %2121 = vmatpush.msra.mxu0 0.0
        %2122 = vmatpush.msra.mxu0 0.0
        %2123 = vmatpush.msra.mxu0 %v2022
        %2124 = vmatpush.msra.mxu0 %v2021
        %2125 = vmatpush.msra.mxu0 %v2020
        %2126 = vmatpush.msra.mxu0 %v2019
        %2127 = vmatpush.msra.mxu0 %v2018
        %2128 = vmatpush.msra.mxu0 %v2017
        %2129 = vmatpush.msra.mxu0 %v2016
        %2130 = vmatpush.msra.mxu0 %v2015
        %2131 = vmatpush.msra.mxu0 %v2014
        %2132 = vmatpush.msra.mxu0 %v2013
        %2133 = vmatpush.msra.mxu0 %v2012
        %2134 = vmatpush.msra.mxu0 %v2011
        %2135 = vmatmul.f32.gmra.mxu0 %v2024
        %v2136 = vpop.f32.mrf.mxu0
        %v2137 = vadd.f32 0.0, %v2136
        %2138 = vmatmul.f32.gmra.mxu0 %v2027
        %v2139 = vpop.f32.mrf.mxu0
        %v2140 = vadd.f32 0.0, %v2139
        %2141 = vmatmul.f32.gmra.mxu0 %v2030
        %v2142 = vpop.f32.mrf.mxu0
        %v2143 = vadd.f32 0.0, %v2142
        %2144 = vmatmul.f32.gmra.mxu0 %v2033
        %v2145 = vpop.f32.mrf.mxu0
        %v2146 = vadd.f32 0.0, %v2145
        %2147 = vmatmul.f32.gmra.mxu0 %v2036
        %v2148 = vpop.f32.mrf.mxu0
        %v2149 = vadd.f32 0.0, %v2148
        %2150 = vmatmul.f32.gmra.mxu0 %v2039
        %v2151 = vpop.f32.mrf.mxu0
        %v2152 = vadd.f32 0.0, %v2151
        %2153 = vmatmul.f32.gmra.mxu0 %v2042
        %v2154 = vpop.f32.mrf.mxu0
        %v2155 = vadd.f32 0.0, %v2154
        %2156 = vmatmul.f32.gmra.mxu0 %v2045
        %v2157 = vpop.f32.mrf.mxu0
        %v2158 = vadd.f32 0.0, %v2157
        %2159 = vmatmul.f32.gmra.mxu0 %v2048
        %v2160 = vpop.f32.mrf.mxu0
        %v2161 = vadd.f32 0.0, %v2160
        %2162 = vmatmul.f32.gmra.mxu0 %v2051
        %v2163 = vpop.f32.mrf.mxu0
        %v2164 = vadd.f32 0.0, %v2163
        %2165 = vmatmul.f32.gmra.mxu0 %v2054
        %v2166 = vpop.f32.mrf.mxu0
        %v2167 = vadd.f32 0.0, %v2166
        %2168 = vmatmul.f32.gmra.mxu0 %v2057
        %v2169 = vpop.f32.mrf.mxu0
        %v2170 = vadd.f32 0.0, %v2169
        %2171 = vmatmul.f32.gmra.mxu0 %v2060
        %v2172 = vpop.f32.mrf.mxu0
        %v2173 = vadd.f32 0.0, %v2172
        %2174 = vmatmul.f32.gmra.mxu0 %v2063
        %v2175 = vpop.f32.mrf.mxu0
        %v2176 = vadd.f32 0.0, %v2175
        %2177 = vmatmul.f32.gmra.mxu0 %v2066
        %v2178 = vpop.f32.mrf.mxu0
        %v2179 = vadd.f32 0.0, %v2178
        %2180 = vmatmul.f32.gmra.mxu0 %v2069
        %v2181 = vpop.f32.mrf.mxu0
        %v2182 = vadd.f32 0.0, %v2181
        %2183 = vmatmul.f32.gmra.mxu0 %v2072
        %v2184 = vpop.f32.mrf.mxu0
        %v2185 = vadd.f32 0.0, %v2184
        %2186 = vmatmul.f32.gmra.mxu0 %v2075
        %v2187 = vpop.f32.mrf.mxu0
        %v2188 = vadd.f32 0.0, %v2187
        %2189 = vmatmul.f32.gmra.mxu0 %v2078
        %v2190 = vpop.f32.mrf.mxu0
        %v2191 = vadd.f32 0.0, %v2190
        %2192 = vmatmul.f32.gmra.mxu0 %v2081
        %v2193 = vpop.f32.mrf.mxu0
        %v2194 = vadd.f32 0.0, %v2193
        %2195 = vmatmul.f32.gmra.mxu0 %v2084
        %v2196 = vpop.f32.mrf.mxu0
        %v2197 = vadd.f32 0.0, %v2196
        %2198 = vmatmul.f32.gmra.mxu0 %v2087
        %v2199 = vpop.f32.mrf.mxu0
        %v2200 = vadd.f32 0.0, %v2199
        %2201 = vmatmul.f32.gmra.mxu0 %v2090
        %v2202 = vpop.f32.mrf.mxu0
        %v2203 = vadd.f32 0.0, %v2202
        %2204 = vmatmul.f32.gmra.mxu0 %v2093
        %v2205 = vpop.f32.mrf.mxu0
        %v2206 = vadd.f32 0.0, %v2205
        %2207 = vmatmul.f32.gmra.mxu0 %v2096
        %v2208 = vpop.f32.mrf.mxu0
        %v2209 = vadd.f32 0.0, %v2208
        %2210 = vmatmul.f32.gmra.mxu0 %v2099
        %v2211 = vpop.f32.mrf.mxu0
        %v2212 = vadd.f32 0.0, %v2211
        %2213 = vmatmul.f32.gmra.mxu0 %v2102
        %v2214 = vpop.f32.mrf.mxu0
        %v2215 = vadd.f32 0.0, %v2214
        %2216 = vmatmul.f32.gmra.mxu0 %v2105
        %v2217 = vpop.f32.mrf.mxu0
        %v2218 = vadd.f32 0.0, %v2217
        %2219 = vmatmul.f32.gmra.mxu0 %v2108
        %v2220 = vpop.f32.mrf.mxu0
        %v2221 = vadd.f32 0.0, %v2220
        %2222 = vmatmul.f32.gmra.mxu0 %v2111
        %v2223 = vpop.f32.mrf.mxu0
        %v2224 = vadd.f32 0.0, %v2223
        %2225 = vmatmul.f32.gmra.mxu0 %v2114
        %v2226 = vpop.f32.mrf.mxu0
        %v2227 = vadd.f32 0.0, %v2226
        %2228 = vmatmul.f32.gmra.mxu0 %v2117
        %v2229 = vpop.f32.mrf.mxu0
        %v2230 = vadd.f32 0.0, %v2229
        %2231 = vdwg.mxu0
        %v2232 = vadd.f32 %v1945, %v2137
        %v2233 = vadd.f32 %v1946, %v2140
        %v2234 = vadd.f32 %v1947, %v2143
        %v2235 = vadd.f32 %v1948, %v2146
        %v2236 = vadd.f32 %v1949, %v2149
        %v2237 = vadd.f32 %v1950, %v2152
        %v2238 = vadd.f32 %v1951, %v2155
        %v2239 = vadd.f32 %v1952, %v2158
        %v2240 = vadd.f32 %v1953, %v2161
        %v2241 = vadd.f32 %v1954, %v2164
        %v2242 = vadd.f32 %v1955, %v2167
        %v2243 = vadd.f32 %v1956, %v2170
        %v2244 = vadd.f32 %v1957, %v2173
        %v2245 = vadd.f32 %v1958, %v2176
        %v2246 = vadd.f32 %v1959, %v2179
        %v2247 = vadd.f32 %v1960, %v2182
        %v2248 = vadd.f32 %v1961, %v2185
        %v2249 = vadd.f32 %v1962, %v2188
        %v2250 = vadd.f32 %v1963, %v2191
        %v2251 = vadd.f32 %v1964, %v2194
        %v2252 = vadd.f32 %v1965, %v2197
        %v2253 = vadd.f32 %v1966, %v2200
        %v2254 = vadd.f32 %v1967, %v2203
        %v2255 = vadd.f32 %v1968, %v2206
        %v2256 = vadd.f32 %v1969, %v2209
        %v2257 = vadd.f32 %v1970, %v2212
        %v2258 = vadd.f32 %v1971, %v2215
        %v2259 = vadd.f32 %v1972, %v2218
        %v2260 = vadd.f32 %v1973, %v2221
        %v2261 = vadd.f32 %v1974, %v2224
        %v2262 = vadd.f32 %v1975, %v2227
        %v2263 = vadd.f32 %v1976, %v2230
        %v2264 = vld [vmem:[%s1977 + $0x1] sm:$0xff]
        %v2265 = vld [vmem:[%s1977 + $0x9] sm:$0xff]
        %v2266 = vld [vmem:[%s1977 + $0x19] sm:$0xff]
        %v2267 = vld [vmem:[%s1977 + $0x21] sm:$0xff]
        %v2268 = vld [vmem:[%s1977 + $0x31] sm:$0xff]
        %v2269 = vld [vmem:[%s1977 + $0x39] sm:$0xff]
        %v2270 = vld [vmem:[%s1977 + $0x49] sm:$0xff]
        %v2271 = vld [vmem:[%s1977 + $0x51] sm:$0xff]
        %v2272 = vld [vmem:[%s1977 + $0x61] sm:$0xff]
        %v2273 = vld [vmem:[%s1977 + $0x69] sm:$0xff]
        %v2274 = vld [vmem:[%s1977 + $0x79] sm:$0xff]
        %v2275 = vld [vmem:[%s1977 + $0x81] sm:$0xff]
        %v2276 = vld [vmem:[%s1977 + $0x91] sm:$0xff]
        %v2277 = vld [vmem:[%s1977 + $0x99] sm:$0xff]
        %v2278 = vld [vmem:[%s1977 + $0xa9] sm:$0xff]
        %v2279 = vld [vmem:[%s1977 + $0xb1] sm:$0xff]
        %v2280 = vld [vmem:[%s1977 + $0xc1] sm:$0xff]
        %v2281 = vld [vmem:[%s1977 + $0xc9] sm:$0xff]
        %v2282 = vld [vmem:[%s1977 + $0xd9] sm:$0xff]
        %v2283 = vld [vmem:[%s1977 + $0xe1] sm:$0xff]
        %v2284 = vld [vmem:[%s1977 + $0xf1] sm:$0xff]
        %v2285 = vld [vmem:[%s1977 + $0xf9] sm:$0xff]
        %v2286 = vld [vmem:[%s1977 + $0x109] sm:$0xff]
        %v2287 = vld [vmem:[%s1977 + $0x111] sm:$0xff]
        %v2288 = vld [vmem:[%s1977 + $0x121] sm:$0xff]
        %v2289 = vld [vmem:[%s1977 + $0x129] sm:$0xff]
        %v2290 = vld [vmem:[%s1977 + $0x139] sm:$0xff]
        %v2291 = vld [vmem:[%s1977 + $0x141] sm:$0xff]
        %v2292 = vld [vmem:[%s1977 + $0x151] sm:$0xff]
        %v2293 = vld [vmem:[%s1977 + $0x159] sm:$0xff]
        %v2294 = vld [vmem:[%s1977 + $0x169] sm:$0xff]
        %v2295 = vld [vmem:[%s1977 + $0x171] sm:$0xff]
        %s2296 = scalar_lea.vmem %s2, 672
        %v2297 = vld [vmem:[%s2296] sm:$0xff]
        %v2298 = vld [vmem:[%s2296 + $0x8] sm:$0xff]
        %v2299 = vld [vmem:[%s2296 + $0x10] sm:$0xff]
        %v2300 = vld [vmem:[%s2296 + $0x18] sm:$0xff]
        %v2301 = vld [vmem:[%s2296 + $0x20] sm:$0xff]
        %v2302 = vld [vmem:[%s2296 + $0x28] sm:$0xff]
        %v2303 = vld [vmem:[%s2296 + $0x30] sm:$0xff]
        %v2304 = vld [vmem:[%s2296 + $0x38] sm:$0xff]
        %v2305 = vld [vmem:[%s2296 + $0x40] sm:$0xff]
        %v2306 = vld [vmem:[%s2296 + $0x48] sm:$0xff]
        %v2307 = vld [vmem:[%s2296 + $0x50] sm:$0xff]
        %v2308 = vld [vmem:[%s2296 + $0x58] sm:$0xff]
        %v2310 = vsel %vm413, %v2264, 0
        %v2313 = vsel %vm413, %v2265, 0
        %v2316 = vsel %vm413, %v2266, 0
        %v2319 = vsel %vm413, %v2267, 0
        %v2322 = vsel %vm413, %v2268, 0
        %v2325 = vsel %vm413, %v2269, 0
        %v2328 = vsel %vm413, %v2270, 0
        %v2331 = vsel %vm413, %v2271, 0
        %v2334 = vsel %vm413, %v2272, 0
        %v2337 = vsel %vm413, %v2273, 0
        %v2340 = vsel %vm413, %v2274, 0
        %v2343 = vsel %vm413, %v2275, 0
        %v2346 = vsel %vm413, %v2276, 0
        %v2349 = vsel %vm413, %v2277, 0
        %v2352 = vsel %vm413, %v2278, 0
        %v2355 = vsel %vm413, %v2279, 0
        %v2358 = vsel %vm413, %v2280, 0
        %v2361 = vsel %vm413, %v2281, 0
        %v2364 = vsel %vm413, %v2282, 0
        %v2367 = vsel %vm413, %v2283, 0
        %v2370 = vsel %vm413, %v2284, 0
        %v2373 = vsel %vm413, %v2285, 0
        %v2376 = vsel %vm413, %v2286, 0
        %v2379 = vsel %vm413, %v2287, 0
        %v2382 = vsel %vm413, %v2288, 0
        %v2385 = vsel %vm413, %v2289, 0
        %v2388 = vsel %vm413, %v2290, 0
        %v2391 = vsel %vm413, %v2291, 0
        %v2394 = vsel %vm413, %v2292, 0
        %v2397 = vsel %vm413, %v2293, 0
        %v2400 = vsel %vm413, %v2294, 0
        %v2403 = vsel %vm413, %v2295, 0
        %2405 = vmatpush.msra.mxu0 0.0
        %2406 = vmatpush.msra.mxu0 0.0
        %2407 = vmatpush.msra.mxu0 0.0
        %2408 = vmatpush.msra.mxu0 0.0
        %2409 = vmatpush.msra.mxu0 %v2308
        %2410 = vmatpush.msra.mxu0 %v2307
        %2411 = vmatpush.msra.mxu0 %v2306
        %2412 = vmatpush.msra.mxu0 %v2305
        %2413 = vmatpush.msra.mxu0 %v2304
        %2414 = vmatpush.msra.mxu0 %v2303
        %2415 = vmatpush.msra.mxu0 %v2302
        %2416 = vmatpush.msra.mxu0 %v2301
        %2417 = vmatpush.msra.mxu0 %v2300
        %2418 = vmatpush.msra.mxu0 %v2299
        %2419 = vmatpush.msra.mxu0 %v2298
        %2420 = vmatpush.msra.mxu0 %v2297
        %2421 = vmatmul.f32.gmra.mxu0 %v2310
        %v2422 = vpop.f32.mrf.mxu0
        %v2423 = vadd.f32 0.0, %v2422
        %2424 = vmatmul.f32.gmra.mxu0 %v2313
        %v2425 = vpop.f32.mrf.mxu0
        %v2426 = vadd.f32 0.0, %v2425
        %2427 = vmatmul.f32.gmra.mxu0 %v2316
        %v2428 = vpop.f32.mrf.mxu0
        %v2429 = vadd.f32 0.0, %v2428
        %2430 = vmatmul.f32.gmra.mxu0 %v2319
        %v2431 = vpop.f32.mrf.mxu0
        %v2432 = vadd.f32 0.0, %v2431
        %2433 = vmatmul.f32.gmra.mxu0 %v2322
        %v2434 = vpop.f32.mrf.mxu0
        %v2435 = vadd.f32 0.0, %v2434
        %2436 = vmatmul.f32.gmra.mxu0 %v2325
        %v2437 = vpop.f32.mrf.mxu0
        %v2438 = vadd.f32 0.0, %v2437
        %2439 = vmatmul.f32.gmra.mxu0 %v2328
        %v2440 = vpop.f32.mrf.mxu0
        %v2441 = vadd.f32 0.0, %v2440
        %2442 = vmatmul.f32.gmra.mxu0 %v2331
        %v2443 = vpop.f32.mrf.mxu0
        %v2444 = vadd.f32 0.0, %v2443
        %2445 = vmatmul.f32.gmra.mxu0 %v2334
        %v2446 = vpop.f32.mrf.mxu0
        %v2447 = vadd.f32 0.0, %v2446
        %2448 = vmatmul.f32.gmra.mxu0 %v2337
        %v2449 = vpop.f32.mrf.mxu0
        %v2450 = vadd.f32 0.0, %v2449
        %2451 = vmatmul.f32.gmra.mxu0 %v2340
        %v2452 = vpop.f32.mrf.mxu0
        %v2453 = vadd.f32 0.0, %v2452
        %2454 = vmatmul.f32.gmra.mxu0 %v2343
        %v2455 = vpop.f32.mrf.mxu0
        %v2456 = vadd.f32 0.0, %v2455
        %2457 = vmatmul.f32.gmra.mxu0 %v2346
        %v2458 = vpop.f32.mrf.mxu0
        %v2459 = vadd.f32 0.0, %v2458
        %2460 = vmatmul.f32.gmra.mxu0 %v2349
        %v2461 = vpop.f32.mrf.mxu0
        %v2462 = vadd.f32 0.0, %v2461
        %2463 = vmatmul.f32.gmra.mxu0 %v2352
        %v2464 = vpop.f32.mrf.mxu0
        %v2465 = vadd.f32 0.0, %v2464
        %2466 = vmatmul.f32.gmra.mxu0 %v2355
        %v2467 = vpop.f32.mrf.mxu0
        %v2468 = vadd.f32 0.0, %v2467
        %2469 = vmatmul.f32.gmra.mxu0 %v2358
        %v2470 = vpop.f32.mrf.mxu0
        %v2471 = vadd.f32 0.0, %v2470
        %2472 = vmatmul.f32.gmra.mxu0 %v2361
        %v2473 = vpop.f32.mrf.mxu0
        %v2474 = vadd.f32 0.0, %v2473
        %2475 = vmatmul.f32.gmra.mxu0 %v2364
        %v2476 = vpop.f32.mrf.mxu0
        %v2477 = vadd.f32 0.0, %v2476
        %2478 = vmatmul.f32.gmra.mxu0 %v2367
        %v2479 = vpop.f32.mrf.mxu0
        %v2480 = vadd.f32 0.0, %v2479
        %2481 = vmatmul.f32.gmra.mxu0 %v2370
        %v2482 = vpop.f32.mrf.mxu0
        %v2483 = vadd.f32 0.0, %v2482
        %2484 = vmatmul.f32.gmra.mxu0 %v2373
        %v2485 = vpop.f32.mrf.mxu0
        %v2486 = vadd.f32 0.0, %v2485
        %2487 = vmatmul.f32.gmra.mxu0 %v2376
        %v2488 = vpop.f32.mrf.mxu0
        %v2489 = vadd.f32 0.0, %v2488
        %2490 = vmatmul.f32.gmra.mxu0 %v2379
        %v2491 = vpop.f32.mrf.mxu0
        %v2492 = vadd.f32 0.0, %v2491
        %2493 = vmatmul.f32.gmra.mxu0 %v2382
        %v2494 = vpop.f32.mrf.mxu0
        %v2495 = vadd.f32 0.0, %v2494
        %2496 = vmatmul.f32.gmra.mxu0 %v2385
        %v2497 = vpop.f32.mrf.mxu0
        %v2498 = vadd.f32 0.0, %v2497
        %2499 = vmatmul.f32.gmra.mxu0 %v2388
        %v2500 = vpop.f32.mrf.mxu0
        %v2501 = vadd.f32 0.0, %v2500
        %2502 = vmatmul.f32.gmra.mxu0 %v2391
        %v2503 = vpop.f32.mrf.mxu0
        %v2504 = vadd.f32 0.0, %v2503
        %2505 = vmatmul.f32.gmra.mxu0 %v2394
        %v2506 = vpop.f32.mrf.mxu0
        %v2507 = vadd.f32 0.0, %v2506
        %2508 = vmatmul.f32.gmra.mxu0 %v2397
        %v2509 = vpop.f32.mrf.mxu0
        %v2510 = vadd.f32 0.0, %v2509
        %2511 = vmatmul.f32.gmra.mxu0 %v2400
        %v2512 = vpop.f32.mrf.mxu0
        %v2513 = vadd.f32 0.0, %v2512
        %2514 = vmatmul.f32.gmra.mxu0 %v2403
        %v2515 = vpop.f32.mrf.mxu0
        %v2516 = vadd.f32 0.0, %v2515
        %2517 = vdwg.mxu0
        %v2518 = vadd.f32 %v2232, %v2423
        %v2519 = vadd.f32 %v2233, %v2426
        %v2520 = vadd.f32 %v2234, %v2429
        %v2521 = vadd.f32 %v2235, %v2432
        %v2522 = vadd.f32 %v2236, %v2435
        %v2523 = vadd.f32 %v2237, %v2438
        %v2524 = vadd.f32 %v2238, %v2441
        %v2525 = vadd.f32 %v2239, %v2444
        %v2526 = vadd.f32 %v2240, %v2447
        %v2527 = vadd.f32 %v2241, %v2450
        %v2528 = vadd.f32 %v2242, %v2453
        %v2529 = vadd.f32 %v2243, %v2456
        %v2530 = vadd.f32 %v2244, %v2459
        %v2531 = vadd.f32 %v2245, %v2462
        %v2532 = vadd.f32 %v2246, %v2465
        %v2533 = vadd.f32 %v2247, %v2468
        %v2534 = vadd.f32 %v2248, %v2471
        %v2535 = vadd.f32 %v2249, %v2474
        %v2536 = vadd.f32 %v2250, %v2477
        %v2537 = vadd.f32 %v2251, %v2480
        %v2538 = vadd.f32 %v2252, %v2483
        %v2539 = vadd.f32 %v2253, %v2486
        %v2540 = vadd.f32 %v2254, %v2489
        %v2541 = vadd.f32 %v2255, %v2492
        %v2542 = vadd.f32 %v2256, %v2495
        %v2543 = vadd.f32 %v2257, %v2498
        %v2544 = vadd.f32 %v2258, %v2501
        %v2545 = vadd.f32 %v2259, %v2504
        %v2546 = vadd.f32 %v2260, %v2507
        %v2547 = vadd.f32 %v2261, %v2510
        %v2548 = vadd.f32 %v2262, %v2513
        %v2549 = vadd.f32 %v2263, %v2516
        %v2550 = vld [vmem:[%s1977 + $0x2] sm:$0xff]
        %v2551 = vld [vmem:[%s1977 + $0xa] sm:$0xff]
        %v2552 = vld [vmem:[%s1977 + $0x1a] sm:$0xff]
        %v2553 = vld [vmem:[%s1977 + $0x22] sm:$0xff]
        %v2554 = vld [vmem:[%s1977 + $0x32] sm:$0xff]
        %v2555 = vld [vmem:[%s1977 + $0x3a] sm:$0xff]
        %v2556 = vld [vmem:[%s1977 + $0x4a] sm:$0xff]
        %v2557 = vld [vmem:[%s1977 + $0x52] sm:$0xff]
        %v2558 = vld [vmem:[%s1977 + $0x62] sm:$0xff]
        %v2559 = vld [vmem:[%s1977 + $0x6a] sm:$0xff]
        %v2560 = vld [vmem:[%s1977 + $0x7a] sm:$0xff]
        %v2561 = vld [vmem:[%s1977 + $0x82] sm:$0xff]
        %v2562 = vld [vmem:[%s1977 + $0x92] sm:$0xff]
        %v2563 = vld [vmem:[%s1977 + $0x9a] sm:$0xff]
        %v2564 = vld [vmem:[%s1977 + $0xaa] sm:$0xff]
        %v2565 = vld [vmem:[%s1977 + $0xb2] sm:$0xff]
        %v2566 = vld [vmem:[%s1977 + $0xc2] sm:$0xff]
        %v2567 = vld [vmem:[%s1977 + $0xca] sm:$0xff]
        %v2568 = vld [vmem:[%s1977 + $0xda] sm:$0xff]
        %v2569 = vld [vmem:[%s1977 + $0xe2] sm:$0xff]
        %v2570 = vld [vmem:[%s1977 + $0xf2] sm:$0xff]
        %v2571 = vld [vmem:[%s1977 + $0xfa] sm:$0xff]
        %v2572 = vld [vmem:[%s1977 + $0x10a] sm:$0xff]
        %v2573 = vld [vmem:[%s1977 + $0x112] sm:$0xff]
        %v2574 = vld [vmem:[%s1977 + $0x122] sm:$0xff]
        %v2575 = vld [vmem:[%s1977 + $0x12a] sm:$0xff]
        %v2576 = vld [vmem:[%s1977 + $0x13a] sm:$0xff]
        %v2577 = vld [vmem:[%s1977 + $0x142] sm:$0xff]
        %v2578 = vld [vmem:[%s1977 + $0x152] sm:$0xff]
        %v2579 = vld [vmem:[%s1977 + $0x15a] sm:$0xff]
        %v2580 = vld [vmem:[%s1977 + $0x16a] sm:$0xff]
        %v2581 = vld [vmem:[%s1977 + $0x172] sm:$0xff]
        %s2582 = scalar_lea.vmem %s2, 768
        %v2583 = vld [vmem:[%s2582] sm:$0xff]
        %v2584 = vld [vmem:[%s2582 + $0x8] sm:$0xff]
        %v2585 = vld [vmem:[%s2582 + $0x10] sm:$0xff]
        %v2586 = vld [vmem:[%s2582 + $0x18] sm:$0xff]
        %v2587 = vld [vmem:[%s2582 + $0x20] sm:$0xff]
        %v2588 = vld [vmem:[%s2582 + $0x28] sm:$0xff]
        %v2589 = vld [vmem:[%s2582 + $0x30] sm:$0xff]
        %v2590 = vld [vmem:[%s2582 + $0x38] sm:$0xff]
        %v2591 = vld [vmem:[%s2582 + $0x40] sm:$0xff]
        %v2592 = vld [vmem:[%s2582 + $0x48] sm:$0xff]
        %v2593 = vld [vmem:[%s2582 + $0x50] sm:$0xff]
        %v2594 = vld [vmem:[%s2582 + $0x58] sm:$0xff]
        %v2596 = vsel %vm413, %v2550, 0
        %v2599 = vsel %vm413, %v2551, 0
        %v2602 = vsel %vm413, %v2552, 0
        %v2605 = vsel %vm413, %v2553, 0
        %v2608 = vsel %vm413, %v2554, 0
        %v2611 = vsel %vm413, %v2555, 0
        %v2614 = vsel %vm413, %v2556, 0
        %v2617 = vsel %vm413, %v2557, 0
        %v2620 = vsel %vm413, %v2558, 0
        %v2623 = vsel %vm413, %v2559, 0
        %v2626 = vsel %vm413, %v2560, 0
        %v2629 = vsel %vm413, %v2561, 0
        %v2632 = vsel %vm413, %v2562, 0
        %v2635 = vsel %vm413, %v2563, 0
        %v2638 = vsel %vm413, %v2564, 0
        %v2641 = vsel %vm413, %v2565, 0
        %v2644 = vsel %vm413, %v2566, 0
        %v2647 = vsel %vm413, %v2567, 0
        %v2650 = vsel %vm413, %v2568, 0
        %v2653 = vsel %vm413, %v2569, 0
        %v2656 = vsel %vm413, %v2570, 0
        %v2659 = vsel %vm413, %v2571, 0
        %v2662 = vsel %vm413, %v2572, 0
        %v2665 = vsel %vm413, %v2573, 0
        %v2668 = vsel %vm413, %v2574, 0
        %v2671 = vsel %vm413, %v2575, 0
        %v2674 = vsel %vm413, %v2576, 0
        %v2677 = vsel %vm413, %v2577, 0
        %v2680 = vsel %vm413, %v2578, 0
        %v2683 = vsel %vm413, %v2579, 0
        %v2686 = vsel %vm413, %v2580, 0
        %v2689 = vsel %vm413, %v2581, 0
        %2691 = vmatpush.msra.mxu0 0.0
        %2692 = vmatpush.msra.mxu0 0.0
        %2693 = vmatpush.msra.mxu0 0.0
        %2694 = vmatpush.msra.mxu0 0.0
        %2695 = vmatpush.msra.mxu0 %v2594
        %2696 = vmatpush.msra.mxu0 %v2593
        %2697 = vmatpush.msra.mxu0 %v2592
        %2698 = vmatpush.msra.mxu0 %v2591
        %2699 = vmatpush.msra.mxu0 %v2590
        %2700 = vmatpush.msra.mxu0 %v2589
        %2701 = vmatpush.msra.mxu0 %v2588
        %2702 = vmatpush.msra.mxu0 %v2587
        %2703 = vmatpush.msra.mxu0 %v2586
        %2704 = vmatpush.msra.mxu0 %v2585
        %2705 = vmatpush.msra.mxu0 %v2584
        %2706 = vmatpush.msra.mxu0 %v2583
        %2707 = vmatmul.f32.gmra.mxu0 %v2596
        %v2708 = vpop.f32.mrf.mxu0
        %v2709 = vadd.f32 0.0, %v2708
        %2710 = vmatmul.f32.gmra.mxu0 %v2599
        %v2711 = vpop.f32.mrf.mxu0
        %v2712 = vadd.f32 0.0, %v2711
        %2713 = vmatmul.f32.gmra.mxu0 %v2602
        %v2714 = vpop.f32.mrf.mxu0
        %v2715 = vadd.f32 0.0, %v2714
        %2716 = vmatmul.f32.gmra.mxu0 %v2605
        %v2717 = vpop.f32.mrf.mxu0
        %v2718 = vadd.f32 0.0, %v2717
        %2719 = vmatmul.f32.gmra.mxu0 %v2608
        %v2720 = vpop.f32.mrf.mxu0
        %v2721 = vadd.f32 0.0, %v2720
        %2722 = vmatmul.f32.gmra.mxu0 %v2611
        %v2723 = vpop.f32.mrf.mxu0
        %v2724 = vadd.f32 0.0, %v2723
        %2725 = vmatmul.f32.gmra.mxu0 %v2614
        %v2726 = vpop.f32.mrf.mxu0
        %v2727 = vadd.f32 0.0, %v2726
        %2728 = vmatmul.f32.gmra.mxu0 %v2617
        %v2729 = vpop.f32.mrf.mxu0
        %v2730 = vadd.f32 0.0, %v2729
        %2731 = vmatmul.f32.gmra.mxu0 %v2620
        %v2732 = vpop.f32.mrf.mxu0
        %v2733 = vadd.f32 0.0, %v2732
        %2734 = vmatmul.f32.gmra.mxu0 %v2623
        %v2735 = vpop.f32.mrf.mxu0
        %v2736 = vadd.f32 0.0, %v2735
        %2737 = vmatmul.f32.gmra.mxu0 %v2626
        %v2738 = vpop.f32.mrf.mxu0
        %v2739 = vadd.f32 0.0, %v2738
        %2740 = vmatmul.f32.gmra.mxu0 %v2629
        %v2741 = vpop.f32.mrf.mxu0
        %v2742 = vadd.f32 0.0, %v2741
        %2743 = vmatmul.f32.gmra.mxu0 %v2632
        %v2744 = vpop.f32.mrf.mxu0
        %v2745 = vadd.f32 0.0, %v2744
        %2746 = vmatmul.f32.gmra.mxu0 %v2635
        %v2747 = vpop.f32.mrf.mxu0
        %v2748 = vadd.f32 0.0, %v2747
        %2749 = vmatmul.f32.gmra.mxu0 %v2638
        %v2750 = vpop.f32.mrf.mxu0
        %v2751 = vadd.f32 0.0, %v2750
        %2752 = vmatmul.f32.gmra.mxu0 %v2641
        %v2753 = vpop.f32.mrf.mxu0
        %v2754 = vadd.f32 0.0, %v2753
        %2755 = vmatmul.f32.gmra.mxu0 %v2644
        %v2756 = vpop.f32.mrf.mxu0
        %v2757 = vadd.f32 0.0, %v2756
        %2758 = vmatmul.f32.gmra.mxu0 %v2647
        %v2759 = vpop.f32.mrf.mxu0
        %v2760 = vadd.f32 0.0, %v2759
        %2761 = vmatmul.f32.gmra.mxu0 %v2650
        %v2762 = vpop.f32.mrf.mxu0
        %v2763 = vadd.f32 0.0, %v2762
        %2764 = vmatmul.f32.gmra.mxu0 %v2653
        %v2765 = vpop.f32.mrf.mxu0
        %v2766 = vadd.f32 0.0, %v2765
        %2767 = vmatmul.f32.gmra.mxu0 %v2656
        %v2768 = vpop.f32.mrf.mxu0
        %v2769 = vadd.f32 0.0, %v2768
        %2770 = vmatmul.f32.gmra.mxu0 %v2659
        %v2771 = vpop.f32.mrf.mxu0
        %v2772 = vadd.f32 0.0, %v2771
        %2773 = vmatmul.f32.gmra.mxu0 %v2662
        %v2774 = vpop.f32.mrf.mxu0
        %v2775 = vadd.f32 0.0, %v2774
        %2776 = vmatmul.f32.gmra.mxu0 %v2665
        %v2777 = vpop.f32.mrf.mxu0
        %v2778 = vadd.f32 0.0, %v2777
        %2779 = vmatmul.f32.gmra.mxu0 %v2668
        %v2780 = vpop.f32.mrf.mxu0
        %v2781 = vadd.f32 0.0, %v2780
        %2782 = vmatmul.f32.gmra.mxu0 %v2671
        %v2783 = vpop.f32.mrf.mxu0
        %v2784 = vadd.f32 0.0, %v2783
        %2785 = vmatmul.f32.gmra.mxu0 %v2674
        %v2786 = vpop.f32.mrf.mxu0
        %v2787 = vadd.f32 0.0, %v2786
        %2788 = vmatmul.f32.gmra.mxu0 %v2677
        %v2789 = vpop.f32.mrf.mxu0
        %v2790 = vadd.f32 0.0, %v2789
        %2791 = vmatmul.f32.gmra.mxu0 %v2680
        %v2792 = vpop.f32.mrf.mxu0
        %v2793 = vadd.f32 0.0, %v2792
        %2794 = vmatmul.f32.gmra.mxu0 %v2683
        %v2795 = vpop.f32.mrf.mxu0
        %v2796 = vadd.f32 0.0, %v2795
        %2797 = vmatmul.f32.gmra.mxu0 %v2686
        %v2798 = vpop.f32.mrf.mxu0
        %v2799 = vadd.f32 0.0, %v2798
        %2800 = vmatmul.f32.gmra.mxu0 %v2689
        %v2801 = vpop.f32.mrf.mxu0
        %v2802 = vadd.f32 0.0, %v2801
        %2803 = vdwg.mxu0
        %v2804 = vadd.f32 %v2518, %v2709
        %v2805 = vadd.f32 %v2519, %v2712
        %v2806 = vadd.f32 %v2520, %v2715
        %v2807 = vadd.f32 %v2521, %v2718
        %v2808 = vadd.f32 %v2522, %v2721
        %v2809 = vadd.f32 %v2523, %v2724
        %v2810 = vadd.f32 %v2524, %v2727
        %v2811 = vadd.f32 %v2525, %v2730
        %v2812 = vadd.f32 %v2526, %v2733
        %v2813 = vadd.f32 %v2527, %v2736
        %v2814 = vadd.f32 %v2528, %v2739
        %v2815 = vadd.f32 %v2529, %v2742
        %v2816 = vadd.f32 %v2530, %v2745
        %v2817 = vadd.f32 %v2531, %v2748
        %v2818 = vadd.f32 %v2532, %v2751
        %v2819 = vadd.f32 %v2533, %v2754
        %v2820 = vadd.f32 %v2534, %v2757
        %v2821 = vadd.f32 %v2535, %v2760
        %v2822 = vadd.f32 %v2536, %v2763
        %v2823 = vadd.f32 %v2537, %v2766
        %v2824 = vadd.f32 %v2538, %v2769
        %v2825 = vadd.f32 %v2539, %v2772
        %v2826 = vadd.f32 %v2540, %v2775
        %v2827 = vadd.f32 %v2541, %v2778
        %v2828 = vadd.f32 %v2542, %v2781
        %v2829 = vadd.f32 %v2543, %v2784
        %v2830 = vadd.f32 %v2544, %v2787
        %v2831 = vadd.f32 %v2545, %v2790
        %v2832 = vadd.f32 %v2546, %v2793
        %v2833 = vadd.f32 %v2547, %v2796
        %v2834 = vadd.f32 %v2548, %v2799
        %v2835 = vadd.f32 %v2549, %v2802
        %v2836 = vld [vmem:[%s3] sm:$0x1]
        %v2838 = vperm.slane %v2836, 0
        %v2840 = vadd.f32 %v2804, %v2838
        %v2841 = vadd.f32 %v2805, %v2838
        %v2842 = vadd.f32 %v2806, %v2838
        %v2843 = vadd.f32 %v2807, %v2838
        %v2844 = vadd.f32 %v2808, %v2838
        %v2845 = vadd.f32 %v2809, %v2838
        %v2846 = vadd.f32 %v2810, %v2838
        %v2847 = vadd.f32 %v2811, %v2838
        %v2848 = vadd.f32 %v2812, %v2838
        %v2849 = vadd.f32 %v2813, %v2838
        %v2850 = vadd.f32 %v2814, %v2838
        %v2851 = vadd.f32 %v2815, %v2838
        %v2852 = vadd.f32 %v2816, %v2838
        %v2853 = vadd.f32 %v2817, %v2838
        %v2854 = vadd.f32 %v2818, %v2838
        %v2855 = vadd.f32 %v2819, %v2838
        %v2856 = vadd.f32 %v2820, %v2838
        %v2857 = vadd.f32 %v2821, %v2838
        %v2858 = vadd.f32 %v2822, %v2838
        %v2859 = vadd.f32 %v2823, %v2838
        %v2860 = vadd.f32 %v2824, %v2838
        %v2861 = vadd.f32 %v2825, %v2838
        %v2862 = vadd.f32 %v2826, %v2838
        %v2863 = vadd.f32 %v2827, %v2838
        %v2864 = vadd.f32 %v2828, %v2838
        %v2865 = vadd.f32 %v2829, %v2838
        %v2866 = vadd.f32 %v2830, %v2838
        %v2867 = vadd.f32 %v2831, %v2838
        %v2868 = vadd.f32 %v2832, %v2838
        %v2869 = vadd.f32 %v2833, %v2838
        %v2870 = vadd.f32 %v2834, %v2838
        %v2871 = vadd.f32 %v2835, %v2838
        %v2872 = vxor.u32 %v2840, 2147483648
        %v2873 = vxor.u32 %v2841, 2147483648
        %v2874 = vxor.u32 %v2842, 2147483648
        %v2875 = vxor.u32 %v2843, 2147483648
        %v2876 = vxor.u32 %v2844, 2147483648
        %v2877 = vxor.u32 %v2845, 2147483648
        %v2878 = vxor.u32 %v2846, 2147483648
        %v2879 = vxor.u32 %v2847, 2147483648
        %v2880 = vxor.u32 %v2848, 2147483648
        %v2881 = vxor.u32 %v2849, 2147483648
        %v2882 = vxor.u32 %v2850, 2147483648
        %v2883 = vxor.u32 %v2851, 2147483648
        %v2884 = vxor.u32 %v2852, 2147483648
        %v2885 = vxor.u32 %v2853, 2147483648
        %v2886 = vxor.u32 %v2854, 2147483648
        %v2887 = vxor.u32 %v2855, 2147483648
        %v2888 = vxor.u32 %v2856, 2147483648
        %v2889 = vxor.u32 %v2857, 2147483648
        %v2890 = vxor.u32 %v2858, 2147483648
        %v2891 = vxor.u32 %v2859, 2147483648
        %v2892 = vxor.u32 %v2860, 2147483648
        %v2893 = vxor.u32 %v2861, 2147483648
        %v2894 = vxor.u32 %v2862, 2147483648
        %v2895 = vxor.u32 %v2863, 2147483648
        %v2896 = vxor.u32 %v2864, 2147483648
        %v2897 = vxor.u32 %v2865, 2147483648
        %v2898 = vxor.u32 %v2866, 2147483648
        %v2899 = vxor.u32 %v2867, 2147483648
        %v2900 = vxor.u32 %v2868, 2147483648
        %v2901 = vxor.u32 %v2869, 2147483648
        %v2902 = vxor.u32 %v2870, 2147483648
        %v2903 = vxor.u32 %v2871, 2147483648
        %v2904 = vmul.f32 %v2872, 1.442695
        %v2905 = vpow.pop %v2904
        %v2906 = vmul.f32 %v2873, 1.442695
        %v2907 = vpow.pop %v2906
        %v2908 = vmul.f32 %v2874, 1.442695
        %v2909 = vpow.pop %v2908
        %v2910 = vmul.f32 %v2875, 1.442695
        %v2911 = vpow.pop %v2910
        %v2912 = vmul.f32 %v2876, 1.442695
        %v2913 = vpow.pop %v2912
        %v2914 = vmul.f32 %v2877, 1.442695
        %v2915 = vpow.pop %v2914
        %v2916 = vmul.f32 %v2878, 1.442695
        %v2917 = vpow.pop %v2916
        %v2918 = vmul.f32 %v2879, 1.442695
        %v2919 = vpow.pop %v2918
        %v2920 = vmul.f32 %v2880, 1.442695
        %v2921 = vpow.pop %v2920
        %v2922 = vmul.f32 %v2881, 1.442695
        %v2923 = vpow.pop %v2922
        %v2924 = vmul.f32 %v2882, 1.442695
        %v2925 = vpow.pop %v2924
        %v2926 = vmul.f32 %v2883, 1.442695
        %v2927 = vpow.pop %v2926
        %v2928 = vmul.f32 %v2884, 1.442695
        %v2929 = vpow.pop %v2928
        %v2930 = vmul.f32 %v2885, 1.442695
        %v2931 = vpow.pop %v2930
        %v2932 = vmul.f32 %v2886, 1.442695
        %v2933 = vpow.pop %v2932
        %v2934 = vmul.f32 %v2887, 1.442695
        %v2935 = vpow.pop %v2934
        %v2936 = vmul.f32 %v2888, 1.442695
        %v2937 = vpow.pop %v2936
        %v2938 = vmul.f32 %v2889, 1.442695
        %v2939 = vpow.pop %v2938
        %v2940 = vmul.f32 %v2890, 1.442695
        %v2941 = vpow.pop %v2940
        %v2942 = vmul.f32 %v2891, 1.442695
        %v2943 = vpow.pop %v2942
        %v2944 = vmul.f32 %v2892, 1.442695
        %v2945 = vpow.pop %v2944
        %v2946 = vmul.f32 %v2893, 1.442695
        %v2947 = vpow.pop %v2946
        %v2948 = vmul.f32 %v2894, 1.442695
        %v2949 = vpow.pop %v2948
        %v2950 = vmul.f32 %v2895, 1.442695
        %v2951 = vpow.pop %v2950
        %v2952 = vmul.f32 %v2896, 1.442695
        %v2953 = vpow.pop %v2952
        %v2954 = vmul.f32 %v2897, 1.442695
        %v2955 = vpow.pop %v2954
        %v2956 = vmul.f32 %v2898, 1.442695
        %v2957 = vpow.pop %v2956
        %v2958 = vmul.f32 %v2899, 1.442695
        %v2959 = vpow.pop %v2958
        %v2960 = vmul.f32 %v2900, 1.442695
        %v2961 = vpow.pop %v2960
        %v2962 = vmul.f32 %v2901, 1.442695
        %v2963 = vpow.pop %v2962
        %v2964 = vmul.f32 %v2902, 1.442695
        %v2965 = vpow.pop %v2964
        %v2966 = vmul.f32 %v2903, 1.442695
        %v2967 = vpow.pop %v2966
        %v2968 = vadd.f32 %v2905, 1.0
        %v2969 = vadd.f32 %v2907, 1.0
        %v2970 = vadd.f32 %v2909, 1.0
        %v2971 = vadd.f32 %v2911, 1.0
        %v2972 = vadd.f32 %v2913, 1.0
        %v2973 = vadd.f32 %v2915, 1.0
        %v2974 = vadd.f32 %v2917, 1.0
        %v2975 = vadd.f32 %v2919, 1.0
        %v2976 = vadd.f32 %v2921, 1.0
        %v2977 = vadd.f32 %v2923, 1.0
        %v2978 = vadd.f32 %v2925, 1.0
        %v2979 = vadd.f32 %v2927, 1.0
        %v2980 = vadd.f32 %v2929, 1.0
        %v2981 = vadd.f32 %v2931, 1.0
        %v2982 = vadd.f32 %v2933, 1.0
        %v2983 = vadd.f32 %v2935, 1.0
        %v2984 = vadd.f32 %v2937, 1.0
        %v2985 = vadd.f32 %v2939, 1.0
        %v2986 = vadd.f32 %v2941, 1.0
        %v2987 = vadd.f32 %v2943, 1.0
        %v2988 = vadd.f32 %v2945, 1.0
        %v2989 = vadd.f32 %v2947, 1.0
        %v2990 = vadd.f32 %v2949, 1.0
        %v2991 = vadd.f32 %v2951, 1.0
        %v2992 = vadd.f32 %v2953, 1.0
        %v2993 = vadd.f32 %v2955, 1.0
        %v2994 = vadd.f32 %v2957, 1.0
        %v2995 = vadd.f32 %v2959, 1.0
        %v2996 = vadd.f32 %v2961, 1.0
        %v2997 = vadd.f32 %v2963, 1.0
        %v2998 = vadd.f32 %v2965, 1.0
        %v2999 = vadd.f32 %v2967, 1.0
        %v3000 = vrcp.pop %v2968
        %v3001 = vmul.f32 %v2968, %v3000
        %v3002 = vsub.f32 1.0, %v3001
        %v3003 = vmul.f32 %v3000, %v3002
        %v3004 = vadd.f32 %v3000, %v3003
        %vm3005 = vweird.f32 %v2968
        %vm3006 = vweird.f32 %v3000
        %vm3007 = vmor %vm3005, %vm3006
        %v3008 = vsel %vm3007, %v3000, %v3004
        %v3009 = vand.u32 2147483647, %v2968
        %vm3010 = vcmp.eq.f32.partialorder %v3009, 8.507059e+37
        %v3011 = vand.u32 %v2968, 2147483648
        %v3012 = vor.u32 1.1754944e-38, %v3011
        %v3013 = vsel %vm3010, %v3012, %v3008
        %v3014 = vmul.f32 1.0, %v3013
        %v3015 = vrcp.pop %v2969
        %v3016 = vmul.f32 %v2969, %v3015
        %v3017 = vsub.f32 1.0, %v3016
        %v3018 = vmul.f32 %v3015, %v3017
        %v3019 = vadd.f32 %v3015, %v3018
        %vm3020 = vweird.f32 %v2969
        %vm3021 = vweird.f32 %v3015
        %vm3022 = vmor %vm3020, %vm3021
        %v3023 = vsel %vm3022, %v3015, %v3019
        %v3024 = vand.u32 2147483647, %v2969
        %vm3025 = vcmp.eq.f32.partialorder %v3024, 8.507059e+37
        %v3026 = vand.u32 %v2969, 2147483648
        %v3027 = vor.u32 1.1754944e-38, %v3026
        %v3028 = vsel %vm3025, %v3027, %v3023
        %v3029 = vmul.f32 1.0, %v3028
        %v3030 = vrcp.pop %v2970
        %v3031 = vmul.f32 %v2970, %v3030
        %v3032 = vsub.f32 1.0, %v3031
        %v3033 = vmul.f32 %v3030, %v3032
        %v3034 = vadd.f32 %v3030, %v3033
        %vm3035 = vweird.f32 %v2970
        %vm3036 = vweird.f32 %v3030
        %vm3037 = vmor %vm3035, %vm3036
        %v3038 = vsel %vm3037, %v3030, %v3034
        %v3039 = vand.u32 2147483647, %v2970
        %vm3040 = vcmp.eq.f32.partialorder %v3039, 8.507059e+37
        %v3041 = vand.u32 %v2970, 2147483648
        %v3042 = vor.u32 1.1754944e-38, %v3041
        %v3043 = vsel %vm3040, %v3042, %v3038
        %v3044 = vmul.f32 1.0, %v3043
        %v3045 = vrcp.pop %v2971
        %v3046 = vmul.f32 %v2971, %v3045
        %v3047 = vsub.f32 1.0, %v3046
        %v3048 = vmul.f32 %v3045, %v3047
        %v3049 = vadd.f32 %v3045, %v3048
        %vm3050 = vweird.f32 %v2971
        %vm3051 = vweird.f32 %v3045
        %vm3052 = vmor %vm3050, %vm3051
        %v3053 = vsel %vm3052, %v3045, %v3049
        %v3054 = vand.u32 2147483647, %v2971
        %vm3055 = vcmp.eq.f32.partialorder %v3054, 8.507059e+37
        %v3056 = vand.u32 %v2971, 2147483648
        %v3057 = vor.u32 1.1754944e-38, %v3056
        %v3058 = vsel %vm3055, %v3057, %v3053
        %v3059 = vmul.f32 1.0, %v3058
        %v3060 = vrcp.pop %v2972
        %v3061 = vmul.f32 %v2972, %v3060
        %v3062 = vsub.f32 1.0, %v3061
        %v3063 = vmul.f32 %v3060, %v3062
        %v3064 = vadd.f32 %v3060, %v3063
        %vm3065 = vweird.f32 %v2972
        %vm3066 = vweird.f32 %v3060
        %vm3067 = vmor %vm3065, %vm3066
        %v3068 = vsel %vm3067, %v3060, %v3064
        %v3069 = vand.u32 2147483647, %v2972
        %vm3070 = vcmp.eq.f32.partialorder %v3069, 8.507059e+37
        %v3071 = vand.u32 %v2972, 2147483648
        %v3072 = vor.u32 1.1754944e-38, %v3071
        %v3073 = vsel %vm3070, %v3072, %v3068
        %v3074 = vmul.f32 1.0, %v3073
        %v3075 = vrcp.pop %v2973
        %v3076 = vmul.f32 %v2973, %v3075
        %v3077 = vsub.f32 1.0, %v3076
        %v3078 = vmul.f32 %v3075, %v3077
        %v3079 = vadd.f32 %v3075, %v3078
        %vm3080 = vweird.f32 %v2973
        %vm3081 = vweird.f32 %v3075
        %vm3082 = vmor %vm3080, %vm3081
        %v3083 = vsel %vm3082, %v3075, %v3079
        %v3084 = vand.u32 2147483647, %v2973
        %vm3085 = vcmp.eq.f32.partialorder %v3084, 8.507059e+37
        %v3086 = vand.u32 %v2973, 2147483648
        %v3087 = vor.u32 1.1754944e-38, %v3086
        %v3088 = vsel %vm3085, %v3087, %v3083
        %v3089 = vmul.f32 1.0, %v3088
        %v3090 = vrcp.pop %v2974
        %v3091 = vmul.f32 %v2974, %v3090
        %v3092 = vsub.f32 1.0, %v3091
        %v3093 = vmul.f32 %v3090, %v3092
        %v3094 = vadd.f32 %v3090, %v3093
        %vm3095 = vweird.f32 %v2974
        %vm3096 = vweird.f32 %v3090
        %vm3097 = vmor %vm3095, %vm3096
        %v3098 = vsel %vm3097, %v3090, %v3094
        %v3099 = vand.u32 2147483647, %v2974
        %vm3100 = vcmp.eq.f32.partialorder %v3099, 8.507059e+37
        %v3101 = vand.u32 %v2974, 2147483648
        %v3102 = vor.u32 1.1754944e-38, %v3101
        %v3103 = vsel %vm3100, %v3102, %v3098
        %v3104 = vmul.f32 1.0, %v3103
        %v3105 = vrcp.pop %v2975
        %v3106 = vmul.f32 %v2975, %v3105
        %v3107 = vsub.f32 1.0, %v3106
        %v3108 = vmul.f32 %v3105, %v3107
        %v3109 = vadd.f32 %v3105, %v3108
        %vm3110 = vweird.f32 %v2975
        %vm3111 = vweird.f32 %v3105
        %vm3112 = vmor %vm3110, %vm3111
        %v3113 = vsel %vm3112, %v3105, %v3109
        %v3114 = vand.u32 2147483647, %v2975
        %vm3115 = vcmp.eq.f32.partialorder %v3114, 8.507059e+37
        %v3116 = vand.u32 %v2975, 2147483648
        %v3117 = vor.u32 1.1754944e-38, %v3116
        %v3118 = vsel %vm3115, %v3117, %v3113
        %v3119 = vmul.f32 1.0, %v3118
        %v3120 = vrcp.pop %v2976
        %v3121 = vmul.f32 %v2976, %v3120
        %v3122 = vsub.f32 1.0, %v3121
        %v3123 = vmul.f32 %v3120, %v3122
        %v3124 = vadd.f32 %v3120, %v3123
        %vm3125 = vweird.f32 %v2976
        %vm3126 = vweird.f32 %v3120
        %vm3127 = vmor %vm3125, %vm3126
        %v3128 = vsel %vm3127, %v3120, %v3124
        %v3129 = vand.u32 2147483647, %v2976
        %vm3130 = vcmp.eq.f32.partialorder %v3129, 8.507059e+37
        %v3131 = vand.u32 %v2976, 2147483648
        %v3132 = vor.u32 1.1754944e-38, %v3131
        %v3133 = vsel %vm3130, %v3132, %v3128
        %v3134 = vmul.f32 1.0, %v3133
        %v3135 = vrcp.pop %v2977
        %v3136 = vmul.f32 %v2977, %v3135
        %v3137 = vsub.f32 1.0, %v3136
        %v3138 = vmul.f32 %v3135, %v3137
        %v3139 = vadd.f32 %v3135, %v3138
        %vm3140 = vweird.f32 %v2977
        %vm3141 = vweird.f32 %v3135
        %vm3142 = vmor %vm3140, %vm3141
        %v3143 = vsel %vm3142, %v3135, %v3139
        %v3144 = vand.u32 2147483647, %v2977
        %vm3145 = vcmp.eq.f32.partialorder %v3144, 8.507059e+37
        %v3146 = vand.u32 %v2977, 2147483648
        %v3147 = vor.u32 1.1754944e-38, %v3146
        %v3148 = vsel %vm3145, %v3147, %v3143
        %v3149 = vmul.f32 1.0, %v3148
        %v3150 = vrcp.pop %v2978
        %v3151 = vmul.f32 %v2978, %v3150
        %v3152 = vsub.f32 1.0, %v3151
        %v3153 = vmul.f32 %v3150, %v3152
        %v3154 = vadd.f32 %v3150, %v3153
        %vm3155 = vweird.f32 %v2978
        %vm3156 = vweird.f32 %v3150
        %vm3157 = vmor %vm3155, %vm3156
        %v3158 = vsel %vm3157, %v3150, %v3154
        %v3159 = vand.u32 2147483647, %v2978
        %vm3160 = vcmp.eq.f32.partialorder %v3159, 8.507059e+37
        %v3161 = vand.u32 %v2978, 2147483648
        %v3162 = vor.u32 1.1754944e-38, %v3161
        %v3163 = vsel %vm3160, %v3162, %v3158
        %v3164 = vmul.f32 1.0, %v3163
        %v3165 = vrcp.pop %v2979
        %v3166 = vmul.f32 %v2979, %v3165
        %v3167 = vsub.f32 1.0, %v3166
        %v3168 = vmul.f32 %v3165, %v3167
        %v3169 = vadd.f32 %v3165, %v3168
        %vm3170 = vweird.f32 %v2979
        %vm3171 = vweird.f32 %v3165
        %vm3172 = vmor %vm3170, %vm3171
        %v3173 = vsel %vm3172, %v3165, %v3169
        %v3174 = vand.u32 2147483647, %v2979
        %vm3175 = vcmp.eq.f32.partialorder %v3174, 8.507059e+37
        %v3176 = vand.u32 %v2979, 2147483648
        %v3177 = vor.u32 1.1754944e-38, %v3176
        %v3178 = vsel %vm3175, %v3177, %v3173
        %v3179 = vmul.f32 1.0, %v3178
        %v3180 = vrcp.pop %v2980
        %v3181 = vmul.f32 %v2980, %v3180
        %v3182 = vsub.f32 1.0, %v3181
        %v3183 = vmul.f32 %v3180, %v3182
        %v3184 = vadd.f32 %v3180, %v3183
        %vm3185 = vweird.f32 %v2980
        %vm3186 = vweird.f32 %v3180
        %vm3187 = vmor %vm3185, %vm3186
        %v3188 = vsel %vm3187, %v3180, %v3184
        %v3189 = vand.u32 2147483647, %v2980
        %vm3190 = vcmp.eq.f32.partialorder %v3189, 8.507059e+37
        %v3191 = vand.u32 %v2980, 2147483648
        %v3192 = vor.u32 1.1754944e-38, %v3191
        %v3193 = vsel %vm3190, %v3192, %v3188
        %v3194 = vmul.f32 1.0, %v3193
        %v3195 = vrcp.pop %v2981
        %v3196 = vmul.f32 %v2981, %v3195
        %v3197 = vsub.f32 1.0, %v3196
        %v3198 = vmul.f32 %v3195, %v3197
        %v3199 = vadd.f32 %v3195, %v3198
        %vm3200 = vweird.f32 %v2981
        %vm3201 = vweird.f32 %v3195
        %vm3202 = vmor %vm3200, %vm3201
        %v3203 = vsel %vm3202, %v3195, %v3199
        %v3204 = vand.u32 2147483647, %v2981
        %vm3205 = vcmp.eq.f32.partialorder %v3204, 8.507059e+37
        %v3206 = vand.u32 %v2981, 2147483648
        %v3207 = vor.u32 1.1754944e-38, %v3206
        %v3208 = vsel %vm3205, %v3207, %v3203
        %v3209 = vmul.f32 1.0, %v3208
        %v3210 = vrcp.pop %v2982
        %v3211 = vmul.f32 %v2982, %v3210
        %v3212 = vsub.f32 1.0, %v3211
        %v3213 = vmul.f32 %v3210, %v3212
        %v3214 = vadd.f32 %v3210, %v3213
        %vm3215 = vweird.f32 %v2982
        %vm3216 = vweird.f32 %v3210
        %vm3217 = vmor %vm3215, %vm3216
        %v3218 = vsel %vm3217, %v3210, %v3214
        %v3219 = vand.u32 2147483647, %v2982
        %vm3220 = vcmp.eq.f32.partialorder %v3219, 8.507059e+37
        %v3221 = vand.u32 %v2982, 2147483648
        %v3222 = vor.u32 1.1754944e-38, %v3221
        %v3223 = vsel %vm3220, %v3222, %v3218
        %v3224 = vmul.f32 1.0, %v3223
        %v3225 = vrcp.pop %v2983
        %v3226 = vmul.f32 %v2983, %v3225
        %v3227 = vsub.f32 1.0, %v3226
        %v3228 = vmul.f32 %v3225, %v3227
        %v3229 = vadd.f32 %v3225, %v3228
        %vm3230 = vweird.f32 %v2983
        %vm3231 = vweird.f32 %v3225
        %vm3232 = vmor %vm3230, %vm3231
        %v3233 = vsel %vm3232, %v3225, %v3229
        %v3234 = vand.u32 2147483647, %v2983
        %vm3235 = vcmp.eq.f32.partialorder %v3234, 8.507059e+37
        %v3236 = vand.u32 %v2983, 2147483648
        %v3237 = vor.u32 1.1754944e-38, %v3236
        %v3238 = vsel %vm3235, %v3237, %v3233
        %v3239 = vmul.f32 1.0, %v3238
        %v3240 = vrcp.pop %v2984
        %v3241 = vmul.f32 %v2984, %v3240
        %v3242 = vsub.f32 1.0, %v3241
        %v3243 = vmul.f32 %v3240, %v3242
        %v3244 = vadd.f32 %v3240, %v3243
        %vm3245 = vweird.f32 %v2984
        %vm3246 = vweird.f32 %v3240
        %vm3247 = vmor %vm3245, %vm3246
        %v3248 = vsel %vm3247, %v3240, %v3244
        %v3249 = vand.u32 2147483647, %v2984
        %vm3250 = vcmp.eq.f32.partialorder %v3249, 8.507059e+37
        %v3251 = vand.u32 %v2984, 2147483648
        %v3252 = vor.u32 1.1754944e-38, %v3251
        %v3253 = vsel %vm3250, %v3252, %v3248
        %v3254 = vmul.f32 1.0, %v3253
        %v3255 = vrcp.pop %v2985
        %v3256 = vmul.f32 %v2985, %v3255
        %v3257 = vsub.f32 1.0, %v3256
        %v3258 = vmul.f32 %v3255, %v3257
        %v3259 = vadd.f32 %v3255, %v3258
        %vm3260 = vweird.f32 %v2985
        %vm3261 = vweird.f32 %v3255
        %vm3262 = vmor %vm3260, %vm3261
        %v3263 = vsel %vm3262, %v3255, %v3259
        %v3264 = vand.u32 2147483647, %v2985
        %vm3265 = vcmp.eq.f32.partialorder %v3264, 8.507059e+37
        %v3266 = vand.u32 %v2985, 2147483648
        %v3267 = vor.u32 1.1754944e-38, %v3266
        %v3268 = vsel %vm3265, %v3267, %v3263
        %v3269 = vmul.f32 1.0, %v3268
        %v3270 = vrcp.pop %v2986
        %v3271 = vmul.f32 %v2986, %v3270
        %v3272 = vsub.f32 1.0, %v3271
        %v3273 = vmul.f32 %v3270, %v3272
        %v3274 = vadd.f32 %v3270, %v3273
        %vm3275 = vweird.f32 %v2986
        %vm3276 = vweird.f32 %v3270
        %vm3277 = vmor %vm3275, %vm3276
        %v3278 = vsel %vm3277, %v3270, %v3274
        %v3279 = vand.u32 2147483647, %v2986
        %vm3280 = vcmp.eq.f32.partialorder %v3279, 8.507059e+37
        %v3281 = vand.u32 %v2986, 2147483648
        %v3282 = vor.u32 1.1754944e-38, %v3281
        %v3283 = vsel %vm3280, %v3282, %v3278
        %v3284 = vmul.f32 1.0, %v3283
        %v3285 = vrcp.pop %v2987
        %v3286 = vmul.f32 %v2987, %v3285
        %v3287 = vsub.f32 1.0, %v3286
        %v3288 = vmul.f32 %v3285, %v3287
        %v3289 = vadd.f32 %v3285, %v3288
        %vm3290 = vweird.f32 %v2987
        %vm3291 = vweird.f32 %v3285
        %vm3292 = vmor %vm3290, %vm3291
        %v3293 = vsel %vm3292, %v3285, %v3289
        %v3294 = vand.u32 2147483647, %v2987
        %vm3295 = vcmp.eq.f32.partialorder %v3294, 8.507059e+37
        %v3296 = vand.u32 %v2987, 2147483648
        %v3297 = vor.u32 1.1754944e-38, %v3296
        %v3298 = vsel %vm3295, %v3297, %v3293
        %v3299 = vmul.f32 1.0, %v3298
        %v3300 = vrcp.pop %v2988
        %v3301 = vmul.f32 %v2988, %v3300
        %v3302 = vsub.f32 1.0, %v3301
        %v3303 = vmul.f32 %v3300, %v3302
        %v3304 = vadd.f32 %v3300, %v3303
        %vm3305 = vweird.f32 %v2988
        %vm3306 = vweird.f32 %v3300
        %vm3307 = vmor %vm3305, %vm3306
        %v3308 = vsel %vm3307, %v3300, %v3304
        %v3309 = vand.u32 2147483647, %v2988
        %vm3310 = vcmp.eq.f32.partialorder %v3309, 8.507059e+37
        %v3311 = vand.u32 %v2988, 2147483648
        %v3312 = vor.u32 1.1754944e-38, %v3311
        %v3313 = vsel %vm3310, %v3312, %v3308
        %v3314 = vmul.f32 1.0, %v3313
        %v3315 = vrcp.pop %v2989
        %v3316 = vmul.f32 %v2989, %v3315
        %v3317 = vsub.f32 1.0, %v3316
        %v3318 = vmul.f32 %v3315, %v3317
        %v3319 = vadd.f32 %v3315, %v3318
        %vm3320 = vweird.f32 %v2989
        %vm3321 = vweird.f32 %v3315
        %vm3322 = vmor %vm3320, %vm3321
        %v3323 = vsel %vm3322, %v3315, %v3319
        %v3324 = vand.u32 2147483647, %v2989
        %vm3325 = vcmp.eq.f32.partialorder %v3324, 8.507059e+37
        %v3326 = vand.u32 %v2989, 2147483648
        %v3327 = vor.u32 1.1754944e-38, %v3326
        %v3328 = vsel %vm3325, %v3327, %v3323
        %v3329 = vmul.f32 1.0, %v3328
        %v3330 = vrcp.pop %v2990
        %v3331 = vmul.f32 %v2990, %v3330
        %v3332 = vsub.f32 1.0, %v3331
        %v3333 = vmul.f32 %v3330, %v3332
        %v3334 = vadd.f32 %v3330, %v3333
        %vm3335 = vweird.f32 %v2990
        %vm3336 = vweird.f32 %v3330
        %vm3337 = vmor %vm3335, %vm3336
        %v3338 = vsel %vm3337, %v3330, %v3334
        %v3339 = vand.u32 2147483647, %v2990
        %vm3340 = vcmp.eq.f32.partialorder %v3339, 8.507059e+37
        %v3341 = vand.u32 %v2990, 2147483648
        %v3342 = vor.u32 1.1754944e-38, %v3341
        %v3343 = vsel %vm3340, %v3342, %v3338
        %v3344 = vmul.f32 1.0, %v3343
        %v3345 = vrcp.pop %v2991
        %v3346 = vmul.f32 %v2991, %v3345
        %v3347 = vsub.f32 1.0, %v3346
        %v3348 = vmul.f32 %v3345, %v3347
        %v3349 = vadd.f32 %v3345, %v3348
        %vm3350 = vweird.f32 %v2991
        %vm3351 = vweird.f32 %v3345
        %vm3352 = vmor %vm3350, %vm3351
        %v3353 = vsel %vm3352, %v3345, %v3349
        %v3354 = vand.u32 2147483647, %v2991
        %vm3355 = vcmp.eq.f32.partialorder %v3354, 8.507059e+37
        %v3356 = vand.u32 %v2991, 2147483648
        %v3357 = vor.u32 1.1754944e-38, %v3356
        %v3358 = vsel %vm3355, %v3357, %v3353
        %v3359 = vmul.f32 1.0, %v3358
        %v3360 = vrcp.pop %v2992
        %v3361 = vmul.f32 %v2992, %v3360
        %v3362 = vsub.f32 1.0, %v3361
        %v3363 = vmul.f32 %v3360, %v3362
        %v3364 = vadd.f32 %v3360, %v3363
        %vm3365 = vweird.f32 %v2992
        %vm3366 = vweird.f32 %v3360
        %vm3367 = vmor %vm3365, %vm3366
        %v3368 = vsel %vm3367, %v3360, %v3364
        %v3369 = vand.u32 2147483647, %v2992
        %vm3370 = vcmp.eq.f32.partialorder %v3369, 8.507059e+37
        %v3371 = vand.u32 %v2992, 2147483648
        %v3372 = vor.u32 1.1754944e-38, %v3371
        %v3373 = vsel %vm3370, %v3372, %v3368
        %v3374 = vmul.f32 1.0, %v3373
        %v3375 = vrcp.pop %v2993
        %v3376 = vmul.f32 %v2993, %v3375
        %v3377 = vsub.f32 1.0, %v3376
        %v3378 = vmul.f32 %v3375, %v3377
        %v3379 = vadd.f32 %v3375, %v3378
        %vm3380 = vweird.f32 %v2993
        %vm3381 = vweird.f32 %v3375
        %vm3382 = vmor %vm3380, %vm3381
        %v3383 = vsel %vm3382, %v3375, %v3379
        %v3384 = vand.u32 2147483647, %v2993
        %vm3385 = vcmp.eq.f32.partialorder %v3384, 8.507059e+37
        %v3386 = vand.u32 %v2993, 2147483648
        %v3387 = vor.u32 1.1754944e-38, %v3386
        %v3388 = vsel %vm3385, %v3387, %v3383
        %v3389 = vmul.f32 1.0, %v3388
        %v3390 = vrcp.pop %v2994
        %v3391 = vmul.f32 %v2994, %v3390
        %v3392 = vsub.f32 1.0, %v3391
        %v3393 = vmul.f32 %v3390, %v3392
        %v3394 = vadd.f32 %v3390, %v3393
        %vm3395 = vweird.f32 %v2994
        %vm3396 = vweird.f32 %v3390
        %vm3397 = vmor %vm3395, %vm3396
        %v3398 = vsel %vm3397, %v3390, %v3394
        %v3399 = vand.u32 2147483647, %v2994
        %vm3400 = vcmp.eq.f32.partialorder %v3399, 8.507059e+37
        %v3401 = vand.u32 %v2994, 2147483648
        %v3402 = vor.u32 1.1754944e-38, %v3401
        %v3403 = vsel %vm3400, %v3402, %v3398
        %v3404 = vmul.f32 1.0, %v3403
        %v3405 = vrcp.pop %v2995
        %v3406 = vmul.f32 %v2995, %v3405
        %v3407 = vsub.f32 1.0, %v3406
        %v3408 = vmul.f32 %v3405, %v3407
        %v3409 = vadd.f32 %v3405, %v3408
        %vm3410 = vweird.f32 %v2995
        %vm3411 = vweird.f32 %v3405
        %vm3412 = vmor %vm3410, %vm3411
        %v3413 = vsel %vm3412, %v3405, %v3409
        %v3414 = vand.u32 2147483647, %v2995
        %vm3415 = vcmp.eq.f32.partialorder %v3414, 8.507059e+37
        %v3416 = vand.u32 %v2995, 2147483648
        %v3417 = vor.u32 1.1754944e-38, %v3416
        %v3418 = vsel %vm3415, %v3417, %v3413
        %v3419 = vmul.f32 1.0, %v3418
        %v3420 = vrcp.pop %v2996
        %v3421 = vmul.f32 %v2996, %v3420
        %v3422 = vsub.f32 1.0, %v3421
        %v3423 = vmul.f32 %v3420, %v3422
        %v3424 = vadd.f32 %v3420, %v3423
        %vm3425 = vweird.f32 %v2996
        %vm3426 = vweird.f32 %v3420
        %vm3427 = vmor %vm3425, %vm3426
        %v3428 = vsel %vm3427, %v3420, %v3424
        %v3429 = vand.u32 2147483647, %v2996
        %vm3430 = vcmp.eq.f32.partialorder %v3429, 8.507059e+37
        %v3431 = vand.u32 %v2996, 2147483648
        %v3432 = vor.u32 1.1754944e-38, %v3431
        %v3433 = vsel %vm3430, %v3432, %v3428
        %v3434 = vmul.f32 1.0, %v3433
        %v3435 = vrcp.pop %v2997
        %v3436 = vmul.f32 %v2997, %v3435
        %v3437 = vsub.f32 1.0, %v3436
        %v3438 = vmul.f32 %v3435, %v3437
        %v3439 = vadd.f32 %v3435, %v3438
        %vm3440 = vweird.f32 %v2997
        %vm3441 = vweird.f32 %v3435
        %vm3442 = vmor %vm3440, %vm3441
        %v3443 = vsel %vm3442, %v3435, %v3439
        %v3444 = vand.u32 2147483647, %v2997
        %vm3445 = vcmp.eq.f32.partialorder %v3444, 8.507059e+37
        %v3446 = vand.u32 %v2997, 2147483648
        %v3447 = vor.u32 1.1754944e-38, %v3446
        %v3448 = vsel %vm3445, %v3447, %v3443
        %v3449 = vmul.f32 1.0, %v3448
        %v3450 = vrcp.pop %v2998
        %v3451 = vmul.f32 %v2998, %v3450
        %v3452 = vsub.f32 1.0, %v3451
        %v3453 = vmul.f32 %v3450, %v3452
        %v3454 = vadd.f32 %v3450, %v3453
        %vm3455 = vweird.f32 %v2998
        %vm3456 = vweird.f32 %v3450
        %vm3457 = vmor %vm3455, %vm3456
        %v3458 = vsel %vm3457, %v3450, %v3454
        %v3459 = vand.u32 2147483647, %v2998
        %vm3460 = vcmp.eq.f32.partialorder %v3459, 8.507059e+37
        %v3461 = vand.u32 %v2998, 2147483648
        %v3462 = vor.u32 1.1754944e-38, %v3461
        %v3463 = vsel %vm3460, %v3462, %v3458
        %v3464 = vmul.f32 1.0, %v3463
        %v3465 = vrcp.pop %v2999
        %v3466 = vmul.f32 %v2999, %v3465
        %v3467 = vsub.f32 1.0, %v3466
        %v3468 = vmul.f32 %v3465, %v3467
        %v3469 = vadd.f32 %v3465, %v3468
        %vm3470 = vweird.f32 %v2999
        %vm3471 = vweird.f32 %v3465
        %vm3472 = vmor %vm3470, %vm3471
        %v3473 = vsel %vm3472, %v3465, %v3469
        %v3474 = vand.u32 2147483647, %v2999
        %vm3475 = vcmp.eq.f32.partialorder %v3474, 8.507059e+37
        %v3476 = vand.u32 %v2999, 2147483648
        %v3477 = vor.u32 1.1754944e-38, %v3476
        %v3478 = vsel %vm3475, %v3477, %v3473
        %v3479 = vmul.f32 1.0, %v3478
        %v3480 = vtanh.pop %v2840
        %v3481 = vtanh.pop %v2841
        %v3482 = vtanh.pop %v2842
        %v3483 = vtanh.pop %v2843
        %v3484 = vtanh.pop %v2844
        %v3485 = vtanh.pop %v2845
        %v3486 = vtanh.pop %v2846
        %v3487 = vtanh.pop %v2847
        %v3488 = vtanh.pop %v2848
        %v3489 = vtanh.pop %v2849
        %v3490 = vtanh.pop %v2850
        %v3491 = vtanh.pop %v2851
        %v3492 = vtanh.pop %v2852
        %v3493 = vtanh.pop %v2853
        %v3494 = vtanh.pop %v2854
        %v3495 = vtanh.pop %v2855
        %v3496 = vtanh.pop %v2856
        %v3497 = vtanh.pop %v2857
        %v3498 = vtanh.pop %v2858
        %v3499 = vtanh.pop %v2859
        %v3500 = vtanh.pop %v2860
        %v3501 = vtanh.pop %v2861
        %v3502 = vtanh.pop %v2862
        %v3503 = vtanh.pop %v2863
        %v3504 = vtanh.pop %v2864
        %v3505 = vtanh.pop %v2865
        %v3506 = vtanh.pop %v2866
        %v3507 = vtanh.pop %v2867
        %v3508 = vtanh.pop %v2868
        %v3509 = vtanh.pop %v2869
        %v3510 = vtanh.pop %v2870
        %v3511 = vtanh.pop %v2871
        %3544 = vrot.lane.b32.xlu0 %v292, 32
        %v3545 = vpop.permute.xlu0 %3544
        %3546 = vrot.lane.b32.xlu0 %v293, 32
        %v3547 = vpop.permute.xlu0 %3546
        %3548 = vrot.lane.b32.xlu0 %v294, 32
        %v3549 = vpop.permute.xlu0 %3548
        %3550 = vrot.lane.b32.xlu0 %v295, 32
        %v3551 = vpop.permute.xlu0 %3550
        %3552 = vrot.lane.b32.xlu0 %v296, 32
        %v3553 = vpop.permute.xlu0 %3552
        %3554 = vrot.lane.b32.xlu0 %v297, 32
        %v3555 = vpop.permute.xlu0 %3554
        %3556 = vrot.lane.b32.xlu0 %v298, 32
        %v3557 = vpop.permute.xlu0 %3556
        %3558 = vrot.lane.b32.xlu0 %v299, 32
        %v3559 = vpop.permute.xlu0 %3558
        %3560 = vrot.lane.b32.xlu0 %v300, 32
        %v3561 = vpop.permute.xlu0 %3560
        %3562 = vrot.lane.b32.xlu0 %v301, 32
        %v3563 = vpop.permute.xlu0 %3562
        %3564 = vrot.lane.b32.xlu0 %v302, 32
        %v3565 = vpop.permute.xlu0 %3564
        %3566 = vrot.lane.b32.xlu0 %v303, 32
        %v3567 = vpop.permute.xlu0 %3566
        %3568 = vrot.lane.b32.xlu0 %v304, 32
        %v3569 = vpop.permute.xlu0 %3568
        %3570 = vrot.lane.b32.xlu0 %v305, 32
        %v3571 = vpop.permute.xlu0 %3570
        %3572 = vrot.lane.b32.xlu0 %v306, 32
        %v3573 = vpop.permute.xlu0 %3572
        %3574 = vrot.lane.b32.xlu0 %v307, 32
        %v3575 = vpop.permute.xlu0 %3574
        %3576 = vrot.lane.b32.xlu0 %v308, 32
        %v3577 = vpop.permute.xlu0 %3576
        %3578 = vrot.lane.b32.xlu0 %v309, 32
        %v3579 = vpop.permute.xlu0 %3578
        %3580 = vrot.lane.b32.xlu0 %v310, 32
        %v3581 = vpop.permute.xlu0 %3580
        %3582 = vrot.lane.b32.xlu0 %v311, 32
        %v3583 = vpop.permute.xlu0 %3582
        %3584 = vrot.lane.b32.xlu0 %v312, 32
        %v3585 = vpop.permute.xlu0 %3584
        %3586 = vrot.lane.b32.xlu0 %v313, 32
        %v3587 = vpop.permute.xlu0 %3586
        %3588 = vrot.lane.b32.xlu0 %v314, 32
        %v3589 = vpop.permute.xlu0 %3588
        %3590 = vrot.lane.b32.xlu0 %v315, 32
        %v3591 = vpop.permute.xlu0 %3590
        %3592 = vrot.lane.b32.xlu0 %v316, 32
        %v3593 = vpop.permute.xlu0 %3592
        %3594 = vrot.lane.b32.xlu0 %v317, 32
        %v3595 = vpop.permute.xlu0 %3594
        %3596 = vrot.lane.b32.xlu0 %v318, 32
        %v3597 = vpop.permute.xlu0 %3596
        %3598 = vrot.lane.b32.xlu0 %v319, 32
        %v3599 = vpop.permute.xlu0 %3598
        %3600 = vrot.lane.b32.xlu0 %v320, 32
        %v3601 = vpop.permute.xlu0 %3600
        %3602 = vrot.lane.b32.xlu0 %v321, 32
        %v3603 = vpop.permute.xlu0 %3602
        %3604 = vrot.lane.b32.xlu0 %v322, 32
        %v3605 = vpop.permute.xlu0 %3604
        %3606 = vrot.lane.b32.xlu0 %v323, 32
        %v3607 = vpop.permute.xlu0 %3606
        %v3640 = vmul.f32 %v3014, %v3545
        %v3641 = vmul.f32 %v3029, %v3547
        %v3642 = vmul.f32 %v3044, %v3549
        %v3643 = vmul.f32 %v3059, %v3551
        %v3644 = vmul.f32 %v3074, %v3553
        %v3645 = vmul.f32 %v3089, %v3555
        %v3646 = vmul.f32 %v3104, %v3557
        %v3647 = vmul.f32 %v3119, %v3559
        %v3648 = vmul.f32 %v3134, %v3561
        %v3649 = vmul.f32 %v3149, %v3563
        %v3650 = vmul.f32 %v3164, %v3565
        %v3651 = vmul.f32 %v3179, %v3567
        %v3652 = vmul.f32 %v3194, %v3569
        %v3653 = vmul.f32 %v3209, %v3571
        %v3654 = vmul.f32 %v3224, %v3573
        %v3655 = vmul.f32 %v3239, %v3575
        %v3656 = vmul.f32 %v3254, %v3577
        %v3657 = vmul.f32 %v3269, %v3579
        %v3658 = vmul.f32 %v3284, %v3581
        %v3659 = vmul.f32 %v3299, %v3583
        %v3660 = vmul.f32 %v3314, %v3585
        %v3661 = vmul.f32 %v3329, %v3587
        %v3662 = vmul.f32 %v3344, %v3589
        %v3663 = vmul.f32 %v3359, %v3591
        %v3664 = vmul.f32 %v3374, %v3593
        %v3665 = vmul.f32 %v3389, %v3595
        %v3666 = vmul.f32 %v3404, %v3597
        %v3667 = vmul.f32 %v3419, %v3599
        %v3668 = vmul.f32 %v3434, %v3601
        %v3669 = vmul.f32 %v3449, %v3603
        %v3670 = vmul.f32 %v3464, %v3605
        %v3671 = vmul.f32 %v3479, %v3607
        %3704 = vrot.lane.b32.xlu0 %v3480, 32
        %v3705 = vpop.permute.xlu0 %3704
        %3706 = vrot.lane.b32.xlu0 %v3481, 32
        %v3707 = vpop.permute.xlu0 %3706
        %3708 = vrot.lane.b32.xlu0 %v3482, 32
        %v3709 = vpop.permute.xlu0 %3708
        %3710 = vrot.lane.b32.xlu0 %v3483, 32
        %v3711 = vpop.permute.xlu0 %3710
        %3712 = vrot.lane.b32.xlu0 %v3484, 32
        %v3713 = vpop.permute.xlu0 %3712
        %3714 = vrot.lane.b32.xlu0 %v3485, 32
        %v3715 = vpop.permute.xlu0 %3714
        %3716 = vrot.lane.b32.xlu0 %v3486, 32
        %v3717 = vpop.permute.xlu0 %3716
        %3718 = vrot.lane.b32.xlu0 %v3487, 32
        %v3719 = vpop.permute.xlu0 %3718
        %3720 = vrot.lane.b32.xlu0 %v3488, 32
        %v3721 = vpop.permute.xlu0 %3720
        %3722 = vrot.lane.b32.xlu0 %v3489, 32
        %v3723 = vpop.permute.xlu0 %3722
        %3724 = vrot.lane.b32.xlu0 %v3490, 32
        %v3725 = vpop.permute.xlu0 %3724
        %3726 = vrot.lane.b32.xlu0 %v3491, 32
        %v3727 = vpop.permute.xlu0 %3726
        %3728 = vrot.lane.b32.xlu0 %v3492, 32
        %v3729 = vpop.permute.xlu0 %3728
        %3730 = vrot.lane.b32.xlu0 %v3493, 32
        %v3731 = vpop.permute.xlu0 %3730
        %3732 = vrot.lane.b32.xlu0 %v3494, 32
        %v3733 = vpop.permute.xlu0 %3732
        %3734 = vrot.lane.b32.xlu0 %v3495, 32
        %v3735 = vpop.permute.xlu0 %3734
        %3736 = vrot.lane.b32.xlu0 %v3496, 32
        %v3737 = vpop.permute.xlu0 %3736
        %3738 = vrot.lane.b32.xlu0 %v3497, 32
        %v3739 = vpop.permute.xlu0 %3738
        %3740 = vrot.lane.b32.xlu0 %v3498, 32
        %v3741 = vpop.permute.xlu0 %3740
        %3742 = vrot.lane.b32.xlu0 %v3499, 32
        %v3743 = vpop.permute.xlu0 %3742
        %3744 = vrot.lane.b32.xlu0 %v3500, 32
        %v3745 = vpop.permute.xlu0 %3744
        %3746 = vrot.lane.b32.xlu0 %v3501, 32
        %v3747 = vpop.permute.xlu0 %3746
        %3748 = vrot.lane.b32.xlu0 %v3502, 32
        %v3749 = vpop.permute.xlu0 %3748
        %3750 = vrot.lane.b32.xlu0 %v3503, 32
        %v3751 = vpop.permute.xlu0 %3750
        %3752 = vrot.lane.b32.xlu0 %v3504, 32
        %v3753 = vpop.permute.xlu0 %3752
        %3754 = vrot.lane.b32.xlu0 %v3505, 32
        %v3755 = vpop.permute.xlu0 %3754
        %3756 = vrot.lane.b32.xlu0 %v3506, 32
        %v3757 = vpop.permute.xlu0 %3756
        %3758 = vrot.lane.b32.xlu0 %v3507, 32
        %v3759 = vpop.permute.xlu0 %3758
        %3760 = vrot.lane.b32.xlu0 %v3508, 32
        %v3761 = vpop.permute.xlu0 %3760
        %3762 = vrot.lane.b32.xlu0 %v3509, 32
        %v3763 = vpop.permute.xlu0 %3762
        %3764 = vrot.lane.b32.xlu0 %v3510, 32
        %v3765 = vpop.permute.xlu0 %3764
        %3766 = vrot.lane.b32.xlu0 %v3511, 32
        %v3767 = vpop.permute.xlu0 %3766
        %v3800 = vmul.f32 %v3014, %v3705
        %v3801 = vmul.f32 %v3029, %v3707
        %v3802 = vmul.f32 %v3044, %v3709
        %v3803 = vmul.f32 %v3059, %v3711
        %v3804 = vmul.f32 %v3074, %v3713
        %v3805 = vmul.f32 %v3089, %v3715
        %v3806 = vmul.f32 %v3104, %v3717
        %v3807 = vmul.f32 %v3119, %v3719
        %v3808 = vmul.f32 %v3134, %v3721
        %v3809 = vmul.f32 %v3149, %v3723
        %v3810 = vmul.f32 %v3164, %v3725
        %v3811 = vmul.f32 %v3179, %v3727
        %v3812 = vmul.f32 %v3194, %v3729
        %v3813 = vmul.f32 %v3209, %v3731
        %v3814 = vmul.f32 %v3224, %v3733
        %v3815 = vmul.f32 %v3239, %v3735
        %v3816 = vmul.f32 %v3254, %v3737
        %v3817 = vmul.f32 %v3269, %v3739
        %v3818 = vmul.f32 %v3284, %v3741
        %v3819 = vmul.f32 %v3299, %v3743
        %v3820 = vmul.f32 %v3314, %v3745
        %v3821 = vmul.f32 %v3329, %v3747
        %v3822 = vmul.f32 %v3344, %v3749
        %v3823 = vmul.f32 %v3359, %v3751
        %v3824 = vmul.f32 %v3374, %v3753
        %v3825 = vmul.f32 %v3389, %v3755
        %v3826 = vmul.f32 %v3404, %v3757
        %v3827 = vmul.f32 %v3419, %v3759
        %v3828 = vmul.f32 %v3434, %v3761
        %v3829 = vmul.f32 %v3449, %v3763
        %v3830 = vmul.f32 %v3464, %v3765
        %v3831 = vmul.f32 %v3479, %v3767
        %3864 = vrot.lane.b32.xlu0 %v3800, 32
        %v3865 = vpop.permute.xlu0 %3864
        %3866 = vrot.lane.b32.xlu0 %v3801, 32
        %v3867 = vpop.permute.xlu0 %3866
        %3868 = vrot.lane.b32.xlu0 %v3802, 32
        %v3869 = vpop.permute.xlu0 %3868
        %3870 = vrot.lane.b32.xlu0 %v3803, 32
        %v3871 = vpop.permute.xlu0 %3870
        %3872 = vrot.lane.b32.xlu0 %v3804, 32
        %v3873 = vpop.permute.xlu0 %3872
        %3874 = vrot.lane.b32.xlu0 %v3805, 32
        %v3875 = vpop.permute.xlu0 %3874
        %3876 = vrot.lane.b32.xlu0 %v3806, 32
        %v3877 = vpop.permute.xlu0 %3876
        %3878 = vrot.lane.b32.xlu0 %v3807, 32
        %v3879 = vpop.permute.xlu0 %3878
        %3880 = vrot.lane.b32.xlu0 %v3808, 32
        %v3881 = vpop.permute.xlu0 %3880
        %3882 = vrot.lane.b32.xlu0 %v3809, 32
        %v3883 = vpop.permute.xlu0 %3882
        %3884 = vrot.lane.b32.xlu0 %v3810, 32
        %v3885 = vpop.permute.xlu0 %3884
        %3886 = vrot.lane.b32.xlu0 %v3811, 32
        %v3887 = vpop.permute.xlu0 %3886
        %3888 = vrot.lane.b32.xlu0 %v3812, 32
        %v3889 = vpop.permute.xlu0 %3888
        %3890 = vrot.lane.b32.xlu0 %v3813, 32
        %v3891 = vpop.permute.xlu0 %3890
        %3892 = vrot.lane.b32.xlu0 %v3814, 32
        %v3893 = vpop.permute.xlu0 %3892
        %3894 = vrot.lane.b32.xlu0 %v3815, 32
        %v3895 = vpop.permute.xlu0 %3894
        %3896 = vrot.lane.b32.xlu0 %v3816, 32
        %v3897 = vpop.permute.xlu0 %3896
        %3898 = vrot.lane.b32.xlu0 %v3817, 32
        %v3899 = vpop.permute.xlu0 %3898
        %3900 = vrot.lane.b32.xlu0 %v3818, 32
        %v3901 = vpop.permute.xlu0 %3900
        %3902 = vrot.lane.b32.xlu0 %v3819, 32
        %v3903 = vpop.permute.xlu0 %3902
        %3904 = vrot.lane.b32.xlu0 %v3820, 32
        %v3905 = vpop.permute.xlu0 %3904
        %3906 = vrot.lane.b32.xlu0 %v3821, 32
        %v3907 = vpop.permute.xlu0 %3906
        %3908 = vrot.lane.b32.xlu0 %v3822, 32
        %v3909 = vpop.permute.xlu0 %3908
        %3910 = vrot.lane.b32.xlu0 %v3823, 32
        %v3911 = vpop.permute.xlu0 %3910
        %3912 = vrot.lane.b32.xlu0 %v3824, 32
        %v3913 = vpop.permute.xlu0 %3912
        %3914 = vrot.lane.b32.xlu0 %v3825, 32
        %v3915 = vpop.permute.xlu0 %3914
        %3916 = vrot.lane.b32.xlu0 %v3826, 32
        %v3917 = vpop.permute.xlu0 %3916
        %3918 = vrot.lane.b32.xlu0 %v3827, 32
        %v3919 = vpop.permute.xlu0 %3918
        %3920 = vrot.lane.b32.xlu0 %v3828, 32
        %v3921 = vpop.permute.xlu0 %3920
        %3922 = vrot.lane.b32.xlu0 %v3829, 32
        %v3923 = vpop.permute.xlu0 %3922
        %3924 = vrot.lane.b32.xlu0 %v3830, 32
        %v3925 = vpop.permute.xlu0 %3924
        %3926 = vrot.lane.b32.xlu0 %v3831, 32
        %v3927 = vpop.permute.xlu0 %3926
        %v3960 = vadd.f32 %v3640, %v3865
        %v3961 = vadd.f32 %v3641, %v3867
        %v3962 = vadd.f32 %v3642, %v3869
        %v3963 = vadd.f32 %v3643, %v3871
        %v3964 = vadd.f32 %v3644, %v3873
        %v3965 = vadd.f32 %v3645, %v3875
        %v3966 = vadd.f32 %v3646, %v3877
        %v3967 = vadd.f32 %v3647, %v3879
        %v3968 = vadd.f32 %v3648, %v3881
        %v3969 = vadd.f32 %v3649, %v3883
        %v3970 = vadd.f32 %v3650, %v3885
        %v3971 = vadd.f32 %v3651, %v3887
        %v3972 = vadd.f32 %v3652, %v3889
        %v3973 = vadd.f32 %v3653, %v3891
        %v3974 = vadd.f32 %v3654, %v3893
        %v3975 = vadd.f32 %v3655, %v3895
        %v3976 = vadd.f32 %v3656, %v3897
        %v3977 = vadd.f32 %v3657, %v3899
        %v3978 = vadd.f32 %v3658, %v3901
        %v3979 = vadd.f32 %v3659, %v3903
        %v3980 = vadd.f32 %v3660, %v3905
        %v3981 = vadd.f32 %v3661, %v3907
        %v3982 = vadd.f32 %v3662, %v3909
        %v3983 = vadd.f32 %v3663, %v3911
        %v3984 = vadd.f32 %v3664, %v3913
        %v3985 = vadd.f32 %v3665, %v3915
        %v3986 = vadd.f32 %v3666, %v3917
        %v3987 = vadd.f32 %v3667, %v3919
        %v3988 = vadd.f32 %v3668, %v3921
        %v3989 = vadd.f32 %v3669, %v3923
        %v3990 = vadd.f32 %v3670, %v3925
        %v3991 = vadd.f32 %v3671, %v3927
        %v3992 = vtanh.pop %v3960
        %v3993 = vtanh.pop %v3961
        %v3994 = vtanh.pop %v3962
        %v3995 = vtanh.pop %v3963
        %v3996 = vtanh.pop %v3964
        %v3997 = vtanh.pop %v3965
        %v3998 = vtanh.pop %v3966
        %v3999 = vtanh.pop %v3967
        %v4000 = vtanh.pop %v3968
        %v4001 = vtanh.pop %v3969
        %v4002 = vtanh.pop %v3970
        %v4003 = vtanh.pop %v3971
        %v4004 = vtanh.pop %v3972
        %v4005 = vtanh.pop %v3973
        %v4006 = vtanh.pop %v3974
        %v4007 = vtanh.pop %v3975
        %v4008 = vtanh.pop %v3976
        %v4009 = vtanh.pop %v3977
        %v4010 = vtanh.pop %v3978
        %v4011 = vtanh.pop %v3979
        %v4012 = vtanh.pop %v3980
        %v4013 = vtanh.pop %v3981
        %v4014 = vtanh.pop %v3982
        %v4015 = vtanh.pop %v3983
        %v4016 = vtanh.pop %v3984
        %v4017 = vtanh.pop %v3985
        %v4018 = vtanh.pop %v3986
        %v4019 = vtanh.pop %v3987
        %v4020 = vtanh.pop %v3988
        %v4021 = vtanh.pop %v3989
        %v4022 = vtanh.pop %v3990
        %v4023 = vtanh.pop %v3991
        %4056 = vrot.lane.b32.xlu0 %v3992, 32
        %v4057 = vpop.permute.xlu0 %4056
        %4058 = vrot.lane.b32.xlu0 %v3993, 32
        %v4059 = vpop.permute.xlu0 %4058
        %4060 = vrot.lane.b32.xlu0 %v3994, 32
        %v4061 = vpop.permute.xlu0 %4060
        %4062 = vrot.lane.b32.xlu0 %v3995, 32
        %v4063 = vpop.permute.xlu0 %4062
        %4064 = vrot.lane.b32.xlu0 %v3996, 32
        %v4065 = vpop.permute.xlu0 %4064
        %4066 = vrot.lane.b32.xlu0 %v3997, 32
        %v4067 = vpop.permute.xlu0 %4066
        %4068 = vrot.lane.b32.xlu0 %v3998, 32
        %v4069 = vpop.permute.xlu0 %4068
        %4070 = vrot.lane.b32.xlu0 %v3999, 32
        %v4071 = vpop.permute.xlu0 %4070
        %4072 = vrot.lane.b32.xlu0 %v4000, 32
        %v4073 = vpop.permute.xlu0 %4072
        %4074 = vrot.lane.b32.xlu0 %v4001, 32
        %v4075 = vpop.permute.xlu0 %4074
        %4076 = vrot.lane.b32.xlu0 %v4002, 32
        %v4077 = vpop.permute.xlu0 %4076
        %4078 = vrot.lane.b32.xlu0 %v4003, 32
        %v4079 = vpop.permute.xlu0 %4078
        %4080 = vrot.lane.b32.xlu0 %v4004, 32
        %v4081 = vpop.permute.xlu0 %4080
        %4082 = vrot.lane.b32.xlu0 %v4005, 32
        %v4083 = vpop.permute.xlu0 %4082
        %4084 = vrot.lane.b32.xlu0 %v4006, 32
        %v4085 = vpop.permute.xlu0 %4084
        %4086 = vrot.lane.b32.xlu0 %v4007, 32
        %v4087 = vpop.permute.xlu0 %4086
        %4088 = vrot.lane.b32.xlu0 %v4008, 32
        %v4089 = vpop.permute.xlu0 %4088
        %4090 = vrot.lane.b32.xlu0 %v4009, 32
        %v4091 = vpop.permute.xlu0 %4090
        %4092 = vrot.lane.b32.xlu0 %v4010, 32
        %v4093 = vpop.permute.xlu0 %4092
        %4094 = vrot.lane.b32.xlu0 %v4011, 32
        %v4095 = vpop.permute.xlu0 %4094
        %4096 = vrot.lane.b32.xlu0 %v4012, 32
        %v4097 = vpop.permute.xlu0 %4096
        %4098 = vrot.lane.b32.xlu0 %v4013, 32
        %v4099 = vpop.permute.xlu0 %4098
        %4100 = vrot.lane.b32.xlu0 %v4014, 32
        %v4101 = vpop.permute.xlu0 %4100
        %4102 = vrot.lane.b32.xlu0 %v4015, 32
        %v4103 = vpop.permute.xlu0 %4102
        %4104 = vrot.lane.b32.xlu0 %v4016, 32
        %v4105 = vpop.permute.xlu0 %4104
        %4106 = vrot.lane.b32.xlu0 %v4017, 32
        %v4107 = vpop.permute.xlu0 %4106
        %4108 = vrot.lane.b32.xlu0 %v4018, 32
        %v4109 = vpop.permute.xlu0 %4108
        %4110 = vrot.lane.b32.xlu0 %v4019, 32
        %v4111 = vpop.permute.xlu0 %4110
        %4112 = vrot.lane.b32.xlu0 %v4020, 32
        %v4113 = vpop.permute.xlu0 %4112
        %4114 = vrot.lane.b32.xlu0 %v4021, 32
        %v4115 = vpop.permute.xlu0 %4114
        %4116 = vrot.lane.b32.xlu0 %v4022, 32
        %v4117 = vpop.permute.xlu0 %4116
        %4118 = vrot.lane.b32.xlu0 %v4023, 32
        %v4119 = vpop.permute.xlu0 %4118
        %v4152 = vmul.f32 %v3014, %v4057
        %v4153 = vmul.f32 %v3029, %v4059
        %v4154 = vmul.f32 %v3044, %v4061
        %v4155 = vmul.f32 %v3059, %v4063
        %v4156 = vmul.f32 %v3074, %v4065
        %v4157 = vmul.f32 %v3089, %v4067
        %v4158 = vmul.f32 %v3104, %v4069
        %v4159 = vmul.f32 %v3119, %v4071
        %v4160 = vmul.f32 %v3134, %v4073
        %v4161 = vmul.f32 %v3149, %v4075
        %v4162 = vmul.f32 %v3164, %v4077
        %v4163 = vmul.f32 %v3179, %v4079
        %v4164 = vmul.f32 %v3194, %v4081
        %v4165 = vmul.f32 %v3209, %v4083
        %v4166 = vmul.f32 %v3224, %v4085
        %v4167 = vmul.f32 %v3239, %v4087
        %v4168 = vmul.f32 %v3254, %v4089
        %v4169 = vmul.f32 %v3269, %v4091
        %v4170 = vmul.f32 %v3284, %v4093
        %v4171 = vmul.f32 %v3299, %v4095
        %v4172 = vmul.f32 %v3314, %v4097
        %v4173 = vmul.f32 %v3329, %v4099
        %v4174 = vmul.f32 %v3344, %v4101
        %v4175 = vmul.f32 %v3359, %v4103
        %v4176 = vmul.f32 %v3374, %v4105
        %v4177 = vmul.f32 %v3389, %v4107
        %v4178 = vmul.f32 %v3404, %v4109
        %v4179 = vmul.f32 %v3419, %v4111
        %v4180 = vmul.f32 %v3434, %v4113
        %v4181 = vmul.f32 %v3449, %v4115
        %v4182 = vmul.f32 %v3464, %v4117
        %v4183 = vmul.f32 %v3479, %v4119
        %vm4184 = vcmask 523264
        %4185 = vst.msk [vmem:[#allocation2] sm:$0xff] %vm4184, 0.0
        %4186 = vst.msk [vmem:[#allocation2 + $0x8] sm:$0xff] %vm4184, 0.0
        %vm4187 = vcmask 517120
        %4188 = vst.msk [vmem:[#allocation2 + $0x10] sm:$0x3] %vm4187, 0.0
        %s4189 = scalar_lea.vmem [#allocation2], 408
        %4190 = vst.msk [vmem:[%s4189] sm:$0xff] %vm4184, 0.0
        %4191 = vst.msk [vmem:[%s4189 + $0x8] sm:$0xff] %vm4184, 0.0
        %4192 = vst.msk [vmem:[%s4189 + $0x10] sm:$0x3] %vm4187, 0.0
        %s4193 = scalar_lea.vmem [#allocation2], 24
        %vm4194 = vcmask 516096
        %4195 = vst.msk [vmem:[%s4193] sm:$0x1] %vm4194, 0.0
        %4196 = vst.msk [vmem:[%s4193 + $0x18] sm:$0x1] %vm4194, 0.0
        %4197 = vst.msk [vmem:[%s4193 + $0x30] sm:$0x1] %vm4194, 0.0
        %4198 = vst.msk [vmem:[%s4193 + $0x48] sm:$0x1] %vm4194, 0.0
        %4199 = vst.msk [vmem:[%s4193 + $0x60] sm:$0x1] %vm4194, 0.0
        %4200 = vst.msk [vmem:[%s4193 + $0x78] sm:$0x1] %vm4194, 0.0
        %4201 = vst.msk [vmem:[%s4193 + $0x90] sm:$0x1] %vm4194, 0.0
        %4202 = vst.msk [vmem:[%s4193 + $0xa8] sm:$0x1] %vm4194, 0.0
        %4203 = vst.msk [vmem:[%s4193 + $0xc0] sm:$0x1] %vm4194, 0.0
        %4204 = vst.msk [vmem:[%s4193 + $0xd8] sm:$0x1] %vm4194, 0.0
        %4205 = vst.msk [vmem:[%s4193 + $0xf0] sm:$0x1] %vm4194, 0.0
        %4206 = vst.msk [vmem:[%s4193 + $0x108] sm:$0x1] %vm4194, 0.0
        %4207 = vst.msk [vmem:[%s4193 + $0x120] sm:$0x1] %vm4194, 0.0
        %4208 = vst.msk [vmem:[%s4193 + $0x138] sm:$0x1] %vm4194, 0.0
        %4209 = vst.msk [vmem:[%s4193 + $0x150] sm:$0x1] %vm4194, 0.0
        %4210 = vst.msk [vmem:[%s4193 + $0x168] sm:$0x1] %vm4194, 0.0
        %4211 = vst.msk [vmem:[%s4193 + $0x11] sm:$0x1] %vm4194, 0.0
        %4212 = vst.msk [vmem:[%s4193 + $0x29] sm:$0x1] %vm4194, 0.0
        %4213 = vst.msk [vmem:[%s4193 + $0x41] sm:$0x1] %vm4194, 0.0
        %4214 = vst.msk [vmem:[%s4193 + $0x59] sm:$0x1] %vm4194, 0.0
        %4215 = vst.msk [vmem:[%s4193 + $0x71] sm:$0x1] %vm4194, 0.0
        %4216 = vst.msk [vmem:[%s4193 + $0x89] sm:$0x1] %vm4194, 0.0
        %4217 = vst.msk [vmem:[%s4193 + $0xa1] sm:$0x1] %vm4194, 0.0
        %4218 = vst.msk [vmem:[%s4193 + $0xb9] sm:$0x1] %vm4194, 0.0
        %4219 = vst.msk [vmem:[%s4193 + $0xd1] sm:$0x1] %vm4194, 0.0
        %4220 = vst.msk [vmem:[%s4193 + $0xe9] sm:$0x1] %vm4194, 0.0
        %4221 = vst.msk [vmem:[%s4193 + $0x101] sm:$0x1] %vm4194, 0.0
        %4222 = vst.msk [vmem:[%s4193 + $0x119] sm:$0x1] %vm4194, 0.0
        %4223 = vst.msk [vmem:[%s4193 + $0x131] sm:$0x1] %vm4194, 0.0
        %4224 = vst.msk [vmem:[%s4193 + $0x149] sm:$0x1] %vm4194, 0.0
        %4225 = vst.msk [vmem:[%s4193 + $0x161] sm:$0x1] %vm4194, 0.0
        %4226 = vst.msk [vmem:[%s4193 + $0x179] sm:$0x1] %vm4194, 0.0
        %4259 = vrot.lane.b32.xlu0 %v4152, 64
        %v4260 = vpop.permute.xlu0 %4259
        %4261 = vrot.lane.b32.xlu0 %v4153, 64
        %v4262 = vpop.permute.xlu0 %4261
        %4263 = vrot.lane.b32.xlu0 %v4154, 64
        %v4264 = vpop.permute.xlu0 %4263
        %4265 = vrot.lane.b32.xlu0 %v4155, 64
        %v4266 = vpop.permute.xlu0 %4265
        %4267 = vrot.lane.b32.xlu0 %v4156, 64
        %v4268 = vpop.permute.xlu0 %4267
        %4269 = vrot.lane.b32.xlu0 %v4157, 64
        %v4270 = vpop.permute.xlu0 %4269
        %4271 = vrot.lane.b32.xlu0 %v4158, 64
        %v4272 = vpop.permute.xlu0 %4271
        %4273 = vrot.lane.b32.xlu0 %v4159, 64
        %v4274 = vpop.permute.xlu0 %4273
        %4275 = vrot.lane.b32.xlu0 %v4160, 64
        %v4276 = vpop.permute.xlu0 %4275
        %4277 = vrot.lane.b32.xlu0 %v4161, 64
        %v4278 = vpop.permute.xlu0 %4277
        %4279 = vrot.lane.b32.xlu0 %v4162, 64
        %v4280 = vpop.permute.xlu0 %4279
        %4281 = vrot.lane.b32.xlu0 %v4163, 64
        %v4282 = vpop.permute.xlu0 %4281
        %4283 = vrot.lane.b32.xlu0 %v4164, 64
        %v4284 = vpop.permute.xlu0 %4283
        %4285 = vrot.lane.b32.xlu0 %v4165, 64
        %v4286 = vpop.permute.xlu0 %4285
        %4287 = vrot.lane.b32.xlu0 %v4166, 64
        %v4288 = vpop.permute.xlu0 %4287
        %4289 = vrot.lane.b32.xlu0 %v4167, 64
        %v4290 = vpop.permute.xlu0 %4289
        %4291 = vrot.lane.b32.xlu0 %v4168, 64
        %v4292 = vpop.permute.xlu0 %4291
        %4293 = vrot.lane.b32.xlu0 %v4169, 64
        %v4294 = vpop.permute.xlu0 %4293
        %4295 = vrot.lane.b32.xlu0 %v4170, 64
        %v4296 = vpop.permute.xlu0 %4295
        %4297 = vrot.lane.b32.xlu0 %v4171, 64
        %v4298 = vpop.permute.xlu0 %4297
        %4299 = vrot.lane.b32.xlu0 %v4172, 64
        %v4300 = vpop.permute.xlu0 %4299
        %4301 = vrot.lane.b32.xlu0 %v4173, 64
        %v4302 = vpop.permute.xlu0 %4301
        %4303 = vrot.lane.b32.xlu0 %v4174, 64
        %v4304 = vpop.permute.xlu0 %4303
        %4305 = vrot.lane.b32.xlu0 %v4175, 64
        %v4306 = vpop.permute.xlu0 %4305
        %4307 = vrot.lane.b32.xlu0 %v4176, 64
        %v4308 = vpop.permute.xlu0 %4307
        %4309 = vrot.lane.b32.xlu0 %v4177, 64
        %v4310 = vpop.permute.xlu0 %4309
        %4311 = vrot.lane.b32.xlu0 %v4178, 64
        %v4312 = vpop.permute.xlu0 %4311
        %4313 = vrot.lane.b32.xlu0 %v4179, 64
        %v4314 = vpop.permute.xlu0 %4313
        %4315 = vrot.lane.b32.xlu0 %v4180, 64
        %v4316 = vpop.permute.xlu0 %4315
        %4317 = vrot.lane.b32.xlu0 %v4181, 64
        %v4318 = vpop.permute.xlu0 %4317
        %4319 = vrot.lane.b32.xlu0 %v4182, 64
        %v4320 = vpop.permute.xlu0 %4319
        %4321 = vrot.lane.b32.xlu0 %v4183, 64
        %v4322 = vpop.permute.xlu0 %4321
        %vm4355 = vcmask 261120
        %v4356 = vsel %vm4355, %v4260, %v292
        %v4357 = vsel %vm4355, %v4262, %v293
        %v4358 = vsel %vm4355, %v4264, %v294
        %v4359 = vsel %vm4355, %v4266, %v295
        %v4360 = vsel %vm4355, %v4268, %v296
        %v4361 = vsel %vm4355, %v4270, %v297
        %v4362 = vsel %vm4355, %v4272, %v298
        %v4363 = vsel %vm4355, %v4274, %v299
        %v4364 = vsel %vm4355, %v4276, %v300
        %v4365 = vsel %vm4355, %v4278, %v301
        %v4366 = vsel %vm4355, %v4280, %v302
        %v4367 = vsel %vm4355, %v4282, %v303
        %v4368 = vsel %vm4355, %v4284, %v304
        %v4369 = vsel %vm4355, %v4286, %v305
        %v4370 = vsel %vm4355, %v4288, %v306
        %v4371 = vsel %vm4355, %v4290, %v307
        %v4372 = vsel %vm4355, %v4292, %v308
        %v4373 = vsel %vm4355, %v4294, %v309
        %v4374 = vsel %vm4355, %v4296, %v310
        %v4375 = vsel %vm4355, %v4298, %v311
        %v4376 = vsel %vm4355, %v4300, %v312
        %v4377 = vsel %vm4355, %v4302, %v313
        %v4378 = vsel %vm4355, %v4304, %v314
        %v4379 = vsel %vm4355, %v4306, %v315
        %v4380 = vsel %vm4355, %v4308, %v316
        %v4381 = vsel %vm4355, %v4310, %v317
        %v4382 = vsel %vm4355, %v4312, %v318
        %v4383 = vsel %vm4355, %v4314, %v319
        %v4384 = vsel %vm4355, %v4316, %v320
        %v4385 = vsel %vm4355, %v4318, %v321
        %v4386 = vsel %vm4355, %v4320, %v322
        %v4387 = vsel %vm4355, %v4322, %v323
        %4388 = vst.msk [vmem:[%s4193 + $0x1] sm:$0xff] %vm4184, %v4356
        %4389 = vst.msk [vmem:[%s4193 + $0x9] sm:$0xff] %vm4184, %v4357
        %4390 = vst.msk [vmem:[%s4193 + $0x19] sm:$0xff] %vm4184, %v4358
        %4391 = vst.msk [vmem:[%s4193 + $0x21] sm:$0xff] %vm4184, %v4359
        %4392 = vst.msk [vmem:[%s4193 + $0x31] sm:$0xff] %vm4184, %v4360
        %4393 = vst.msk [vmem:[%s4193 + $0x39] sm:$0xff] %vm4184, %v4361
        %4394 = vst.msk [vmem:[%s4193 + $0x49] sm:$0xff] %vm4184, %v4362
        %4395 = vst.msk [vmem:[%s4193 + $0x51] sm:$0xff] %vm4184, %v4363
        %4396 = vst.msk [vmem:[%s4193 + $0x61] sm:$0xff] %vm4184, %v4364
        %4397 = vst.msk [vmem:[%s4193 + $0x69] sm:$0xff] %vm4184, %v4365
        %4398 = vst.msk [vmem:[%s4193 + $0x79] sm:$0xff] %vm4184, %v4366
        %4399 = vst.msk [vmem:[%s4193 + $0x81] sm:$0xff] %vm4184, %v4367
        %4400 = vst.msk [vmem:[%s4193 + $0x91] sm:$0xff] %vm4184, %v4368
        %4401 = vst.msk [vmem:[%s4193 + $0x99] sm:$0xff] %vm4184, %v4369
        %4402 = vst.msk [vmem:[%s4193 + $0xa9] sm:$0xff] %vm4184, %v4370
        %4403 = vst.msk [vmem:[%s4193 + $0xb1] sm:$0xff] %vm4184, %v4371
        %4404 = vst.msk [vmem:[%s4193 + $0xc1] sm:$0xff] %vm4184, %v4372
        %4405 = vst.msk [vmem:[%s4193 + $0xc9] sm:$0xff] %vm4184, %v4373
        %4406 = vst.msk [vmem:[%s4193 + $0xd9] sm:$0xff] %vm4184, %v4374
        %4407 = vst.msk [vmem:[%s4193 + $0xe1] sm:$0xff] %vm4184, %v4375
        %4408 = vst.msk [vmem:[%s4193 + $0xf1] sm:$0xff] %vm4184, %v4376
        %4409 = vst.msk [vmem:[%s4193 + $0xf9] sm:$0xff] %vm4184, %v4377
        %4410 = vst.msk [vmem:[%s4193 + $0x109] sm:$0xff] %vm4184, %v4378
        %4411 = vst.msk [vmem:[%s4193 + $0x111] sm:$0xff] %vm4184, %v4379
        %4412 = vst.msk [vmem:[%s4193 + $0x121] sm:$0xff] %vm4184, %v4380
        %4413 = vst.msk [vmem:[%s4193 + $0x129] sm:$0xff] %vm4184, %v4381
        %4414 = vst.msk [vmem:[%s4193 + $0x139] sm:$0xff] %vm4184, %v4382
        %4415 = vst.msk [vmem:[%s4193 + $0x141] sm:$0xff] %vm4184, %v4383
        %4416 = vst.msk [vmem:[%s4193 + $0x151] sm:$0xff] %vm4184, %v4384
        %4417 = vst.msk [vmem:[%s4193 + $0x159] sm:$0xff] %vm4184, %v4385
        %4418 = vst.msk [vmem:[%s4193 + $0x169] sm:$0xff] %vm4184, %v4386
        %4419 = vst.msk [vmem:[%s4193 + $0x171] sm:$0xff] %vm4184, %v4387
        %v4420 = vld [vmem:[#allocation2] sm:$0xff]
        %v4421 = vld [vmem:[#allocation2 + $0x8] sm:$0xff]
        %v4422 = vld [vmem:[#allocation2 + $0x18] sm:$0xff]
        %v4423 = vld [vmem:[#allocation2 + $0x20] sm:$0xff]
        %v4424 = vld [vmem:[#allocation2 + $0x30] sm:$0xff]
        %v4425 = vld [vmem:[#allocation2 + $0x38] sm:$0xff]
        %v4426 = vld [vmem:[#allocation2 + $0x48] sm:$0xff]
        %v4427 = vld [vmem:[#allocation2 + $0x50] sm:$0xff]
        %v4428 = vld [vmem:[#allocation2 + $0x60] sm:$0xff]
        %v4429 = vld [vmem:[#allocation2 + $0x68] sm:$0xff]
        %v4430 = vld [vmem:[#allocation2 + $0x78] sm:$0xff]
        %v4431 = vld [vmem:[#allocation2 + $0x80] sm:$0xff]
        %v4432 = vld [vmem:[#allocation2 + $0x90] sm:$0xff]
        %v4433 = vld [vmem:[#allocation2 + $0x98] sm:$0xff]
        %v4434 = vld [vmem:[#allocation2 + $0xa8] sm:$0xff]
        %v4435 = vld [vmem:[#allocation2 + $0xb0] sm:$0xff]
        %v4436 = vld [vmem:[#allocation2 + $0xc0] sm:$0xff]
        %v4437 = vld [vmem:[#allocation2 + $0xc8] sm:$0xff]
        %v4438 = vld [vmem:[#allocation2 + $0xd8] sm:$0xff]
        %v4439 = vld [vmem:[#allocation2 + $0xe0] sm:$0xff]
        %v4440 = vld [vmem:[#allocation2 + $0xf0] sm:$0xff]
        %v4441 = vld [vmem:[#allocation2 + $0xf8] sm:$0xff]
        %v4442 = vld [vmem:[#allocation2 + $0x108] sm:$0xff]
        %v4443 = vld [vmem:[#allocation2 + $0x110] sm:$0xff]
        %v4444 = vld [vmem:[#allocation2 + $0x120] sm:$0xff]
        %v4445 = vld [vmem:[#allocation2 + $0x128] sm:$0xff]
        %v4446 = vld [vmem:[#allocation2 + $0x138] sm:$0xff]
        %v4447 = vld [vmem:[#allocation2 + $0x140] sm:$0xff]
        %v4448 = vld [vmem:[#allocation2 + $0x150] sm:$0xff]
        %v4449 = vld [vmem:[#allocation2 + $0x158] sm:$0xff]
        %v4450 = vld [vmem:[#allocation2 + $0x168] sm:$0xff]
        %v4451 = vld [vmem:[#allocation2 + $0x170] sm:$0xff]
        %v4452 = vld [vmem:[%s4] sm:$0xff]
        %v4453 = vld [vmem:[%s4 + $0x8] sm:$0xff]
        %v4454 = vld [vmem:[%s4 + $0x10] sm:$0xff]
        %v4455 = vld [vmem:[%s4 + $0x18] sm:$0xff]
        %v4456 = vld [vmem:[%s4 + $0x20] sm:$0xff]
        %v4457 = vld [vmem:[%s4 + $0x28] sm:$0xff]
        %v4458 = vld [vmem:[%s4 + $0x30] sm:$0xff]
        %v4459 = vld [vmem:[%s4 + $0x38] sm:$0xff]
        %v4460 = vld [vmem:[#allocation2 + $0x1] sm:$0xff]
        %v4461 = vld [vmem:[#allocation2 + $0x9] sm:$0xff]
        %v4462 = vld [vmem:[#allocation2 + $0x19] sm:$0xff]
        %v4463 = vld [vmem:[#allocation2 + $0x21] sm:$0xff]
        %v4464 = vld [vmem:[#allocation2 + $0x31] sm:$0xff]
        %v4465 = vld [vmem:[#allocation2 + $0x39] sm:$0xff]
        %v4466 = vld [vmem:[#allocation2 + $0x49] sm:$0xff]
        %v4467 = vld [vmem:[#allocation2 + $0x51] sm:$0xff]
        %v4468 = vld [vmem:[#allocation2 + $0x61] sm:$0xff]
        %v4469 = vld [vmem:[#allocation2 + $0x69] sm:$0xff]
        %v4470 = vld [vmem:[#allocation2 + $0x79] sm:$0xff]
        %v4471 = vld [vmem:[#allocation2 + $0x81] sm:$0xff]
        %v4472 = vld [vmem:[#allocation2 + $0x91] sm:$0xff]
        %v4473 = vld [vmem:[#allocation2 + $0x99] sm:$0xff]
        %v4474 = vld [vmem:[#allocation2 + $0xa9] sm:$0xff]
        %v4475 = vld [vmem:[#allocation2 + $0xb1] sm:$0xff]
        %v4476 = vld [vmem:[#allocation2 + $0xc1] sm:$0xff]
        %v4477 = vld [vmem:[#allocation2 + $0xc9] sm:$0xff]
        %v4478 = vld [vmem:[#allocation2 + $0xd9] sm:$0xff]
        %v4479 = vld [vmem:[#allocation2 + $0xe1] sm:$0xff]
        %v4480 = vld [vmem:[#allocation2 + $0xf1] sm:$0xff]
        %v4481 = vld [vmem:[#allocation2 + $0xf9] sm:$0xff]
        %v4482 = vld [vmem:[#allocation2 + $0x109] sm:$0xff]
        %v4483 = vld [vmem:[#allocation2 + $0x111] sm:$0xff]
        %v4484 = vld [vmem:[#allocation2 + $0x121] sm:$0xff]
        %v4485 = vld [vmem:[#allocation2 + $0x129] sm:$0xff]
        %v4486 = vld [vmem:[#allocation2 + $0x139] sm:$0xff]
        %v4487 = vld [vmem:[#allocation2 + $0x141] sm:$0xff]
        %v4488 = vld [vmem:[#allocation2 + $0x151] sm:$0xff]
        %v4489 = vld [vmem:[#allocation2 + $0x159] sm:$0xff]
        %v4490 = vld [vmem:[#allocation2 + $0x169] sm:$0xff]
        %v4491 = vld [vmem:[#allocation2 + $0x171] sm:$0xff]
        %s4492 = scalar_lea.vmem %s4, 64
        %v4493 = vld [vmem:[%s4492] sm:$0xff]
        %v4494 = vld [vmem:[%s4492 + $0x8] sm:$0xff]
        %v4495 = vld [vmem:[%s4492 + $0x10] sm:$0xff]
        %v4496 = vld [vmem:[%s4492 + $0x18] sm:$0xff]
        %v4497 = vld [vmem:[%s4492 + $0x20] sm:$0xff]
        %v4498 = vld [vmem:[%s4492 + $0x28] sm:$0xff]
        %v4499 = vld [vmem:[%s4492 + $0x30] sm:$0xff]
        %v4500 = vld [vmem:[%s4492 + $0x38] sm:$0xff]
        %v4502 = vsel %vm4184, %v4460, 0
        %v4505 = vsel %vm4184, %v4461, 0
        %v4508 = vsel %vm4184, %v4462, 0
        %v4511 = vsel %vm4184, %v4463, 0
        %v4514 = vsel %vm4184, %v4464, 0
        %v4517 = vsel %vm4184, %v4465, 0
        %v4520 = vsel %vm4184, %v4466, 0
        %v4523 = vsel %vm4184, %v4467, 0
        %v4526 = vsel %vm4184, %v4468, 0
        %v4529 = vsel %vm4184, %v4469, 0
        %v4532 = vsel %vm4184, %v4470, 0
        %v4535 = vsel %vm4184, %v4471, 0
        %v4538 = vsel %vm4184, %v4472, 0
        %v4541 = vsel %vm4184, %v4473, 0
        %v4544 = vsel %vm4184, %v4474, 0
        %v4547 = vsel %vm4184, %v4475, 0
        %v4550 = vsel %vm4184, %v4476, 0
        %v4553 = vsel %vm4184, %v4477, 0
        %v4556 = vsel %vm4184, %v4478, 0
        %v4559 = vsel %vm4184, %v4479, 0
        %v4562 = vsel %vm4184, %v4480, 0
        %v4565 = vsel %vm4184, %v4481, 0
        %v4568 = vsel %vm4184, %v4482, 0
        %v4571 = vsel %vm4184, %v4483, 0
        %v4574 = vsel %vm4184, %v4484, 0
        %v4577 = vsel %vm4184, %v4485, 0
        %v4580 = vsel %vm4184, %v4486, 0
        %v4583 = vsel %vm4184, %v4487, 0
        %v4586 = vsel %vm4184, %v4488, 0
        %v4589 = vsel %vm4184, %v4489, 0
        %v4592 = vsel %vm4184, %v4490, 0
        %v4595 = vsel %vm4184, %v4491, 0
        %4597 = vmatpush.msra.mxu0 0.0
        %4598 = vmatpush.msra.mxu0 0.0
        %4599 = vmatpush.msra.mxu0 0.0
        %4600 = vmatpush.msra.mxu0 0.0
        %4601 = vmatpush.msra.mxu0 0.0
        %4602 = vmatpush.msra.mxu0 0.0
        %4603 = vmatpush.msra.mxu0 0.0
        %4604 = vmatpush.msra.mxu0 0.0
        %4605 = vmatpush.msra.mxu0 %v4500
        %4606 = vmatpush.msra.mxu0 %v4499
        %4607 = vmatpush.msra.mxu0 %v4498
        %4608 = vmatpush.msra.mxu0 %v4497
        %4609 = vmatpush.msra.mxu0 %v4496
        %4610 = vmatpush.msra.mxu0 %v4495
        %4611 = vmatpush.msra.mxu0 %v4494
        %4612 = vmatpush.msra.mxu0 %v4493
        %4613 = vmatmul.f32.gmra.mxu0 %v4502
        %v4614 = vpop.f32.mrf.mxu0
        %v4615 = vadd.f32 0.0, %v4614
        %4616 = vmatmul.f32.gmra.mxu0 %v4505
        %v4617 = vpop.f32.mrf.mxu0
        %v4618 = vadd.f32 0.0, %v4617
        %4619 = vmatmul.f32.gmra.mxu0 %v4508
        %v4620 = vpop.f32.mrf.mxu0
        %v4621 = vadd.f32 0.0, %v4620
        %4622 = vmatmul.f32.gmra.mxu0 %v4511
        %v4623 = vpop.f32.mrf.mxu0
        %v4624 = vadd.f32 0.0, %v4623
        %4625 = vmatmul.f32.gmra.mxu0 %v4514
        %v4626 = vpop.f32.mrf.mxu0
        %v4627 = vadd.f32 0.0, %v4626
        %4628 = vmatmul.f32.gmra.mxu0 %v4517
        %v4629 = vpop.f32.mrf.mxu0
        %v4630 = vadd.f32 0.0, %v4629
        %4631 = vmatmul.f32.gmra.mxu0 %v4520
        %v4632 = vpop.f32.mrf.mxu0
        %v4633 = vadd.f32 0.0, %v4632
        %4634 = vmatmul.f32.gmra.mxu0 %v4523
        %v4635 = vpop.f32.mrf.mxu0
        %v4636 = vadd.f32 0.0, %v4635
        %4637 = vmatmul.f32.gmra.mxu0 %v4526
        %v4638 = vpop.f32.mrf.mxu0
        %v4639 = vadd.f32 0.0, %v4638
        %4640 = vmatmul.f32.gmra.mxu0 %v4529
        %v4641 = vpop.f32.mrf.mxu0
        %v4642 = vadd.f32 0.0, %v4641
        %4643 = vmatmul.f32.gmra.mxu0 %v4532
        %v4644 = vpop.f32.mrf.mxu0
        %v4645 = vadd.f32 0.0, %v4644
        %4646 = vmatmul.f32.gmra.mxu0 %v4535
        %v4647 = vpop.f32.mrf.mxu0
        %v4648 = vadd.f32 0.0, %v4647
        %4649 = vmatmul.f32.gmra.mxu0 %v4538
        %v4650 = vpop.f32.mrf.mxu0
        %v4651 = vadd.f32 0.0, %v4650
        %4652 = vmatmul.f32.gmra.mxu0 %v4541
        %v4653 = vpop.f32.mrf.mxu0
        %v4654 = vadd.f32 0.0, %v4653
        %4655 = vmatmul.f32.gmra.mxu0 %v4544
        %v4656 = vpop.f32.mrf.mxu0
        %v4657 = vadd.f32 0.0, %v4656
        %4658 = vmatmul.f32.gmra.mxu0 %v4547
        %v4659 = vpop.f32.mrf.mxu0
        %v4660 = vadd.f32 0.0, %v4659
        %4661 = vmatmul.f32.gmra.mxu0 %v4550
        %v4662 = vpop.f32.mrf.mxu0
        %v4663 = vadd.f32 0.0, %v4662
        %4664 = vmatmul.f32.gmra.mxu0 %v4553
        %v4665 = vpop.f32.mrf.mxu0
        %v4666 = vadd.f32 0.0, %v4665
        %4667 = vmatmul.f32.gmra.mxu0 %v4556
        %v4668 = vpop.f32.mrf.mxu0
        %v4669 = vadd.f32 0.0, %v4668
        %4670 = vmatmul.f32.gmra.mxu0 %v4559
        %v4671 = vpop.f32.mrf.mxu0
        %v4672 = vadd.f32 0.0, %v4671
        %4673 = vmatmul.f32.gmra.mxu0 %v4562
        %v4674 = vpop.f32.mrf.mxu0
        %v4675 = vadd.f32 0.0, %v4674
        %4676 = vmatmul.f32.gmra.mxu0 %v4565
        %v4677 = vpop.f32.mrf.mxu0
        %v4678 = vadd.f32 0.0, %v4677
        %4679 = vmatmul.f32.gmra.mxu0 %v4568
        %v4680 = vpop.f32.mrf.mxu0
        %v4681 = vadd.f32 0.0, %v4680
        %4682 = vmatmul.f32.gmra.mxu0 %v4571
        %v4683 = vpop.f32.mrf.mxu0
        %v4684 = vadd.f32 0.0, %v4683
        %4685 = vmatmul.f32.gmra.mxu0 %v4574
        %v4686 = vpop.f32.mrf.mxu0
        %v4687 = vadd.f32 0.0, %v4686
        %4688 = vmatmul.f32.gmra.mxu0 %v4577
        %v4689 = vpop.f32.mrf.mxu0
        %v4690 = vadd.f32 0.0, %v4689
        %4691 = vmatmul.f32.gmra.mxu0 %v4580
        %v4692 = vpop.f32.mrf.mxu0
        %v4693 = vadd.f32 0.0, %v4692
        %4694 = vmatmul.f32.gmra.mxu0 %v4583
        %v4695 = vpop.f32.mrf.mxu0
        %v4696 = vadd.f32 0.0, %v4695
        %4697 = vmatmul.f32.gmra.mxu0 %v4586
        %v4698 = vpop.f32.mrf.mxu0
        %v4699 = vadd.f32 0.0, %v4698
        %4700 = vmatmul.f32.gmra.mxu0 %v4589
        %v4701 = vpop.f32.mrf.mxu0
        %v4702 = vadd.f32 0.0, %v4701
        %4703 = vmatmul.f32.gmra.mxu0 %v4592
        %v4704 = vpop.f32.mrf.mxu0
        %v4705 = vadd.f32 0.0, %v4704
        %4706 = vmatmul.f32.gmra.mxu0 %v4595
        %v4707 = vpop.f32.mrf.mxu0
        %v4708 = vadd.f32 0.0, %v4707
        %4709 = vdwg.mxu0
        %v4711 = vsel %vm4184, %v4420, 0
        %v4714 = vsel %vm4184, %v4421, 0
        %v4717 = vsel %vm4184, %v4422, 0
        %v4720 = vsel %vm4184, %v4423, 0
        %v4723 = vsel %vm4184, %v4424, 0
        %v4726 = vsel %vm4184, %v4425, 0
        %v4729 = vsel %vm4184, %v4426, 0
        %v4732 = vsel %vm4184, %v4427, 0
        %v4735 = vsel %vm4184, %v4428, 0
        %v4738 = vsel %vm4184, %v4429, 0
        %v4741 = vsel %vm4184, %v4430, 0
        %v4744 = vsel %vm4184, %v4431, 0
        %v4747 = vsel %vm4184, %v4432, 0
        %v4750 = vsel %vm4184, %v4433, 0
        %v4753 = vsel %vm4184, %v4434, 0
        %v4756 = vsel %vm4184, %v4435, 0
        %v4759 = vsel %vm4184, %v4436, 0
        %v4762 = vsel %vm4184, %v4437, 0
        %v4765 = vsel %vm4184, %v4438, 0
        %v4768 = vsel %vm4184, %v4439, 0
        %v4771 = vsel %vm4184, %v4440, 0
        %v4774 = vsel %vm4184, %v4441, 0
        %v4777 = vsel %vm4184, %v4442, 0
        %v4780 = vsel %vm4184, %v4443, 0
        %v4783 = vsel %vm4184, %v4444, 0
        %v4786 = vsel %vm4184, %v4445, 0
        %v4789 = vsel %vm4184, %v4446, 0
        %v4792 = vsel %vm4184, %v4447, 0
        %v4795 = vsel %vm4184, %v4448, 0
        %v4798 = vsel %vm4184, %v4449, 0
        %v4801 = vsel %vm4184, %v4450, 0
        %v4804 = vsel %vm4184, %v4451, 0
        %4806 = vmatpush.msra.mxu0 0.0
        %4807 = vmatpush.msra.mxu0 0.0
        %4808 = vmatpush.msra.mxu0 0.0
        %4809 = vmatpush.msra.mxu0 0.0
        %4810 = vmatpush.msra.mxu0 0.0
        %4811 = vmatpush.msra.mxu0 0.0
        %4812 = vmatpush.msra.mxu0 0.0
        %4813 = vmatpush.msra.mxu0 0.0
        %4814 = vmatpush.msra.mxu0 %v4459
        %4815 = vmatpush.msra.mxu0 %v4458
        %4816 = vmatpush.msra.mxu0 %v4457
        %4817 = vmatpush.msra.mxu0 %v4456
        %4818 = vmatpush.msra.mxu0 %v4455
        %4819 = vmatpush.msra.mxu0 %v4454
        %4820 = vmatpush.msra.mxu0 %v4453
        %4821 = vmatpush.msra.mxu0 %v4452
        %4822 = vmatmul.f32.gmra.mxu0 %v4711
        %v4823 = vpop.f32.mrf.mxu0
        %v4824 = vadd.f32 %v4615, %v4823
        %4825 = vmatmul.f32.gmra.mxu0 %v4714
        %v4826 = vpop.f32.mrf.mxu0
        %v4827 = vadd.f32 %v4618, %v4826
        %4828 = vmatmul.f32.gmra.mxu0 %v4717
        %v4829 = vpop.f32.mrf.mxu0
        %v4830 = vadd.f32 %v4621, %v4829
        %4831 = vmatmul.f32.gmra.mxu0 %v4720
        %v4832 = vpop.f32.mrf.mxu0
        %v4833 = vadd.f32 %v4624, %v4832
        %4834 = vmatmul.f32.gmra.mxu0 %v4723
        %v4835 = vpop.f32.mrf.mxu0
        %v4836 = vadd.f32 %v4627, %v4835
        %4837 = vmatmul.f32.gmra.mxu0 %v4726
        %v4838 = vpop.f32.mrf.mxu0
        %v4839 = vadd.f32 %v4630, %v4838
        %4840 = vmatmul.f32.gmra.mxu0 %v4729
        %v4841 = vpop.f32.mrf.mxu0
        %v4842 = vadd.f32 %v4633, %v4841
        %4843 = vmatmul.f32.gmra.mxu0 %v4732
        %v4844 = vpop.f32.mrf.mxu0
        %v4845 = vadd.f32 %v4636, %v4844
        %4846 = vmatmul.f32.gmra.mxu0 %v4735
        %v4847 = vpop.f32.mrf.mxu0
        %v4848 = vadd.f32 %v4639, %v4847
        %4849 = vmatmul.f32.gmra.mxu0 %v4738
        %v4850 = vpop.f32.mrf.mxu0
        %v4851 = vadd.f32 %v4642, %v4850
        %4852 = vmatmul.f32.gmra.mxu0 %v4741
        %v4853 = vpop.f32.mrf.mxu0
        %v4854 = vadd.f32 %v4645, %v4853
        %4855 = vmatmul.f32.gmra.mxu0 %v4744
        %v4856 = vpop.f32.mrf.mxu0
        %v4857 = vadd.f32 %v4648, %v4856
        %4858 = vmatmul.f32.gmra.mxu0 %v4747
        %v4859 = vpop.f32.mrf.mxu0
        %v4860 = vadd.f32 %v4651, %v4859
        %4861 = vmatmul.f32.gmra.mxu0 %v4750
        %v4862 = vpop.f32.mrf.mxu0
        %v4863 = vadd.f32 %v4654, %v4862
        %4864 = vmatmul.f32.gmra.mxu0 %v4753
        %v4865 = vpop.f32.mrf.mxu0
        %v4866 = vadd.f32 %v4657, %v4865
        %4867 = vmatmul.f32.gmra.mxu0 %v4756
        %v4868 = vpop.f32.mrf.mxu0
        %v4869 = vadd.f32 %v4660, %v4868
        %4870 = vmatmul.f32.gmra.mxu0 %v4759
        %v4871 = vpop.f32.mrf.mxu0
        %v4872 = vadd.f32 %v4663, %v4871
        %4873 = vmatmul.f32.gmra.mxu0 %v4762
        %v4874 = vpop.f32.mrf.mxu0
        %v4875 = vadd.f32 %v4666, %v4874
        %4876 = vmatmul.f32.gmra.mxu0 %v4765
        %v4877 = vpop.f32.mrf.mxu0
        %v4878 = vadd.f32 %v4669, %v4877
        %4879 = vmatmul.f32.gmra.mxu0 %v4768
        %v4880 = vpop.f32.mrf.mxu0
        %v4881 = vadd.f32 %v4672, %v4880
        %4882 = vmatmul.f32.gmra.mxu0 %v4771
        %v4883 = vpop.f32.mrf.mxu0
        %v4884 = vadd.f32 %v4675, %v4883
        %4885 = vmatmul.f32.gmra.mxu0 %v4774
        %v4886 = vpop.f32.mrf.mxu0
        %v4887 = vadd.f32 %v4678, %v4886
        %4888 = vmatmul.f32.gmra.mxu0 %v4777
        %v4889 = vpop.f32.mrf.mxu0
        %v4890 = vadd.f32 %v4681, %v4889
        %4891 = vmatmul.f32.gmra.mxu0 %v4780
        %v4892 = vpop.f32.mrf.mxu0
        %v4893 = vadd.f32 %v4684, %v4892
        %4894 = vmatmul.f32.gmra.mxu0 %v4783
        %v4895 = vpop.f32.mrf.mxu0
        %v4896 = vadd.f32 %v4687, %v4895
        %4897 = vmatmul.f32.gmra.mxu0 %v4786
        %v4898 = vpop.f32.mrf.mxu0
        %v4899 = vadd.f32 %v4690, %v4898
        %4900 = vmatmul.f32.gmra.mxu0 %v4789
        %v4901 = vpop.f32.mrf.mxu0
        %v4902 = vadd.f32 %v4693, %v4901
        %4903 = vmatmul.f32.gmra.mxu0 %v4792
        %v4904 = vpop.f32.mrf.mxu0
        %v4905 = vadd.f32 %v4696, %v4904
        %4906 = vmatmul.f32.gmra.mxu0 %v4795
        %v4907 = vpop.f32.mrf.mxu0
        %v4908 = vadd.f32 %v4699, %v4907
        %4909 = vmatmul.f32.gmra.mxu0 %v4798
        %v4910 = vpop.f32.mrf.mxu0
        %v4911 = vadd.f32 %v4702, %v4910
        %4912 = vmatmul.f32.gmra.mxu0 %v4801
        %v4913 = vpop.f32.mrf.mxu0
        %v4914 = vadd.f32 %v4705, %v4913
        %4915 = vmatmul.f32.gmra.mxu0 %v4804
        %v4916 = vpop.f32.mrf.mxu0
        %v4917 = vadd.f32 %v4708, %v4916
        %4918 = vdwg.mxu0
        %v4919 = vld [vmem:[#allocation2 + $0x2] sm:$0xff]
        %v4920 = vld [vmem:[#allocation2 + $0xa] sm:$0xff]
        %v4921 = vld [vmem:[#allocation2 + $0x1a] sm:$0xff]
        %v4922 = vld [vmem:[#allocation2 + $0x22] sm:$0xff]
        %v4923 = vld [vmem:[#allocation2 + $0x32] sm:$0xff]
        %v4924 = vld [vmem:[#allocation2 + $0x3a] sm:$0xff]
        %v4925 = vld [vmem:[#allocation2 + $0x4a] sm:$0xff]
        %v4926 = vld [vmem:[#allocation2 + $0x52] sm:$0xff]
        %v4927 = vld [vmem:[#allocation2 + $0x62] sm:$0xff]
        %v4928 = vld [vmem:[#allocation2 + $0x6a] sm:$0xff]
        %v4929 = vld [vmem:[#allocation2 + $0x7a] sm:$0xff]
        %v4930 = vld [vmem:[#allocation2 + $0x82] sm:$0xff]
        %v4931 = vld [vmem:[#allocation2 + $0x92] sm:$0xff]
        %v4932 = vld [vmem:[#allocation2 + $0x9a] sm:$0xff]
        %v4933 = vld [vmem:[#allocation2 + $0xaa] sm:$0xff]
        %v4934 = vld [vmem:[#allocation2 + $0xb2] sm:$0xff]
        %v4935 = vld [vmem:[#allocation2 + $0xc2] sm:$0xff]
        %v4936 = vld [vmem:[#allocation2 + $0xca] sm:$0xff]
        %v4937 = vld [vmem:[#allocation2 + $0xda] sm:$0xff]
        %v4938 = vld [vmem:[#allocation2 + $0xe2] sm:$0xff]
        %v4939 = vld [vmem:[#allocation2 + $0xf2] sm:$0xff]
        %v4940 = vld [vmem:[#allocation2 + $0xfa] sm:$0xff]
        %v4941 = vld [vmem:[#allocation2 + $0x10a] sm:$0xff]
        %v4942 = vld [vmem:[#allocation2 + $0x112] sm:$0xff]
        %v4943 = vld [vmem:[#allocation2 + $0x122] sm:$0xff]
        %v4944 = vld [vmem:[#allocation2 + $0x12a] sm:$0xff]
        %v4945 = vld [vmem:[#allocation2 + $0x13a] sm:$0xff]
        %v4946 = vld [vmem:[#allocation2 + $0x142] sm:$0xff]
        %v4947 = vld [vmem:[#allocation2 + $0x152] sm:$0xff]
        %v4948 = vld [vmem:[#allocation2 + $0x15a] sm:$0xff]
        %v4949 = vld [vmem:[#allocation2 + $0x16a] sm:$0xff]
        %v4950 = vld [vmem:[#allocation2 + $0x172] sm:$0xff]
        %s4951 = scalar_lea.vmem %s4, 128
        %v4952 = vld [vmem:[%s4951] sm:$0xff]
        %v4953 = vld [vmem:[%s4951 + $0x8] sm:$0xff]
        %v4954 = vld [vmem:[%s4951 + $0x10] sm:$0xff]
        %v4955 = vld [vmem:[%s4951 + $0x18] sm:$0xff]
        %v4956 = vld [vmem:[%s4951 + $0x20] sm:$0xff]
        %v4957 = vld [vmem:[%s4951 + $0x28] sm:$0xff]
        %v4958 = vld [vmem:[%s4951 + $0x30] sm:$0xff]
        %v4959 = vld [vmem:[%s4951 + $0x38] sm:$0xff]
        %v4961 = vsel %vm4184, %v4919, 0
        %v4964 = vsel %vm4184, %v4920, 0
        %v4967 = vsel %vm4184, %v4921, 0
        %v4970 = vsel %vm4184, %v4922, 0
        %v4973 = vsel %vm4184, %v4923, 0
        %v4976 = vsel %vm4184, %v4924, 0
        %v4979 = vsel %vm4184, %v4925, 0
        %v4982 = vsel %vm4184, %v4926, 0
        %v4985 = vsel %vm4184, %v4927, 0
        %v4988 = vsel %vm4184, %v4928, 0
        %v4991 = vsel %vm4184, %v4929, 0
        %v4994 = vsel %vm4184, %v4930, 0
        %v4997 = vsel %vm4184, %v4931, 0
        %v5000 = vsel %vm4184, %v4932, 0
        %v5003 = vsel %vm4184, %v4933, 0
        %v5006 = vsel %vm4184, %v4934, 0
        %v5009 = vsel %vm4184, %v4935, 0
        %v5012 = vsel %vm4184, %v4936, 0
        %v5015 = vsel %vm4184, %v4937, 0
        %v5018 = vsel %vm4184, %v4938, 0
        %v5021 = vsel %vm4184, %v4939, 0
        %v5024 = vsel %vm4184, %v4940, 0
        %v5027 = vsel %vm4184, %v4941, 0
        %v5030 = vsel %vm4184, %v4942, 0
        %v5033 = vsel %vm4184, %v4943, 0
        %v5036 = vsel %vm4184, %v4944, 0
        %v5039 = vsel %vm4184, %v4945, 0
        %v5042 = vsel %vm4184, %v4946, 0
        %v5045 = vsel %vm4184, %v4947, 0
        %v5048 = vsel %vm4184, %v4948, 0
        %v5051 = vsel %vm4184, %v4949, 0
        %v5054 = vsel %vm4184, %v4950, 0
        %5056 = vmatpush.msra.mxu0 0.0
        %5057 = vmatpush.msra.mxu0 0.0
        %5058 = vmatpush.msra.mxu0 0.0
        %5059 = vmatpush.msra.mxu0 0.0
        %5060 = vmatpush.msra.mxu0 0.0
        %5061 = vmatpush.msra.mxu0 0.0
        %5062 = vmatpush.msra.mxu0 0.0
        %5063 = vmatpush.msra.mxu0 0.0
        %5064 = vmatpush.msra.mxu0 %v4959
        %5065 = vmatpush.msra.mxu0 %v4958
        %5066 = vmatpush.msra.mxu0 %v4957
        %5067 = vmatpush.msra.mxu0 %v4956
        %5068 = vmatpush.msra.mxu0 %v4955
        %5069 = vmatpush.msra.mxu0 %v4954
        %5070 = vmatpush.msra.mxu0 %v4953
        %5071 = vmatpush.msra.mxu0 %v4952
        %5072 = vmatmul.f32.gmra.mxu0 %v4961
        %v5073 = vpop.f32.mrf.mxu0
        %v5074 = vadd.f32 0.0, %v5073
        %5075 = vmatmul.f32.gmra.mxu0 %v4964
        %v5076 = vpop.f32.mrf.mxu0
        %v5077 = vadd.f32 0.0, %v5076
        %5078 = vmatmul.f32.gmra.mxu0 %v4967
        %v5079 = vpop.f32.mrf.mxu0
        %v5080 = vadd.f32 0.0, %v5079
        %5081 = vmatmul.f32.gmra.mxu0 %v4970
        %v5082 = vpop.f32.mrf.mxu0
        %v5083 = vadd.f32 0.0, %v5082
        %5084 = vmatmul.f32.gmra.mxu0 %v4973
        %v5085 = vpop.f32.mrf.mxu0
        %v5086 = vadd.f32 0.0, %v5085
        %5087 = vmatmul.f32.gmra.mxu0 %v4976
        %v5088 = vpop.f32.mrf.mxu0
        %v5089 = vadd.f32 0.0, %v5088
        %5090 = vmatmul.f32.gmra.mxu0 %v4979
        %v5091 = vpop.f32.mrf.mxu0
        %v5092 = vadd.f32 0.0, %v5091
        %5093 = vmatmul.f32.gmra.mxu0 %v4982
        %v5094 = vpop.f32.mrf.mxu0
        %v5095 = vadd.f32 0.0, %v5094
        %5096 = vmatmul.f32.gmra.mxu0 %v4985
        %v5097 = vpop.f32.mrf.mxu0
        %v5098 = vadd.f32 0.0, %v5097
        %5099 = vmatmul.f32.gmra.mxu0 %v4988
        %v5100 = vpop.f32.mrf.mxu0
        %v5101 = vadd.f32 0.0, %v5100
        %5102 = vmatmul.f32.gmra.mxu0 %v4991
        %v5103 = vpop.f32.mrf.mxu0
        %v5104 = vadd.f32 0.0, %v5103
        %5105 = vmatmul.f32.gmra.mxu0 %v4994
        %v5106 = vpop.f32.mrf.mxu0
        %v5107 = vadd.f32 0.0, %v5106
        %5108 = vmatmul.f32.gmra.mxu0 %v4997
        %v5109 = vpop.f32.mrf.mxu0
        %v5110 = vadd.f32 0.0, %v5109
        %5111 = vmatmul.f32.gmra.mxu0 %v5000
        %v5112 = vpop.f32.mrf.mxu0
        %v5113 = vadd.f32 0.0, %v5112
        %5114 = vmatmul.f32.gmra.mxu0 %v5003
        %v5115 = vpop.f32.mrf.mxu0
        %v5116 = vadd.f32 0.0, %v5115
        %5117 = vmatmul.f32.gmra.mxu0 %v5006
        %v5118 = vpop.f32.mrf.mxu0
        %v5119 = vadd.f32 0.0, %v5118
        %5120 = vmatmul.f32.gmra.mxu0 %v5009
        %v5121 = vpop.f32.mrf.mxu0
        %v5122 = vadd.f32 0.0, %v5121
        %5123 = vmatmul.f32.gmra.mxu0 %v5012
        %v5124 = vpop.f32.mrf.mxu0
        %v5125 = vadd.f32 0.0, %v5124
        %5126 = vmatmul.f32.gmra.mxu0 %v5015
        %v5127 = vpop.f32.mrf.mxu0
        %v5128 = vadd.f32 0.0, %v5127
        %5129 = vmatmul.f32.gmra.mxu0 %v5018
        %v5130 = vpop.f32.mrf.mxu0
        %v5131 = vadd.f32 0.0, %v5130
        %5132 = vmatmul.f32.gmra.mxu0 %v5021
        %v5133 = vpop.f32.mrf.mxu0
        %v5134 = vadd.f32 0.0, %v5133
        %5135 = vmatmul.f32.gmra.mxu0 %v5024
        %v5136 = vpop.f32.mrf.mxu0
        %v5137 = vadd.f32 0.0, %v5136
        %5138 = vmatmul.f32.gmra.mxu0 %v5027
        %v5139 = vpop.f32.mrf.mxu0
        %v5140 = vadd.f32 0.0, %v5139
        %5141 = vmatmul.f32.gmra.mxu0 %v5030
        %v5142 = vpop.f32.mrf.mxu0
        %v5143 = vadd.f32 0.0, %v5142
        %5144 = vmatmul.f32.gmra.mxu0 %v5033
        %v5145 = vpop.f32.mrf.mxu0
        %v5146 = vadd.f32 0.0, %v5145
        %5147 = vmatmul.f32.gmra.mxu0 %v5036
        %v5148 = vpop.f32.mrf.mxu0
        %v5149 = vadd.f32 0.0, %v5148
        %5150 = vmatmul.f32.gmra.mxu0 %v5039
        %v5151 = vpop.f32.mrf.mxu0
        %v5152 = vadd.f32 0.0, %v5151
        %5153 = vmatmul.f32.gmra.mxu0 %v5042
        %v5154 = vpop.f32.mrf.mxu0
        %v5155 = vadd.f32 0.0, %v5154
        %5156 = vmatmul.f32.gmra.mxu0 %v5045
        %v5157 = vpop.f32.mrf.mxu0
        %v5158 = vadd.f32 0.0, %v5157
        %5159 = vmatmul.f32.gmra.mxu0 %v5048
        %v5160 = vpop.f32.mrf.mxu0
        %v5161 = vadd.f32 0.0, %v5160
        %5162 = vmatmul.f32.gmra.mxu0 %v5051
        %v5163 = vpop.f32.mrf.mxu0
        %v5164 = vadd.f32 0.0, %v5163
        %5165 = vmatmul.f32.gmra.mxu0 %v5054
        %v5166 = vpop.f32.mrf.mxu0
        %v5167 = vadd.f32 0.0, %v5166
        %5168 = vdwg.mxu0
        %v5169 = vadd.f32 %v4824, %v5074
        %v5170 = vadd.f32 %v4827, %v5077
        %v5171 = vadd.f32 %v4830, %v5080
        %v5172 = vadd.f32 %v4833, %v5083
        %v5173 = vadd.f32 %v4836, %v5086
        %v5174 = vadd.f32 %v4839, %v5089
        %v5175 = vadd.f32 %v4842, %v5092
        %v5176 = vadd.f32 %v4845, %v5095
        %v5177 = vadd.f32 %v4848, %v5098
        %v5178 = vadd.f32 %v4851, %v5101
        %v5179 = vadd.f32 %v4854, %v5104
        %v5180 = vadd.f32 %v4857, %v5107
        %v5181 = vadd.f32 %v4860, %v5110
        %v5182 = vadd.f32 %v4863, %v5113
        %v5183 = vadd.f32 %v4866, %v5116
        %v5184 = vadd.f32 %v4869, %v5119
        %v5185 = vadd.f32 %v4872, %v5122
        %v5186 = vadd.f32 %v4875, %v5125
        %v5187 = vadd.f32 %v4878, %v5128
        %v5188 = vadd.f32 %v4881, %v5131
        %v5189 = vadd.f32 %v4884, %v5134
        %v5190 = vadd.f32 %v4887, %v5137
        %v5191 = vadd.f32 %v4890, %v5140
        %v5192 = vadd.f32 %v4893, %v5143
        %v5193 = vadd.f32 %v4896, %v5146
        %v5194 = vadd.f32 %v4899, %v5149
        %v5195 = vadd.f32 %v4902, %v5152
        %v5196 = vadd.f32 %v4905, %v5155
        %v5197 = vadd.f32 %v4908, %v5158
        %v5198 = vadd.f32 %v4911, %v5161
        %v5199 = vadd.f32 %v4914, %v5164
        %v5200 = vadd.f32 %v4917, %v5167
        %v5201 = vld [vmem:[%s4193] sm:$0xff]
        %v5202 = vld [vmem:[%s4193 + $0x8] sm:$0xff]
        %v5203 = vld [vmem:[%s4193 + $0x18] sm:$0xff]
        %v5204 = vld [vmem:[%s4193 + $0x20] sm:$0xff]
        %v5205 = vld [vmem:[%s4193 + $0x30] sm:$0xff]
        %v5206 = vld [vmem:[%s4193 + $0x38] sm:$0xff]
        %v5207 = vld [vmem:[%s4193 + $0x48] sm:$0xff]
        %v5208 = vld [vmem:[%s4193 + $0x50] sm:$0xff]
        %v5209 = vld [vmem:[%s4193 + $0x60] sm:$0xff]
        %v5210 = vld [vmem:[%s4193 + $0x68] sm:$0xff]
        %v5211 = vld [vmem:[%s4193 + $0x78] sm:$0xff]
        %v5212 = vld [vmem:[%s4193 + $0x80] sm:$0xff]
        %v5213 = vld [vmem:[%s4193 + $0x90] sm:$0xff]
        %v5214 = vld [vmem:[%s4193 + $0x98] sm:$0xff]
        %v5215 = vld [vmem:[%s4193 + $0xa8] sm:$0xff]
        %v5216 = vld [vmem:[%s4193 + $0xb0] sm:$0xff]
        %v5217 = vld [vmem:[%s4193 + $0xc0] sm:$0xff]
        %v5218 = vld [vmem:[%s4193 + $0xc8] sm:$0xff]
        %v5219 = vld [vmem:[%s4193 + $0xd8] sm:$0xff]
        %v5220 = vld [vmem:[%s4193 + $0xe0] sm:$0xff]
        %v5221 = vld [vmem:[%s4193 + $0xf0] sm:$0xff]
        %v5222 = vld [vmem:[%s4193 + $0xf8] sm:$0xff]
        %v5223 = vld [vmem:[%s4193 + $0x108] sm:$0xff]
        %v5224 = vld [vmem:[%s4193 + $0x110] sm:$0xff]
        %v5225 = vld [vmem:[%s4193 + $0x120] sm:$0xff]
        %v5226 = vld [vmem:[%s4193 + $0x128] sm:$0xff]
        %v5227 = vld [vmem:[%s4193 + $0x138] sm:$0xff]
        %v5228 = vld [vmem:[%s4193 + $0x140] sm:$0xff]
        %v5229 = vld [vmem:[%s4193 + $0x150] sm:$0xff]
        %v5230 = vld [vmem:[%s4193 + $0x158] sm:$0xff]
        %v5231 = vld [vmem:[%s4193 + $0x168] sm:$0xff]
        %v5232 = vld [vmem:[%s4193 + $0x170] sm:$0xff]
        %s5233 = scalar_lea.vmem %s4, 192
        %v5234 = vld [vmem:[%s5233] sm:$0xff]
        %v5235 = vld [vmem:[%s5233 + $0x8] sm:$0xff]
        %v5236 = vld [vmem:[%s5233 + $0x10] sm:$0xff]
        %v5237 = vld [vmem:[%s5233 + $0x18] sm:$0xff]
        %v5238 = vld [vmem:[%s5233 + $0x20] sm:$0xff]
        %v5239 = vld [vmem:[%s5233 + $0x28] sm:$0xff]
        %v5240 = vld [vmem:[%s5233 + $0x30] sm:$0xff]
        %v5241 = vld [vmem:[%s5233 + $0x38] sm:$0xff]
        %v5243 = vsel %vm4184, %v5201, 0
        %v5246 = vsel %vm4184, %v5202, 0
        %v5249 = vsel %vm4184, %v5203, 0
        %v5252 = vsel %vm4184, %v5204, 0
        %v5255 = vsel %vm4184, %v5205, 0
        %v5258 = vsel %vm4184, %v5206, 0
        %v5261 = vsel %vm4184, %v5207, 0
        %v5264 = vsel %vm4184, %v5208, 0
        %v5267 = vsel %vm4184, %v5209, 0
        %v5270 = vsel %vm4184, %v5210, 0
        %v5273 = vsel %vm4184, %v5211, 0
        %v5276 = vsel %vm4184, %v5212, 0
        %v5279 = vsel %vm4184, %v5213, 0
        %v5282 = vsel %vm4184, %v5214, 0
        %v5285 = vsel %vm4184, %v5215, 0
        %v5288 = vsel %vm4184, %v5216, 0
        %v5291 = vsel %vm4184, %v5217, 0
        %v5294 = vsel %vm4184, %v5218, 0
        %v5297 = vsel %vm4184, %v5219, 0
        %v5300 = vsel %vm4184, %v5220, 0
        %v5303 = vsel %vm4184, %v5221, 0
        %v5306 = vsel %vm4184, %v5222, 0
        %v5309 = vsel %vm4184, %v5223, 0
        %v5312 = vsel %vm4184, %v5224, 0
        %v5315 = vsel %vm4184, %v5225, 0
        %v5318 = vsel %vm4184, %v5226, 0
        %v5321 = vsel %vm4184, %v5227, 0
        %v5324 = vsel %vm4184, %v5228, 0
        %v5327 = vsel %vm4184, %v5229, 0
        %v5330 = vsel %vm4184, %v5230, 0
        %v5333 = vsel %vm4184, %v5231, 0
        %v5336 = vsel %vm4184, %v5232, 0
        %5338 = vmatpush.msra.mxu0 0.0
        %5339 = vmatpush.msra.mxu0 0.0
        %5340 = vmatpush.msra.mxu0 0.0
        %5341 = vmatpush.msra.mxu0 0.0
        %5342 = vmatpush.msra.mxu0 0.0
        %5343 = vmatpush.msra.mxu0 0.0
        %5344 = vmatpush.msra.mxu0 0.0
        %5345 = vmatpush.msra.mxu0 0.0
        %5346 = vmatpush.msra.mxu0 %v5241
        %5347 = vmatpush.msra.mxu0 %v5240
        %5348 = vmatpush.msra.mxu0 %v5239
        %5349 = vmatpush.msra.mxu0 %v5238
        %5350 = vmatpush.msra.mxu0 %v5237
        %5351 = vmatpush.msra.mxu0 %v5236
        %5352 = vmatpush.msra.mxu0 %v5235
        %5353 = vmatpush.msra.mxu0 %v5234
        %5354 = vmatmul.f32.gmra.mxu0 %v5243
        %v5355 = vpop.f32.mrf.mxu0
        %v5356 = vadd.f32 0.0, %v5355
        %5357 = vmatmul.f32.gmra.mxu0 %v5246
        %v5358 = vpop.f32.mrf.mxu0
        %v5359 = vadd.f32 0.0, %v5358
        %5360 = vmatmul.f32.gmra.mxu0 %v5249
        %v5361 = vpop.f32.mrf.mxu0
        %v5362 = vadd.f32 0.0, %v5361
        %5363 = vmatmul.f32.gmra.mxu0 %v5252
        %v5364 = vpop.f32.mrf.mxu0
        %v5365 = vadd.f32 0.0, %v5364
        %5366 = vmatmul.f32.gmra.mxu0 %v5255
        %v5367 = vpop.f32.mrf.mxu0
        %v5368 = vadd.f32 0.0, %v5367
        %5369 = vmatmul.f32.gmra.mxu0 %v5258
        %v5370 = vpop.f32.mrf.mxu0
        %v5371 = vadd.f32 0.0, %v5370
        %5372 = vmatmul.f32.gmra.mxu0 %v5261
        %v5373 = vpop.f32.mrf.mxu0
        %v5374 = vadd.f32 0.0, %v5373
        %5375 = vmatmul.f32.gmra.mxu0 %v5264
        %v5376 = vpop.f32.mrf.mxu0
        %v5377 = vadd.f32 0.0, %v5376
        %5378 = vmatmul.f32.gmra.mxu0 %v5267
        %v5379 = vpop.f32.mrf.mxu0
        %v5380 = vadd.f32 0.0, %v5379
        %5381 = vmatmul.f32.gmra.mxu0 %v5270
        %v5382 = vpop.f32.mrf.mxu0
        %v5383 = vadd.f32 0.0, %v5382
        %5384 = vmatmul.f32.gmra.mxu0 %v5273
        %v5385 = vpop.f32.mrf.mxu0
        %v5386 = vadd.f32 0.0, %v5385
        %5387 = vmatmul.f32.gmra.mxu0 %v5276
        %v5388 = vpop.f32.mrf.mxu0
        %v5389 = vadd.f32 0.0, %v5388
        %5390 = vmatmul.f32.gmra.mxu0 %v5279
        %v5391 = vpop.f32.mrf.mxu0
        %v5392 = vadd.f32 0.0, %v5391
        %5393 = vmatmul.f32.gmra.mxu0 %v5282
        %v5394 = vpop.f32.mrf.mxu0
        %v5395 = vadd.f32 0.0, %v5394
        %5396 = vmatmul.f32.gmra.mxu0 %v5285
        %v5397 = vpop.f32.mrf.mxu0
        %v5398 = vadd.f32 0.0, %v5397
        %5399 = vmatmul.f32.gmra.mxu0 %v5288
        %v5400 = vpop.f32.mrf.mxu0
        %v5401 = vadd.f32 0.0, %v5400
        %5402 = vmatmul.f32.gmra.mxu0 %v5291
        %v5403 = vpop.f32.mrf.mxu0
        %v5404 = vadd.f32 0.0, %v5403
        %5405 = vmatmul.f32.gmra.mxu0 %v5294
        %v5406 = vpop.f32.mrf.mxu0
        %v5407 = vadd.f32 0.0, %v5406
        %5408 = vmatmul.f32.gmra.mxu0 %v5297
        %v5409 = vpop.f32.mrf.mxu0
        %v5410 = vadd.f32 0.0, %v5409
        %5411 = vmatmul.f32.gmra.mxu0 %v5300
        %v5412 = vpop.f32.mrf.mxu0
        %v5413 = vadd.f32 0.0, %v5412
        %5414 = vmatmul.f32.gmra.mxu0 %v5303
        %v5415 = vpop.f32.mrf.mxu0
        %v5416 = vadd.f32 0.0, %v5415
        %5417 = vmatmul.f32.gmra.mxu0 %v5306
        %v5418 = vpop.f32.mrf.mxu0
        %v5419 = vadd.f32 0.0, %v5418
        %5420 = vmatmul.f32.gmra.mxu0 %v5309
        %v5421 = vpop.f32.mrf.mxu0
        %v5422 = vadd.f32 0.0, %v5421
        %5423 = vmatmul.f32.gmra.mxu0 %v5312
        %v5424 = vpop.f32.mrf.mxu0
        %v5425 = vadd.f32 0.0, %v5424
        %5426 = vmatmul.f32.gmra.mxu0 %v5315
        %v5427 = vpop.f32.mrf.mxu0
        %v5428 = vadd.f32 0.0, %v5427
        %5429 = vmatmul.f32.gmra.mxu0 %v5318
        %v5430 = vpop.f32.mrf.mxu0
        %v5431 = vadd.f32 0.0, %v5430
        %5432 = vmatmul.f32.gmra.mxu0 %v5321
        %v5433 = vpop.f32.mrf.mxu0
        %v5434 = vadd.f32 0.0, %v5433
        %5435 = vmatmul.f32.gmra.mxu0 %v5324
        %v5436 = vpop.f32.mrf.mxu0
        %v5437 = vadd.f32 0.0, %v5436
        %5438 = vmatmul.f32.gmra.mxu0 %v5327
        %v5439 = vpop.f32.mrf.mxu0
        %v5440 = vadd.f32 0.0, %v5439
        %5441 = vmatmul.f32.gmra.mxu0 %v5330
        %v5442 = vpop.f32.mrf.mxu0
        %v5443 = vadd.f32 0.0, %v5442
        %5444 = vmatmul.f32.gmra.mxu0 %v5333
        %v5445 = vpop.f32.mrf.mxu0
        %v5446 = vadd.f32 0.0, %v5445
        %5447 = vmatmul.f32.gmra.mxu0 %v5336
        %v5448 = vpop.f32.mrf.mxu0
        %v5449 = vadd.f32 0.0, %v5448
        %5450 = vdwg.mxu0
        %v5451 = vadd.f32 %v5169, %v5356
        %v5452 = vadd.f32 %v5170, %v5359
        %v5453 = vadd.f32 %v5171, %v5362
        %v5454 = vadd.f32 %v5172, %v5365
        %v5455 = vadd.f32 %v5173, %v5368
        %v5456 = vadd.f32 %v5174, %v5371
        %v5457 = vadd.f32 %v5175, %v5374
        %v5458 = vadd.f32 %v5176, %v5377
        %v5459 = vadd.f32 %v5177, %v5380
        %v5460 = vadd.f32 %v5178, %v5383
        %v5461 = vadd.f32 %v5179, %v5386
        %v5462 = vadd.f32 %v5180, %v5389
        %v5463 = vadd.f32 %v5181, %v5392
        %v5464 = vadd.f32 %v5182, %v5395
        %v5465 = vadd.f32 %v5183, %v5398
        %v5466 = vadd.f32 %v5184, %v5401
        %v5467 = vadd.f32 %v5185, %v5404
        %v5468 = vadd.f32 %v5186, %v5407
        %v5469 = vadd.f32 %v5187, %v5410
        %v5470 = vadd.f32 %v5188, %v5413
        %v5471 = vadd.f32 %v5189, %v5416
        %v5472 = vadd.f32 %v5190, %v5419
        %v5473 = vadd.f32 %v5191, %v5422
        %v5474 = vadd.f32 %v5192, %v5425
        %v5475 = vadd.f32 %v5193, %v5428
        %v5476 = vadd.f32 %v5194, %v5431
        %v5477 = vadd.f32 %v5195, %v5434
        %v5478 = vadd.f32 %v5196, %v5437
        %v5479 = vadd.f32 %v5197, %v5440
        %v5480 = vadd.f32 %v5198, %v5443
        %v5481 = vadd.f32 %v5199, %v5446
        %v5482 = vadd.f32 %v5200, %v5449
        %v5483 = vld [vmem:[%s4193 + $0x1] sm:$0xff]
        %v5484 = vld [vmem:[%s4193 + $0x9] sm:$0xff]
        %v5485 = vld [vmem:[%s4193 + $0x19] sm:$0xff]
        %v5486 = vld [vmem:[%s4193 + $0x21] sm:$0xff]
        %v5487 = vld [vmem:[%s4193 + $0x31] sm:$0xff]
        %v5488 = vld [vmem:[%s4193 + $0x39] sm:$0xff]
        %v5489 = vld [vmem:[%s4193 + $0x49] sm:$0xff]
        %v5490 = vld [vmem:[%s4193 + $0x51] sm:$0xff]
        %v5491 = vld [vmem:[%s4193 + $0x61] sm:$0xff]
        %v5492 = vld [vmem:[%s4193 + $0x69] sm:$0xff]
        %v5493 = vld [vmem:[%s4193 + $0x79] sm:$0xff]
        %v5494 = vld [vmem:[%s4193 + $0x81] sm:$0xff]
        %v5495 = vld [vmem:[%s4193 + $0x91] sm:$0xff]
        %v5496 = vld [vmem:[%s4193 + $0x99] sm:$0xff]
        %v5497 = vld [vmem:[%s4193 + $0xa9] sm:$0xff]
        %v5498 = vld [vmem:[%s4193 + $0xb1] sm:$0xff]
        %v5499 = vld [vmem:[%s4193 + $0xc1] sm:$0xff]
        %v5500 = vld [vmem:[%s4193 + $0xc9] sm:$0xff]
        %v5501 = vld [vmem:[%s4193 + $0xd9] sm:$0xff]
        %v5502 = vld [vmem:[%s4193 + $0xe1] sm:$0xff]
        %v5503 = vld [vmem:[%s4193 + $0xf1] sm:$0xff]
        %v5504 = vld [vmem:[%s4193 + $0xf9] sm:$0xff]
        %v5505 = vld [vmem:[%s4193 + $0x109] sm:$0xff]
        %v5506 = vld [vmem:[%s4193 + $0x111] sm:$0xff]
        %v5507 = vld [vmem:[%s4193 + $0x121] sm:$0xff]
        %v5508 = vld [vmem:[%s4193 + $0x129] sm:$0xff]
        %v5509 = vld [vmem:[%s4193 + $0x139] sm:$0xff]
        %v5510 = vld [vmem:[%s4193 + $0x141] sm:$0xff]
        %v5511 = vld [vmem:[%s4193 + $0x151] sm:$0xff]
        %v5512 = vld [vmem:[%s4193 + $0x159] sm:$0xff]
        %v5513 = vld [vmem:[%s4193 + $0x169] sm:$0xff]
        %v5514 = vld [vmem:[%s4193 + $0x171] sm:$0xff]
        %s5515 = scalar_lea.vmem %s4, 256
        %v5516 = vld [vmem:[%s5515] sm:$0xff]
        %v5517 = vld [vmem:[%s5515 + $0x8] sm:$0xff]
        %v5518 = vld [vmem:[%s5515 + $0x10] sm:$0xff]
        %v5519 = vld [vmem:[%s5515 + $0x18] sm:$0xff]
        %v5520 = vld [vmem:[%s5515 + $0x20] sm:$0xff]
        %v5521 = vld [vmem:[%s5515 + $0x28] sm:$0xff]
        %v5522 = vld [vmem:[%s5515 + $0x30] sm:$0xff]
        %v5523 = vld [vmem:[%s5515 + $0x38] sm:$0xff]
        %v5525 = vsel %vm4184, %v5483, 0
        %v5528 = vsel %vm4184, %v5484, 0
        %v5531 = vsel %vm4184, %v5485, 0
        %v5534 = vsel %vm4184, %v5486, 0
        %v5537 = vsel %vm4184, %v5487, 0
        %v5540 = vsel %vm4184, %v5488, 0
        %v5543 = vsel %vm4184, %v5489, 0
        %v5546 = vsel %vm4184, %v5490, 0
        %v5549 = vsel %vm4184, %v5491, 0
        %v5552 = vsel %vm4184, %v5492, 0
        %v5555 = vsel %vm4184, %v5493, 0
        %v5558 = vsel %vm4184, %v5494, 0
        %v5561 = vsel %vm4184, %v5495, 0
        %v5564 = vsel %vm4184, %v5496, 0
        %v5567 = vsel %vm4184, %v5497, 0
        %v5570 = vsel %vm4184, %v5498, 0
        %v5573 = vsel %vm4184, %v5499, 0
        %v5576 = vsel %vm4184, %v5500, 0
        %v5579 = vsel %vm4184, %v5501, 0
        %v5582 = vsel %vm4184, %v5502, 0
        %v5585 = vsel %vm4184, %v5503, 0
        %v5588 = vsel %vm4184, %v5504, 0
        %v5591 = vsel %vm4184, %v5505, 0
        %v5594 = vsel %vm4184, %v5506, 0
        %v5597 = vsel %vm4184, %v5507, 0
        %v5600 = vsel %vm4184, %v5508, 0
        %v5603 = vsel %vm4184, %v5509, 0
        %v5606 = vsel %vm4184, %v5510, 0
        %v5609 = vsel %vm4184, %v5511, 0
        %v5612 = vsel %vm4184, %v5512, 0
        %v5615 = vsel %vm4184, %v5513, 0
        %v5618 = vsel %vm4184, %v5514, 0
        %5620 = vmatpush.msra.mxu0 0.0
        %5621 = vmatpush.msra.mxu0 0.0
        %5622 = vmatpush.msra.mxu0 0.0
        %5623 = vmatpush.msra.mxu0 0.0
        %5624 = vmatpush.msra.mxu0 0.0
        %5625 = vmatpush.msra.mxu0 0.0
        %5626 = vmatpush.msra.mxu0 0.0
        %5627 = vmatpush.msra.mxu0 0.0
        %5628 = vmatpush.msra.mxu0 %v5523
        %5629 = vmatpush.msra.mxu0 %v5522
        %5630 = vmatpush.msra.mxu0 %v5521
        %5631 = vmatpush.msra.mxu0 %v5520
        %5632 = vmatpush.msra.mxu0 %v5519
        %5633 = vmatpush.msra.mxu0 %v5518
        %5634 = vmatpush.msra.mxu0 %v5517
        %5635 = vmatpush.msra.mxu0 %v5516
        %5636 = vmatmul.f32.gmra.mxu0 %v5525
        %v5637 = vpop.f32.mrf.mxu0
        %v5638 = vadd.f32 0.0, %v5637
        %5639 = vmatmul.f32.gmra.mxu0 %v5528
        %v5640 = vpop.f32.mrf.mxu0
        %v5641 = vadd.f32 0.0, %v5640
        %5642 = vmatmul.f32.gmra.mxu0 %v5531
        %v5643 = vpop.f32.mrf.mxu0
        %v5644 = vadd.f32 0.0, %v5643
        %5645 = vmatmul.f32.gmra.mxu0 %v5534
        %v5646 = vpop.f32.mrf.mxu0
        %v5647 = vadd.f32 0.0, %v5646
        %5648 = vmatmul.f32.gmra.mxu0 %v5537
        %v5649 = vpop.f32.mrf.mxu0
        %v5650 = vadd.f32 0.0, %v5649
        %5651 = vmatmul.f32.gmra.mxu0 %v5540
        %v5652 = vpop.f32.mrf.mxu0
        %v5653 = vadd.f32 0.0, %v5652
        %5654 = vmatmul.f32.gmra.mxu0 %v5543
        %v5655 = vpop.f32.mrf.mxu0
        %v5656 = vadd.f32 0.0, %v5655
        %5657 = vmatmul.f32.gmra.mxu0 %v5546
        %v5658 = vpop.f32.mrf.mxu0
        %v5659 = vadd.f32 0.0, %v5658
        %5660 = vmatmul.f32.gmra.mxu0 %v5549
        %v5661 = vpop.f32.mrf.mxu0
        %v5662 = vadd.f32 0.0, %v5661
        %5663 = vmatmul.f32.gmra.mxu0 %v5552
        %v5664 = vpop.f32.mrf.mxu0
        %v5665 = vadd.f32 0.0, %v5664
        %5666 = vmatmul.f32.gmra.mxu0 %v5555
        %v5667 = vpop.f32.mrf.mxu0
        %v5668 = vadd.f32 0.0, %v5667
        %5669 = vmatmul.f32.gmra.mxu0 %v5558
        %v5670 = vpop.f32.mrf.mxu0
        %v5671 = vadd.f32 0.0, %v5670
        %5672 = vmatmul.f32.gmra.mxu0 %v5561
        %v5673 = vpop.f32.mrf.mxu0
        %v5674 = vadd.f32 0.0, %v5673
        %5675 = vmatmul.f32.gmra.mxu0 %v5564
        %v5676 = vpop.f32.mrf.mxu0
        %v5677 = vadd.f32 0.0, %v5676
        %5678 = vmatmul.f32.gmra.mxu0 %v5567
        %v5679 = vpop.f32.mrf.mxu0
        %v5680 = vadd.f32 0.0, %v5679
        %5681 = vmatmul.f32.gmra.mxu0 %v5570
        %v5682 = vpop.f32.mrf.mxu0
        %v5683 = vadd.f32 0.0, %v5682
        %5684 = vmatmul.f32.gmra.mxu0 %v5573
        %v5685 = vpop.f32.mrf.mxu0
        %v5686 = vadd.f32 0.0, %v5685
        %5687 = vmatmul.f32.gmra.mxu0 %v5576
        %v5688 = vpop.f32.mrf.mxu0
        %v5689 = vadd.f32 0.0, %v5688
        %5690 = vmatmul.f32.gmra.mxu0 %v5579
        %v5691 = vpop.f32.mrf.mxu0
        %v5692 = vadd.f32 0.0, %v5691
        %5693 = vmatmul.f32.gmra.mxu0 %v5582
        %v5694 = vpop.f32.mrf.mxu0
        %v5695 = vadd.f32 0.0, %v5694
        %5696 = vmatmul.f32.gmra.mxu0 %v5585
        %v5697 = vpop.f32.mrf.mxu0
        %v5698 = vadd.f32 0.0, %v5697
        %5699 = vmatmul.f32.gmra.mxu0 %v5588
        %v5700 = vpop.f32.mrf.mxu0
        %v5701 = vadd.f32 0.0, %v5700
        %5702 = vmatmul.f32.gmra.mxu0 %v5591
        %v5703 = vpop.f32.mrf.mxu0
        %v5704 = vadd.f32 0.0, %v5703
        %5705 = vmatmul.f32.gmra.mxu0 %v5594
        %v5706 = vpop.f32.mrf.mxu0
        %v5707 = vadd.f32 0.0, %v5706
        %5708 = vmatmul.f32.gmra.mxu0 %v5597
        %v5709 = vpop.f32.mrf.mxu0
        %v5710 = vadd.f32 0.0, %v5709
        %5711 = vmatmul.f32.gmra.mxu0 %v5600
        %v5712 = vpop.f32.mrf.mxu0
        %v5713 = vadd.f32 0.0, %v5712
        %5714 = vmatmul.f32.gmra.mxu0 %v5603
        %v5715 = vpop.f32.mrf.mxu0
        %v5716 = vadd.f32 0.0, %v5715
        %5717 = vmatmul.f32.gmra.mxu0 %v5606
        %v5718 = vpop.f32.mrf.mxu0
        %v5719 = vadd.f32 0.0, %v5718
        %5720 = vmatmul.f32.gmra.mxu0 %v5609
        %v5721 = vpop.f32.mrf.mxu0
        %v5722 = vadd.f32 0.0, %v5721
        %5723 = vmatmul.f32.gmra.mxu0 %v5612
        %v5724 = vpop.f32.mrf.mxu0
        %v5725 = vadd.f32 0.0, %v5724
        %5726 = vmatmul.f32.gmra.mxu0 %v5615
        %v5727 = vpop.f32.mrf.mxu0
        %v5728 = vadd.f32 0.0, %v5727
        %5729 = vmatmul.f32.gmra.mxu0 %v5618
        %v5730 = vpop.f32.mrf.mxu0
        %v5731 = vadd.f32 0.0, %v5730
        %5732 = vdwg.mxu0
        %v5733 = vadd.f32 %v5451, %v5638
        %v5734 = vadd.f32 %v5452, %v5641
        %v5735 = vadd.f32 %v5453, %v5644
        %v5736 = vadd.f32 %v5454, %v5647
        %v5737 = vadd.f32 %v5455, %v5650
        %v5738 = vadd.f32 %v5456, %v5653
        %v5739 = vadd.f32 %v5457, %v5656
        %v5740 = vadd.f32 %v5458, %v5659
        %v5741 = vadd.f32 %v5459, %v5662
        %v5742 = vadd.f32 %v5460, %v5665
        %v5743 = vadd.f32 %v5461, %v5668
        %v5744 = vadd.f32 %v5462, %v5671
        %v5745 = vadd.f32 %v5463, %v5674
        %v5746 = vadd.f32 %v5464, %v5677
        %v5747 = vadd.f32 %v5465, %v5680
        %v5748 = vadd.f32 %v5466, %v5683
        %v5749 = vadd.f32 %v5467, %v5686
        %v5750 = vadd.f32 %v5468, %v5689
        %v5751 = vadd.f32 %v5469, %v5692
        %v5752 = vadd.f32 %v5470, %v5695
        %v5753 = vadd.f32 %v5471, %v5698
        %v5754 = vadd.f32 %v5472, %v5701
        %v5755 = vadd.f32 %v5473, %v5704
        %v5756 = vadd.f32 %v5474, %v5707
        %v5757 = vadd.f32 %v5475, %v5710
        %v5758 = vadd.f32 %v5476, %v5713
        %v5759 = vadd.f32 %v5477, %v5716
        %v5760 = vadd.f32 %v5478, %v5719
        %v5761 = vadd.f32 %v5479, %v5722
        %v5762 = vadd.f32 %v5480, %v5725
        %v5763 = vadd.f32 %v5481, %v5728
        %v5764 = vadd.f32 %v5482, %v5731
        %v5765 = vld [vmem:[%s4193 + $0x2] sm:$0xff]
        %v5766 = vld [vmem:[%s4193 + $0xa] sm:$0xff]
        %v5767 = vld [vmem:[%s4193 + $0x1a] sm:$0xff]
        %v5768 = vld [vmem:[%s4193 + $0x22] sm:$0xff]
        %v5769 = vld [vmem:[%s4193 + $0x32] sm:$0xff]
        %v5770 = vld [vmem:[%s4193 + $0x3a] sm:$0xff]
        %v5771 = vld [vmem:[%s4193 + $0x4a] sm:$0xff]
        %v5772 = vld [vmem:[%s4193 + $0x52] sm:$0xff]
        %v5773 = vld [vmem:[%s4193 + $0x62] sm:$0xff]
        %v5774 = vld [vmem:[%s4193 + $0x6a] sm:$0xff]
        %v5775 = vld [vmem:[%s4193 + $0x7a] sm:$0xff]
        %v5776 = vld [vmem:[%s4193 + $0x82] sm:$0xff]
        %v5777 = vld [vmem:[%s4193 + $0x92] sm:$0xff]
        %v5778 = vld [vmem:[%s4193 + $0x9a] sm:$0xff]
        %v5779 = vld [vmem:[%s4193 + $0xaa] sm:$0xff]
        %v5780 = vld [vmem:[%s4193 + $0xb2] sm:$0xff]
        %v5781 = vld [vmem:[%s4193 + $0xc2] sm:$0xff]
        %v5782 = vld [vmem:[%s4193 + $0xca] sm:$0xff]
        %v5783 = vld [vmem:[%s4193 + $0xda] sm:$0xff]
        %v5784 = vld [vmem:[%s4193 + $0xe2] sm:$0xff]
        %v5785 = vld [vmem:[%s4193 + $0xf2] sm:$0xff]
        %v5786 = vld [vmem:[%s4193 + $0xfa] sm:$0xff]
        %v5787 = vld [vmem:[%s4193 + $0x10a] sm:$0xff]
        %v5788 = vld [vmem:[%s4193 + $0x112] sm:$0xff]
        %v5789 = vld [vmem:[%s4193 + $0x122] sm:$0xff]
        %v5790 = vld [vmem:[%s4193 + $0x12a] sm:$0xff]
        %v5791 = vld [vmem:[%s4193 + $0x13a] sm:$0xff]
        %v5792 = vld [vmem:[%s4193 + $0x142] sm:$0xff]
        %v5793 = vld [vmem:[%s4193 + $0x152] sm:$0xff]
        %v5794 = vld [vmem:[%s4193 + $0x15a] sm:$0xff]
        %v5795 = vld [vmem:[%s4193 + $0x16a] sm:$0xff]
        %v5796 = vld [vmem:[%s4193 + $0x172] sm:$0xff]
        %s5797 = scalar_lea.vmem %s4, 320
        %v5798 = vld [vmem:[%s5797] sm:$0xff]
        %v5799 = vld [vmem:[%s5797 + $0x8] sm:$0xff]
        %v5800 = vld [vmem:[%s5797 + $0x10] sm:$0xff]
        %v5801 = vld [vmem:[%s5797 + $0x18] sm:$0xff]
        %v5802 = vld [vmem:[%s5797 + $0x20] sm:$0xff]
        %v5803 = vld [vmem:[%s5797 + $0x28] sm:$0xff]
        %v5804 = vld [vmem:[%s5797 + $0x30] sm:$0xff]
        %v5805 = vld [vmem:[%s5797 + $0x38] sm:$0xff]
        %v5807 = vsel %vm4184, %v5765, 0
        %v5810 = vsel %vm4184, %v5766, 0
        %v5813 = vsel %vm4184, %v5767, 0
        %v5816 = vsel %vm4184, %v5768, 0
        %v5819 = vsel %vm4184, %v5769, 0
        %v5822 = vsel %vm4184, %v5770, 0
        %v5825 = vsel %vm4184, %v5771, 0
        %v5828 = vsel %vm4184, %v5772, 0
        %v5831 = vsel %vm4184, %v5773, 0
        %v5834 = vsel %vm4184, %v5774, 0
        %v5837 = vsel %vm4184, %v5775, 0
        %v5840 = vsel %vm4184, %v5776, 0
        %v5843 = vsel %vm4184, %v5777, 0
        %v5846 = vsel %vm4184, %v5778, 0
        %v5849 = vsel %vm4184, %v5779, 0
        %v5852 = vsel %vm4184, %v5780, 0
        %v5855 = vsel %vm4184, %v5781, 0
        %v5858 = vsel %vm4184, %v5782, 0
        %v5861 = vsel %vm4184, %v5783, 0
        %v5864 = vsel %vm4184, %v5784, 0
        %v5867 = vsel %vm4184, %v5785, 0
        %v5870 = vsel %vm4184, %v5786, 0
        %v5873 = vsel %vm4184, %v5787, 0
        %v5876 = vsel %vm4184, %v5788, 0
        %v5879 = vsel %vm4184, %v5789, 0
        %v5882 = vsel %vm4184, %v5790, 0
        %v5885 = vsel %vm4184, %v5791, 0
        %v5888 = vsel %vm4184, %v5792, 0
        %v5891 = vsel %vm4184, %v5793, 0
        %v5894 = vsel %vm4184, %v5794, 0
        %v5897 = vsel %vm4184, %v5795, 0
        %v5900 = vsel %vm4184, %v5796, 0
        %5902 = vmatpush.msra.mxu0 0.0
        %5903 = vmatpush.msra.mxu0 0.0
        %5904 = vmatpush.msra.mxu0 0.0
        %5905 = vmatpush.msra.mxu0 0.0
        %5906 = vmatpush.msra.mxu0 0.0
        %5907 = vmatpush.msra.mxu0 0.0
        %5908 = vmatpush.msra.mxu0 0.0
        %5909 = vmatpush.msra.mxu0 0.0
        %5910 = vmatpush.msra.mxu0 %v5805
        %5911 = vmatpush.msra.mxu0 %v5804
        %5912 = vmatpush.msra.mxu0 %v5803
        %5913 = vmatpush.msra.mxu0 %v5802
        %5914 = vmatpush.msra.mxu0 %v5801
        %5915 = vmatpush.msra.mxu0 %v5800
        %5916 = vmatpush.msra.mxu0 %v5799
        %5917 = vmatpush.msra.mxu0 %v5798
        %5918 = vmatmul.f32.gmra.mxu0 %v5807
        %v5919 = vpop.f32.mrf.mxu0
        %v5920 = vadd.f32 0.0, %v5919
        %5921 = vmatmul.f32.gmra.mxu0 %v5810
        %v5922 = vpop.f32.mrf.mxu0
        %v5923 = vadd.f32 0.0, %v5922
        %5924 = vmatmul.f32.gmra.mxu0 %v5813
        %v5925 = vpop.f32.mrf.mxu0
        %v5926 = vadd.f32 0.0, %v5925
        %5927 = vmatmul.f32.gmra.mxu0 %v5816
        %v5928 = vpop.f32.mrf.mxu0
        %v5929 = vadd.f32 0.0, %v5928
        %5930 = vmatmul.f32.gmra.mxu0 %v5819
        %v5931 = vpop.f32.mrf.mxu0
        %v5932 = vadd.f32 0.0, %v5931
        %5933 = vmatmul.f32.gmra.mxu0 %v5822
        %v5934 = vpop.f32.mrf.mxu0
        %v5935 = vadd.f32 0.0, %v5934
        %5936 = vmatmul.f32.gmra.mxu0 %v5825
        %v5937 = vpop.f32.mrf.mxu0
        %v5938 = vadd.f32 0.0, %v5937
        %5939 = vmatmul.f32.gmra.mxu0 %v5828
        %v5940 = vpop.f32.mrf.mxu0
        %v5941 = vadd.f32 0.0, %v5940
        %5942 = vmatmul.f32.gmra.mxu0 %v5831
        %v5943 = vpop.f32.mrf.mxu0
        %v5944 = vadd.f32 0.0, %v5943
        %5945 = vmatmul.f32.gmra.mxu0 %v5834
        %v5946 = vpop.f32.mrf.mxu0
        %v5947 = vadd.f32 0.0, %v5946
        %5948 = vmatmul.f32.gmra.mxu0 %v5837
        %v5949 = vpop.f32.mrf.mxu0
        %v5950 = vadd.f32 0.0, %v5949
        %5951 = vmatmul.f32.gmra.mxu0 %v5840
        %v5952 = vpop.f32.mrf.mxu0
        %v5953 = vadd.f32 0.0, %v5952
        %5954 = vmatmul.f32.gmra.mxu0 %v5843
        %v5955 = vpop.f32.mrf.mxu0
        %v5956 = vadd.f32 0.0, %v5955
        %5957 = vmatmul.f32.gmra.mxu0 %v5846
        %v5958 = vpop.f32.mrf.mxu0
        %v5959 = vadd.f32 0.0, %v5958
        %5960 = vmatmul.f32.gmra.mxu0 %v5849
        %v5961 = vpop.f32.mrf.mxu0
        %v5962 = vadd.f32 0.0, %v5961
        %5963 = vmatmul.f32.gmra.mxu0 %v5852
        %v5964 = vpop.f32.mrf.mxu0
        %v5965 = vadd.f32 0.0, %v5964
        %5966 = vmatmul.f32.gmra.mxu0 %v5855
        %v5967 = vpop.f32.mrf.mxu0
        %v5968 = vadd.f32 0.0, %v5967
        %5969 = vmatmul.f32.gmra.mxu0 %v5858
        %v5970 = vpop.f32.mrf.mxu0
        %v5971 = vadd.f32 0.0, %v5970
        %5972 = vmatmul.f32.gmra.mxu0 %v5861
        %v5973 = vpop.f32.mrf.mxu0
        %v5974 = vadd.f32 0.0, %v5973
        %5975 = vmatmul.f32.gmra.mxu0 %v5864
        %v5976 = vpop.f32.mrf.mxu0
        %v5977 = vadd.f32 0.0, %v5976
        %5978 = vmatmul.f32.gmra.mxu0 %v5867
        %v5979 = vpop.f32.mrf.mxu0
        %v5980 = vadd.f32 0.0, %v5979
        %5981 = vmatmul.f32.gmra.mxu0 %v5870
        %v5982 = vpop.f32.mrf.mxu0
        %v5983 = vadd.f32 0.0, %v5982
        %5984 = vmatmul.f32.gmra.mxu0 %v5873
        %v5985 = vpop.f32.mrf.mxu0
        %v5986 = vadd.f32 0.0, %v5985
        %5987 = vmatmul.f32.gmra.mxu0 %v5876
        %v5988 = vpop.f32.mrf.mxu0
        %v5989 = vadd.f32 0.0, %v5988
        %5990 = vmatmul.f32.gmra.mxu0 %v5879
        %v5991 = vpop.f32.mrf.mxu0
        %v5992 = vadd.f32 0.0, %v5991
        %5993 = vmatmul.f32.gmra.mxu0 %v5882
        %v5994 = vpop.f32.mrf.mxu0
        %v5995 = vadd.f32 0.0, %v5994
        %5996 = vmatmul.f32.gmra.mxu0 %v5885
        %v5997 = vpop.f32.mrf.mxu0
        %v5998 = vadd.f32 0.0, %v5997
        %5999 = vmatmul.f32.gmra.mxu0 %v5888
        %v6000 = vpop.f32.mrf.mxu0
        %v6001 = vadd.f32 0.0, %v6000
        %6002 = vmatmul.f32.gmra.mxu0 %v5891
        %v6003 = vpop.f32.mrf.mxu0
        %v6004 = vadd.f32 0.0, %v6003
        %6005 = vmatmul.f32.gmra.mxu0 %v5894
        %v6006 = vpop.f32.mrf.mxu0
        %v6007 = vadd.f32 0.0, %v6006
        %6008 = vmatmul.f32.gmra.mxu0 %v5897
        %v6009 = vpop.f32.mrf.mxu0
        %v6010 = vadd.f32 0.0, %v6009
        %6011 = vmatmul.f32.gmra.mxu0 %v5900
        %v6012 = vpop.f32.mrf.mxu0
        %v6013 = vadd.f32 0.0, %v6012
        %6014 = vdwg.mxu0
        %v6015 = vadd.f32 %v5733, %v5920
        %v6016 = vadd.f32 %v5734, %v5923
        %v6017 = vadd.f32 %v5735, %v5926
        %v6018 = vadd.f32 %v5736, %v5929
        %v6019 = vadd.f32 %v5737, %v5932
        %v6020 = vadd.f32 %v5738, %v5935
        %v6021 = vadd.f32 %v5739, %v5938
        %v6022 = vadd.f32 %v5740, %v5941
        %v6023 = vadd.f32 %v5741, %v5944
        %v6024 = vadd.f32 %v5742, %v5947
        %v6025 = vadd.f32 %v5743, %v5950
        %v6026 = vadd.f32 %v5744, %v5953
        %v6027 = vadd.f32 %v5745, %v5956
        %v6028 = vadd.f32 %v5746, %v5959
        %v6029 = vadd.f32 %v5747, %v5962
        %v6030 = vadd.f32 %v5748, %v5965
        %v6031 = vadd.f32 %v5749, %v5968
        %v6032 = vadd.f32 %v5750, %v5971
        %v6033 = vadd.f32 %v5751, %v5974
        %v6034 = vadd.f32 %v5752, %v5977
        %v6035 = vadd.f32 %v5753, %v5980
        %v6036 = vadd.f32 %v5754, %v5983
        %v6037 = vadd.f32 %v5755, %v5986
        %v6038 = vadd.f32 %v5756, %v5989
        %v6039 = vadd.f32 %v5757, %v5992
        %v6040 = vadd.f32 %v5758, %v5995
        %v6041 = vadd.f32 %v5759, %v5998
        %v6042 = vadd.f32 %v5760, %v6001
        %v6043 = vadd.f32 %v5761, %v6004
        %v6044 = vadd.f32 %v5762, %v6007
        %v6045 = vadd.f32 %v5763, %v6010
        %v6046 = vadd.f32 %v5764, %v6013
        %s6047 = scalar_lea.vmem [#allocation2], 48
        %v6048 = vld [vmem:[%s6047] sm:$0xff]
        %v6049 = vld [vmem:[%s6047 + $0x8] sm:$0xff]
        %v6050 = vld [vmem:[%s6047 + $0x18] sm:$0xff]
        %v6051 = vld [vmem:[%s6047 + $0x20] sm:$0xff]
        %v6052 = vld [vmem:[%s6047 + $0x30] sm:$0xff]
        %v6053 = vld [vmem:[%s6047 + $0x38] sm:$0xff]
        %v6054 = vld [vmem:[%s6047 + $0x48] sm:$0xff]
        %v6055 = vld [vmem:[%s6047 + $0x50] sm:$0xff]
        %v6056 = vld [vmem:[%s6047 + $0x60] sm:$0xff]
        %v6057 = vld [vmem:[%s6047 + $0x68] sm:$0xff]
        %v6058 = vld [vmem:[%s6047 + $0x78] sm:$0xff]
        %v6059 = vld [vmem:[%s6047 + $0x80] sm:$0xff]
        %v6060 = vld [vmem:[%s6047 + $0x90] sm:$0xff]
        %v6061 = vld [vmem:[%s6047 + $0x98] sm:$0xff]
        %v6062 = vld [vmem:[%s6047 + $0xa8] sm:$0xff]
        %v6063 = vld [vmem:[%s6047 + $0xb0] sm:$0xff]
        %v6064 = vld [vmem:[%s6047 + $0xc0] sm:$0xff]
        %v6065 = vld [vmem:[%s6047 + $0xc8] sm:$0xff]
        %v6066 = vld [vmem:[%s6047 + $0xd8] sm:$0xff]
        %v6067 = vld [vmem:[%s6047 + $0xe0] sm:$0xff]
        %v6068 = vld [vmem:[%s6047 + $0xf0] sm:$0xff]
        %v6069 = vld [vmem:[%s6047 + $0xf8] sm:$0xff]
        %v6070 = vld [vmem:[%s6047 + $0x108] sm:$0xff]
        %v6071 = vld [vmem:[%s6047 + $0x110] sm:$0xff]
        %v6072 = vld [vmem:[%s6047 + $0x120] sm:$0xff]
        %v6073 = vld [vmem:[%s6047 + $0x128] sm:$0xff]
        %v6074 = vld [vmem:[%s6047 + $0x138] sm:$0xff]
        %v6075 = vld [vmem:[%s6047 + $0x140] sm:$0xff]
        %v6076 = vld [vmem:[%s6047 + $0x150] sm:$0xff]
        %v6077 = vld [vmem:[%s6047 + $0x158] sm:$0xff]
        %v6078 = vld [vmem:[%s6047 + $0x168] sm:$0xff]
        %v6079 = vld [vmem:[%s6047 + $0x170] sm:$0xff]
        %s6080 = scalar_lea.vmem %s4, 384
        %v6081 = vld [vmem:[%s6080] sm:$0xff]
        %v6082 = vld [vmem:[%s6080 + $0x8] sm:$0xff]
        %v6083 = vld [vmem:[%s6080 + $0x10] sm:$0xff]
        %v6084 = vld [vmem:[%s6080 + $0x18] sm:$0xff]
        %v6085 = vld [vmem:[%s6080 + $0x20] sm:$0xff]
        %v6086 = vld [vmem:[%s6080 + $0x28] sm:$0xff]
        %v6087 = vld [vmem:[%s6080 + $0x30] sm:$0xff]
        %v6088 = vld [vmem:[%s6080 + $0x38] sm:$0xff]
        %v6090 = vsel %vm4184, %v6048, 0
        %v6093 = vsel %vm4184, %v6049, 0
        %v6096 = vsel %vm4184, %v6050, 0
        %v6099 = vsel %vm4184, %v6051, 0
        %v6102 = vsel %vm4184, %v6052, 0
        %v6105 = vsel %vm4184, %v6053, 0
        %v6108 = vsel %vm4184, %v6054, 0
        %v6111 = vsel %vm4184, %v6055, 0
        %v6114 = vsel %vm4184, %v6056, 0
        %v6117 = vsel %vm4184, %v6057, 0
        %v6120 = vsel %vm4184, %v6058, 0
        %v6123 = vsel %vm4184, %v6059, 0
        %v6126 = vsel %vm4184, %v6060, 0
        %v6129 = vsel %vm4184, %v6061, 0
        %v6132 = vsel %vm4184, %v6062, 0
        %v6135 = vsel %vm4184, %v6063, 0
        %v6138 = vsel %vm4184, %v6064, 0
        %v6141 = vsel %vm4184, %v6065, 0
        %v6144 = vsel %vm4184, %v6066, 0
        %v6147 = vsel %vm4184, %v6067, 0
        %v6150 = vsel %vm4184, %v6068, 0
        %v6153 = vsel %vm4184, %v6069, 0
        %v6156 = vsel %vm4184, %v6070, 0
        %v6159 = vsel %vm4184, %v6071, 0
        %v6162 = vsel %vm4184, %v6072, 0
        %v6165 = vsel %vm4184, %v6073, 0
        %v6168 = vsel %vm4184, %v6074, 0
        %v6171 = vsel %vm4184, %v6075, 0
        %v6174 = vsel %vm4184, %v6076, 0
        %v6177 = vsel %vm4184, %v6077, 0
        %v6180 = vsel %vm4184, %v6078, 0
        %v6183 = vsel %vm4184, %v6079, 0
        %6185 = vmatpush.msra.mxu0 0.0
        %6186 = vmatpush.msra.mxu0 0.0
        %6187 = vmatpush.msra.mxu0 0.0
        %6188 = vmatpush.msra.mxu0 0.0
        %6189 = vmatpush.msra.mxu0 0.0
        %6190 = vmatpush.msra.mxu0 0.0
        %6191 = vmatpush.msra.mxu0 0.0
        %6192 = vmatpush.msra.mxu0 0.0
        %6193 = vmatpush.msra.mxu0 %v6088
        %6194 = vmatpush.msra.mxu0 %v6087
        %6195 = vmatpush.msra.mxu0 %v6086
        %6196 = vmatpush.msra.mxu0 %v6085
        %6197 = vmatpush.msra.mxu0 %v6084
        %6198 = vmatpush.msra.mxu0 %v6083
        %6199 = vmatpush.msra.mxu0 %v6082
        %6200 = vmatpush.msra.mxu0 %v6081
        %6201 = vmatmul.f32.gmra.mxu0 %v6090
        %v6202 = vpop.f32.mrf.mxu0
        %v6203 = vadd.f32 0.0, %v6202
        %6204 = vmatmul.f32.gmra.mxu0 %v6093
        %v6205 = vpop.f32.mrf.mxu0
        %v6206 = vadd.f32 0.0, %v6205
        %6207 = vmatmul.f32.gmra.mxu0 %v6096
        %v6208 = vpop.f32.mrf.mxu0
        %v6209 = vadd.f32 0.0, %v6208
        %6210 = vmatmul.f32.gmra.mxu0 %v6099
        %v6211 = vpop.f32.mrf.mxu0
        %v6212 = vadd.f32 0.0, %v6211
        %6213 = vmatmul.f32.gmra.mxu0 %v6102
        %v6214 = vpop.f32.mrf.mxu0
        %v6215 = vadd.f32 0.0, %v6214
        %6216 = vmatmul.f32.gmra.mxu0 %v6105
        %v6217 = vpop.f32.mrf.mxu0
        %v6218 = vadd.f32 0.0, %v6217
        %6219 = vmatmul.f32.gmra.mxu0 %v6108
        %v6220 = vpop.f32.mrf.mxu0
        %v6221 = vadd.f32 0.0, %v6220
        %6222 = vmatmul.f32.gmra.mxu0 %v6111
        %v6223 = vpop.f32.mrf.mxu0
        %v6224 = vadd.f32 0.0, %v6223
        %6225 = vmatmul.f32.gmra.mxu0 %v6114
        %v6226 = vpop.f32.mrf.mxu0
        %v6227 = vadd.f32 0.0, %v6226
        %6228 = vmatmul.f32.gmra.mxu0 %v6117
        %v6229 = vpop.f32.mrf.mxu0
        %v6230 = vadd.f32 0.0, %v6229
        %6231 = vmatmul.f32.gmra.mxu0 %v6120
        %v6232 = vpop.f32.mrf.mxu0
        %v6233 = vadd.f32 0.0, %v6232
        %6234 = vmatmul.f32.gmra.mxu0 %v6123
        %v6235 = vpop.f32.mrf.mxu0
        %v6236 = vadd.f32 0.0, %v6235
        %6237 = vmatmul.f32.gmra.mxu0 %v6126
        %v6238 = vpop.f32.mrf.mxu0
        %v6239 = vadd.f32 0.0, %v6238
        %6240 = vmatmul.f32.gmra.mxu0 %v6129
        %v6241 = vpop.f32.mrf.mxu0
        %v6242 = vadd.f32 0.0, %v6241
        %6243 = vmatmul.f32.gmra.mxu0 %v6132
        %v6244 = vpop.f32.mrf.mxu0
        %v6245 = vadd.f32 0.0, %v6244
        %6246 = vmatmul.f32.gmra.mxu0 %v6135
        %v6247 = vpop.f32.mrf.mxu0
        %v6248 = vadd.f32 0.0, %v6247
        %6249 = vmatmul.f32.gmra.mxu0 %v6138
        %v6250 = vpop.f32.mrf.mxu0
        %v6251 = vadd.f32 0.0, %v6250
        %6252 = vmatmul.f32.gmra.mxu0 %v6141
        %v6253 = vpop.f32.mrf.mxu0
        %v6254 = vadd.f32 0.0, %v6253
        %6255 = vmatmul.f32.gmra.mxu0 %v6144
        %v6256 = vpop.f32.mrf.mxu0
        %v6257 = vadd.f32 0.0, %v6256
        %6258 = vmatmul.f32.gmra.mxu0 %v6147
        %v6259 = vpop.f32.mrf.mxu0
        %v6260 = vadd.f32 0.0, %v6259
        %6261 = vmatmul.f32.gmra.mxu0 %v6150
        %v6262 = vpop.f32.mrf.mxu0
        %v6263 = vadd.f32 0.0, %v6262
        %6264 = vmatmul.f32.gmra.mxu0 %v6153
        %v6265 = vpop.f32.mrf.mxu0
        %v6266 = vadd.f32 0.0, %v6265
        %6267 = vmatmul.f32.gmra.mxu0 %v6156
        %v6268 = vpop.f32.mrf.mxu0
        %v6269 = vadd.f32 0.0, %v6268
        %6270 = vmatmul.f32.gmra.mxu0 %v6159
        %v6271 = vpop.f32.mrf.mxu0
        %v6272 = vadd.f32 0.0, %v6271
        %6273 = vmatmul.f32.gmra.mxu0 %v6162
        %v6274 = vpop.f32.mrf.mxu0
        %v6275 = vadd.f32 0.0, %v6274
        %6276 = vmatmul.f32.gmra.mxu0 %v6165
        %v6277 = vpop.f32.mrf.mxu0
        %v6278 = vadd.f32 0.0, %v6277
        %6279 = vmatmul.f32.gmra.mxu0 %v6168
        %v6280 = vpop.f32.mrf.mxu0
        %v6281 = vadd.f32 0.0, %v6280
        %6282 = vmatmul.f32.gmra.mxu0 %v6171
        %v6283 = vpop.f32.mrf.mxu0
        %v6284 = vadd.f32 0.0, %v6283
        %6285 = vmatmul.f32.gmra.mxu0 %v6174
        %v6286 = vpop.f32.mrf.mxu0
        %v6287 = vadd.f32 0.0, %v6286
        %6288 = vmatmul.f32.gmra.mxu0 %v6177
        %v6289 = vpop.f32.mrf.mxu0
        %v6290 = vadd.f32 0.0, %v6289
        %6291 = vmatmul.f32.gmra.mxu0 %v6180
        %v6292 = vpop.f32.mrf.mxu0
        %v6293 = vadd.f32 0.0, %v6292
        %6294 = vmatmul.f32.gmra.mxu0 %v6183
        %v6295 = vpop.f32.mrf.mxu0
        %v6296 = vadd.f32 0.0, %v6295
        %6297 = vdwg.mxu0
        %v6298 = vadd.f32 %v6015, %v6203
        %v6299 = vadd.f32 %v6016, %v6206
        %v6300 = vadd.f32 %v6017, %v6209
        %v6301 = vadd.f32 %v6018, %v6212
        %v6302 = vadd.f32 %v6019, %v6215
        %v6303 = vadd.f32 %v6020, %v6218
        %v6304 = vadd.f32 %v6021, %v6221
        %v6305 = vadd.f32 %v6022, %v6224
        %v6306 = vadd.f32 %v6023, %v6227
        %v6307 = vadd.f32 %v6024, %v6230
        %v6308 = vadd.f32 %v6025, %v6233
        %v6309 = vadd.f32 %v6026, %v6236
        %v6310 = vadd.f32 %v6027, %v6239
        %v6311 = vadd.f32 %v6028, %v6242
        %v6312 = vadd.f32 %v6029, %v6245
        %v6313 = vadd.f32 %v6030, %v6248
        %v6314 = vadd.f32 %v6031, %v6251
        %v6315 = vadd.f32 %v6032, %v6254
        %v6316 = vadd.f32 %v6033, %v6257
        %v6317 = vadd.f32 %v6034, %v6260
        %v6318 = vadd.f32 %v6035, %v6263
        %v6319 = vadd.f32 %v6036, %v6266
        %v6320 = vadd.f32 %v6037, %v6269
        %v6321 = vadd.f32 %v6038, %v6272
        %v6322 = vadd.f32 %v6039, %v6275
        %v6323 = vadd.f32 %v6040, %v6278
        %v6324 = vadd.f32 %v6041, %v6281
        %v6325 = vadd.f32 %v6042, %v6284
        %v6326 = vadd.f32 %v6043, %v6287
        %v6327 = vadd.f32 %v6044, %v6290
        %v6328 = vadd.f32 %v6045, %v6293
        %v6329 = vadd.f32 %v6046, %v6296
        %v6330 = vld [vmem:[%s6047 + $0x1] sm:$0xff]
        %v6331 = vld [vmem:[%s6047 + $0x9] sm:$0xff]
        %v6332 = vld [vmem:[%s6047 + $0x19] sm:$0xff]
        %v6333 = vld [vmem:[%s6047 + $0x21] sm:$0xff]
        %v6334 = vld [vmem:[%s6047 + $0x31] sm:$0xff]
        %v6335 = vld [vmem:[%s6047 + $0x39] sm:$0xff]
        %v6336 = vld [vmem:[%s6047 + $0x49] sm:$0xff]
        %v6337 = vld [vmem:[%s6047 + $0x51] sm:$0xff]
        %v6338 = vld [vmem:[%s6047 + $0x61] sm:$0xff]
        %v6339 = vld [vmem:[%s6047 + $0x69] sm:$0xff]
        %v6340 = vld [vmem:[%s6047 + $0x79] sm:$0xff]
        %v6341 = vld [vmem:[%s6047 + $0x81] sm:$0xff]
        %v6342 = vld [vmem:[%s6047 + $0x91] sm:$0xff]
        %v6343 = vld [vmem:[%s6047 + $0x99] sm:$0xff]
        %v6344 = vld [vmem:[%s6047 + $0xa9] sm:$0xff]
        %v6345 = vld [vmem:[%s6047 + $0xb1] sm:$0xff]
        %v6346 = vld [vmem:[%s6047 + $0xc1] sm:$0xff]
        %v6347 = vld [vmem:[%s6047 + $0xc9] sm:$0xff]
        %v6348 = vld [vmem:[%s6047 + $0xd9] sm:$0xff]
        %v6349 = vld [vmem:[%s6047 + $0xe1] sm:$0xff]
        %v6350 = vld [vmem:[%s6047 + $0xf1] sm:$0xff]
        %v6351 = vld [vmem:[%s6047 + $0xf9] sm:$0xff]
        %v6352 = vld [vmem:[%s6047 + $0x109] sm:$0xff]
        %v6353 = vld [vmem:[%s6047 + $0x111] sm:$0xff]
        %v6354 = vld [vmem:[%s6047 + $0x121] sm:$0xff]
        %v6355 = vld [vmem:[%s6047 + $0x129] sm:$0xff]
        %v6356 = vld [vmem:[%s6047 + $0x139] sm:$0xff]
        %v6357 = vld [vmem:[%s6047 + $0x141] sm:$0xff]
        %v6358 = vld [vmem:[%s6047 + $0x151] sm:$0xff]
        %v6359 = vld [vmem:[%s6047 + $0x159] sm:$0xff]
        %v6360 = vld [vmem:[%s6047 + $0x169] sm:$0xff]
        %v6361 = vld [vmem:[%s6047 + $0x171] sm:$0xff]
        %s6362 = scalar_lea.vmem %s4, 448
        %v6363 = vld [vmem:[%s6362] sm:$0xff]
        %v6364 = vld [vmem:[%s6362 + $0x8] sm:$0xff]
        %v6365 = vld [vmem:[%s6362 + $0x10] sm:$0xff]
        %v6366 = vld [vmem:[%s6362 + $0x18] sm:$0xff]
        %v6367 = vld [vmem:[%s6362 + $0x20] sm:$0xff]
        %v6368 = vld [vmem:[%s6362 + $0x28] sm:$0xff]
        %v6369 = vld [vmem:[%s6362 + $0x30] sm:$0xff]
        %v6370 = vld [vmem:[%s6362 + $0x38] sm:$0xff]
        %v6372 = vsel %vm4184, %v6330, 0
        %v6375 = vsel %vm4184, %v6331, 0
        %v6378 = vsel %vm4184, %v6332, 0
        %v6381 = vsel %vm4184, %v6333, 0
        %v6384 = vsel %vm4184, %v6334, 0
        %v6387 = vsel %vm4184, %v6335, 0
        %v6390 = vsel %vm4184, %v6336, 0
        %v6393 = vsel %vm4184, %v6337, 0
        %v6396 = vsel %vm4184, %v6338, 0
        %v6399 = vsel %vm4184, %v6339, 0
        %v6402 = vsel %vm4184, %v6340, 0
        %v6405 = vsel %vm4184, %v6341, 0
        %v6408 = vsel %vm4184, %v6342, 0
        %v6411 = vsel %vm4184, %v6343, 0
        %v6414 = vsel %vm4184, %v6344, 0
        %v6417 = vsel %vm4184, %v6345, 0
        %v6420 = vsel %vm4184, %v6346, 0
        %v6423 = vsel %vm4184, %v6347, 0
        %v6426 = vsel %vm4184, %v6348, 0
        %v6429 = vsel %vm4184, %v6349, 0
        %v6432 = vsel %vm4184, %v6350, 0
        %v6435 = vsel %vm4184, %v6351, 0
        %v6438 = vsel %vm4184, %v6352, 0
        %v6441 = vsel %vm4184, %v6353, 0
        %v6444 = vsel %vm4184, %v6354, 0
        %v6447 = vsel %vm4184, %v6355, 0
        %v6450 = vsel %vm4184, %v6356, 0
        %v6453 = vsel %vm4184, %v6357, 0
        %v6456 = vsel %vm4184, %v6358, 0
        %v6459 = vsel %vm4184, %v6359, 0
        %v6462 = vsel %vm4184, %v6360, 0
        %v6465 = vsel %vm4184, %v6361, 0
        %6467 = vmatpush.msra.mxu0 0.0
        %6468 = vmatpush.msra.mxu0 0.0
        %6469 = vmatpush.msra.mxu0 0.0
        %6470 = vmatpush.msra.mxu0 0.0
        %6471 = vmatpush.msra.mxu0 0.0
        %6472 = vmatpush.msra.mxu0 0.0
        %6473 = vmatpush.msra.mxu0 0.0
        %6474 = vmatpush.msra.mxu0 0.0
        %6475 = vmatpush.msra.mxu0 %v6370
        %6476 = vmatpush.msra.mxu0 %v6369
        %6477 = vmatpush.msra.mxu0 %v6368
        %6478 = vmatpush.msra.mxu0 %v6367
        %6479 = vmatpush.msra.mxu0 %v6366
        %6480 = vmatpush.msra.mxu0 %v6365
        %6481 = vmatpush.msra.mxu0 %v6364
        %6482 = vmatpush.msra.mxu0 %v6363
        %6483 = vmatmul.f32.gmra.mxu0 %v6372
        %v6484 = vpop.f32.mrf.mxu0
        %v6485 = vadd.f32 0.0, %v6484
        %6486 = vmatmul.f32.gmra.mxu0 %v6375
        %v6487 = vpop.f32.mrf.mxu0
        %v6488 = vadd.f32 0.0, %v6487
        %6489 = vmatmul.f32.gmra.mxu0 %v6378
        %v6490 = vpop.f32.mrf.mxu0
        %v6491 = vadd.f32 0.0, %v6490
        %6492 = vmatmul.f32.gmra.mxu0 %v6381
        %v6493 = vpop.f32.mrf.mxu0
        %v6494 = vadd.f32 0.0, %v6493
        %6495 = vmatmul.f32.gmra.mxu0 %v6384
        %v6496 = vpop.f32.mrf.mxu0
        %v6497 = vadd.f32 0.0, %v6496
        %6498 = vmatmul.f32.gmra.mxu0 %v6387
        %v6499 = vpop.f32.mrf.mxu0
        %v6500 = vadd.f32 0.0, %v6499
        %6501 = vmatmul.f32.gmra.mxu0 %v6390
        %v6502 = vpop.f32.mrf.mxu0
        %v6503 = vadd.f32 0.0, %v6502
        %6504 = vmatmul.f32.gmra.mxu0 %v6393
        %v6505 = vpop.f32.mrf.mxu0
        %v6506 = vadd.f32 0.0, %v6505
        %6507 = vmatmul.f32.gmra.mxu0 %v6396
        %v6508 = vpop.f32.mrf.mxu0
        %v6509 = vadd.f32 0.0, %v6508
        %6510 = vmatmul.f32.gmra.mxu0 %v6399
        %v6511 = vpop.f32.mrf.mxu0
        %v6512 = vadd.f32 0.0, %v6511
        %6513 = vmatmul.f32.gmra.mxu0 %v6402
        %v6514 = vpop.f32.mrf.mxu0
        %v6515 = vadd.f32 0.0, %v6514
        %6516 = vmatmul.f32.gmra.mxu0 %v6405
        %v6517 = vpop.f32.mrf.mxu0
        %v6518 = vadd.f32 0.0, %v6517
        %6519 = vmatmul.f32.gmra.mxu0 %v6408
        %v6520 = vpop.f32.mrf.mxu0
        %v6521 = vadd.f32 0.0, %v6520
        %6522 = vmatmul.f32.gmra.mxu0 %v6411
        %v6523 = vpop.f32.mrf.mxu0
        %v6524 = vadd.f32 0.0, %v6523
        %6525 = vmatmul.f32.gmra.mxu0 %v6414
        %v6526 = vpop.f32.mrf.mxu0
        %v6527 = vadd.f32 0.0, %v6526
        %6528 = vmatmul.f32.gmra.mxu0 %v6417
        %v6529 = vpop.f32.mrf.mxu0
        %v6530 = vadd.f32 0.0, %v6529
        %6531 = vmatmul.f32.gmra.mxu0 %v6420
        %v6532 = vpop.f32.mrf.mxu0
        %v6533 = vadd.f32 0.0, %v6532
        %6534 = vmatmul.f32.gmra.mxu0 %v6423
        %v6535 = vpop.f32.mrf.mxu0
        %v6536 = vadd.f32 0.0, %v6535
        %6537 = vmatmul.f32.gmra.mxu0 %v6426
        %v6538 = vpop.f32.mrf.mxu0
        %v6539 = vadd.f32 0.0, %v6538
        %6540 = vmatmul.f32.gmra.mxu0 %v6429
        %v6541 = vpop.f32.mrf.mxu0
        %v6542 = vadd.f32 0.0, %v6541
        %6543 = vmatmul.f32.gmra.mxu0 %v6432
        %v6544 = vpop.f32.mrf.mxu0
        %v6545 = vadd.f32 0.0, %v6544
        %6546 = vmatmul.f32.gmra.mxu0 %v6435
        %v6547 = vpop.f32.mrf.mxu0
        %v6548 = vadd.f32 0.0, %v6547
        %6549 = vmatmul.f32.gmra.mxu0 %v6438
        %v6550 = vpop.f32.mrf.mxu0
        %v6551 = vadd.f32 0.0, %v6550
        %6552 = vmatmul.f32.gmra.mxu0 %v6441
        %v6553 = vpop.f32.mrf.mxu0
        %v6554 = vadd.f32 0.0, %v6553
        %6555 = vmatmul.f32.gmra.mxu0 %v6444
        %v6556 = vpop.f32.mrf.mxu0
        %v6557 = vadd.f32 0.0, %v6556
        %6558 = vmatmul.f32.gmra.mxu0 %v6447
        %v6559 = vpop.f32.mrf.mxu0
        %v6560 = vadd.f32 0.0, %v6559
        %6561 = vmatmul.f32.gmra.mxu0 %v6450
        %v6562 = vpop.f32.mrf.mxu0
        %v6563 = vadd.f32 0.0, %v6562
        %6564 = vmatmul.f32.gmra.mxu0 %v6453
        %v6565 = vpop.f32.mrf.mxu0
        %v6566 = vadd.f32 0.0, %v6565
        %6567 = vmatmul.f32.gmra.mxu0 %v6456
        %v6568 = vpop.f32.mrf.mxu0
        %v6569 = vadd.f32 0.0, %v6568
        %6570 = vmatmul.f32.gmra.mxu0 %v6459
        %v6571 = vpop.f32.mrf.mxu0
        %v6572 = vadd.f32 0.0, %v6571
        %6573 = vmatmul.f32.gmra.mxu0 %v6462
        %v6574 = vpop.f32.mrf.mxu0
        %v6575 = vadd.f32 0.0, %v6574
        %6576 = vmatmul.f32.gmra.mxu0 %v6465
        %v6577 = vpop.f32.mrf.mxu0
        %v6578 = vadd.f32 0.0, %v6577
        %6579 = vdwg.mxu0
        %v6580 = vadd.f32 %v6298, %v6485
        %v6581 = vadd.f32 %v6299, %v6488
        %v6582 = vadd.f32 %v6300, %v6491
        %v6583 = vadd.f32 %v6301, %v6494
        %v6584 = vadd.f32 %v6302, %v6497
        %v6585 = vadd.f32 %v6303, %v6500
        %v6586 = vadd.f32 %v6304, %v6503
        %v6587 = vadd.f32 %v6305, %v6506
        %v6588 = vadd.f32 %v6306, %v6509
        %v6589 = vadd.f32 %v6307, %v6512
        %v6590 = vadd.f32 %v6308, %v6515
        %v6591 = vadd.f32 %v6309, %v6518
        %v6592 = vadd.f32 %v6310, %v6521
        %v6593 = vadd.f32 %v6311, %v6524
        %v6594 = vadd.f32 %v6312, %v6527
        %v6595 = vadd.f32 %v6313, %v6530
        %v6596 = vadd.f32 %v6314, %v6533
        %v6597 = vadd.f32 %v6315, %v6536
        %v6598 = vadd.f32 %v6316, %v6539
        %v6599 = vadd.f32 %v6317, %v6542
        %v6600 = vadd.f32 %v6318, %v6545
        %v6601 = vadd.f32 %v6319, %v6548
        %v6602 = vadd.f32 %v6320, %v6551
        %v6603 = vadd.f32 %v6321, %v6554
        %v6604 = vadd.f32 %v6322, %v6557
        %v6605 = vadd.f32 %v6323, %v6560
        %v6606 = vadd.f32 %v6324, %v6563
        %v6607 = vadd.f32 %v6325, %v6566
        %v6608 = vadd.f32 %v6326, %v6569
        %v6609 = vadd.f32 %v6327, %v6572
        %v6610 = vadd.f32 %v6328, %v6575
        %v6611 = vadd.f32 %v6329, %v6578
        %v6612 = vld [vmem:[%s6047 + $0x2] sm:$0xff]
        %v6613 = vld [vmem:[%s6047 + $0xa] sm:$0xff]
        %v6614 = vld [vmem:[%s6047 + $0x1a] sm:$0xff]
        %v6615 = vld [vmem:[%s6047 + $0x22] sm:$0xff]
        %v6616 = vld [vmem:[%s6047 + $0x32] sm:$0xff]
        %v6617 = vld [vmem:[%s6047 + $0x3a] sm:$0xff]
        %v6618 = vld [vmem:[%s6047 + $0x4a] sm:$0xff]
        %v6619 = vld [vmem:[%s6047 + $0x52] sm:$0xff]
        %v6620 = vld [vmem:[%s6047 + $0x62] sm:$0xff]
        %v6621 = vld [vmem:[%s6047 + $0x6a] sm:$0xff]
        %v6622 = vld [vmem:[%s6047 + $0x7a] sm:$0xff]
        %v6623 = vld [vmem:[%s6047 + $0x82] sm:$0xff]
        %v6624 = vld [vmem:[%s6047 + $0x92] sm:$0xff]
        %v6625 = vld [vmem:[%s6047 + $0x9a] sm:$0xff]
        %v6626 = vld [vmem:[%s6047 + $0xaa] sm:$0xff]
        %v6627 = vld [vmem:[%s6047 + $0xb2] sm:$0xff]
        %v6628 = vld [vmem:[%s6047 + $0xc2] sm:$0xff]
        %v6629 = vld [vmem:[%s6047 + $0xca] sm:$0xff]
        %v6630 = vld [vmem:[%s6047 + $0xda] sm:$0xff]
        %v6631 = vld [vmem:[%s6047 + $0xe2] sm:$0xff]
        %v6632 = vld [vmem:[%s6047 + $0xf2] sm:$0xff]
        %v6633 = vld [vmem:[%s6047 + $0xfa] sm:$0xff]
        %v6634 = vld [vmem:[%s6047 + $0x10a] sm:$0xff]
        %v6635 = vld [vmem:[%s6047 + $0x112] sm:$0xff]
        %v6636 = vld [vmem:[%s6047 + $0x122] sm:$0xff]
        %v6637 = vld [vmem:[%s6047 + $0x12a] sm:$0xff]
        %v6638 = vld [vmem:[%s6047 + $0x13a] sm:$0xff]
        %v6639 = vld [vmem:[%s6047 + $0x142] sm:$0xff]
        %v6640 = vld [vmem:[%s6047 + $0x152] sm:$0xff]
        %v6641 = vld [vmem:[%s6047 + $0x15a] sm:$0xff]
        %v6642 = vld [vmem:[%s6047 + $0x16a] sm:$0xff]
        %v6643 = vld [vmem:[%s6047 + $0x172] sm:$0xff]
        %s6644 = scalar_lea.vmem %s4, 512
        %v6645 = vld [vmem:[%s6644] sm:$0xff]
        %v6646 = vld [vmem:[%s6644 + $0x8] sm:$0xff]
        %v6647 = vld [vmem:[%s6644 + $0x10] sm:$0xff]
        %v6648 = vld [vmem:[%s6644 + $0x18] sm:$0xff]
        %v6649 = vld [vmem:[%s6644 + $0x20] sm:$0xff]
        %v6650 = vld [vmem:[%s6644 + $0x28] sm:$0xff]
        %v6651 = vld [vmem:[%s6644 + $0x30] sm:$0xff]
        %v6652 = vld [vmem:[%s6644 + $0x38] sm:$0xff]
        %v6654 = vsel %vm4184, %v6612, 0
        %v6657 = vsel %vm4184, %v6613, 0
        %v6660 = vsel %vm4184, %v6614, 0
        %v6663 = vsel %vm4184, %v6615, 0
        %v6666 = vsel %vm4184, %v6616, 0
        %v6669 = vsel %vm4184, %v6617, 0
        %v6672 = vsel %vm4184, %v6618, 0
        %v6675 = vsel %vm4184, %v6619, 0
        %v6678 = vsel %vm4184, %v6620, 0
        %v6681 = vsel %vm4184, %v6621, 0
        %v6684 = vsel %vm4184, %v6622, 0
        %v6687 = vsel %vm4184, %v6623, 0
        %v6690 = vsel %vm4184, %v6624, 0
        %v6693 = vsel %vm4184, %v6625, 0
        %v6696 = vsel %vm4184, %v6626, 0
        %v6699 = vsel %vm4184, %v6627, 0
        %v6702 = vsel %vm4184, %v6628, 0
        %v6705 = vsel %vm4184, %v6629, 0
        %v6708 = vsel %vm4184, %v6630, 0
        %v6711 = vsel %vm4184, %v6631, 0
        %v6714 = vsel %vm4184, %v6632, 0
        %v6717 = vsel %vm4184, %v6633, 0
        %v6720 = vsel %vm4184, %v6634, 0
        %v6723 = vsel %vm4184, %v6635, 0
        %v6726 = vsel %vm4184, %v6636, 0
        %v6729 = vsel %vm4184, %v6637, 0
        %v6732 = vsel %vm4184, %v6638, 0
        %v6735 = vsel %vm4184, %v6639, 0
        %v6738 = vsel %vm4184, %v6640, 0
        %v6741 = vsel %vm4184, %v6641, 0
        %v6744 = vsel %vm4184, %v6642, 0
        %v6747 = vsel %vm4184, %v6643, 0
        %6749 = vmatpush.msra.mxu0 0.0
        %6750 = vmatpush.msra.mxu0 0.0
        %6751 = vmatpush.msra.mxu0 0.0
        %6752 = vmatpush.msra.mxu0 0.0
        %6753 = vmatpush.msra.mxu0 0.0
        %6754 = vmatpush.msra.mxu0 0.0
        %6755 = vmatpush.msra.mxu0 0.0
        %6756 = vmatpush.msra.mxu0 0.0
        %6757 = vmatpush.msra.mxu0 %v6652
        %6758 = vmatpush.msra.mxu0 %v6651
        %6759 = vmatpush.msra.mxu0 %v6650
        %6760 = vmatpush.msra.mxu0 %v6649
        %6761 = vmatpush.msra.mxu0 %v6648
        %6762 = vmatpush.msra.mxu0 %v6647
        %6763 = vmatpush.msra.mxu0 %v6646
        %6764 = vmatpush.msra.mxu0 %v6645
        %6765 = vmatmul.f32.gmra.mxu0 %v6654
        %v6766 = vpop.f32.mrf.mxu0
        %v6767 = vadd.f32 0.0, %v6766
        %6768 = vmatmul.f32.gmra.mxu0 %v6657
        %v6769 = vpop.f32.mrf.mxu0
        %v6770 = vadd.f32 0.0, %v6769
        %6771 = vmatmul.f32.gmra.mxu0 %v6660
        %v6772 = vpop.f32.mrf.mxu0
        %v6773 = vadd.f32 0.0, %v6772
        %6774 = vmatmul.f32.gmra.mxu0 %v6663
        %v6775 = vpop.f32.mrf.mxu0
        %v6776 = vadd.f32 0.0, %v6775
        %6777 = vmatmul.f32.gmra.mxu0 %v6666
        %v6778 = vpop.f32.mrf.mxu0
        %v6779 = vadd.f32 0.0, %v6778
        %6780 = vmatmul.f32.gmra.mxu0 %v6669
        %v6781 = vpop.f32.mrf.mxu0
        %v6782 = vadd.f32 0.0, %v6781
        %6783 = vmatmul.f32.gmra.mxu0 %v6672
        %v6784 = vpop.f32.mrf.mxu0
        %v6785 = vadd.f32 0.0, %v6784
        %6786 = vmatmul.f32.gmra.mxu0 %v6675
        %v6787 = vpop.f32.mrf.mxu0
        %v6788 = vadd.f32 0.0, %v6787
        %6789 = vmatmul.f32.gmra.mxu0 %v6678
        %v6790 = vpop.f32.mrf.mxu0
        %v6791 = vadd.f32 0.0, %v6790
        %6792 = vmatmul.f32.gmra.mxu0 %v6681
        %v6793 = vpop.f32.mrf.mxu0
        %v6794 = vadd.f32 0.0, %v6793
        %6795 = vmatmul.f32.gmra.mxu0 %v6684
        %v6796 = vpop.f32.mrf.mxu0
        %v6797 = vadd.f32 0.0, %v6796
        %6798 = vmatmul.f32.gmra.mxu0 %v6687
        %v6799 = vpop.f32.mrf.mxu0
        %v6800 = vadd.f32 0.0, %v6799
        %6801 = vmatmul.f32.gmra.mxu0 %v6690
        %v6802 = vpop.f32.mrf.mxu0
        %v6803 = vadd.f32 0.0, %v6802
        %6804 = vmatmul.f32.gmra.mxu0 %v6693
        %v6805 = vpop.f32.mrf.mxu0
        %v6806 = vadd.f32 0.0, %v6805
        %6807 = vmatmul.f32.gmra.mxu0 %v6696
        %v6808 = vpop.f32.mrf.mxu0
        %v6809 = vadd.f32 0.0, %v6808
        %6810 = vmatmul.f32.gmra.mxu0 %v6699
        %v6811 = vpop.f32.mrf.mxu0
        %v6812 = vadd.f32 0.0, %v6811
        %6813 = vmatmul.f32.gmra.mxu0 %v6702
        %v6814 = vpop.f32.mrf.mxu0
        %v6815 = vadd.f32 0.0, %v6814
        %6816 = vmatmul.f32.gmra.mxu0 %v6705
        %v6817 = vpop.f32.mrf.mxu0
        %v6818 = vadd.f32 0.0, %v6817
        %6819 = vmatmul.f32.gmra.mxu0 %v6708
        %v6820 = vpop.f32.mrf.mxu0
        %v6821 = vadd.f32 0.0, %v6820
        %6822 = vmatmul.f32.gmra.mxu0 %v6711
        %v6823 = vpop.f32.mrf.mxu0
        %v6824 = vadd.f32 0.0, %v6823
        %6825 = vmatmul.f32.gmra.mxu0 %v6714
        %v6826 = vpop.f32.mrf.mxu0
        %v6827 = vadd.f32 0.0, %v6826
        %6828 = vmatmul.f32.gmra.mxu0 %v6717
        %v6829 = vpop.f32.mrf.mxu0
        %v6830 = vadd.f32 0.0, %v6829
        %6831 = vmatmul.f32.gmra.mxu0 %v6720
        %v6832 = vpop.f32.mrf.mxu0
        %v6833 = vadd.f32 0.0, %v6832
        %6834 = vmatmul.f32.gmra.mxu0 %v6723
        %v6835 = vpop.f32.mrf.mxu0
        %v6836 = vadd.f32 0.0, %v6835
        %6837 = vmatmul.f32.gmra.mxu0 %v6726
        %v6838 = vpop.f32.mrf.mxu0
        %v6839 = vadd.f32 0.0, %v6838
        %6840 = vmatmul.f32.gmra.mxu0 %v6729
        %v6841 = vpop.f32.mrf.mxu0
        %v6842 = vadd.f32 0.0, %v6841
        %6843 = vmatmul.f32.gmra.mxu0 %v6732
        %v6844 = vpop.f32.mrf.mxu0
        %v6845 = vadd.f32 0.0, %v6844
        %6846 = vmatmul.f32.gmra.mxu0 %v6735
        %v6847 = vpop.f32.mrf.mxu0
        %v6848 = vadd.f32 0.0, %v6847
        %6849 = vmatmul.f32.gmra.mxu0 %v6738
        %v6850 = vpop.f32.mrf.mxu0
        %v6851 = vadd.f32 0.0, %v6850
        %6852 = vmatmul.f32.gmra.mxu0 %v6741
        %v6853 = vpop.f32.mrf.mxu0
        %v6854 = vadd.f32 0.0, %v6853
        %6855 = vmatmul.f32.gmra.mxu0 %v6744
        %v6856 = vpop.f32.mrf.mxu0
        %v6857 = vadd.f32 0.0, %v6856
        %6858 = vmatmul.f32.gmra.mxu0 %v6747
        %v6859 = vpop.f32.mrf.mxu0
        %v6860 = vadd.f32 0.0, %v6859
        %6861 = vdwg.mxu0
        %v6862 = vadd.f32 %v6580, %v6767
        %v6863 = vadd.f32 %v6581, %v6770
        %v6864 = vadd.f32 %v6582, %v6773
        %v6865 = vadd.f32 %v6583, %v6776
        %v6866 = vadd.f32 %v6584, %v6779
        %v6867 = vadd.f32 %v6585, %v6782
        %v6868 = vadd.f32 %v6586, %v6785
        %v6869 = vadd.f32 %v6587, %v6788
        %v6870 = vadd.f32 %v6588, %v6791
        %v6871 = vadd.f32 %v6589, %v6794
        %v6872 = vadd.f32 %v6590, %v6797
        %v6873 = vadd.f32 %v6591, %v6800
        %v6874 = vadd.f32 %v6592, %v6803
        %v6875 = vadd.f32 %v6593, %v6806
        %v6876 = vadd.f32 %v6594, %v6809
        %v6877 = vadd.f32 %v6595, %v6812
        %v6878 = vadd.f32 %v6596, %v6815
        %v6879 = vadd.f32 %v6597, %v6818
        %v6880 = vadd.f32 %v6598, %v6821
        %v6881 = vadd.f32 %v6599, %v6824
        %v6882 = vadd.f32 %v6600, %v6827
        %v6883 = vadd.f32 %v6601, %v6830
        %v6884 = vadd.f32 %v6602, %v6833
        %v6885 = vadd.f32 %v6603, %v6836
        %v6886 = vadd.f32 %v6604, %v6839
        %v6887 = vadd.f32 %v6605, %v6842
        %v6888 = vadd.f32 %v6606, %v6845
        %v6889 = vadd.f32 %v6607, %v6848
        %v6890 = vadd.f32 %v6608, %v6851
        %v6891 = vadd.f32 %v6609, %v6854
        %v6892 = vadd.f32 %v6610, %v6857
        %v6893 = vadd.f32 %v6611, %v6860
        %v6894 = vld [vmem:[%s5] sm:$0x1]
        %v6896 = vperm.slane %v6894, 0
        %v6898 = vadd.f32 %v6862, %v6896
        %v6899 = vadd.f32 %v6863, %v6896
        %v6900 = vadd.f32 %v6864, %v6896
        %v6901 = vadd.f32 %v6865, %v6896
        %v6902 = vadd.f32 %v6866, %v6896
        %v6903 = vadd.f32 %v6867, %v6896
        %v6904 = vadd.f32 %v6868, %v6896
        %v6905 = vadd.f32 %v6869, %v6896
        %v6906 = vadd.f32 %v6870, %v6896
        %v6907 = vadd.f32 %v6871, %v6896
        %v6908 = vadd.f32 %v6872, %v6896
        %v6909 = vadd.f32 %v6873, %v6896
        %v6910 = vadd.f32 %v6874, %v6896
        %v6911 = vadd.f32 %v6875, %v6896
        %v6912 = vadd.f32 %v6876, %v6896
        %v6913 = vadd.f32 %v6877, %v6896
        %v6914 = vadd.f32 %v6878, %v6896
        %v6915 = vadd.f32 %v6879, %v6896
        %v6916 = vadd.f32 %v6880, %v6896
        %v6917 = vadd.f32 %v6881, %v6896
        %v6918 = vadd.f32 %v6882, %v6896
        %v6919 = vadd.f32 %v6883, %v6896
        %v6920 = vadd.f32 %v6884, %v6896
        %v6921 = vadd.f32 %v6885, %v6896
        %v6922 = vadd.f32 %v6886, %v6896
        %v6923 = vadd.f32 %v6887, %v6896
        %v6924 = vadd.f32 %v6888, %v6896
        %v6925 = vadd.f32 %v6889, %v6896
        %v6926 = vadd.f32 %v6890, %v6896
        %v6927 = vadd.f32 %v6891, %v6896
        %v6928 = vadd.f32 %v6892, %v6896
        %v6929 = vadd.f32 %v6893, %v6896
        %v6930 = vxor.u32 %v6898, 2147483648
        %v6931 = vxor.u32 %v6899, 2147483648
        %v6932 = vxor.u32 %v6900, 2147483648
        %v6933 = vxor.u32 %v6901, 2147483648
        %v6934 = vxor.u32 %v6902, 2147483648
        %v6935 = vxor.u32 %v6903, 2147483648
        %v6936 = vxor.u32 %v6904, 2147483648
        %v6937 = vxor.u32 %v6905, 2147483648
        %v6938 = vxor.u32 %v6906, 2147483648
        %v6939 = vxor.u32 %v6907, 2147483648
        %v6940 = vxor.u32 %v6908, 2147483648
        %v6941 = vxor.u32 %v6909, 2147483648
        %v6942 = vxor.u32 %v6910, 2147483648
        %v6943 = vxor.u32 %v6911, 2147483648
        %v6944 = vxor.u32 %v6912, 2147483648
        %v6945 = vxor.u32 %v6913, 2147483648
        %v6946 = vxor.u32 %v6914, 2147483648
        %v6947 = vxor.u32 %v6915, 2147483648
        %v6948 = vxor.u32 %v6916, 2147483648
        %v6949 = vxor.u32 %v6917, 2147483648
        %v6950 = vxor.u32 %v6918, 2147483648
        %v6951 = vxor.u32 %v6919, 2147483648
        %v6952 = vxor.u32 %v6920, 2147483648
        %v6953 = vxor.u32 %v6921, 2147483648
        %v6954 = vxor.u32 %v6922, 2147483648
        %v6955 = vxor.u32 %v6923, 2147483648
        %v6956 = vxor.u32 %v6924, 2147483648
        %v6957 = vxor.u32 %v6925, 2147483648
        %v6958 = vxor.u32 %v6926, 2147483648
        %v6959 = vxor.u32 %v6927, 2147483648
        %v6960 = vxor.u32 %v6928, 2147483648
        %v6961 = vxor.u32 %v6929, 2147483648
        %v6962 = vmul.f32 %v6930, 1.442695
        %v6963 = vpow.pop %v6962
        %v6964 = vmul.f32 %v6931, 1.442695
        %v6965 = vpow.pop %v6964
        %v6966 = vmul.f32 %v6932, 1.442695
        %v6967 = vpow.pop %v6966
        %v6968 = vmul.f32 %v6933, 1.442695
        %v6969 = vpow.pop %v6968
        %v6970 = vmul.f32 %v6934, 1.442695
        %v6971 = vpow.pop %v6970
        %v6972 = vmul.f32 %v6935, 1.442695
        %v6973 = vpow.pop %v6972
        %v6974 = vmul.f32 %v6936, 1.442695
        %v6975 = vpow.pop %v6974
        %v6976 = vmul.f32 %v6937, 1.442695
        %v6977 = vpow.pop %v6976
        %v6978 = vmul.f32 %v6938, 1.442695
        %v6979 = vpow.pop %v6978
        %v6980 = vmul.f32 %v6939, 1.442695
        %v6981 = vpow.pop %v6980
        %v6982 = vmul.f32 %v6940, 1.442695
        %v6983 = vpow.pop %v6982
        %v6984 = vmul.f32 %v6941, 1.442695
        %v6985 = vpow.pop %v6984
        %v6986 = vmul.f32 %v6942, 1.442695
        %v6987 = vpow.pop %v6986
        %v6988 = vmul.f32 %v6943, 1.442695
        %v6989 = vpow.pop %v6988
        %v6990 = vmul.f32 %v6944, 1.442695
        %v6991 = vpow.pop %v6990
        %v6992 = vmul.f32 %v6945, 1.442695
        %v6993 = vpow.pop %v6992
        %v6994 = vmul.f32 %v6946, 1.442695
        %v6995 = vpow.pop %v6994
        %v6996 = vmul.f32 %v6947, 1.442695
        %v6997 = vpow.pop %v6996
        %v6998 = vmul.f32 %v6948, 1.442695
        %v6999 = vpow.pop %v6998
        %v7000 = vmul.f32 %v6949, 1.442695
        %v7001 = vpow.pop %v7000
        %v7002 = vmul.f32 %v6950, 1.442695
        %v7003 = vpow.pop %v7002
        %v7004 = vmul.f32 %v6951, 1.442695
        %v7005 = vpow.pop %v7004
        %v7006 = vmul.f32 %v6952, 1.442695
        %v7007 = vpow.pop %v7006
        %v7008 = vmul.f32 %v6953, 1.442695
        %v7009 = vpow.pop %v7008
        %v7010 = vmul.f32 %v6954, 1.442695
        %v7011 = vpow.pop %v7010
        %v7012 = vmul.f32 %v6955, 1.442695
        %v7013 = vpow.pop %v7012
        %v7014 = vmul.f32 %v6956, 1.442695
        %v7015 = vpow.pop %v7014
        %v7016 = vmul.f32 %v6957, 1.442695
        %v7017 = vpow.pop %v7016
        %v7018 = vmul.f32 %v6958, 1.442695
        %v7019 = vpow.pop %v7018
        %v7020 = vmul.f32 %v6959, 1.442695
        %v7021 = vpow.pop %v7020
        %v7022 = vmul.f32 %v6960, 1.442695
        %v7023 = vpow.pop %v7022
        %v7024 = vmul.f32 %v6961, 1.442695
        %v7025 = vpow.pop %v7024
        %v7026 = vadd.f32 %v6963, 1.0
        %v7027 = vadd.f32 %v6965, 1.0
        %v7028 = vadd.f32 %v6967, 1.0
        %v7029 = vadd.f32 %v6969, 1.0
        %v7030 = vadd.f32 %v6971, 1.0
        %v7031 = vadd.f32 %v6973, 1.0
        %v7032 = vadd.f32 %v6975, 1.0
        %v7033 = vadd.f32 %v6977, 1.0
        %v7034 = vadd.f32 %v6979, 1.0
        %v7035 = vadd.f32 %v6981, 1.0
        %v7036 = vadd.f32 %v6983, 1.0
        %v7037 = vadd.f32 %v6985, 1.0
        %v7038 = vadd.f32 %v6987, 1.0
        %v7039 = vadd.f32 %v6989, 1.0
        %v7040 = vadd.f32 %v6991, 1.0
        %v7041 = vadd.f32 %v6993, 1.0
        %v7042 = vadd.f32 %v6995, 1.0
        %v7043 = vadd.f32 %v6997, 1.0
        %v7044 = vadd.f32 %v6999, 1.0
        %v7045 = vadd.f32 %v7001, 1.0
        %v7046 = vadd.f32 %v7003, 1.0
        %v7047 = vadd.f32 %v7005, 1.0
        %v7048 = vadd.f32 %v7007, 1.0
        %v7049 = vadd.f32 %v7009, 1.0
        %v7050 = vadd.f32 %v7011, 1.0
        %v7051 = vadd.f32 %v7013, 1.0
        %v7052 = vadd.f32 %v7015, 1.0
        %v7053 = vadd.f32 %v7017, 1.0
        %v7054 = vadd.f32 %v7019, 1.0
        %v7055 = vadd.f32 %v7021, 1.0
        %v7056 = vadd.f32 %v7023, 1.0
        %v7057 = vadd.f32 %v7025, 1.0
        %v7058 = vrcp.pop %v7026
        %v7059 = vmul.f32 %v7026, %v7058
        %v7060 = vsub.f32 1.0, %v7059
        %v7061 = vmul.f32 %v7058, %v7060
        %v7062 = vadd.f32 %v7058, %v7061
        %vm7063 = vweird.f32 %v7026
        %vm7064 = vweird.f32 %v7058
        %vm7065 = vmor %vm7063, %vm7064
        %v7066 = vsel %vm7065, %v7058, %v7062
        %v7067 = vand.u32 2147483647, %v7026
        %vm7068 = vcmp.eq.f32.partialorder %v7067, 8.507059e+37
        %v7069 = vand.u32 %v7026, 2147483648
        %v7070 = vor.u32 1.1754944e-38, %v7069
        %v7071 = vsel %vm7068, %v7070, %v7066
        %v7072 = vmul.f32 1.0, %v7071
        %v7073 = vrcp.pop %v7027
        %v7074 = vmul.f32 %v7027, %v7073
        %v7075 = vsub.f32 1.0, %v7074
        %v7076 = vmul.f32 %v7073, %v7075
        %v7077 = vadd.f32 %v7073, %v7076
        %vm7078 = vweird.f32 %v7027
        %vm7079 = vweird.f32 %v7073
        %vm7080 = vmor %vm7078, %vm7079
        %v7081 = vsel %vm7080, %v7073, %v7077
        %v7082 = vand.u32 2147483647, %v7027
        %vm7083 = vcmp.eq.f32.partialorder %v7082, 8.507059e+37
        %v7084 = vand.u32 %v7027, 2147483648
        %v7085 = vor.u32 1.1754944e-38, %v7084
        %v7086 = vsel %vm7083, %v7085, %v7081
        %v7087 = vmul.f32 1.0, %v7086
        %v7088 = vrcp.pop %v7028
        %v7089 = vmul.f32 %v7028, %v7088
        %v7090 = vsub.f32 1.0, %v7089
        %v7091 = vmul.f32 %v7088, %v7090
        %v7092 = vadd.f32 %v7088, %v7091
        %vm7093 = vweird.f32 %v7028
        %vm7094 = vweird.f32 %v7088
        %vm7095 = vmor %vm7093, %vm7094
        %v7096 = vsel %vm7095, %v7088, %v7092
        %v7097 = vand.u32 2147483647, %v7028
        %vm7098 = vcmp.eq.f32.partialorder %v7097, 8.507059e+37
        %v7099 = vand.u32 %v7028, 2147483648
        %v7100 = vor.u32 1.1754944e-38, %v7099
        %v7101 = vsel %vm7098, %v7100, %v7096
        %v7102 = vmul.f32 1.0, %v7101
        %v7103 = vrcp.pop %v7029
        %v7104 = vmul.f32 %v7029, %v7103
        %v7105 = vsub.f32 1.0, %v7104
        %v7106 = vmul.f32 %v7103, %v7105
        %v7107 = vadd.f32 %v7103, %v7106
        %vm7108 = vweird.f32 %v7029
        %vm7109 = vweird.f32 %v7103
        %vm7110 = vmor %vm7108, %vm7109
        %v7111 = vsel %vm7110, %v7103, %v7107
        %v7112 = vand.u32 2147483647, %v7029
        %vm7113 = vcmp.eq.f32.partialorder %v7112, 8.507059e+37
        %v7114 = vand.u32 %v7029, 2147483648
        %v7115 = vor.u32 1.1754944e-38, %v7114
        %v7116 = vsel %vm7113, %v7115, %v7111
        %v7117 = vmul.f32 1.0, %v7116
        %v7118 = vrcp.pop %v7030
        %v7119 = vmul.f32 %v7030, %v7118
        %v7120 = vsub.f32 1.0, %v7119
        %v7121 = vmul.f32 %v7118, %v7120
        %v7122 = vadd.f32 %v7118, %v7121
        %vm7123 = vweird.f32 %v7030
        %vm7124 = vweird.f32 %v7118
        %vm7125 = vmor %vm7123, %vm7124
        %v7126 = vsel %vm7125, %v7118, %v7122
        %v7127 = vand.u32 2147483647, %v7030
        %vm7128 = vcmp.eq.f32.partialorder %v7127, 8.507059e+37
        %v7129 = vand.u32 %v7030, 2147483648
        %v7130 = vor.u32 1.1754944e-38, %v7129
        %v7131 = vsel %vm7128, %v7130, %v7126
        %v7132 = vmul.f32 1.0, %v7131
        %v7133 = vrcp.pop %v7031
        %v7134 = vmul.f32 %v7031, %v7133
        %v7135 = vsub.f32 1.0, %v7134
        %v7136 = vmul.f32 %v7133, %v7135
        %v7137 = vadd.f32 %v7133, %v7136
        %vm7138 = vweird.f32 %v7031
        %vm7139 = vweird.f32 %v7133
        %vm7140 = vmor %vm7138, %vm7139
        %v7141 = vsel %vm7140, %v7133, %v7137
        %v7142 = vand.u32 2147483647, %v7031
        %vm7143 = vcmp.eq.f32.partialorder %v7142, 8.507059e+37
        %v7144 = vand.u32 %v7031, 2147483648
        %v7145 = vor.u32 1.1754944e-38, %v7144
        %v7146 = vsel %vm7143, %v7145, %v7141
        %v7147 = vmul.f32 1.0, %v7146
        %v7148 = vrcp.pop %v7032
        %v7149 = vmul.f32 %v7032, %v7148
        %v7150 = vsub.f32 1.0, %v7149
        %v7151 = vmul.f32 %v7148, %v7150
        %v7152 = vadd.f32 %v7148, %v7151
        %vm7153 = vweird.f32 %v7032
        %vm7154 = vweird.f32 %v7148
        %vm7155 = vmor %vm7153, %vm7154
        %v7156 = vsel %vm7155, %v7148, %v7152
        %v7157 = vand.u32 2147483647, %v7032
        %vm7158 = vcmp.eq.f32.partialorder %v7157, 8.507059e+37
        %v7159 = vand.u32 %v7032, 2147483648
        %v7160 = vor.u32 1.1754944e-38, %v7159
        %v7161 = vsel %vm7158, %v7160, %v7156
        %v7162 = vmul.f32 1.0, %v7161
        %v7163 = vrcp.pop %v7033
        %v7164 = vmul.f32 %v7033, %v7163
        %v7165 = vsub.f32 1.0, %v7164
        %v7166 = vmul.f32 %v7163, %v7165
        %v7167 = vadd.f32 %v7163, %v7166
        %vm7168 = vweird.f32 %v7033
        %vm7169 = vweird.f32 %v7163
        %vm7170 = vmor %vm7168, %vm7169
        %v7171 = vsel %vm7170, %v7163, %v7167
        %v7172 = vand.u32 2147483647, %v7033
        %vm7173 = vcmp.eq.f32.partialorder %v7172, 8.507059e+37
        %v7174 = vand.u32 %v7033, 2147483648
        %v7175 = vor.u32 1.1754944e-38, %v7174
        %v7176 = vsel %vm7173, %v7175, %v7171
        %v7177 = vmul.f32 1.0, %v7176
        %v7178 = vrcp.pop %v7034
        %v7179 = vmul.f32 %v7034, %v7178
        %v7180 = vsub.f32 1.0, %v7179
        %v7181 = vmul.f32 %v7178, %v7180
        %v7182 = vadd.f32 %v7178, %v7181
        %vm7183 = vweird.f32 %v7034
        %vm7184 = vweird.f32 %v7178
        %vm7185 = vmor %vm7183, %vm7184
        %v7186 = vsel %vm7185, %v7178, %v7182
        %v7187 = vand.u32 2147483647, %v7034
        %vm7188 = vcmp.eq.f32.partialorder %v7187, 8.507059e+37
        %v7189 = vand.u32 %v7034, 2147483648
        %v7190 = vor.u32 1.1754944e-38, %v7189
        %v7191 = vsel %vm7188, %v7190, %v7186
        %v7192 = vmul.f32 1.0, %v7191
        %v7193 = vrcp.pop %v7035
        %v7194 = vmul.f32 %v7035, %v7193
        %v7195 = vsub.f32 1.0, %v7194
        %v7196 = vmul.f32 %v7193, %v7195
        %v7197 = vadd.f32 %v7193, %v7196
        %vm7198 = vweird.f32 %v7035
        %vm7199 = vweird.f32 %v7193
        %vm7200 = vmor %vm7198, %vm7199
        %v7201 = vsel %vm7200, %v7193, %v7197
        %v7202 = vand.u32 2147483647, %v7035
        %vm7203 = vcmp.eq.f32.partialorder %v7202, 8.507059e+37
        %v7204 = vand.u32 %v7035, 2147483648
        %v7205 = vor.u32 1.1754944e-38, %v7204
        %v7206 = vsel %vm7203, %v7205, %v7201
        %v7207 = vmul.f32 1.0, %v7206
        %v7208 = vrcp.pop %v7036
        %v7209 = vmul.f32 %v7036, %v7208
        %v7210 = vsub.f32 1.0, %v7209
        %v7211 = vmul.f32 %v7208, %v7210
        %v7212 = vadd.f32 %v7208, %v7211
        %vm7213 = vweird.f32 %v7036
        %vm7214 = vweird.f32 %v7208
        %vm7215 = vmor %vm7213, %vm7214
        %v7216 = vsel %vm7215, %v7208, %v7212
        %v7217 = vand.u32 2147483647, %v7036
        %vm7218 = vcmp.eq.f32.partialorder %v7217, 8.507059e+37
        %v7219 = vand.u32 %v7036, 2147483648
        %v7220 = vor.u32 1.1754944e-38, %v7219
        %v7221 = vsel %vm7218, %v7220, %v7216
        %v7222 = vmul.f32 1.0, %v7221
        %v7223 = vrcp.pop %v7037
        %v7224 = vmul.f32 %v7037, %v7223
        %v7225 = vsub.f32 1.0, %v7224
        %v7226 = vmul.f32 %v7223, %v7225
        %v7227 = vadd.f32 %v7223, %v7226
        %vm7228 = vweird.f32 %v7037
        %vm7229 = vweird.f32 %v7223
        %vm7230 = vmor %vm7228, %vm7229
        %v7231 = vsel %vm7230, %v7223, %v7227
        %v7232 = vand.u32 2147483647, %v7037
        %vm7233 = vcmp.eq.f32.partialorder %v7232, 8.507059e+37
        %v7234 = vand.u32 %v7037, 2147483648
        %v7235 = vor.u32 1.1754944e-38, %v7234
        %v7236 = vsel %vm7233, %v7235, %v7231
        %v7237 = vmul.f32 1.0, %v7236
        %v7238 = vrcp.pop %v7038
        %v7239 = vmul.f32 %v7038, %v7238
        %v7240 = vsub.f32 1.0, %v7239
        %v7241 = vmul.f32 %v7238, %v7240
        %v7242 = vadd.f32 %v7238, %v7241
        %vm7243 = vweird.f32 %v7038
        %vm7244 = vweird.f32 %v7238
        %vm7245 = vmor %vm7243, %vm7244
        %v7246 = vsel %vm7245, %v7238, %v7242
        %v7247 = vand.u32 2147483647, %v7038
        %vm7248 = vcmp.eq.f32.partialorder %v7247, 8.507059e+37
        %v7249 = vand.u32 %v7038, 2147483648
        %v7250 = vor.u32 1.1754944e-38, %v7249
        %v7251 = vsel %vm7248, %v7250, %v7246
        %v7252 = vmul.f32 1.0, %v7251
        %v7253 = vrcp.pop %v7039
        %v7254 = vmul.f32 %v7039, %v7253
        %v7255 = vsub.f32 1.0, %v7254
        %v7256 = vmul.f32 %v7253, %v7255
        %v7257 = vadd.f32 %v7253, %v7256
        %vm7258 = vweird.f32 %v7039
        %vm7259 = vweird.f32 %v7253
        %vm7260 = vmor %vm7258, %vm7259
        %v7261 = vsel %vm7260, %v7253, %v7257
        %v7262 = vand.u32 2147483647, %v7039
        %vm7263 = vcmp.eq.f32.partialorder %v7262, 8.507059e+37
        %v7264 = vand.u32 %v7039, 2147483648
        %v7265 = vor.u32 1.1754944e-38, %v7264
        %v7266 = vsel %vm7263, %v7265, %v7261
        %v7267 = vmul.f32 1.0, %v7266
        %v7268 = vrcp.pop %v7040
        %v7269 = vmul.f32 %v7040, %v7268
        %v7270 = vsub.f32 1.0, %v7269
        %v7271 = vmul.f32 %v7268, %v7270
        %v7272 = vadd.f32 %v7268, %v7271
        %vm7273 = vweird.f32 %v7040
        %vm7274 = vweird.f32 %v7268
        %vm7275 = vmor %vm7273, %vm7274
        %v7276 = vsel %vm7275, %v7268, %v7272
        %v7277 = vand.u32 2147483647, %v7040
        %vm7278 = vcmp.eq.f32.partialorder %v7277, 8.507059e+37
        %v7279 = vand.u32 %v7040, 2147483648
        %v7280 = vor.u32 1.1754944e-38, %v7279
        %v7281 = vsel %vm7278, %v7280, %v7276
        %v7282 = vmul.f32 1.0, %v7281
        %v7283 = vrcp.pop %v7041
        %v7284 = vmul.f32 %v7041, %v7283
        %v7285 = vsub.f32 1.0, %v7284
        %v7286 = vmul.f32 %v7283, %v7285
        %v7287 = vadd.f32 %v7283, %v7286
        %vm7288 = vweird.f32 %v7041
        %vm7289 = vweird.f32 %v7283
        %vm7290 = vmor %vm7288, %vm7289
        %v7291 = vsel %vm7290, %v7283, %v7287
        %v7292 = vand.u32 2147483647, %v7041
        %vm7293 = vcmp.eq.f32.partialorder %v7292, 8.507059e+37
        %v7294 = vand.u32 %v7041, 2147483648
        %v7295 = vor.u32 1.1754944e-38, %v7294
        %v7296 = vsel %vm7293, %v7295, %v7291
        %v7297 = vmul.f32 1.0, %v7296
        %v7298 = vrcp.pop %v7042
        %v7299 = vmul.f32 %v7042, %v7298
        %v7300 = vsub.f32 1.0, %v7299
        %v7301 = vmul.f32 %v7298, %v7300
        %v7302 = vadd.f32 %v7298, %v7301
        %vm7303 = vweird.f32 %v7042
        %vm7304 = vweird.f32 %v7298
        %vm7305 = vmor %vm7303, %vm7304
        %v7306 = vsel %vm7305, %v7298, %v7302
        %v7307 = vand.u32 2147483647, %v7042
        %vm7308 = vcmp.eq.f32.partialorder %v7307, 8.507059e+37
        %v7309 = vand.u32 %v7042, 2147483648
        %v7310 = vor.u32 1.1754944e-38, %v7309
        %v7311 = vsel %vm7308, %v7310, %v7306
        %v7312 = vmul.f32 1.0, %v7311
        %v7313 = vrcp.pop %v7043
        %v7314 = vmul.f32 %v7043, %v7313
        %v7315 = vsub.f32 1.0, %v7314
        %v7316 = vmul.f32 %v7313, %v7315
        %v7317 = vadd.f32 %v7313, %v7316
        %vm7318 = vweird.f32 %v7043
        %vm7319 = vweird.f32 %v7313
        %vm7320 = vmor %vm7318, %vm7319
        %v7321 = vsel %vm7320, %v7313, %v7317
        %v7322 = vand.u32 2147483647, %v7043
        %vm7323 = vcmp.eq.f32.partialorder %v7322, 8.507059e+37
        %v7324 = vand.u32 %v7043, 2147483648
        %v7325 = vor.u32 1.1754944e-38, %v7324
        %v7326 = vsel %vm7323, %v7325, %v7321
        %v7327 = vmul.f32 1.0, %v7326
        %v7328 = vrcp.pop %v7044
        %v7329 = vmul.f32 %v7044, %v7328
        %v7330 = vsub.f32 1.0, %v7329
        %v7331 = vmul.f32 %v7328, %v7330
        %v7332 = vadd.f32 %v7328, %v7331
        %vm7333 = vweird.f32 %v7044
        %vm7334 = vweird.f32 %v7328
        %vm7335 = vmor %vm7333, %vm7334
        %v7336 = vsel %vm7335, %v7328, %v7332
        %v7337 = vand.u32 2147483647, %v7044
        %vm7338 = vcmp.eq.f32.partialorder %v7337, 8.507059e+37
        %v7339 = vand.u32 %v7044, 2147483648
        %v7340 = vor.u32 1.1754944e-38, %v7339
        %v7341 = vsel %vm7338, %v7340, %v7336
        %v7342 = vmul.f32 1.0, %v7341
        %v7343 = vrcp.pop %v7045
        %v7344 = vmul.f32 %v7045, %v7343
        %v7345 = vsub.f32 1.0, %v7344
        %v7346 = vmul.f32 %v7343, %v7345
        %v7347 = vadd.f32 %v7343, %v7346
        %vm7348 = vweird.f32 %v7045
        %vm7349 = vweird.f32 %v7343
        %vm7350 = vmor %vm7348, %vm7349
        %v7351 = vsel %vm7350, %v7343, %v7347
        %v7352 = vand.u32 2147483647, %v7045
        %vm7353 = vcmp.eq.f32.partialorder %v7352, 8.507059e+37
        %v7354 = vand.u32 %v7045, 2147483648
        %v7355 = vor.u32 1.1754944e-38, %v7354
        %v7356 = vsel %vm7353, %v7355, %v7351
        %v7357 = vmul.f32 1.0, %v7356
        %v7358 = vrcp.pop %v7046
        %v7359 = vmul.f32 %v7046, %v7358
        %v7360 = vsub.f32 1.0, %v7359
        %v7361 = vmul.f32 %v7358, %v7360
        %v7362 = vadd.f32 %v7358, %v7361
        %vm7363 = vweird.f32 %v7046
        %vm7364 = vweird.f32 %v7358
        %vm7365 = vmor %vm7363, %vm7364
        %v7366 = vsel %vm7365, %v7358, %v7362
        %v7367 = vand.u32 2147483647, %v7046
        %vm7368 = vcmp.eq.f32.partialorder %v7367, 8.507059e+37
        %v7369 = vand.u32 %v7046, 2147483648
        %v7370 = vor.u32 1.1754944e-38, %v7369
        %v7371 = vsel %vm7368, %v7370, %v7366
        %v7372 = vmul.f32 1.0, %v7371
        %v7373 = vrcp.pop %v7047
        %v7374 = vmul.f32 %v7047, %v7373
        %v7375 = vsub.f32 1.0, %v7374
        %v7376 = vmul.f32 %v7373, %v7375
        %v7377 = vadd.f32 %v7373, %v7376
        %vm7378 = vweird.f32 %v7047
        %vm7379 = vweird.f32 %v7373
        %vm7380 = vmor %vm7378, %vm7379
        %v7381 = vsel %vm7380, %v7373, %v7377
        %v7382 = vand.u32 2147483647, %v7047
        %vm7383 = vcmp.eq.f32.partialorder %v7382, 8.507059e+37
        %v7384 = vand.u32 %v7047, 2147483648
        %v7385 = vor.u32 1.1754944e-38, %v7384
        %v7386 = vsel %vm7383, %v7385, %v7381
        %v7387 = vmul.f32 1.0, %v7386
        %v7388 = vrcp.pop %v7048
        %v7389 = vmul.f32 %v7048, %v7388
        %v7390 = vsub.f32 1.0, %v7389
        %v7391 = vmul.f32 %v7388, %v7390
        %v7392 = vadd.f32 %v7388, %v7391
        %vm7393 = vweird.f32 %v7048
        %vm7394 = vweird.f32 %v7388
        %vm7395 = vmor %vm7393, %vm7394
        %v7396 = vsel %vm7395, %v7388, %v7392
        %v7397 = vand.u32 2147483647, %v7048
        %vm7398 = vcmp.eq.f32.partialorder %v7397, 8.507059e+37
        %v7399 = vand.u32 %v7048, 2147483648
        %v7400 = vor.u32 1.1754944e-38, %v7399
        %v7401 = vsel %vm7398, %v7400, %v7396
        %v7402 = vmul.f32 1.0, %v7401
        %v7403 = vrcp.pop %v7049
        %v7404 = vmul.f32 %v7049, %v7403
        %v7405 = vsub.f32 1.0, %v7404
        %v7406 = vmul.f32 %v7403, %v7405
        %v7407 = vadd.f32 %v7403, %v7406
        %vm7408 = vweird.f32 %v7049
        %vm7409 = vweird.f32 %v7403
        %vm7410 = vmor %vm7408, %vm7409
        %v7411 = vsel %vm7410, %v7403, %v7407
        %v7412 = vand.u32 2147483647, %v7049
        %vm7413 = vcmp.eq.f32.partialorder %v7412, 8.507059e+37
        %v7414 = vand.u32 %v7049, 2147483648
        %v7415 = vor.u32 1.1754944e-38, %v7414
        %v7416 = vsel %vm7413, %v7415, %v7411
        %v7417 = vmul.f32 1.0, %v7416
        %v7418 = vrcp.pop %v7050
        %v7419 = vmul.f32 %v7050, %v7418
        %v7420 = vsub.f32 1.0, %v7419
        %v7421 = vmul.f32 %v7418, %v7420
        %v7422 = vadd.f32 %v7418, %v7421
        %vm7423 = vweird.f32 %v7050
        %vm7424 = vweird.f32 %v7418
        %vm7425 = vmor %vm7423, %vm7424
        %v7426 = vsel %vm7425, %v7418, %v7422
        %v7427 = vand.u32 2147483647, %v7050
        %vm7428 = vcmp.eq.f32.partialorder %v7427, 8.507059e+37
        %v7429 = vand.u32 %v7050, 2147483648
        %v7430 = vor.u32 1.1754944e-38, %v7429
        %v7431 = vsel %vm7428, %v7430, %v7426
        %v7432 = vmul.f32 1.0, %v7431
        %v7433 = vrcp.pop %v7051
        %v7434 = vmul.f32 %v7051, %v7433
        %v7435 = vsub.f32 1.0, %v7434
        %v7436 = vmul.f32 %v7433, %v7435
        %v7437 = vadd.f32 %v7433, %v7436
        %vm7438 = vweird.f32 %v7051
        %vm7439 = vweird.f32 %v7433
        %vm7440 = vmor %vm7438, %vm7439
        %v7441 = vsel %vm7440, %v7433, %v7437
        %v7442 = vand.u32 2147483647, %v7051
        %vm7443 = vcmp.eq.f32.partialorder %v7442, 8.507059e+37
        %v7444 = vand.u32 %v7051, 2147483648
        %v7445 = vor.u32 1.1754944e-38, %v7444
        %v7446 = vsel %vm7443, %v7445, %v7441
        %v7447 = vmul.f32 1.0, %v7446
        %v7448 = vrcp.pop %v7052
        %v7449 = vmul.f32 %v7052, %v7448
        %v7450 = vsub.f32 1.0, %v7449
        %v7451 = vmul.f32 %v7448, %v7450
        %v7452 = vadd.f32 %v7448, %v7451
        %vm7453 = vweird.f32 %v7052
        %vm7454 = vweird.f32 %v7448
        %vm7455 = vmor %vm7453, %vm7454
        %v7456 = vsel %vm7455, %v7448, %v7452
        %v7457 = vand.u32 2147483647, %v7052
        %vm7458 = vcmp.eq.f32.partialorder %v7457, 8.507059e+37
        %v7459 = vand.u32 %v7052, 2147483648
        %v7460 = vor.u32 1.1754944e-38, %v7459
        %v7461 = vsel %vm7458, %v7460, %v7456
        %v7462 = vmul.f32 1.0, %v7461
        %v7463 = vrcp.pop %v7053
        %v7464 = vmul.f32 %v7053, %v7463
        %v7465 = vsub.f32 1.0, %v7464
        %v7466 = vmul.f32 %v7463, %v7465
        %v7467 = vadd.f32 %v7463, %v7466
        %vm7468 = vweird.f32 %v7053
        %vm7469 = vweird.f32 %v7463
        %vm7470 = vmor %vm7468, %vm7469
        %v7471 = vsel %vm7470, %v7463, %v7467
        %v7472 = vand.u32 2147483647, %v7053
        %vm7473 = vcmp.eq.f32.partialorder %v7472, 8.507059e+37
        %v7474 = vand.u32 %v7053, 2147483648
        %v7475 = vor.u32 1.1754944e-38, %v7474
        %v7476 = vsel %vm7473, %v7475, %v7471
        %v7477 = vmul.f32 1.0, %v7476
        %v7478 = vrcp.pop %v7054
        %v7479 = vmul.f32 %v7054, %v7478
        %v7480 = vsub.f32 1.0, %v7479
        %v7481 = vmul.f32 %v7478, %v7480
        %v7482 = vadd.f32 %v7478, %v7481
        %vm7483 = vweird.f32 %v7054
        %vm7484 = vweird.f32 %v7478
        %vm7485 = vmor %vm7483, %vm7484
        %v7486 = vsel %vm7485, %v7478, %v7482
        %v7487 = vand.u32 2147483647, %v7054
        %vm7488 = vcmp.eq.f32.partialorder %v7487, 8.507059e+37
        %v7489 = vand.u32 %v7054, 2147483648
        %v7490 = vor.u32 1.1754944e-38, %v7489
        %v7491 = vsel %vm7488, %v7490, %v7486
        %v7492 = vmul.f32 1.0, %v7491
        %v7493 = vrcp.pop %v7055
        %v7494 = vmul.f32 %v7055, %v7493
        %v7495 = vsub.f32 1.0, %v7494
        %v7496 = vmul.f32 %v7493, %v7495
        %v7497 = vadd.f32 %v7493, %v7496
        %vm7498 = vweird.f32 %v7055
        %vm7499 = vweird.f32 %v7493
        %vm7500 = vmor %vm7498, %vm7499
        %v7501 = vsel %vm7500, %v7493, %v7497
        %v7502 = vand.u32 2147483647, %v7055
        %vm7503 = vcmp.eq.f32.partialorder %v7502, 8.507059e+37
        %v7504 = vand.u32 %v7055, 2147483648
        %v7505 = vor.u32 1.1754944e-38, %v7504
        %v7506 = vsel %vm7503, %v7505, %v7501
        %v7507 = vmul.f32 1.0, %v7506
        %v7508 = vrcp.pop %v7056
        %v7509 = vmul.f32 %v7056, %v7508
        %v7510 = vsub.f32 1.0, %v7509
        %v7511 = vmul.f32 %v7508, %v7510
        %v7512 = vadd.f32 %v7508, %v7511
        %vm7513 = vweird.f32 %v7056
        %vm7514 = vweird.f32 %v7508
        %vm7515 = vmor %vm7513, %vm7514
        %v7516 = vsel %vm7515, %v7508, %v7512
        %v7517 = vand.u32 2147483647, %v7056
        %vm7518 = vcmp.eq.f32.partialorder %v7517, 8.507059e+37
        %v7519 = vand.u32 %v7056, 2147483648
        %v7520 = vor.u32 1.1754944e-38, %v7519
        %v7521 = vsel %vm7518, %v7520, %v7516
        %v7522 = vmul.f32 1.0, %v7521
        %v7523 = vrcp.pop %v7057
        %v7524 = vmul.f32 %v7057, %v7523
        %v7525 = vsub.f32 1.0, %v7524
        %v7526 = vmul.f32 %v7523, %v7525
        %v7527 = vadd.f32 %v7523, %v7526
        %vm7528 = vweird.f32 %v7057
        %vm7529 = vweird.f32 %v7523
        %vm7530 = vmor %vm7528, %vm7529
        %v7531 = vsel %vm7530, %v7523, %v7527
        %v7532 = vand.u32 2147483647, %v7057
        %vm7533 = vcmp.eq.f32.partialorder %v7532, 8.507059e+37
        %v7534 = vand.u32 %v7057, 2147483648
        %v7535 = vor.u32 1.1754944e-38, %v7534
        %v7536 = vsel %vm7533, %v7535, %v7531
        %v7537 = vmul.f32 1.0, %v7536
        %v7538 = vtanh.pop %v6898
        %v7539 = vtanh.pop %v6899
        %v7540 = vtanh.pop %v6900
        %v7541 = vtanh.pop %v6901
        %v7542 = vtanh.pop %v6902
        %v7543 = vtanh.pop %v6903
        %v7544 = vtanh.pop %v6904
        %v7545 = vtanh.pop %v6905
        %v7546 = vtanh.pop %v6906
        %v7547 = vtanh.pop %v6907
        %v7548 = vtanh.pop %v6908
        %v7549 = vtanh.pop %v6909
        %v7550 = vtanh.pop %v6910
        %v7551 = vtanh.pop %v6911
        %v7552 = vtanh.pop %v6912
        %v7553 = vtanh.pop %v6913
        %v7554 = vtanh.pop %v6914
        %v7555 = vtanh.pop %v6915
        %v7556 = vtanh.pop %v6916
        %v7557 = vtanh.pop %v6917
        %v7558 = vtanh.pop %v6918
        %v7559 = vtanh.pop %v6919
        %v7560 = vtanh.pop %v6920
        %v7561 = vtanh.pop %v6921
        %v7562 = vtanh.pop %v6922
        %v7563 = vtanh.pop %v6923
        %v7564 = vtanh.pop %v6924
        %v7565 = vtanh.pop %v6925
        %v7566 = vtanh.pop %v6926
        %v7567 = vtanh.pop %v6927
        %v7568 = vtanh.pop %v6928
        %v7569 = vtanh.pop %v6929
        %7570 = vrot.lane.b32.xlu0 %v292, 96
        %v7571 = vpop.permute.xlu0 %7570
        %7572 = vrot.lane.b32.xlu0 %v293, 96
        %v7573 = vpop.permute.xlu0 %7572
        %7574 = vrot.lane.b32.xlu0 %v294, 96
        %v7575 = vpop.permute.xlu0 %7574
        %7576 = vrot.lane.b32.xlu0 %v295, 96
        %v7577 = vpop.permute.xlu0 %7576
        %7578 = vrot.lane.b32.xlu0 %v296, 96
        %v7579 = vpop.permute.xlu0 %7578
        %7580 = vrot.lane.b32.xlu0 %v297, 96
        %v7581 = vpop.permute.xlu0 %7580
        %7582 = vrot.lane.b32.xlu0 %v298, 96
        %v7583 = vpop.permute.xlu0 %7582
        %7584 = vrot.lane.b32.xlu0 %v299, 96
        %v7585 = vpop.permute.xlu0 %7584
        %7586 = vrot.lane.b32.xlu0 %v300, 96
        %v7587 = vpop.permute.xlu0 %7586
        %7588 = vrot.lane.b32.xlu0 %v301, 96
        %v7589 = vpop.permute.xlu0 %7588
        %7590 = vrot.lane.b32.xlu0 %v302, 96
        %v7591 = vpop.permute.xlu0 %7590
        %7592 = vrot.lane.b32.xlu0 %v303, 96
        %v7593 = vpop.permute.xlu0 %7592
        %7594 = vrot.lane.b32.xlu0 %v304, 96
        %v7595 = vpop.permute.xlu0 %7594
        %7596 = vrot.lane.b32.xlu0 %v305, 96
        %v7597 = vpop.permute.xlu0 %7596
        %7598 = vrot.lane.b32.xlu0 %v306, 96
        %v7599 = vpop.permute.xlu0 %7598
        %7600 = vrot.lane.b32.xlu0 %v307, 96
        %v7601 = vpop.permute.xlu0 %7600
        %7602 = vrot.lane.b32.xlu0 %v308, 96
        %v7603 = vpop.permute.xlu0 %7602
        %7604 = vrot.lane.b32.xlu0 %v309, 96
        %v7605 = vpop.permute.xlu0 %7604
        %7606 = vrot.lane.b32.xlu0 %v310, 96
        %v7607 = vpop.permute.xlu0 %7606
        %7608 = vrot.lane.b32.xlu0 %v311, 96
        %v7609 = vpop.permute.xlu0 %7608
        %7610 = vrot.lane.b32.xlu0 %v312, 96
        %v7611 = vpop.permute.xlu0 %7610
        %7612 = vrot.lane.b32.xlu0 %v313, 96
        %v7613 = vpop.permute.xlu0 %7612
        %7614 = vrot.lane.b32.xlu0 %v314, 96
        %v7615 = vpop.permute.xlu0 %7614
        %7616 = vrot.lane.b32.xlu0 %v315, 96
        %v7617 = vpop.permute.xlu0 %7616
        %7618 = vrot.lane.b32.xlu0 %v316, 96
        %v7619 = vpop.permute.xlu0 %7618
        %7620 = vrot.lane.b32.xlu0 %v317, 96
        %v7621 = vpop.permute.xlu0 %7620
        %7622 = vrot.lane.b32.xlu0 %v318, 96
        %v7623 = vpop.permute.xlu0 %7622
        %7624 = vrot.lane.b32.xlu0 %v319, 96
        %v7625 = vpop.permute.xlu0 %7624
        %7626 = vrot.lane.b32.xlu0 %v320, 96
        %v7627 = vpop.permute.xlu0 %7626
        %7628 = vrot.lane.b32.xlu0 %v321, 96
        %v7629 = vpop.permute.xlu0 %7628
        %7630 = vrot.lane.b32.xlu0 %v322, 96
        %v7631 = vpop.permute.xlu0 %7630
        %7632 = vrot.lane.b32.xlu0 %v323, 96
        %v7633 = vpop.permute.xlu0 %7632
        %v7666 = vmul.f32 %v7072, %v7571
        %v7667 = vmul.f32 %v7087, %v7573
        %v7668 = vmul.f32 %v7102, %v7575
        %v7669 = vmul.f32 %v7117, %v7577
        %v7670 = vmul.f32 %v7132, %v7579
        %v7671 = vmul.f32 %v7147, %v7581
        %v7672 = vmul.f32 %v7162, %v7583
        %v7673 = vmul.f32 %v7177, %v7585
        %v7674 = vmul.f32 %v7192, %v7587
        %v7675 = vmul.f32 %v7207, %v7589
        %v7676 = vmul.f32 %v7222, %v7591
        %v7677 = vmul.f32 %v7237, %v7593
        %v7678 = vmul.f32 %v7252, %v7595
        %v7679 = vmul.f32 %v7267, %v7597
        %v7680 = vmul.f32 %v7282, %v7599
        %v7681 = vmul.f32 %v7297, %v7601
        %v7682 = vmul.f32 %v7312, %v7603
        %v7683 = vmul.f32 %v7327, %v7605
        %v7684 = vmul.f32 %v7342, %v7607
        %v7685 = vmul.f32 %v7357, %v7609
        %v7686 = vmul.f32 %v7372, %v7611
        %v7687 = vmul.f32 %v7387, %v7613
        %v7688 = vmul.f32 %v7402, %v7615
        %v7689 = vmul.f32 %v7417, %v7617
        %v7690 = vmul.f32 %v7432, %v7619
        %v7691 = vmul.f32 %v7447, %v7621
        %v7692 = vmul.f32 %v7462, %v7623
        %v7693 = vmul.f32 %v7477, %v7625
        %v7694 = vmul.f32 %v7492, %v7627
        %v7695 = vmul.f32 %v7507, %v7629
        %v7696 = vmul.f32 %v7522, %v7631
        %v7697 = vmul.f32 %v7537, %v7633
        %7730 = vrot.lane.b32.xlu0 %v7538, 32
        %v7731 = vpop.permute.xlu0 %7730
        %7732 = vrot.lane.b32.xlu0 %v7539, 32
        %v7733 = vpop.permute.xlu0 %7732
        %7734 = vrot.lane.b32.xlu0 %v7540, 32
        %v7735 = vpop.permute.xlu0 %7734
        %7736 = vrot.lane.b32.xlu0 %v7541, 32
        %v7737 = vpop.permute.xlu0 %7736
        %7738 = vrot.lane.b32.xlu0 %v7542, 32
        %v7739 = vpop.permute.xlu0 %7738
        %7740 = vrot.lane.b32.xlu0 %v7543, 32
        %v7741 = vpop.permute.xlu0 %7740
        %7742 = vrot.lane.b32.xlu0 %v7544, 32
        %v7743 = vpop.permute.xlu0 %7742
        %7744 = vrot.lane.b32.xlu0 %v7545, 32
        %v7745 = vpop.permute.xlu0 %7744
        %7746 = vrot.lane.b32.xlu0 %v7546, 32
        %v7747 = vpop.permute.xlu0 %7746
        %7748 = vrot.lane.b32.xlu0 %v7547, 32
        %v7749 = vpop.permute.xlu0 %7748
        %7750 = vrot.lane.b32.xlu0 %v7548, 32
        %v7751 = vpop.permute.xlu0 %7750
        %7752 = vrot.lane.b32.xlu0 %v7549, 32
        %v7753 = vpop.permute.xlu0 %7752
        %7754 = vrot.lane.b32.xlu0 %v7550, 32
        %v7755 = vpop.permute.xlu0 %7754
        %7756 = vrot.lane.b32.xlu0 %v7551, 32
        %v7757 = vpop.permute.xlu0 %7756
        %7758 = vrot.lane.b32.xlu0 %v7552, 32
        %v7759 = vpop.permute.xlu0 %7758
        %7760 = vrot.lane.b32.xlu0 %v7553, 32
        %v7761 = vpop.permute.xlu0 %7760
        %7762 = vrot.lane.b32.xlu0 %v7554, 32
        %v7763 = vpop.permute.xlu0 %7762
        %7764 = vrot.lane.b32.xlu0 %v7555, 32
        %v7765 = vpop.permute.xlu0 %7764
        %7766 = vrot.lane.b32.xlu0 %v7556, 32
        %v7767 = vpop.permute.xlu0 %7766
        %7768 = vrot.lane.b32.xlu0 %v7557, 32
        %v7769 = vpop.permute.xlu0 %7768
        %7770 = vrot.lane.b32.xlu0 %v7558, 32
        %v7771 = vpop.permute.xlu0 %7770
        %7772 = vrot.lane.b32.xlu0 %v7559, 32
        %v7773 = vpop.permute.xlu0 %7772
        %7774 = vrot.lane.b32.xlu0 %v7560, 32
        %v7775 = vpop.permute.xlu0 %7774
        %7776 = vrot.lane.b32.xlu0 %v7561, 32
        %v7777 = vpop.permute.xlu0 %7776
        %7778 = vrot.lane.b32.xlu0 %v7562, 32
        %v7779 = vpop.permute.xlu0 %7778
        %7780 = vrot.lane.b32.xlu0 %v7563, 32
        %v7781 = vpop.permute.xlu0 %7780
        %7782 = vrot.lane.b32.xlu0 %v7564, 32
        %v7783 = vpop.permute.xlu0 %7782
        %7784 = vrot.lane.b32.xlu0 %v7565, 32
        %v7785 = vpop.permute.xlu0 %7784
        %7786 = vrot.lane.b32.xlu0 %v7566, 32
        %v7787 = vpop.permute.xlu0 %7786
        %7788 = vrot.lane.b32.xlu0 %v7567, 32
        %v7789 = vpop.permute.xlu0 %7788
        %7790 = vrot.lane.b32.xlu0 %v7568, 32
        %v7791 = vpop.permute.xlu0 %7790
        %7792 = vrot.lane.b32.xlu0 %v7569, 32
        %v7793 = vpop.permute.xlu0 %7792
        %v7826 = vmul.f32 %v7072, %v7731
        %v7827 = vmul.f32 %v7087, %v7733
        %v7828 = vmul.f32 %v7102, %v7735
        %v7829 = vmul.f32 %v7117, %v7737
        %v7830 = vmul.f32 %v7132, %v7739
        %v7831 = vmul.f32 %v7147, %v7741
        %v7832 = vmul.f32 %v7162, %v7743
        %v7833 = vmul.f32 %v7177, %v7745
        %v7834 = vmul.f32 %v7192, %v7747
        %v7835 = vmul.f32 %v7207, %v7749
        %v7836 = vmul.f32 %v7222, %v7751
        %v7837 = vmul.f32 %v7237, %v7753
        %v7838 = vmul.f32 %v7252, %v7755
        %v7839 = vmul.f32 %v7267, %v7757
        %v7840 = vmul.f32 %v7282, %v7759
        %v7841 = vmul.f32 %v7297, %v7761
        %v7842 = vmul.f32 %v7312, %v7763
        %v7843 = vmul.f32 %v7327, %v7765
        %v7844 = vmul.f32 %v7342, %v7767
        %v7845 = vmul.f32 %v7357, %v7769
        %v7846 = vmul.f32 %v7372, %v7771
        %v7847 = vmul.f32 %v7387, %v7773
        %v7848 = vmul.f32 %v7402, %v7775
        %v7849 = vmul.f32 %v7417, %v7777
        %v7850 = vmul.f32 %v7432, %v7779
        %v7851 = vmul.f32 %v7447, %v7781
        %v7852 = vmul.f32 %v7462, %v7783
        %v7853 = vmul.f32 %v7477, %v7785
        %v7854 = vmul.f32 %v7492, %v7787
        %v7855 = vmul.f32 %v7507, %v7789
        %v7856 = vmul.f32 %v7522, %v7791
        %v7857 = vmul.f32 %v7537, %v7793
        %7890 = vrot.lane.b32.xlu0 %v7826, 32
        %v7891 = vpop.permute.xlu0 %7890
        %7892 = vrot.lane.b32.xlu0 %v7827, 32
        %v7893 = vpop.permute.xlu0 %7892
        %7894 = vrot.lane.b32.xlu0 %v7828, 32
        %v7895 = vpop.permute.xlu0 %7894
        %7896 = vrot.lane.b32.xlu0 %v7829, 32
        %v7897 = vpop.permute.xlu0 %7896
        %7898 = vrot.lane.b32.xlu0 %v7830, 32
        %v7899 = vpop.permute.xlu0 %7898
        %7900 = vrot.lane.b32.xlu0 %v7831, 32
        %v7901 = vpop.permute.xlu0 %7900
        %7902 = vrot.lane.b32.xlu0 %v7832, 32
        %v7903 = vpop.permute.xlu0 %7902
        %7904 = vrot.lane.b32.xlu0 %v7833, 32
        %v7905 = vpop.permute.xlu0 %7904
        %7906 = vrot.lane.b32.xlu0 %v7834, 32
        %v7907 = vpop.permute.xlu0 %7906
        %7908 = vrot.lane.b32.xlu0 %v7835, 32
        %v7909 = vpop.permute.xlu0 %7908
        %7910 = vrot.lane.b32.xlu0 %v7836, 32
        %v7911 = vpop.permute.xlu0 %7910
        %7912 = vrot.lane.b32.xlu0 %v7837, 32
        %v7913 = vpop.permute.xlu0 %7912
        %7914 = vrot.lane.b32.xlu0 %v7838, 32
        %v7915 = vpop.permute.xlu0 %7914
        %7916 = vrot.lane.b32.xlu0 %v7839, 32
        %v7917 = vpop.permute.xlu0 %7916
        %7918 = vrot.lane.b32.xlu0 %v7840, 32
        %v7919 = vpop.permute.xlu0 %7918
        %7920 = vrot.lane.b32.xlu0 %v7841, 32
        %v7921 = vpop.permute.xlu0 %7920
        %7922 = vrot.lane.b32.xlu0 %v7842, 32
        %v7923 = vpop.permute.xlu0 %7922
        %7924 = vrot.lane.b32.xlu0 %v7843, 32
        %v7925 = vpop.permute.xlu0 %7924
        %7926 = vrot.lane.b32.xlu0 %v7844, 32
        %v7927 = vpop.permute.xlu0 %7926
        %7928 = vrot.lane.b32.xlu0 %v7845, 32
        %v7929 = vpop.permute.xlu0 %7928
        %7930 = vrot.lane.b32.xlu0 %v7846, 32
        %v7931 = vpop.permute.xlu0 %7930
        %7932 = vrot.lane.b32.xlu0 %v7847, 32
        %v7933 = vpop.permute.xlu0 %7932
        %7934 = vrot.lane.b32.xlu0 %v7848, 32
        %v7935 = vpop.permute.xlu0 %7934
        %7936 = vrot.lane.b32.xlu0 %v7849, 32
        %v7937 = vpop.permute.xlu0 %7936
        %7938 = vrot.lane.b32.xlu0 %v7850, 32
        %v7939 = vpop.permute.xlu0 %7938
        %7940 = vrot.lane.b32.xlu0 %v7851, 32
        %v7941 = vpop.permute.xlu0 %7940
        %7942 = vrot.lane.b32.xlu0 %v7852, 32
        %v7943 = vpop.permute.xlu0 %7942
        %7944 = vrot.lane.b32.xlu0 %v7853, 32
        %v7945 = vpop.permute.xlu0 %7944
        %7946 = vrot.lane.b32.xlu0 %v7854, 32
        %v7947 = vpop.permute.xlu0 %7946
        %7948 = vrot.lane.b32.xlu0 %v7855, 32
        %v7949 = vpop.permute.xlu0 %7948
        %7950 = vrot.lane.b32.xlu0 %v7856, 32
        %v7951 = vpop.permute.xlu0 %7950
        %7952 = vrot.lane.b32.xlu0 %v7857, 32
        %v7953 = vpop.permute.xlu0 %7952
        %v7986 = vadd.f32 %v7666, %v7891
        %v7987 = vadd.f32 %v7667, %v7893
        %v7988 = vadd.f32 %v7668, %v7895
        %v7989 = vadd.f32 %v7669, %v7897
        %v7990 = vadd.f32 %v7670, %v7899
        %v7991 = vadd.f32 %v7671, %v7901
        %v7992 = vadd.f32 %v7672, %v7903
        %v7993 = vadd.f32 %v7673, %v7905
        %v7994 = vadd.f32 %v7674, %v7907
        %v7995 = vadd.f32 %v7675, %v7909
        %v7996 = vadd.f32 %v7676, %v7911
        %v7997 = vadd.f32 %v7677, %v7913
        %v7998 = vadd.f32 %v7678, %v7915
        %v7999 = vadd.f32 %v7679, %v7917
        %v8000 = vadd.f32 %v7680, %v7919
        %v8001 = vadd.f32 %v7681, %v7921
        %v8002 = vadd.f32 %v7682, %v7923
        %v8003 = vadd.f32 %v7683, %v7925
        %v8004 = vadd.f32 %v7684, %v7927
        %v8005 = vadd.f32 %v7685, %v7929
        %v8006 = vadd.f32 %v7686, %v7931
        %v8007 = vadd.f32 %v7687, %v7933
        %v8008 = vadd.f32 %v7688, %v7935
        %v8009 = vadd.f32 %v7689, %v7937
        %v8010 = vadd.f32 %v7690, %v7939
        %v8011 = vadd.f32 %v7691, %v7941
        %v8012 = vadd.f32 %v7692, %v7943
        %v8013 = vadd.f32 %v7693, %v7945
        %v8014 = vadd.f32 %v7694, %v7947
        %v8015 = vadd.f32 %v7695, %v7949
        %v8016 = vadd.f32 %v7696, %v7951
        %v8017 = vadd.f32 %v7697, %v7953
        %v8018 = vtanh.pop %v7986
        %v8019 = vtanh.pop %v7987
        %v8020 = vtanh.pop %v7988
        %v8021 = vtanh.pop %v7989
        %v8022 = vtanh.pop %v7990
        %v8023 = vtanh.pop %v7991
        %v8024 = vtanh.pop %v7992
        %v8025 = vtanh.pop %v7993
        %v8026 = vtanh.pop %v7994
        %v8027 = vtanh.pop %v7995
        %v8028 = vtanh.pop %v7996
        %v8029 = vtanh.pop %v7997
        %v8030 = vtanh.pop %v7998
        %v8031 = vtanh.pop %v7999
        %v8032 = vtanh.pop %v8000
        %v8033 = vtanh.pop %v8001
        %v8034 = vtanh.pop %v8002
        %v8035 = vtanh.pop %v8003
        %v8036 = vtanh.pop %v8004
        %v8037 = vtanh.pop %v8005
        %v8038 = vtanh.pop %v8006
        %v8039 = vtanh.pop %v8007
        %v8040 = vtanh.pop %v8008
        %v8041 = vtanh.pop %v8009
        %v8042 = vtanh.pop %v8010
        %v8043 = vtanh.pop %v8011
        %v8044 = vtanh.pop %v8012
        %v8045 = vtanh.pop %v8013
        %v8046 = vtanh.pop %v8014
        %v8047 = vtanh.pop %v8015
        %v8048 = vtanh.pop %v8016
        %v8049 = vtanh.pop %v8017
        %8082 = vrot.lane.b32.xlu0 %v8018, 32
        %v8083 = vpop.permute.xlu0 %8082
        %8084 = vrot.lane.b32.xlu0 %v8019, 32
        %v8085 = vpop.permute.xlu0 %8084
        %8086 = vrot.lane.b32.xlu0 %v8020, 32
        %v8087 = vpop.permute.xlu0 %8086
        %8088 = vrot.lane.b32.xlu0 %v8021, 32
        %v8089 = vpop.permute.xlu0 %8088
        %8090 = vrot.lane.b32.xlu0 %v8022, 32
        %v8091 = vpop.permute.xlu0 %8090
        %8092 = vrot.lane.b32.xlu0 %v8023, 32
        %v8093 = vpop.permute.xlu0 %8092
        %8094 = vrot.lane.b32.xlu0 %v8024, 32
        %v8095 = vpop.permute.xlu0 %8094
        %8096 = vrot.lane.b32.xlu0 %v8025, 32
        %v8097 = vpop.permute.xlu0 %8096
        %8098 = vrot.lane.b32.xlu0 %v8026, 32
        %v8099 = vpop.permute.xlu0 %8098
        %8100 = vrot.lane.b32.xlu0 %v8027, 32
        %v8101 = vpop.permute.xlu0 %8100
        %8102 = vrot.lane.b32.xlu0 %v8028, 32
        %v8103 = vpop.permute.xlu0 %8102
        %8104 = vrot.lane.b32.xlu0 %v8029, 32
        %v8105 = vpop.permute.xlu0 %8104
        %8106 = vrot.lane.b32.xlu0 %v8030, 32
        %v8107 = vpop.permute.xlu0 %8106
        %8108 = vrot.lane.b32.xlu0 %v8031, 32
        %v8109 = vpop.permute.xlu0 %8108
        %8110 = vrot.lane.b32.xlu0 %v8032, 32
        %v8111 = vpop.permute.xlu0 %8110
        %8112 = vrot.lane.b32.xlu0 %v8033, 32
        %v8113 = vpop.permute.xlu0 %8112
        %8114 = vrot.lane.b32.xlu0 %v8034, 32
        %v8115 = vpop.permute.xlu0 %8114
        %8116 = vrot.lane.b32.xlu0 %v8035, 32
        %v8117 = vpop.permute.xlu0 %8116
        %8118 = vrot.lane.b32.xlu0 %v8036, 32
        %v8119 = vpop.permute.xlu0 %8118
        %8120 = vrot.lane.b32.xlu0 %v8037, 32
        %v8121 = vpop.permute.xlu0 %8120
        %8122 = vrot.lane.b32.xlu0 %v8038, 32
        %v8123 = vpop.permute.xlu0 %8122
        %8124 = vrot.lane.b32.xlu0 %v8039, 32
        %v8125 = vpop.permute.xlu0 %8124
        %8126 = vrot.lane.b32.xlu0 %v8040, 32
        %v8127 = vpop.permute.xlu0 %8126
        %8128 = vrot.lane.b32.xlu0 %v8041, 32
        %v8129 = vpop.permute.xlu0 %8128
        %8130 = vrot.lane.b32.xlu0 %v8042, 32
        %v8131 = vpop.permute.xlu0 %8130
        %8132 = vrot.lane.b32.xlu0 %v8043, 32
        %v8133 = vpop.permute.xlu0 %8132
        %8134 = vrot.lane.b32.xlu0 %v8044, 32
        %v8135 = vpop.permute.xlu0 %8134
        %8136 = vrot.lane.b32.xlu0 %v8045, 32
        %v8137 = vpop.permute.xlu0 %8136
        %8138 = vrot.lane.b32.xlu0 %v8046, 32
        %v8139 = vpop.permute.xlu0 %8138
        %8140 = vrot.lane.b32.xlu0 %v8047, 32
        %v8141 = vpop.permute.xlu0 %8140
        %8142 = vrot.lane.b32.xlu0 %v8048, 32
        %v8143 = vpop.permute.xlu0 %8142
        %8144 = vrot.lane.b32.xlu0 %v8049, 32
        %v8145 = vpop.permute.xlu0 %8144
        %v8178 = vmul.f32 %v7072, %v8083
        %v8179 = vmul.f32 %v7087, %v8085
        %v8180 = vmul.f32 %v7102, %v8087
        %v8181 = vmul.f32 %v7117, %v8089
        %v8182 = vmul.f32 %v7132, %v8091
        %v8183 = vmul.f32 %v7147, %v8093
        %v8184 = vmul.f32 %v7162, %v8095
        %v8185 = vmul.f32 %v7177, %v8097
        %v8186 = vmul.f32 %v7192, %v8099
        %v8187 = vmul.f32 %v7207, %v8101
        %v8188 = vmul.f32 %v7222, %v8103
        %v8189 = vmul.f32 %v7237, %v8105
        %v8190 = vmul.f32 %v7252, %v8107
        %v8191 = vmul.f32 %v7267, %v8109
        %v8192 = vmul.f32 %v7282, %v8111
        %v8193 = vmul.f32 %v7297, %v8113
        %v8194 = vmul.f32 %v7312, %v8115
        %v8195 = vmul.f32 %v7327, %v8117
        %v8196 = vmul.f32 %v7342, %v8119
        %v8197 = vmul.f32 %v7357, %v8121
        %v8198 = vmul.f32 %v7372, %v8123
        %v8199 = vmul.f32 %v7387, %v8125
        %v8200 = vmul.f32 %v7402, %v8127
        %v8201 = vmul.f32 %v7417, %v8129
        %v8202 = vmul.f32 %v7432, %v8131
        %v8203 = vmul.f32 %v7447, %v8133
        %v8204 = vmul.f32 %v7462, %v8135
        %v8205 = vmul.f32 %v7477, %v8137
        %v8206 = vmul.f32 %v7492, %v8139
        %v8207 = vmul.f32 %v7507, %v8141
        %v8208 = vmul.f32 %v7522, %v8143
        %v8209 = vmul.f32 %v7537, %v8145
        %8242 = vrot.lane.b32.xlu0 %v7986, 64
        %v8243 = vpop.permute.xlu0 %8242
        %8244 = vrot.lane.b32.xlu0 %v7987, 64
        %v8245 = vpop.permute.xlu0 %8244
        %8246 = vrot.lane.b32.xlu0 %v7988, 64
        %v8247 = vpop.permute.xlu0 %8246
        %8248 = vrot.lane.b32.xlu0 %v7989, 64
        %v8249 = vpop.permute.xlu0 %8248
        %8250 = vrot.lane.b32.xlu0 %v7990, 64
        %v8251 = vpop.permute.xlu0 %8250
        %8252 = vrot.lane.b32.xlu0 %v7991, 64
        %v8253 = vpop.permute.xlu0 %8252
        %8254 = vrot.lane.b32.xlu0 %v7992, 64
        %v8255 = vpop.permute.xlu0 %8254
        %8256 = vrot.lane.b32.xlu0 %v7993, 64
        %v8257 = vpop.permute.xlu0 %8256
        %8258 = vrot.lane.b32.xlu0 %v7994, 64
        %v8259 = vpop.permute.xlu0 %8258
        %8260 = vrot.lane.b32.xlu0 %v7995, 64
        %v8261 = vpop.permute.xlu0 %8260
        %8262 = vrot.lane.b32.xlu0 %v7996, 64
        %v8263 = vpop.permute.xlu0 %8262
        %8264 = vrot.lane.b32.xlu0 %v7997, 64
        %v8265 = vpop.permute.xlu0 %8264
        %8266 = vrot.lane.b32.xlu0 %v7998, 64
        %v8267 = vpop.permute.xlu0 %8266
        %8268 = vrot.lane.b32.xlu0 %v7999, 64
        %v8269 = vpop.permute.xlu0 %8268
        %8270 = vrot.lane.b32.xlu0 %v8000, 64
        %v8271 = vpop.permute.xlu0 %8270
        %8272 = vrot.lane.b32.xlu0 %v8001, 64
        %v8273 = vpop.permute.xlu0 %8272
        %8274 = vrot.lane.b32.xlu0 %v8002, 64
        %v8275 = vpop.permute.xlu0 %8274
        %8276 = vrot.lane.b32.xlu0 %v8003, 64
        %v8277 = vpop.permute.xlu0 %8276
        %8278 = vrot.lane.b32.xlu0 %v8004, 64
        %v8279 = vpop.permute.xlu0 %8278
        %8280 = vrot.lane.b32.xlu0 %v8005, 64
        %v8281 = vpop.permute.xlu0 %8280
        %8282 = vrot.lane.b32.xlu0 %v8006, 64
        %v8283 = vpop.permute.xlu0 %8282
        %8284 = vrot.lane.b32.xlu0 %v8007, 64
        %v8285 = vpop.permute.xlu0 %8284
        %8286 = vrot.lane.b32.xlu0 %v8008, 64
        %v8287 = vpop.permute.xlu0 %8286
        %8288 = vrot.lane.b32.xlu0 %v8009, 64
        %v8289 = vpop.permute.xlu0 %8288
        %8290 = vrot.lane.b32.xlu0 %v8010, 64
        %v8291 = vpop.permute.xlu0 %8290
        %8292 = vrot.lane.b32.xlu0 %v8011, 64
        %v8293 = vpop.permute.xlu0 %8292
        %8294 = vrot.lane.b32.xlu0 %v8012, 64
        %v8295 = vpop.permute.xlu0 %8294
        %8296 = vrot.lane.b32.xlu0 %v8013, 64
        %v8297 = vpop.permute.xlu0 %8296
        %8298 = vrot.lane.b32.xlu0 %v8014, 64
        %v8299 = vpop.permute.xlu0 %8298
        %8300 = vrot.lane.b32.xlu0 %v8015, 64
        %v8301 = vpop.permute.xlu0 %8300
        %8302 = vrot.lane.b32.xlu0 %v8016, 64
        %v8303 = vpop.permute.xlu0 %8302
        %8304 = vrot.lane.b32.xlu0 %v8017, 64
        %v8305 = vpop.permute.xlu0 %8304
        %v8338 = vsel %vm4355, %v4260, %v3960
        %v8339 = vsel %vm4355, %v4262, %v3961
        %v8340 = vsel %vm4355, %v4264, %v3962
        %v8341 = vsel %vm4355, %v4266, %v3963
        %v8342 = vsel %vm4355, %v4268, %v3964
        %v8343 = vsel %vm4355, %v4270, %v3965
        %v8344 = vsel %vm4355, %v4272, %v3966
        %v8345 = vsel %vm4355, %v4274, %v3967
        %v8346 = vsel %vm4355, %v4276, %v3968
        %v8347 = vsel %vm4355, %v4278, %v3969
        %v8348 = vsel %vm4355, %v4280, %v3970
        %v8349 = vsel %vm4355, %v4282, %v3971
        %v8350 = vsel %vm4355, %v4284, %v3972
        %v8351 = vsel %vm4355, %v4286, %v3973
        %v8352 = vsel %vm4355, %v4288, %v3974
        %v8353 = vsel %vm4355, %v4290, %v3975
        %v8354 = vsel %vm4355, %v4292, %v3976
        %v8355 = vsel %vm4355, %v4294, %v3977
        %v8356 = vsel %vm4355, %v4296, %v3978
        %v8357 = vsel %vm4355, %v4298, %v3979
        %v8358 = vsel %vm4355, %v4300, %v3980
        %v8359 = vsel %vm4355, %v4302, %v3981
        %v8360 = vsel %vm4355, %v4304, %v3982
        %v8361 = vsel %vm4355, %v4306, %v3983
        %v8362 = vsel %vm4355, %v4308, %v3984
        %v8363 = vsel %vm4355, %v4310, %v3985
        %v8364 = vsel %vm4355, %v4312, %v3986
        %v8365 = vsel %vm4355, %v4314, %v3987
        %v8366 = vsel %vm4355, %v4316, %v3988
        %v8367 = vsel %vm4355, %v4318, %v3989
        %v8368 = vsel %vm4355, %v4320, %v3990
        %v8369 = vsel %vm4355, %v4322, %v3991
        %v8370 = vsel %vm4184, %v8338, %v8178
        %v8371 = vsel %vm4184, %v8339, %v8179
        %v8372 = vsel %vm4184, %v8340, %v8180
        %v8373 = vsel %vm4184, %v8341, %v8181
        %v8374 = vsel %vm4184, %v8342, %v8182
        %v8375 = vsel %vm4184, %v8343, %v8183
        %v8376 = vsel %vm4184, %v8344, %v8184
        %v8377 = vsel %vm4184, %v8345, %v8185
        %v8378 = vsel %vm4184, %v8346, %v8186
        %v8379 = vsel %vm4184, %v8347, %v8187
        %v8380 = vsel %vm4184, %v8348, %v8188
        %v8381 = vsel %vm4184, %v8349, %v8189
        %v8382 = vsel %vm4184, %v8350, %v8190
        %v8383 = vsel %vm4184, %v8351, %v8191
        %v8384 = vsel %vm4184, %v8352, %v8192
        %v8385 = vsel %vm4184, %v8353, %v8193
        %v8386 = vsel %vm4184, %v8354, %v8194
        %v8387 = vsel %vm4184, %v8355, %v8195
        %v8388 = vsel %vm4184, %v8356, %v8196
        %v8389 = vsel %vm4184, %v8357, %v8197
        %v8390 = vsel %vm4184, %v8358, %v8198
        %v8391 = vsel %vm4184, %v8359, %v8199
        %v8392 = vsel %vm4184, %v8360, %v8200
        %v8393 = vsel %vm4184, %v8361, %v8201
        %v8394 = vsel %vm4184, %v8362, %v8202
        %v8395 = vsel %vm4184, %v8363, %v8203
        %v8396 = vsel %vm4184, %v8364, %v8204
        %v8397 = vsel %vm4184, %v8365, %v8205
        %v8398 = vsel %vm4184, %v8366, %v8206
        %v8399 = vsel %vm4184, %v8367, %v8207
        %v8400 = vsel %vm4184, %v8368, %v8208
        %v8401 = vsel %vm4184, %v8369, %v8209
        %v8402 = vsel %vm413, %v8370, %v8243
        %v8403 = vsel %vm413, %v8371, %v8245
        %v8404 = vsel %vm413, %v8372, %v8247
        %v8405 = vsel %vm413, %v8373, %v8249
        %v8406 = vsel %vm413, %v8374, %v8251
        %v8407 = vsel %vm413, %v8375, %v8253
        %v8408 = vsel %vm413, %v8376, %v8255
        %v8409 = vsel %vm413, %v8377, %v8257
        %v8410 = vsel %vm413, %v8378, %v8259
        %v8411 = vsel %vm413, %v8379, %v8261
        %v8412 = vsel %vm413, %v8380, %v8263
        %v8413 = vsel %vm413, %v8381, %v8265
        %v8414 = vsel %vm413, %v8382, %v8267
        %v8415 = vsel %vm413, %v8383, %v8269
        %v8416 = vsel %vm413, %v8384, %v8271
        %v8417 = vsel %vm413, %v8385, %v8273
        %v8418 = vsel %vm413, %v8386, %v8275
        %v8419 = vsel %vm413, %v8387, %v8277
        %v8420 = vsel %vm413, %v8388, %v8279
        %v8421 = vsel %vm413, %v8389, %v8281
        %v8422 = vsel %vm413, %v8390, %v8283
        %v8423 = vsel %vm413, %v8391, %v8285
        %v8424 = vsel %vm413, %v8392, %v8287
        %v8425 = vsel %vm413, %v8393, %v8289
        %v8426 = vsel %vm413, %v8394, %v8291
        %v8427 = vsel %vm413, %v8395, %v8293
        %v8428 = vsel %vm413, %v8396, %v8295
        %v8429 = vsel %vm413, %v8397, %v8297
        %v8430 = vsel %vm413, %v8398, %v8299
        %v8431 = vsel %vm413, %v8399, %v8301
        %v8432 = vsel %vm413, %v8400, %v8303
        %v8433 = vsel %vm413, %v8401, %v8305
        %8434 = vst [vmem:[%s286] sm:$0xff] %v8402
        %8435 = vst [vmem:[%s286 + $0x8] sm:$0xff] %v8403
        %8436 = vst [vmem:[%s286 + $0x10] sm:$0xff] %v8404
        %8437 = vst [vmem:[%s286 + $0x18] sm:$0xff] %v8405
        %8438 = vst [vmem:[%s286 + $0x20] sm:$0xff] %v8406
        %8439 = vst [vmem:[%s286 + $0x28] sm:$0xff] %v8407
        %8440 = vst [vmem:[%s286 + $0x30] sm:$0xff] %v8408
        %8441 = vst [vmem:[%s286 + $0x38] sm:$0xff] %v8409
        %8442 = vst [vmem:[%s286 + $0x40] sm:$0xff] %v8410
        %8443 = vst [vmem:[%s286 + $0x48] sm:$0xff] %v8411
        %8444 = vst [vmem:[%s286 + $0x50] sm:$0xff] %v8412
        %8445 = vst [vmem:[%s286 + $0x58] sm:$0xff] %v8413
        %8446 = vst [vmem:[%s286 + $0x60] sm:$0xff] %v8414
        %8447 = vst [vmem:[%s286 + $0x68] sm:$0xff] %v8415
        %8448 = vst [vmem:[%s286 + $0x70] sm:$0xff] %v8416
        %8449 = vst [vmem:[%s286 + $0x78] sm:$0xff] %v8417
        %8450 = vst [vmem:[%s286 + $0x80] sm:$0xff] %v8418
        %8451 = vst [vmem:[%s286 + $0x88] sm:$0xff] %v8419
        %8452 = vst [vmem:[%s286 + $0x90] sm:$0xff] %v8420
        %8453 = vst [vmem:[%s286 + $0x98] sm:$0xff] %v8421
        %8454 = vst [vmem:[%s286 + $0xa0] sm:$0xff] %v8422
        %8455 = vst [vmem:[%s286 + $0xa8] sm:$0xff] %v8423
        %8456 = vst [vmem:[%s286 + $0xb0] sm:$0xff] %v8424
        %8457 = vst [vmem:[%s286 + $0xb8] sm:$0xff] %v8425
        %8458 = vst [vmem:[%s286 + $0xc0] sm:$0xff] %v8426
        %8459 = vst [vmem:[%s286 + $0xc8] sm:$0xff] %v8427
        %8460 = vst [vmem:[%s286 + $0xd0] sm:$0xff] %v8428
        %8461 = vst [vmem:[%s286 + $0xd8] sm:$0xff] %v8429
        %8462 = vst [vmem:[%s286 + $0xe0] sm:$0xff] %v8430
        %8463 = vst [vmem:[%s286 + $0xe8] sm:$0xff] %v8431
        %8464 = vst [vmem:[%s286 + $0xf0] sm:$0xff] %v8432
        %8465 = vst [vmem:[%s286 + $0xf8] sm:$0xff] %v8433
        %s8466 = sand.u32 %s167, 1
        %s8467 = scalar_lea.sflag [#allocation5], %s8466
        %s8468 = sand.u32 %s167, 1
        %s8469 = smul.addr %s8468, 256
        %s8470 = scalar_lea.vmem [#allocation6], %s8469
        // Predicated region
        $region49: #{tpu_custom_call.1} parent=43 // pred_check
          %p8471 = pneg %p177
        $region50: #{tpu_custom_call.1} parent=43 // pred_check_branch
          %8473 = sbr.rel (%p8471) target = $region52
        $region51: #{tpu_custom_call.1} parent=43 // pred_region
          %8475 = vsyncadd %s8467, 0
          %s8476 = smul.addr %s23, 32
          %s8477 = smul.addr %s8476, 8
          %s8478 = scalar_lea.hbm %s6, %s8477
          %s8479 = sshll.u32 %s8470, 4
          %s8480 = int_to_ptr.vmem [resolvable:$true] %s8479
          %s8481 = sshll.u32 %s8478, 4
          %s8482 = int_to_ptr.hbm [resolvable:$true] %s8481
          %8487 = dma.vmem_to_hbm [thread:$0]  %s8480, 4096, %s8482, %s8467, 128, 128, 8
        $region52: #{tpu_custom_call.1} parent=43 // pred_fallthru
          _
      $region44: #{tpu_custom_call.1} parent=5 // pred_fallthru
        _
      %p8488 = scmp.le.s32.totalorder 2, %s18
      // Predicated region
      $region53: #{tpu_custom_call.1} parent=5 // pred_check
        %p8489 = pneg %p8488
      $region54: #{tpu_custom_call.1} parent=5 // pred_check_branch
        %8491 = sbr.rel (%p8489) target = $region56
      $region55: #{tpu_custom_call.1} parent=5 // pred_region
        %s8492 = ssub.s32 %s18, 2
        // Predicated region
        $region57: #{tpu_custom_call.1} parent=55 // pred_check
          %p8493 = pneg %p183
        $region58: #{tpu_custom_call.1} parent=55 // pred_check_branch
          %8495 = sbr.rel (%p8493) target = $region60
        $region59: #{tpu_custom_call.1} parent=55 // pred_region
          %s8496 = sand.u32 %s168, 1
          %s8497 = scalar_lea.sflag [#allocation5], %s8496
          %s8498 = sand.u32 %s168, 1
          %s8499 = smul.addr %s8498, 256
          %s8500 = scalar_lea.vmem [#allocation6], %s8499
          %8502 = dma.done %s8497, 4096
        $region60: #{tpu_custom_call.1} parent=55 // pred_fallthru
          _
      $region56: #{tpu_custom_call.1} parent=5 // pred_fallthru
        _
    $region6: #{tpu_custom_call.1} parent=1 // loop_footer
      %s22 = sadd.s32 1, %s18
    $region7: #{tpu_custom_call.1} parent=1 // loop_footer_branch
      %17 = sbr.rel target = $region3
    $region8: #{tpu_custom_call.1} parent=1 // loop_exit
      _
    %8503 = vsyncpa [#allocation4], 1
    %s8504 = scalar_lea.sflag [#allocation4], 1
    %8505 = vsyncpa %s8504, 1
    %8506 = vsyncpa [#allocation5], 1
    %s8507 = scalar_lea.sflag [#allocation5], 1
    %8508 = vsyncpa %s8507, 1

</llo_original>
